<compile_context>
chip_gen: v7x
topology: tpu7x:2x2x1
jax: 0.10.0
libtpu: 0.0.40
codegen_flags: <defaults>
</compile_context>

<pallas_src>
import jax
import jax.numpy as jnp
from jax import lax
from jax.experimental import pallas as pl
from jax.experimental.pallas import tpu as pltpu

INNN = 10              # per-slot input features
DIM = 96               # Resblock hidden dim
HID = 96               # block() hidden dim
HID2 = int(HID * 1.5)  # 144
N_SUB = 4              # blocks b..e inside each Resblock
N_SLOT = 4             # slots per Dora
N_DORA = 2
N_RES = N_SLOT * N_DORA  # 8 independent Resblocks total
EPS = 1e-5
OUT_LANES = 128        # lane-dense output width

KERNEL_PARAM_ORDER = [
    "wa", "ba", "ga", "bta",
    "w1", "b1", "g1", "bt1",
    "w2", "b2", "g2", "bt2",
    "w3", "b3", "g3", "bt3",
    "wm1", "bm1", "wm2", "bm2",
    "wd1", "bd1", "wd2t", "bd2",
]


# ----------------------------- Pallas kernel ------------------------------ #

def _ln(h, g, b):
    """LayerNorm over the last axis (biased variance, eps=1e-5), affine g/b.

    One-pass variance (E[x^2] - mu^2) so both cross-lane reductions are
    independent and can be issued together on the XLU.
    """
    inv_n = 1.0 / h.shape[-1]
    mu = jnp.sum(h, axis=-1, keepdims=True) * inv_n
    ex2 = jnp.sum(h * h, axis=-1, keepdims=True) * inv_n
    var = jnp.maximum(ex2 - mu * mu, 0.0)
    return (h - mu) * lax.rsqrt(var + EPS) * g + b


def doranet_kernel(x_ref,
                   wa, ba, ga, bta,
                   w1, b1, g1, bt1,
                   w2, b2, g2, bt2,
                   w3, b3, g3, bt3,
                   wm1, bm1, wm2, bm2,
                   wd1, bd1, wd2t, bd2,
                   o_ref):
    f32 = jnp.float32
    r = pl.program_id(0)           # slot index 0..3
    x = x_ref[r]                   # [B, INNN]  (input slab is VMEM-resident)

    def resblock(rr):
        # mlpa: Linear(innn, dim) -> LayerNorm -> ReLU
        h = jnp.dot(x, wa[rr], preferred_element_type=f32) + ba[rr]
        h = jnp.maximum(_ln(h, ga[rr], bta[rr]), 0.0)

        # mlpb..mlpe: residual MLP blocks
        for i in range(N_SUB):
            s = rr * N_SUB + i
            t = jnp.dot(h, w1[s], preferred_element_type=f32) + b1[s]
            t = jnp.maximum(_ln(t, g1[s], bt1[s]), 0.0)
            t = jnp.dot(t, w2[s], preferred_element_type=f32) + b2[s]
            t = jnp.maximum(_ln(t, g2[s], bt2[s]), 0.0)
            t = jnp.dot(t, w3[s], preferred_element_type=f32) + b3[s]
            t = _ln(t, g3[s], bt3[s])
            h = jnp.maximum(h + t, 0.0)        # relu(x + mlp(x))

        # midres: Linear(dim, dim//2) -> ReLU -> Linear(dim//2, dim)
        m = jnp.maximum(
            jnp.dot(h, wm1[rr], preferred_element_type=f32) + bm1[rr], 0.0)
        m = jnp.dot(m, wm2[rr], preferred_element_type=f32) + bm2[rr]
        h = jnp.maximum(h + m, 0.0)

        # mid: Linear(dim, dim) -> ReLU -> Linear(dim, 1)
        d = jnp.maximum(
            jnp.dot(h, wd1[rr], preferred_element_type=f32) + bd1[rr], 0.0)
        # final N=1 matmul as VPU multiply + lane reduction (no MXU round-trip)
        return jnp.sum(d * wd2t[rr], axis=-1, keepdims=True) + bd2[rr]  # [B,1]

    o_a = resblock(r)              # Dora 1, slot r
    o_b = resblock(r + N_SLOT)     # Dora 2, slot r  (independent chain)
    o_avg = (o_a + o_b) * 0.5      # [B, 1]

    # Lane-dense store: full [B, 128] block, result in column 0.
    col = lax.broadcasted_iota(jnp.int32, o_ref.shape[1:], 1)   # [B, OUT_LANES]
    o_ref[0] = jnp.where(col == 0, o_avg, 0.0)


# ------------------------------- wrapper ----------------------------------- #

def _resident_spec(arr):
    """Full-extent block, constant index map -> array stays VMEM-resident."""
    blk = tuple(arr.shape)
    zeros = (0,) * arr.ndim
    return pl.BlockSpec(blk, lambda r, _z=zeros: _z)


@jax.jit
def doranet_forward(finalpos, params):
    """finalpos: [B, 4, INNN] float32 -> [B, 4] float32 (avg of the two Doras)."""
    B = finalpos.shape[0]
    xT = jnp.transpose(finalpos, (1, 0, 2))          # [4, B, INNN]

    # Flatten the per-subblock param stacks so the kernel always indexes a
    # single (possibly dynamic) leading axis; transpose wd2 for the VPU reduce.
    kp = dict(params)
    for k in ("w1", "b1", "g1", "bt1",
              "w2", "b2", "g2", "bt2",
              "w3", "b3", "g3", "bt3"):
        kp[k] = params[k].reshape((N_RES * N_SUB,) + params[k].shape[2:])
    kp["wd2t"] = jnp.transpose(params["wd2"], (0, 2, 1))   # [N_RES, 1, DIM]
    del kp["wd2"]

    args = [xT] + [kp[k] for k in KERNEL_PARAM_ORDER]
    in_specs = [_resident_spec(a) for a in args]

    out = pl.pallas_call(
        doranet_kernel,
        out_shape=jax.ShapeDtypeStruct((N_SLOT, B, OUT_LANES), jnp.float32),
        grid_spec=pltpu.PrefetchScalarGridSpec(
            num_scalar_prefetch=0,
            grid=(N_SLOT,),
            in_specs=in_specs,
            out_specs=pl.BlockSpec((1, B, OUT_LANES), lambda r: (r, 0, 0)),
        ),
        compiler_params=pltpu.CompilerParams(
            dimension_semantics=("parallel",),        # disjoint outputs per step
            vmem_limit_bytes=40 * 1024 * 1024),
    )(*args)

    return out[:, :, 0].T                             # [B, 4]


# ------------------------- deterministic parameters ------------------------ #

def _init_resblock(key):
    keys = jax.random.split(key, 64)
    idx = [0]

    def nxt():
        k = keys[idx[0]]
        idx[0] += 1
        return k

    def lin(din, dout):
        s = 1.0 / (din ** 0.5)
        w = jax.random.uniform(nxt(), (din, dout), jnp.float32, -s, s)
        b = jax.random.uniform(nxt(), (1, dout), jnp.float32, -s, s)
        return w, b

    def lnp(d):
        g = 1.0 + 0.05 * jax.random.normal(nxt(), (1, d), jnp.float32)
        bt = 0.05 * jax.random.normal(nxt(), (1, d), jnp.float32)
        return g, bt

    p = {}
    p["wa"], p["ba"] = lin(INNN, DIM)
    p["ga"], p["bta"] = lnp(DIM)

    w1, b1, g1, bt1 = [], [], [], []
    w2, b2, g2, bt2 = [], [], [], []
    w3, b3, g3, bt3 = [], [], [], []
    for _ in range(N_SUB):
        w, b = lin(DIM, HID);   g, bt = lnp(HID)
        w1.append(w); b1.append(b); g1.append(g); bt1.append(bt)
        w, b = lin(HID, HID2);  g, bt = lnp(HID2)
        w2.append(w); b2.append(b); g2.append(g); bt2.append(bt)
        w, b = lin(HID2, DIM);  g, bt = lnp(DIM)
        w3.append(w); b3.append(b); g3.append(g); bt3.append(bt)
    for name, lst in (("w1", w1), ("b1", b1), ("g1", g1), ("bt1", bt1),
                      ("w2", w2), ("b2", b2), ("g2", g2), ("bt2", bt2),
                      ("w3", w3), ("b3", b3), ("g3", g3), ("bt3", bt3)):
        p[name] = jnp.stack(lst, axis=0)

    p["wm1"], p["bm1"] = lin(DIM, DIM // 2)
    p["wm2"], p["bm2"] = lin(DIM // 2, DIM)
    p["wd1"], p["bd1"] = lin(DIM, DIM)
    p["wd2"], p["bd2"] = lin(DIM, 1)
    return p


def init_params(key):
    """Stack 8 independent Resblocks (2 Doras x 4 slots) along a leading axis."""
    rkeys = jax.random.split(key, N_RES)
    plist = [_init_resblock(k) for k in rkeys]
    return jax.tree_util.tree_map(lambda *xs: jnp.stack(xs, axis=0), *plist)


# ----------------------------- pure-JAX reference -------------------------- #

def _resblock_ref(x, p, r):
    def ln(h, g, b):
        mu = h.mean(-1, keepdims=True)
        var = jnp.square(h - mu).mean(-1, keepdims=True)
        return (h - mu) * lax.rsqrt(var + EPS) * g + b

    h = jnp.maximum(ln(x @ p["wa"][r] + p["ba"][r], p["ga"][r], p["bta"][r]), 0.0)
    for i in range(N_SUB):
        t = jnp.maximum(ln(h @ p["w1"][r, i] + p["b1"][r, i],
                           p["g1"][r, i], p["bt1"][r, i]), 0.0)
        t = jnp.maximum(ln(t @ p["w2"][r, i] + p["b2"][r, i],
                           p["g2"][r, i], p["bt2"][r, i]), 0.0)
        t = ln(t @ p["w3"][r, i] + p["b3"][r, i], p["g3"][r, i], p["bt3"][r, i])
        h = jnp.maximum(h + t, 0.0)
    m = jnp.maximum(h @ p["wm1"][r] + p["bm1"][r], 0.0) @ p["wm2"][r] + p["bm2"][r]
    h = jnp.maximum(h + m, 0.0)
    d = jnp.maximum(h @ p["wd1"][r] + p["bd1"][r], 0.0)
    return d @ p["wd2"][r] + p["bd2"][r]


def doranet_ref(finalpos, params):
    outs = [_resblock_ref(finalpos[:, r % N_SLOT, :], params, r)
            for r in range(N_RES)]
    o = jnp.stack(outs, axis=0)[..., 0]                           # [8, B]
    return (o[:N_SLOT].T + o[N_SLOT:].T) * 0.5                    # [B, 4]


# ----------------------------------- main ----------------------------------- #

if __name__ == "__main__":
    key = jax.random.PRNGKey(0)
    kx, kp = jax.random.split(key)

    B = 8
    finalpos = jax.random.normal(kx, (B, 4, INNN), jnp.float32)
    params = init_params(kp)

    out = jax.block_until_ready(doranet_forward(finalpos, params))
    ref = doranet_ref(finalpos, params)

    assert out.shape == (B, 4), out.shape
    max_err = float(jnp.max(jnp.abs(out - ref)))
    assert max_err < 1e-3, f"max abs error too large: {max_err}"

    print("KERNEL_OK")
</pallas_src>

<mosaic_0001>
module attributes {stable_mosaic.version = 11 : i64} {
  func.func @doranet_kernel(%arg0: i32, %arg1: memref<4x8x10xf32, #tpu.memory_space<vmem>>, %arg2: memref<8x10x96xf32, #tpu.memory_space<vmem>>, %arg3: memref<8x1x96xf32, #tpu.memory_space<vmem>>, %arg4: memref<8x1x96xf32, #tpu.memory_space<vmem>>, %arg5: memref<8x1x96xf32, #tpu.memory_space<vmem>>, %arg6: memref<32x96x96xf32, #tpu.memory_space<vmem>>, %arg7: memref<32x1x96xf32, #tpu.memory_space<vmem>>, %arg8: memref<32x1x96xf32, #tpu.memory_space<vmem>>, %arg9: memref<32x1x96xf32, #tpu.memory_space<vmem>>, %arg10: memref<32x96x144xf32, #tpu.memory_space<vmem>>, %arg11: memref<32x1x144xf32, #tpu.memory_space<vmem>>, %arg12: memref<32x1x144xf32, #tpu.memory_space<vmem>>, %arg13: memref<32x1x144xf32, #tpu.memory_space<vmem>>, %arg14: memref<32x144x96xf32, #tpu.memory_space<vmem>>, %arg15: memref<32x1x96xf32, #tpu.memory_space<vmem>>, %arg16: memref<32x1x96xf32, #tpu.memory_space<vmem>>, %arg17: memref<32x1x96xf32, #tpu.memory_space<vmem>>, %arg18: memref<8x96x48xf32, #tpu.memory_space<vmem>>, %arg19: memref<8x1x48xf32, #tpu.memory_space<vmem>>, %arg20: memref<8x48x96xf32, #tpu.memory_space<vmem>>, %arg21: memref<8x1x96xf32, #tpu.memory_space<vmem>>, %arg22: memref<8x96x96xf32, #tpu.memory_space<vmem>>, %arg23: memref<8x1x96xf32, #tpu.memory_space<vmem>>, %arg24: memref<8x1x96xf32, #tpu.memory_space<vmem>>, %arg25: memref<8x1x1xf32, #tpu.memory_space<vmem>>, %arg26: memref<1x8x128xf32, #tpu.memory_space<vmem>>) attributes {dimension_semantics = [#tpu.dimension_semantics<parallel>], iteration_bounds = array<i64: 4>, scalar_prefetch = 0 : i64, scratch_operands = 0 : i64, tpu.core_type = #tpu.core_type<tc>, window_params = [{pipeline_mode = #tpu.pipeline_mode<synchronous>, transform_indices = @transform_0, window_bounds = array<i64: 4, 8, 10>}, {pipeline_mode = #tpu.pipeline_mode<synchronous>, transform_indices = @transform_1, window_bounds = array<i64: 8, 10, 96>}, {pipeline_mode = #tpu.pipeline_mode<synchronous>, transform_indices = @transform_2, window_bounds = array<i64: 8, 1, 96>}, {pipeline_mode = #tpu.pipeline_mode<synchronous>, transform_indices = @transform_3, window_bounds = array<i64: 8, 1, 96>}, {pipeline_mode = #tpu.pipeline_mode<synchronous>, transform_indices = @transform_4, window_bounds = array<i64: 8, 1, 96>}, {pipeline_mode = #tpu.pipeline_mode<synchronous>, transform_indices = @transform_5, window_bounds = array<i64: 32, 96, 96>}, {pipeline_mode = #tpu.pipeline_mode<synchronous>, transform_indices = @transform_6, window_bounds = array<i64: 32, 1, 96>}, {pipeline_mode = #tpu.pipeline_mode<synchronous>, transform_indices = @transform_7, window_bounds = array<i64: 32, 1, 96>}, {pipeline_mode = #tpu.pipeline_mode<synchronous>, transform_indices = @transform_8, window_bounds = array<i64: 32, 1, 96>}, {pipeline_mode = #tpu.pipeline_mode<synchronous>, transform_indices = @transform_9, window_bounds = array<i64: 32, 96, 144>}, {pipeline_mode = #tpu.pipeline_mode<synchronous>, transform_indices = @transform_10, window_bounds = array<i64: 32, 1, 144>}, {pipeline_mode = #tpu.pipeline_mode<synchronous>, transform_indices = @transform_11, window_bounds = array<i64: 32, 1, 144>}, {pipeline_mode = #tpu.pipeline_mode<synchronous>, transform_indices = @transform_12, window_bounds = array<i64: 32, 1, 144>}, {pipeline_mode = #tpu.pipeline_mode<synchronous>, transform_indices = @transform_13, window_bounds = array<i64: 32, 144, 96>}, {pipeline_mode = #tpu.pipeline_mode<synchronous>, transform_indices = @transform_14, window_bounds = array<i64: 32, 1, 96>}, {pipeline_mode = #tpu.pipeline_mode<synchronous>, transform_indices = @transform_15, window_bounds = array<i64: 32, 1, 96>}, {pipeline_mode = #tpu.pipeline_mode<synchronous>, transform_indices = @transform_16, window_bounds = array<i64: 32, 1, 96>}, {pipeline_mode = #tpu.pipeline_mode<synchronous>, transform_indices = @transform_17, window_bounds = array<i64: 8, 96, 48>}, {pipeline_mode = #tpu.pipeline_mode<synchronous>, transform_indices = @transform_18, window_bounds = array<i64: 8, 1, 48>}, {pipeline_mode = #tpu.pipeline_mode<synchronous>, transform_indices = @transform_19, window_bounds = array<i64: 8, 48, 96>}, {pipeline_mode = #tpu.pipeline_mode<synchronous>, transform_indices = @transform_20, window_bounds = array<i64: 8, 1, 96>}, {pipeline_mode = #tpu.pipeline_mode<synchronous>, transform_indices = @transform_21, window_bounds = array<i64: 8, 96, 96>}, {pipeline_mode = #tpu.pipeline_mode<synchronous>, transform_indices = @transform_22, window_bounds = array<i64: 8, 1, 96>}, {pipeline_mode = #tpu.pipeline_mode<synchronous>, transform_indices = @transform_23, window_bounds = array<i64: 8, 1, 96>}, {pipeline_mode = #tpu.pipeline_mode<synchronous>, transform_indices = @transform_24, window_bounds = array<i64: 8, 1, 1>}, {transform_indices = @transform_25, window_bounds = array<i64: 1, 8, 128>}]} {
    %0 = arith.index_cast %arg0 : i32 to index
    %c0 = arith.constant 0 : index
    %c0_0 = arith.constant 0 : index
    %1 = vector.load %arg1[%0, %c0, %c0_0] : memref<4x8x10xf32, #tpu.memory_space<vmem>>, vector<1x8x10xf32>
    %2 = vector.shape_cast %1 : vector<1x8x10xf32> to vector<8x10xf32>
    %3 = arith.index_cast %arg0 : i32 to index
    %c0_1 = arith.constant 0 : index
    %c0_2 = arith.constant 0 : index
    %4 = vector.load %arg2[%3, %c0_1, %c0_2] : memref<8x10x96xf32, #tpu.memory_space<vmem>>, vector<1x10x96xf32>
    %5 = vector.shape_cast %4 : vector<1x10x96xf32> to vector<10x96xf32>
    %cst = arith.constant dense<0.000000e+00> : vector<8x96xf32>
    %6 = tpu.matmul %2, %5, %cst {dimension_numbers = #tpu.dot_dimension_numbers<[1], [0], [0], [1], [0, 0, 1, 1], [], []>} : vector<8x10xf32>, vector<10x96xf32>, vector<8x96xf32> -> vector<8x96xf32>
    %7 = arith.index_cast %arg0 : i32 to index
    %c0_3 = arith.constant 0 : index
    %c0_4 = arith.constant 0 : index
    %8 = vector.load %arg3[%7, %c0_3, %c0_4] : memref<8x1x96xf32, #tpu.memory_space<vmem>>, vector<1x1x96xf32>
    %9 = vector.shape_cast %8 : vector<1x1x96xf32> to vector<1x96xf32>
    %10 = vector.broadcast %9 : vector<1x96xf32> to vector<8x96xf32>
    %11 = arith.addf %6, %10 : vector<8x96xf32>
    %12 = arith.index_cast %arg0 : i32 to index
    %c0_5 = arith.constant 0 : index
    %c0_6 = arith.constant 0 : index
    %13 = vector.load %arg4[%12, %c0_5, %c0_6] : memref<8x1x96xf32, #tpu.memory_space<vmem>>, vector<1x1x96xf32>
    %14 = vector.shape_cast %13 : vector<1x1x96xf32> to vector<1x96xf32>
    %15 = arith.index_cast %arg0 : i32 to index
    %c0_7 = arith.constant 0 : index
    %c0_8 = arith.constant 0 : index
    %16 = vector.load %arg5[%15, %c0_7, %c0_8] : memref<8x1x96xf32, #tpu.memory_space<vmem>>, vector<1x1x96xf32>
    %17 = vector.shape_cast %16 : vector<1x1x96xf32> to vector<1x96xf32>
    %cst_9 = arith.constant dense<0.000000e+00> : vector<8xf32>
    %18 = vector.multi_reduction <add>, %11, %cst_9 [1] : vector<8x96xf32> to vector<8xf32>
    %19 = vector.shape_cast %18 : vector<8xf32> to vector<8x1xf32>
    %cst_10 = arith.constant 0.010416667 : f32
    %20 = vector.broadcast %cst_10 : f32 to vector<8x1xf32>
    %21 = arith.mulf %19, %20 : vector<8x1xf32>
    %22 = arith.mulf %11, %11 : vector<8x96xf32>
    %cst_11 = arith.constant dense<0.000000e+00> : vector<8xf32>
    %23 = vector.multi_reduction <add>, %22, %cst_11 [1] : vector<8x96xf32> to vector<8xf32>
    %24 = vector.shape_cast %23 : vector<8xf32> to vector<8x1xf32>
    %cst_12 = arith.constant 0.010416667 : f32
    %25 = vector.broadcast %cst_12 : f32 to vector<8x1xf32>
    %26 = arith.mulf %24, %25 : vector<8x1xf32>
    %27 = arith.mulf %21, %21 : vector<8x1xf32>
    %28 = arith.subf %26, %27 : vector<8x1xf32>
    %cst_13 = arith.constant 0.000000e+00 : f32
    %29 = vector.broadcast %cst_13 : f32 to vector<8x1xf32>
    %30 = arith.maximumf %28, %29 : vector<8x1xf32>
    %31 = vector.broadcast %21 : vector<8x1xf32> to vector<8x96xf32>
    %32 = arith.subf %11, %31 : vector<8x96xf32>
    %cst_14 = arith.constant 9.99999974E-6 : f32
    %33 = vector.broadcast %cst_14 : f32 to vector<8x1xf32>
    %34 = arith.addf %30, %33 : vector<8x1xf32>
    %35 = math.rsqrt %34 : vector<8x1xf32>
    %36 = vector.broadcast %35 : vector<8x1xf32> to vector<8x96xf32>
    %37 = arith.mulf %32, %36 : vector<8x96xf32>
    %38 = vector.broadcast %14 : vector<1x96xf32> to vector<8x96xf32>
    %39 = arith.mulf %37, %38 : vector<8x96xf32>
    %40 = vector.broadcast %17 : vector<1x96xf32> to vector<8x96xf32>
    %41 = arith.addf %39, %40 : vector<8x96xf32>
    %cst_15 = arith.constant 0.000000e+00 : f32
    %42 = vector.broadcast %cst_15 : f32 to vector<8x96xf32>
    %43 = arith.maximumf %41, %42 : vector<8x96xf32>
    %c4_i32 = arith.constant 4 : i32
    %44 = arith.muli %arg0, %c4_i32 : i32
    %c0_i32 = arith.constant 0 : i32
    %45 = arith.addi %44, %c0_i32 : i32
    %46 = arith.index_cast %45 : i32 to index
    %c0_16 = arith.constant 0 : index
    %c0_17 = arith.constant 0 : index
    %47 = vector.load %arg6[%46, %c0_16, %c0_17] : memref<32x96x96xf32, #tpu.memory_space<vmem>>, vector<1x96x96xf32>
    %48 = vector.shape_cast %47 : vector<1x96x96xf32> to vector<96x96xf32>
    %cst_18 = arith.constant dense<0.000000e+00> : vector<8x96xf32>
    %49 = tpu.matmul %43, %48, %cst_18 {dimension_numbers = #tpu.dot_dimension_numbers<[1], [0], [0], [1], [0, 0, 1, 1], [], []>} : vector<8x96xf32>, vector<96x96xf32>, vector<8x96xf32> -> vector<8x96xf32>
    %50 = arith.index_cast %45 : i32 to index
    %c0_19 = arith.constant 0 : index
    %c0_20 = arith.constant 0 : index
    %51 = vector.load %arg7[%50, %c0_19, %c0_20] : memref<32x1x96xf32, #tpu.memory_space<vmem>>, vector<1x1x96xf32>
    %52 = vector.shape_cast %51 : vector<1x1x96xf32> to vector<1x96xf32>
    %53 = vector.broadcast %52 : vector<1x96xf32> to vector<8x96xf32>
    %54 = arith.addf %49, %53 : vector<8x96xf32>
    %55 = arith.index_cast %45 : i32 to index
    %c0_21 = arith.constant 0 : index
    %c0_22 = arith.constant 0 : index
    %56 = vector.load %arg8[%55, %c0_21, %c0_22] : memref<32x1x96xf32, #tpu.memory_space<vmem>>, vector<1x1x96xf32>
    %57 = vector.shape_cast %56 : vector<1x1x96xf32> to vector<1x96xf32>
    %58 = arith.index_cast %45 : i32 to index
    %c0_23 = arith.constant 0 : index
    %c0_24 = arith.constant 0 : index
    %59 = vector.load %arg9[%58, %c0_23, %c0_24] : memref<32x1x96xf32, #tpu.memory_space<vmem>>, vector<1x1x96xf32>
    %60 = vector.shape_cast %59 : vector<1x1x96xf32> to vector<1x96xf32>
    %cst_25 = arith.constant dense<0.000000e+00> : vector<8xf32>
    %61 = vector.multi_reduction <add>, %54, %cst_25 [1] : vector<8x96xf32> to vector<8xf32>
    %62 = vector.shape_cast %61 : vector<8xf32> to vector<8x1xf32>
    %cst_26 = arith.constant 0.010416667 : f32
    %63 = vector.broadcast %cst_26 : f32 to vector<8x1xf32>
    %64 = arith.mulf %62, %63 : vector<8x1xf32>
    %65 = arith.mulf %54, %54 : vector<8x96xf32>
    %cst_27 = arith.constant dense<0.000000e+00> : vector<8xf32>
    %66 = vector.multi_reduction <add>, %65, %cst_27 [1] : vector<8x96xf32> to vector<8xf32>
    %67 = vector.shape_cast %66 : vector<8xf32> to vector<8x1xf32>
    %cst_28 = arith.constant 0.010416667 : f32
    %68 = vector.broadcast %cst_28 : f32 to vector<8x1xf32>
    %69 = arith.mulf %67, %68 : vector<8x1xf32>
    %70 = arith.mulf %64, %64 : vector<8x1xf32>
    %71 = arith.subf %69, %70 : vector<8x1xf32>
    %cst_29 = arith.constant 0.000000e+00 : f32
    %72 = vector.broadcast %cst_29 : f32 to vector<8x1xf32>
    %73 = arith.maximumf %71, %72 : vector<8x1xf32>
    %74 = vector.broadcast %64 : vector<8x1xf32> to vector<8x96xf32>
    %75 = arith.subf %54, %74 : vector<8x96xf32>
    %cst_30 = arith.constant 9.99999974E-6 : f32
    %76 = vector.broadcast %cst_30 : f32 to vector<8x1xf32>
    %77 = arith.addf %73, %76 : vector<8x1xf32>
    %78 = math.rsqrt %77 : vector<8x1xf32>
    %79 = vector.broadcast %78 : vector<8x1xf32> to vector<8x96xf32>
    %80 = arith.mulf %75, %79 : vector<8x96xf32>
    %81 = vector.broadcast %57 : vector<1x96xf32> to vector<8x96xf32>
    %82 = arith.mulf %80, %81 : vector<8x96xf32>
    %83 = vector.broadcast %60 : vector<1x96xf32> to vector<8x96xf32>
    %84 = arith.addf %82, %83 : vector<8x96xf32>
    %cst_31 = arith.constant 0.000000e+00 : f32
    %85 = vector.broadcast %cst_31 : f32 to vector<8x96xf32>
    %86 = arith.maximumf %84, %85 : vector<8x96xf32>
    %87 = arith.index_cast %45 : i32 to index
    %c0_32 = arith.constant 0 : index
    %c0_33 = arith.constant 0 : index
    %88 = vector.load %arg10[%87, %c0_32, %c0_33] : memref<32x96x144xf32, #tpu.memory_space<vmem>>, vector<1x96x144xf32>
    %89 = vector.shape_cast %88 : vector<1x96x144xf32> to vector<96x144xf32>
    %cst_34 = arith.constant dense<0.000000e+00> : vector<8x144xf32>
    %90 = tpu.matmul %86, %89, %cst_34 {dimension_numbers = #tpu.dot_dimension_numbers<[1], [0], [0], [1], [0, 0, 1, 1], [], []>} : vector<8x96xf32>, vector<96x144xf32>, vector<8x144xf32> -> vector<8x144xf32>
    %91 = arith.index_cast %45 : i32 to index
    %c0_35 = arith.constant 0 : index
    %c0_36 = arith.constant 0 : index
    %92 = vector.load %arg11[%91, %c0_35, %c0_36] : memref<32x1x144xf32, #tpu.memory_space<vmem>>, vector<1x1x144xf32>
    %93 = vector.shape_cast %92 : vector<1x1x144xf32> to vector<1x144xf32>
    %94 = vector.broadcast %93 : vector<1x144xf32> to vector<8x144xf32>
    %95 = arith.addf %90, %94 : vector<8x144xf32>
    %96 = arith.index_cast %45 : i32 to index
    %c0_37 = arith.constant 0 : index
    %c0_38 = arith.constant 0 : index
    %97 = vector.load %arg12[%96, %c0_37, %c0_38] : memref<32x1x144xf32, #tpu.memory_space<vmem>>, vector<1x1x144xf32>
    %98 = vector.shape_cast %97 : vector<1x1x144xf32> to vector<1x144xf32>
    %99 = arith.index_cast %45 : i32 to index
    %c0_39 = arith.constant 0 : index
    %c0_40 = arith.constant 0 : index
    %100 = vector.load %arg13[%99, %c0_39, %c0_40] : memref<32x1x144xf32, #tpu.memory_space<vmem>>, vector<1x1x144xf32>
    %101 = vector.shape_cast %100 : vector<1x1x144xf32> to vector<1x144xf32>
    %cst_41 = arith.constant dense<0.000000e+00> : vector<8xf32>
    %102 = vector.multi_reduction <add>, %95, %cst_41 [1] : vector<8x144xf32> to vector<8xf32>
    %103 = vector.shape_cast %102 : vector<8xf32> to vector<8x1xf32>
    %cst_42 = arith.constant 0.0069444445 : f32
    %104 = vector.broadcast %cst_42 : f32 to vector<8x1xf32>
    %105 = arith.mulf %103, %104 : vector<8x1xf32>
    %106 = arith.mulf %95, %95 : vector<8x144xf32>
    %cst_43 = arith.constant dense<0.000000e+00> : vector<8xf32>
    %107 = vector.multi_reduction <add>, %106, %cst_43 [1] : vector<8x144xf32> to vector<8xf32>
    %108 = vector.shape_cast %107 : vector<8xf32> to vector<8x1xf32>
    %cst_44 = arith.constant 0.0069444445 : f32
    %109 = vector.broadcast %cst_44 : f32 to vector<8x1xf32>
    %110 = arith.mulf %108, %109 : vector<8x1xf32>
    %111 = arith.mulf %105, %105 : vector<8x1xf32>
    %112 = arith.subf %110, %111 : vector<8x1xf32>
    %cst_45 = arith.constant 0.000000e+00 : f32
    %113 = vector.broadcast %cst_45 : f32 to vector<8x1xf32>
    %114 = arith.maximumf %112, %113 : vector<8x1xf32>
    %115 = vector.broadcast %105 : vector<8x1xf32> to vector<8x144xf32>
    %116 = arith.subf %95, %115 : vector<8x144xf32>
    %cst_46 = arith.constant 9.99999974E-6 : f32
    %117 = vector.broadcast %cst_46 : f32 to vector<8x1xf32>
    %118 = arith.addf %114, %117 : vector<8x1xf32>
    %119 = math.rsqrt %118 : vector<8x1xf32>
    %120 = vector.broadcast %119 : vector<8x1xf32> to vector<8x144xf32>
    %121 = arith.mulf %116, %120 : vector<8x144xf32>
    %122 = vector.broadcast %98 : vector<1x144xf32> to vector<8x144xf32>
    %123 = arith.mulf %121, %122 : vector<8x144xf32>
    %124 = vector.broadcast %101 : vector<1x144xf32> to vector<8x144xf32>
    %125 = arith.addf %123, %124 : vector<8x144xf32>
    %cst_47 = arith.constant 0.000000e+00 : f32
    %126 = vector.broadcast %cst_47 : f32 to vector<8x144xf32>
    %127 = arith.maximumf %125, %126 : vector<8x144xf32>
    %128 = arith.index_cast %45 : i32 to index
    %c0_48 = arith.constant 0 : index
    %c0_49 = arith.constant 0 : index
    %129 = vector.load %arg14[%128, %c0_48, %c0_49] : memref<32x144x96xf32, #tpu.memory_space<vmem>>, vector<1x144x96xf32>
    %130 = vector.shape_cast %129 : vector<1x144x96xf32> to vector<144x96xf32>
    %cst_50 = arith.constant dense<0.000000e+00> : vector<8x96xf32>
    %131 = tpu.matmul %127, %130, %cst_50 {dimension_numbers = #tpu.dot_dimension_numbers<[1], [0], [0], [1], [0, 0, 1, 1], [], []>} : vector<8x144xf32>, vector<144x96xf32>, vector<8x96xf32> -> vector<8x96xf32>
    %132 = arith.index_cast %45 : i32 to index
    %c0_51 = arith.constant 0 : index
    %c0_52 = arith.constant 0 : index
    %133 = vector.load %arg15[%132, %c0_51, %c0_52] : memref<32x1x96xf32, #tpu.memory_space<vmem>>, vector<1x1x96xf32>
    %134 = vector.shape_cast %133 : vector<1x1x96xf32> to vector<1x96xf32>
    %135 = vector.broadcast %134 : vector<1x96xf32> to vector<8x96xf32>
    %136 = arith.addf %131, %135 : vector<8x96xf32>
    %137 = arith.index_cast %45 : i32 to index
    %c0_53 = arith.constant 0 : index
    %c0_54 = arith.constant 0 : index
    %138 = vector.load %arg16[%137, %c0_53, %c0_54] : memref<32x1x96xf32, #tpu.memory_space<vmem>>, vector<1x1x96xf32>
    %139 = vector.shape_cast %138 : vector<1x1x96xf32> to vector<1x96xf32>
    %140 = arith.index_cast %45 : i32 to index
    %c0_55 = arith.constant 0 : index
    %c0_56 = arith.constant 0 : index
    %141 = vector.load %arg17[%140, %c0_55, %c0_56] : memref<32x1x96xf32, #tpu.memory_space<vmem>>, vector<1x1x96xf32>
    %142 = vector.shape_cast %141 : vector<1x1x96xf32> to vector<1x96xf32>
    %cst_57 = arith.constant dense<0.000000e+00> : vector<8xf32>
    %143 = vector.multi_reduction <add>, %136, %cst_57 [1] : vector<8x96xf32> to vector<8xf32>
    %144 = vector.shape_cast %143 : vector<8xf32> to vector<8x1xf32>
    %cst_58 = arith.constant 0.010416667 : f32
    %145 = vector.broadcast %cst_58 : f32 to vector<8x1xf32>
    %146 = arith.mulf %144, %145 : vector<8x1xf32>
    %147 = arith.mulf %136, %136 : vector<8x96xf32>
    %cst_59 = arith.constant dense<0.000000e+00> : vector<8xf32>
    %148 = vector.multi_reduction <add>, %147, %cst_59 [1] : vector<8x96xf32> to vector<8xf32>
    %149 = vector.shape_cast %148 : vector<8xf32> to vector<8x1xf32>
    %cst_60 = arith.constant 0.010416667 : f32
    %150 = vector.broadcast %cst_60 : f32 to vector<8x1xf32>
    %151 = arith.mulf %149, %150 : vector<8x1xf32>
    %152 = arith.mulf %146, %146 : vector<8x1xf32>
    %153 = arith.subf %151, %152 : vector<8x1xf32>
    %cst_61 = arith.constant 0.000000e+00 : f32
    %154 = vector.broadcast %cst_61 : f32 to vector<8x1xf32>
    %155 = arith.maximumf %153, %154 : vector<8x1xf32>
    %156 = vector.broadcast %146 : vector<8x1xf32> to vector<8x96xf32>
    %157 = arith.subf %136, %156 : vector<8x96xf32>
    %cst_62 = arith.constant 9.99999974E-6 : f32
    %158 = vector.broadcast %cst_62 : f32 to vector<8x1xf32>
    %159 = arith.addf %155, %158 : vector<8x1xf32>
    %160 = math.rsqrt %159 : vector<8x1xf32>
    %161 = vector.broadcast %160 : vector<8x1xf32> to vector<8x96xf32>
    %162 = arith.mulf %157, %161 : vector<8x96xf32>
    %163 = vector.broadcast %139 : vector<1x96xf32> to vector<8x96xf32>
    %164 = arith.mulf %162, %163 : vector<8x96xf32>
    %165 = vector.broadcast %142 : vector<1x96xf32> to vector<8x96xf32>
    %166 = arith.addf %164, %165 : vector<8x96xf32>
    %167 = arith.addf %43, %166 : vector<8x96xf32>
    %cst_63 = arith.constant 0.000000e+00 : f32
    %168 = vector.broadcast %cst_63 : f32 to vector<8x96xf32>
    %169 = arith.maximumf %167, %168 : vector<8x96xf32>
    %c4_i32_64 = arith.constant 4 : i32
    %170 = arith.muli %arg0, %c4_i32_64 : i32
    %c1_i32 = arith.constant 1 : i32
    %171 = arith.addi %170, %c1_i32 : i32
    %172 = arith.index_cast %171 : i32 to index
    %c0_65 = arith.constant 0 : index
    %c0_66 = arith.constant 0 : index
    %173 = vector.load %arg6[%172, %c0_65, %c0_66] : memref<32x96x96xf32, #tpu.memory_space<vmem>>, vector<1x96x96xf32>
    %174 = vector.shape_cast %173 : vector<1x96x96xf32> to vector<96x96xf32>
    %cst_67 = arith.constant dense<0.000000e+00> : vector<8x96xf32>
    %175 = tpu.matmul %169, %174, %cst_67 {dimension_numbers = #tpu.dot_dimension_numbers<[1], [0], [0], [1], [0, 0, 1, 1], [], []>} : vector<8x96xf32>, vector<96x96xf32>, vector<8x96xf32> -> vector<8x96xf32>
    %176 = arith.index_cast %171 : i32 to index
    %c0_68 = arith.constant 0 : index
    %c0_69 = arith.constant 0 : index
    %177 = vector.load %arg7[%176, %c0_68, %c0_69] : memref<32x1x96xf32, #tpu.memory_space<vmem>>, vector<1x1x96xf32>
    %178 = vector.shape_cast %177 : vector<1x1x96xf32> to vector<1x96xf32>
    %179 = vector.broadcast %178 : vector<1x96xf32> to vector<8x96xf32>
    %180 = arith.addf %175, %179 : vector<8x96xf32>
    %181 = arith.index_cast %171 : i32 to index
    %c0_70 = arith.constant 0 : index
    %c0_71 = arith.constant 0 : index
    %182 = vector.load %arg8[%181, %c0_70, %c0_71] : memref<32x1x96xf32, #tpu.memory_space<vmem>>, vector<1x1x96xf32>
    %183 = vector.shape_cast %182 : vector<1x1x96xf32> to vector<1x96xf32>
    %184 = arith.index_cast %171 : i32 to index
    %c0_72 = arith.constant 0 : index
    %c0_73 = arith.constant 0 : index
    %185 = vector.load %arg9[%184, %c0_72, %c0_73] : memref<32x1x96xf32, #tpu.memory_space<vmem>>, vector<1x1x96xf32>
    %186 = vector.shape_cast %185 : vector<1x1x96xf32> to vector<1x96xf32>
    %cst_74 = arith.constant dense<0.000000e+00> : vector<8xf32>
    %187 = vector.multi_reduction <add>, %180, %cst_74 [1] : vector<8x96xf32> to vector<8xf32>
    %188 = vector.shape_cast %187 : vector<8xf32> to vector<8x1xf32>
    %cst_75 = arith.constant 0.010416667 : f32
    %189 = vector.broadcast %cst_75 : f32 to vector<8x1xf32>
    %190 = arith.mulf %188, %189 : vector<8x1xf32>
    %191 = arith.mulf %180, %180 : vector<8x96xf32>
    %cst_76 = arith.constant dense<0.000000e+00> : vector<8xf32>
    %192 = vector.multi_reduction <add>, %191, %cst_76 [1] : vector<8x96xf32> to vector<8xf32>
    %193 = vector.shape_cast %192 : vector<8xf32> to vector<8x1xf32>
    %cst_77 = arith.constant 0.010416667 : f32
    %194 = vector.broadcast %cst_77 : f32 to vector<8x1xf32>
    %195 = arith.mulf %193, %194 : vector<8x1xf32>
    %196 = arith.mulf %190, %190 : vector<8x1xf32>
    %197 = arith.subf %195, %196 : vector<8x1xf32>
    %cst_78 = arith.constant 0.000000e+00 : f32
    %198 = vector.broadcast %cst_78 : f32 to vector<8x1xf32>
    %199 = arith.maximumf %197, %198 : vector<8x1xf32>
    %200 = vector.broadcast %190 : vector<8x1xf32> to vector<8x96xf32>
    %201 = arith.subf %180, %200 : vector<8x96xf32>
    %cst_79 = arith.constant 9.99999974E-6 : f32
    %202 = vector.broadcast %cst_79 : f32 to vector<8x1xf32>
    %203 = arith.addf %199, %202 : vector<8x1xf32>
    %204 = math.rsqrt %203 : vector<8x1xf32>
    %205 = vector.broadcast %204 : vector<8x1xf32> to vector<8x96xf32>
    %206 = arith.mulf %201, %205 : vector<8x96xf32>
    %207 = vector.broadcast %183 : vector<1x96xf32> to vector<8x96xf32>
    %208 = arith.mulf %206, %207 : vector<8x96xf32>
    %209 = vector.broadcast %186 : vector<1x96xf32> to vector<8x96xf32>
    %210 = arith.addf %208, %209 : vector<8x96xf32>
    %cst_80 = arith.constant 0.000000e+00 : f32
    %211 = vector.broadcast %cst_80 : f32 to vector<8x96xf32>
    %212 = arith.maximumf %210, %211 : vector<8x96xf32>
    %213 = arith.index_cast %171 : i32 to index
    %c0_81 = arith.constant 0 : index
    %c0_82 = arith.constant 0 : index
    %214 = vector.load %arg10[%213, %c0_81, %c0_82] : memref<32x96x144xf32, #tpu.memory_space<vmem>>, vector<1x96x144xf32>
    %215 = vector.shape_cast %214 : vector<1x96x144xf32> to vector<96x144xf32>
    %cst_83 = arith.constant dense<0.000000e+00> : vector<8x144xf32>
    %216 = tpu.matmul %212, %215, %cst_83 {dimension_numbers = #tpu.dot_dimension_numbers<[1], [0], [0], [1], [0, 0, 1, 1], [], []>} : vector<8x96xf32>, vector<96x144xf32>, vector<8x144xf32> -> vector<8x144xf32>
    %217 = arith.index_cast %171 : i32 to index
    %c0_84 = arith.constant 0 : index
    %c0_85 = arith.constant 0 : index
    %218 = vector.load %arg11[%217, %c0_84, %c0_85] : memref<32x1x144xf32, #tpu.memory_space<vmem>>, vector<1x1x144xf32>
    %219 = vector.shape_cast %218 : vector<1x1x144xf32> to vector<1x144xf32>
    %220 = vector.broadcast %219 : vector<1x144xf32> to vector<8x144xf32>
    %221 = arith.addf %216, %220 : vector<8x144xf32>
    %222 = arith.index_cast %171 : i32 to index
    %c0_86 = arith.constant 0 : index
    %c0_87 = arith.constant 0 : index
    %223 = vector.load %arg12[%222, %c0_86, %c0_87] : memref<32x1x144xf32, #tpu.memory_space<vmem>>, vector<1x1x144xf32>
    %224 = vector.shape_cast %223 : vector<1x1x144xf32> to vector<1x144xf32>
    %225 = arith.index_cast %171 : i32 to index
    %c0_88 = arith.constant 0 : index
    %c0_89 = arith.constant 0 : index
    %226 = vector.load %arg13[%225, %c0_88, %c0_89] : memref<32x1x144xf32, #tpu.memory_space<vmem>>, vector<1x1x144xf32>
    %227 = vector.shape_cast %226 : vector<1x1x144xf32> to vector<1x144xf32>
    %cst_90 = arith.constant dense<0.000000e+00> : vector<8xf32>
    %228 = vector.multi_reduction <add>, %221, %cst_90 [1] : vector<8x144xf32> to vector<8xf32>
    %229 = vector.shape_cast %228 : vector<8xf32> to vector<8x1xf32>
    %cst_91 = arith.constant 0.0069444445 : f32
    %230 = vector.broadcast %cst_91 : f32 to vector<8x1xf32>
    %231 = arith.mulf %229, %230 : vector<8x1xf32>
    %232 = arith.mulf %221, %221 : vector<8x144xf32>
    %cst_92 = arith.constant dense<0.000000e+00> : vector<8xf32>
    %233 = vector.multi_reduction <add>, %232, %cst_92 [1] : vector<8x144xf32> to vector<8xf32>
    %234 = vector.shape_cast %233 : vector<8xf32> to vector<8x1xf32>
    %cst_93 = arith.constant 0.0069444445 : f32
    %235 = vector.broadcast %cst_93 : f32 to vector<8x1xf32>
    %236 = arith.mulf %234, %235 : vector<8x1xf32>
    %237 = arith.mulf %231, %231 : vector<8x1xf32>
    %238 = arith.subf %236, %237 : vector<8x1xf32>
    %cst_94 = arith.constant 0.000000e+00 : f32
    %239 = vector.broadcast %cst_94 : f32 to vector<8x1xf32>
    %240 = arith.maximumf %238, %239 : vector<8x1xf32>
    %241 = vector.broadcast %231 : vector<8x1xf32> to vector<8x144xf32>
    %242 = arith.subf %221, %241 : vector<8x144xf32>
    %cst_95 = arith.constant 9.99999974E-6 : f32
    %243 = vector.broadcast %cst_95 : f32 to vector<8x1xf32>
    %244 = arith.addf %240, %243 : vector<8x1xf32>
    %245 = math.rsqrt %244 : vector<8x1xf32>
    %246 = vector.broadcast %245 : vector<8x1xf32> to vector<8x144xf32>
    %247 = arith.mulf %242, %246 : vector<8x144xf32>
    %248 = vector.broadcast %224 : vector<1x144xf32> to vector<8x144xf32>
    %249 = arith.mulf %247, %248 : vector<8x144xf32>
    %250 = vector.broadcast %227 : vector<1x144xf32> to vector<8x144xf32>
    %251 = arith.addf %249, %250 : vector<8x144xf32>
    %cst_96 = arith.constant 0.000000e+00 : f32
    %252 = vector.broadcast %cst_96 : f32 to vector<8x144xf32>
    %253 = arith.maximumf %251, %252 : vector<8x144xf32>
    %254 = arith.index_cast %171 : i32 to index
    %c0_97 = arith.constant 0 : index
    %c0_98 = arith.constant 0 : index
    %255 = vector.load %arg14[%254, %c0_97, %c0_98] : memref<32x144x96xf32, #tpu.memory_space<vmem>>, vector<1x144x96xf32>
    %256 = vector.shape_cast %255 : vector<1x144x96xf32> to vector<144x96xf32>
    %cst_99 = arith.constant dense<0.000000e+00> : vector<8x96xf32>
    %257 = tpu.matmul %253, %256, %cst_99 {dimension_numbers = #tpu.dot_dimension_numbers<[1], [0], [0], [1], [0, 0, 1, 1], [], []>} : vector<8x144xf32>, vector<144x96xf32>, vector<8x96xf32> -> vector<8x96xf32>
    %258 = arith.index_cast %171 : i32 to index
    %c0_100 = arith.constant 0 : index
    %c0_101 = arith.constant 0 : index
    %259 = vector.load %arg15[%258, %c0_100, %c0_101] : memref<32x1x96xf32, #tpu.memory_space<vmem>>, vector<1x1x96xf32>
    %260 = vector.shape_cast %259 : vector<1x1x96xf32> to vector<1x96xf32>
    %261 = vector.broadcast %260 : vector<1x96xf32> to vector<8x96xf32>
    %262 = arith.addf %257, %261 : vector<8x96xf32>
    %263 = arith.index_cast %171 : i32 to index
    %c0_102 = arith.constant 0 : index
    %c0_103 = arith.constant 0 : index
    %264 = vector.load %arg16[%263, %c0_102, %c0_103] : memref<32x1x96xf32, #tpu.memory_space<vmem>>, vector<1x1x96xf32>
    %265 = vector.shape_cast %264 : vector<1x1x96xf32> to vector<1x96xf32>
    %266 = arith.index_cast %171 : i32 to index
    %c0_104 = arith.constant 0 : index
    %c0_105 = arith.constant 0 : index
    %267 = vector.load %arg17[%266, %c0_104, %c0_105] : memref<32x1x96xf32, #tpu.memory_space<vmem>>, vector<1x1x96xf32>
    %268 = vector.shape_cast %267 : vector<1x1x96xf32> to vector<1x96xf32>
    %cst_106 = arith.constant dense<0.000000e+00> : vector<8xf32>
    %269 = vector.multi_reduction <add>, %262, %cst_106 [1] : vector<8x96xf32> to vector<8xf32>
    %270 = vector.shape_cast %269 : vector<8xf32> to vector<8x1xf32>
    %cst_107 = arith.constant 0.010416667 : f32
    %271 = vector.broadcast %cst_107 : f32 to vector<8x1xf32>
    %272 = arith.mulf %270, %271 : vector<8x1xf32>
    %273 = arith.mulf %262, %262 : vector<8x96xf32>
    %cst_108 = arith.constant dense<0.000000e+00> : vector<8xf32>
    %274 = vector.multi_reduction <add>, %273, %cst_108 [1] : vector<8x96xf32> to vector<8xf32>
    %275 = vector.shape_cast %274 : vector<8xf32> to vector<8x1xf32>
    %cst_109 = arith.constant 0.010416667 : f32
    %276 = vector.broadcast %cst_109 : f32 to vector<8x1xf32>
    %277 = arith.mulf %275, %276 : vector<8x1xf32>
    %278 = arith.mulf %272, %272 : vector<8x1xf32>
    %279 = arith.subf %277, %278 : vector<8x1xf32>
    %cst_110 = arith.constant 0.000000e+00 : f32
    %280 = vector.broadcast %cst_110 : f32 to vector<8x1xf32>
    %281 = arith.maximumf %279, %280 : vector<8x1xf32>
    %282 = vector.broadcast %272 : vector<8x1xf32> to vector<8x96xf32>
    %283 = arith.subf %262, %282 : vector<8x96xf32>
    %cst_111 = arith.constant 9.99999974E-6 : f32
    %284 = vector.broadcast %cst_111 : f32 to vector<8x1xf32>
    %285 = arith.addf %281, %284 : vector<8x1xf32>
    %286 = math.rsqrt %285 : vector<8x1xf32>
    %287 = vector.broadcast %286 : vector<8x1xf32> to vector<8x96xf32>
    %288 = arith.mulf %283, %287 : vector<8x96xf32>
    %289 = vector.broadcast %265 : vector<1x96xf32> to vector<8x96xf32>
    %290 = arith.mulf %288, %289 : vector<8x96xf32>
    %291 = vector.broadcast %268 : vector<1x96xf32> to vector<8x96xf32>
    %292 = arith.addf %290, %291 : vector<8x96xf32>
    %293 = arith.addf %169, %292 : vector<8x96xf32>
    %cst_112 = arith.constant 0.000000e+00 : f32
    %294 = vector.broadcast %cst_112 : f32 to vector<8x96xf32>
    %295 = arith.maximumf %293, %294 : vector<8x96xf32>
    %c4_i32_113 = arith.constant 4 : i32
    %296 = arith.muli %arg0, %c4_i32_113 : i32
    %c2_i32 = arith.constant 2 : i32
    %297 = arith.addi %296, %c2_i32 : i32
    %298 = arith.index_cast %297 : i32 to index
    %c0_114 = arith.constant 0 : index
    %c0_115 = arith.constant 0 : index
    %299 = vector.load %arg6[%298, %c0_114, %c0_115] : memref<32x96x96xf32, #tpu.memory_space<vmem>>, vector<1x96x96xf32>
    %300 = vector.shape_cast %299 : vector<1x96x96xf32> to vector<96x96xf32>
    %cst_116 = arith.constant dense<0.000000e+00> : vector<8x96xf32>
    %301 = tpu.matmul %295, %300, %cst_116 {dimension_numbers = #tpu.dot_dimension_numbers<[1], [0], [0], [1], [0, 0, 1, 1], [], []>} : vector<8x96xf32>, vector<96x96xf32>, vector<8x96xf32> -> vector<8x96xf32>
    %302 = arith.index_cast %297 : i32 to index
    %c0_117 = arith.constant 0 : index
    %c0_118 = arith.constant 0 : index
    %303 = vector.load %arg7[%302, %c0_117, %c0_118] : memref<32x1x96xf32, #tpu.memory_space<vmem>>, vector<1x1x96xf32>
    %304 = vector.shape_cast %303 : vector<1x1x96xf32> to vector<1x96xf32>
    %305 = vector.broadcast %304 : vector<1x96xf32> to vector<8x96xf32>
    %306 = arith.addf %301, %305 : vector<8x96xf32>
    %307 = arith.index_cast %297 : i32 to index
    %c0_119 = arith.constant 0 : index
    %c0_120 = arith.constant 0 : index
    %308 = vector.load %arg8[%307, %c0_119, %c0_120] : memref<32x1x96xf32, #tpu.memory_space<vmem>>, vector<1x1x96xf32>
    %309 = vector.shape_cast %308 : vector<1x1x96xf32> to vector<1x96xf32>
    %310 = arith.index_cast %297 : i32 to index
    %c0_121 = arith.constant 0 : index
    %c0_122 = arith.constant 0 : index
    %311 = vector.load %arg9[%310, %c0_121, %c0_122] : memref<32x1x96xf32, #tpu.memory_space<vmem>>, vector<1x1x96xf32>
    %312 = vector.shape_cast %311 : vector<1x1x96xf32> to vector<1x96xf32>
    %cst_123 = arith.constant dense<0.000000e+00> : vector<8xf32>
    %313 = vector.multi_reduction <add>, %306, %cst_123 [1] : vector<8x96xf32> to vector<8xf32>
    %314 = vector.shape_cast %313 : vector<8xf32> to vector<8x1xf32>
    %cst_124 = arith.constant 0.010416667 : f32
    %315 = vector.broadcast %cst_124 : f32 to vector<8x1xf32>
    %316 = arith.mulf %314, %315 : vector<8x1xf32>
    %317 = arith.mulf %306, %306 : vector<8x96xf32>
    %cst_125 = arith.constant dense<0.000000e+00> : vector<8xf32>
    %318 = vector.multi_reduction <add>, %317, %cst_125 [1] : vector<8x96xf32> to vector<8xf32>
    %319 = vector.shape_cast %318 : vector<8xf32> to vector<8x1xf32>
    %cst_126 = arith.constant 0.010416667 : f32
    %320 = vector.broadcast %cst_126 : f32 to vector<8x1xf32>
    %321 = arith.mulf %319, %320 : vector<8x1xf32>
    %322 = arith.mulf %316, %316 : vector<8x1xf32>
    %323 = arith.subf %321, %322 : vector<8x1xf32>
    %cst_127 = arith.constant 0.000000e+00 : f32
    %324 = vector.broadcast %cst_127 : f32 to vector<8x1xf32>
    %325 = arith.maximumf %323, %324 : vector<8x1xf32>
    %326 = vector.broadcast %316 : vector<8x1xf32> to vector<8x96xf32>
    %327 = arith.subf %306, %326 : vector<8x96xf32>
    %cst_128 = arith.constant 9.99999974E-6 : f32
    %328 = vector.broadcast %cst_128 : f32 to vector<8x1xf32>
    %329 = arith.addf %325, %328 : vector<8x1xf32>
    %330 = math.rsqrt %329 : vector<8x1xf32>
    %331 = vector.broadcast %330 : vector<8x1xf32> to vector<8x96xf32>
    %332 = arith.mulf %327, %331 : vector<8x96xf32>
    %333 = vector.broadcast %309 : vector<1x96xf32> to vector<8x96xf32>
    %334 = arith.mulf %332, %333 : vector<8x96xf32>
    %335 = vector.broadcast %312 : vector<1x96xf32> to vector<8x96xf32>
    %336 = arith.addf %334, %335 : vector<8x96xf32>
    %cst_129 = arith.constant 0.000000e+00 : f32
    %337 = vector.broadcast %cst_129 : f32 to vector<8x96xf32>
    %338 = arith.maximumf %336, %337 : vector<8x96xf32>
    %339 = arith.index_cast %297 : i32 to index
    %c0_130 = arith.constant 0 : index
    %c0_131 = arith.constant 0 : index
    %340 = vector.load %arg10[%339, %c0_130, %c0_131] : memref<32x96x144xf32, #tpu.memory_space<vmem>>, vector<1x96x144xf32>
    %341 = vector.shape_cast %340 : vector<1x96x144xf32> to vector<96x144xf32>
    %cst_132 = arith.constant dense<0.000000e+00> : vector<8x144xf32>
    %342 = tpu.matmul %338, %341, %cst_132 {dimension_numbers = #tpu.dot_dimension_numbers<[1], [0], [0], [1], [0, 0, 1, 1], [], []>} : vector<8x96xf32>, vector<96x144xf32>, vector<8x144xf32> -> vector<8x144xf32>
    %343 = arith.index_cast %297 : i32 to index
    %c0_133 = arith.constant 0 : index
    %c0_134 = arith.constant 0 : index
    %344 = vector.load %arg11[%343, %c0_133, %c0_134] : memref<32x1x144xf32, #tpu.memory_space<vmem>>, vector<1x1x144xf32>
    %345 = vector.shape_cast %344 : vector<1x1x144xf32> to vector<1x144xf32>
    %346 = vector.broadcast %345 : vector<1x144xf32> to vector<8x144xf32>
    %347 = arith.addf %342, %346 : vector<8x144xf32>
    %348 = arith.index_cast %297 : i32 to index
    %c0_135 = arith.constant 0 : index
    %c0_136 = arith.constant 0 : index
    %349 = vector.load %arg12[%348, %c0_135, %c0_136] : memref<32x1x144xf32, #tpu.memory_space<vmem>>, vector<1x1x144xf32>
    %350 = vector.shape_cast %349 : vector<1x1x144xf32> to vector<1x144xf32>
    %351 = arith.index_cast %297 : i32 to index
    %c0_137 = arith.constant 0 : index
    %c0_138 = arith.constant 0 : index
    %352 = vector.load %arg13[%351, %c0_137, %c0_138] : memref<32x1x144xf32, #tpu.memory_space<vmem>>, vector<1x1x144xf32>
    %353 = vector.shape_cast %352 : vector<1x1x144xf32> to vector<1x144xf32>
    %cst_139 = arith.constant dense<0.000000e+00> : vector<8xf32>
    %354 = vector.multi_reduction <add>, %347, %cst_139 [1] : vector<8x144xf32> to vector<8xf32>
    %355 = vector.shape_cast %354 : vector<8xf32> to vector<8x1xf32>
    %cst_140 = arith.constant 0.0069444445 : f32
    %356 = vector.broadcast %cst_140 : f32 to vector<8x1xf32>
    %357 = arith.mulf %355, %356 : vector<8x1xf32>
    %358 = arith.mulf %347, %347 : vector<8x144xf32>
    %cst_141 = arith.constant dense<0.000000e+00> : vector<8xf32>
    %359 = vector.multi_reduction <add>, %358, %cst_141 [1] : vector<8x144xf32> to vector<8xf32>
    %360 = vector.shape_cast %359 : vector<8xf32> to vector<8x1xf32>
    %cst_142 = arith.constant 0.0069444445 : f32
    %361 = vector.broadcast %cst_142 : f32 to vector<8x1xf32>
    %362 = arith.mulf %360, %361 : vector<8x1xf32>
    %363 = arith.mulf %357, %357 : vector<8x1xf32>
    %364 = arith.subf %362, %363 : vector<8x1xf32>
    %cst_143 = arith.constant 0.000000e+00 : f32
    %365 = vector.broadcast %cst_143 : f32 to vector<8x1xf32>
    %366 = arith.maximumf %364, %365 : vector<8x1xf32>
    %367 = vector.broadcast %357 : vector<8x1xf32> to vector<8x144xf32>
    %368 = arith.subf %347, %367 : vector<8x144xf32>
    %cst_144 = arith.constant 9.99999974E-6 : f32
    %369 = vector.broadcast %cst_144 : f32 to vector<8x1xf32>
    %370 = arith.addf %366, %369 : vector<8x1xf32>
    %371 = math.rsqrt %370 : vector<8x1xf32>
    %372 = vector.broadcast %371 : vector<8x1xf32> to vector<8x144xf32>
    %373 = arith.mulf %368, %372 : vector<8x144xf32>
    %374 = vector.broadcast %350 : vector<1x144xf32> to vector<8x144xf32>
    %375 = arith.mulf %373, %374 : vector<8x144xf32>
    %376 = vector.broadcast %353 : vector<1x144xf32> to vector<8x144xf32>
    %377 = arith.addf %375, %376 : vector<8x144xf32>
    %cst_145 = arith.constant 0.000000e+00 : f32
    %378 = vector.broadcast %cst_145 : f32 to vector<8x144xf32>
    %379 = arith.maximumf %377, %378 : vector<8x144xf32>
    %380 = arith.index_cast %297 : i32 to index
    %c0_146 = arith.constant 0 : index
    %c0_147 = arith.constant 0 : index
    %381 = vector.load %arg14[%380, %c0_146, %c0_147] : memref<32x144x96xf32, #tpu.memory_space<vmem>>, vector<1x144x96xf32>
    %382 = vector.shape_cast %381 : vector<1x144x96xf32> to vector<144x96xf32>
    %cst_148 = arith.constant dense<0.000000e+00> : vector<8x96xf32>
    %383 = tpu.matmul %379, %382, %cst_148 {dimension_numbers = #tpu.dot_dimension_numbers<[1], [0], [0], [1], [0, 0, 1, 1], [], []>} : vector<8x144xf32>, vector<144x96xf32>, vector<8x96xf32> -> vector<8x96xf32>
    %384 = arith.index_cast %297 : i32 to index
    %c0_149 = arith.constant 0 : index
    %c0_150 = arith.constant 0 : index
    %385 = vector.load %arg15[%384, %c0_149, %c0_150] : memref<32x1x96xf32, #tpu.memory_space<vmem>>, vector<1x1x96xf32>
    %386 = vector.shape_cast %385 : vector<1x1x96xf32> to vector<1x96xf32>
    %387 = vector.broadcast %386 : vector<1x96xf32> to vector<8x96xf32>
    %388 = arith.addf %383, %387 : vector<8x96xf32>
    %389 = arith.index_cast %297 : i32 to index
    %c0_151 = arith.constant 0 : index
    %c0_152 = arith.constant 0 : index
    %390 = vector.load %arg16[%389, %c0_151, %c0_152] : memref<32x1x96xf32, #tpu.memory_space<vmem>>, vector<1x1x96xf32>
    %391 = vector.shape_cast %390 : vector<1x1x96xf32> to vector<1x96xf32>
    %392 = arith.index_cast %297 : i32 to index
    %c0_153 = arith.constant 0 : index
    %c0_154 = arith.constant 0 : index
    %393 = vector.load %arg17[%392, %c0_153, %c0_154] : memref<32x1x96xf32, #tpu.memory_space<vmem>>, vector<1x1x96xf32>
    %394 = vector.shape_cast %393 : vector<1x1x96xf32> to vector<1x96xf32>
    %cst_155 = arith.constant dense<0.000000e+00> : vector<8xf32>
    %395 = vector.multi_reduction <add>, %388, %cst_155 [1] : vector<8x96xf32> to vector<8xf32>
    %396 = vector.shape_cast %395 : vector<8xf32> to vector<8x1xf32>
    %cst_156 = arith.constant 0.010416667 : f32
    %397 = vector.broadcast %cst_156 : f32 to vector<8x1xf32>
    %398 = arith.mulf %396, %397 : vector<8x1xf32>
    %399 = arith.mulf %388, %388 : vector<8x96xf32>
    %cst_157 = arith.constant dense<0.000000e+00> : vector<8xf32>
    %400 = vector.multi_reduction <add>, %399, %cst_157 [1] : vector<8x96xf32> to vector<8xf32>
    %401 = vector.shape_cast %400 : vector<8xf32> to vector<8x1xf32>
    %cst_158 = arith.constant 0.010416667 : f32
    %402 = vector.broadcast %cst_158 : f32 to vector<8x1xf32>
    %403 = arith.mulf %401, %402 : vector<8x1xf32>
    %404 = arith.mulf %398, %398 : vector<8x1xf32>
    %405 = arith.subf %403, %404 : vector<8x1xf32>
    %cst_159 = arith.constant 0.000000e+00 : f32
    %406 = vector.broadcast %cst_159 : f32 to vector<8x1xf32>
    %407 = arith.maximumf %405, %406 : vector<8x1xf32>
    %408 = vector.broadcast %398 : vector<8x1xf32> to vector<8x96xf32>
    %409 = arith.subf %388, %408 : vector<8x96xf32>
    %cst_160 = arith.constant 9.99999974E-6 : f32
    %410 = vector.broadcast %cst_160 : f32 to vector<8x1xf32>
    %411 = arith.addf %407, %410 : vector<8x1xf32>
    %412 = math.rsqrt %411 : vector<8x1xf32>
    %413 = vector.broadcast %412 : vector<8x1xf32> to vector<8x96xf32>
    %414 = arith.mulf %409, %413 : vector<8x96xf32>
    %415 = vector.broadcast %391 : vector<1x96xf32> to vector<8x96xf32>
    %416 = arith.mulf %414, %415 : vector<8x96xf32>
    %417 = vector.broadcast %394 : vector<1x96xf32> to vector<8x96xf32>
    %418 = arith.addf %416, %417 : vector<8x96xf32>
    %419 = arith.addf %295, %418 : vector<8x96xf32>
    %cst_161 = arith.constant 0.000000e+00 : f32
    %420 = vector.broadcast %cst_161 : f32 to vector<8x96xf32>
    %421 = arith.maximumf %419, %420 : vector<8x96xf32>
    %c4_i32_162 = arith.constant 4 : i32
    %422 = arith.muli %arg0, %c4_i32_162 : i32
    %c3_i32 = arith.constant 3 : i32
    %423 = arith.addi %422, %c3_i32 : i32
    %424 = arith.index_cast %423 : i32 to index
    %c0_163 = arith.constant 0 : index
    %c0_164 = arith.constant 0 : index
    %425 = vector.load %arg6[%424, %c0_163, %c0_164] : memref<32x96x96xf32, #tpu.memory_space<vmem>>, vector<1x96x96xf32>
    %426 = vector.shape_cast %425 : vector<1x96x96xf32> to vector<96x96xf32>
    %cst_165 = arith.constant dense<0.000000e+00> : vector<8x96xf32>
    %427 = tpu.matmul %421, %426, %cst_165 {dimension_numbers = #tpu.dot_dimension_numbers<[1], [0], [0], [1], [0, 0, 1, 1], [], []>} : vector<8x96xf32>, vector<96x96xf32>, vector<8x96xf32> -> vector<8x96xf32>
    %428 = arith.index_cast %423 : i32 to index
    %c0_166 = arith.constant 0 : index
    %c0_167 = arith.constant 0 : index
    %429 = vector.load %arg7[%428, %c0_166, %c0_167] : memref<32x1x96xf32, #tpu.memory_space<vmem>>, vector<1x1x96xf32>
    %430 = vector.shape_cast %429 : vector<1x1x96xf32> to vector<1x96xf32>
    %431 = vector.broadcast %430 : vector<1x96xf32> to vector<8x96xf32>
    %432 = arith.addf %427, %431 : vector<8x96xf32>
    %433 = arith.index_cast %423 : i32 to index
    %c0_168 = arith.constant 0 : index
    %c0_169 = arith.constant 0 : index
    %434 = vector.load %arg8[%433, %c0_168, %c0_169] : memref<32x1x96xf32, #tpu.memory_space<vmem>>, vector<1x1x96xf32>
    %435 = vector.shape_cast %434 : vector<1x1x96xf32> to vector<1x96xf32>
    %436 = arith.index_cast %423 : i32 to index
    %c0_170 = arith.constant 0 : index
    %c0_171 = arith.constant 0 : index
    %437 = vector.load %arg9[%436, %c0_170, %c0_171] : memref<32x1x96xf32, #tpu.memory_space<vmem>>, vector<1x1x96xf32>
    %438 = vector.shape_cast %437 : vector<1x1x96xf32> to vector<1x96xf32>
    %cst_172 = arith.constant dense<0.000000e+00> : vector<8xf32>
    %439 = vector.multi_reduction <add>, %432, %cst_172 [1] : vector<8x96xf32> to vector<8xf32>
    %440 = vector.shape_cast %439 : vector<8xf32> to vector<8x1xf32>
    %cst_173 = arith.constant 0.010416667 : f32
    %441 = vector.broadcast %cst_173 : f32 to vector<8x1xf32>
    %442 = arith.mulf %440, %441 : vector<8x1xf32>
    %443 = arith.mulf %432, %432 : vector<8x96xf32>
    %cst_174 = arith.constant dense<0.000000e+00> : vector<8xf32>
    %444 = vector.multi_reduction <add>, %443, %cst_174 [1] : vector<8x96xf32> to vector<8xf32>
    %445 = vector.shape_cast %444 : vector<8xf32> to vector<8x1xf32>
    %cst_175 = arith.constant 0.010416667 : f32
    %446 = vector.broadcast %cst_175 : f32 to vector<8x1xf32>
    %447 = arith.mulf %445, %446 : vector<8x1xf32>
    %448 = arith.mulf %442, %442 : vector<8x1xf32>
    %449 = arith.subf %447, %448 : vector<8x1xf32>
    %cst_176 = arith.constant 0.000000e+00 : f32
    %450 = vector.broadcast %cst_176 : f32 to vector<8x1xf32>
    %451 = arith.maximumf %449, %450 : vector<8x1xf32>
    %452 = vector.broadcast %442 : vector<8x1xf32> to vector<8x96xf32>
    %453 = arith.subf %432, %452 : vector<8x96xf32>
    %cst_177 = arith.constant 9.99999974E-6 : f32
    %454 = vector.broadcast %cst_177 : f32 to vector<8x1xf32>
    %455 = arith.addf %451, %454 : vector<8x1xf32>
    %456 = math.rsqrt %455 : vector<8x1xf32>
    %457 = vector.broadcast %456 : vector<8x1xf32> to vector<8x96xf32>
    %458 = arith.mulf %453, %457 : vector<8x96xf32>
    %459 = vector.broadcast %435 : vector<1x96xf32> to vector<8x96xf32>
    %460 = arith.mulf %458, %459 : vector<8x96xf32>
    %461 = vector.broadcast %438 : vector<1x96xf32> to vector<8x96xf32>
    %462 = arith.addf %460, %461 : vector<8x96xf32>
    %cst_178 = arith.constant 0.000000e+00 : f32
    %463 = vector.broadcast %cst_178 : f32 to vector<8x96xf32>
    %464 = arith.maximumf %462, %463 : vector<8x96xf32>
    %465 = arith.index_cast %423 : i32 to index
    %c0_179 = arith.constant 0 : index
    %c0_180 = arith.constant 0 : index
    %466 = vector.load %arg10[%465, %c0_179, %c0_180] : memref<32x96x144xf32, #tpu.memory_space<vmem>>, vector<1x96x144xf32>
    %467 = vector.shape_cast %466 : vector<1x96x144xf32> to vector<96x144xf32>
    %cst_181 = arith.constant dense<0.000000e+00> : vector<8x144xf32>
    %468 = tpu.matmul %464, %467, %cst_181 {dimension_numbers = #tpu.dot_dimension_numbers<[1], [0], [0], [1], [0, 0, 1, 1], [], []>} : vector<8x96xf32>, vector<96x144xf32>, vector<8x144xf32> -> vector<8x144xf32>
    %469 = arith.index_cast %423 : i32 to index
    %c0_182 = arith.constant 0 : index
    %c0_183 = arith.constant 0 : index
    %470 = vector.load %arg11[%469, %c0_182, %c0_183] : memref<32x1x144xf32, #tpu.memory_space<vmem>>, vector<1x1x144xf32>
    %471 = vector.shape_cast %470 : vector<1x1x144xf32> to vector<1x144xf32>
    %472 = vector.broadcast %471 : vector<1x144xf32> to vector<8x144xf32>
    %473 = arith.addf %468, %472 : vector<8x144xf32>
    %474 = arith.index_cast %423 : i32 to index
    %c0_184 = arith.constant 0 : index
    %c0_185 = arith.constant 0 : index
    %475 = vector.load %arg12[%474, %c0_184, %c0_185] : memref<32x1x144xf32, #tpu.memory_space<vmem>>, vector<1x1x144xf32>
    %476 = vector.shape_cast %475 : vector<1x1x144xf32> to vector<1x144xf32>
    %477 = arith.index_cast %423 : i32 to index
    %c0_186 = arith.constant 0 : index
    %c0_187 = arith.constant 0 : index
    %478 = vector.load %arg13[%477, %c0_186, %c0_187] : memref<32x1x144xf32, #tpu.memory_space<vmem>>, vector<1x1x144xf32>
    %479 = vector.shape_cast %478 : vector<1x1x144xf32> to vector<1x144xf32>
    %cst_188 = arith.constant dense<0.000000e+00> : vector<8xf32>
    %480 = vector.multi_reduction <add>, %473, %cst_188 [1] : vector<8x144xf32> to vector<8xf32>
    %481 = vector.shape_cast %480 : vector<8xf32> to vector<8x1xf32>
    %cst_189 = arith.constant 0.0069444445 : f32
    %482 = vector.broadcast %cst_189 : f32 to vector<8x1xf32>
    %483 = arith.mulf %481, %482 : vector<8x1xf32>
    %484 = arith.mulf %473, %473 : vector<8x144xf32>
    %cst_190 = arith.constant dense<0.000000e+00> : vector<8xf32>
    %485 = vector.multi_reduction <add>, %484, %cst_190 [1] : vector<8x144xf32> to vector<8xf32>
    %486 = vector.shape_cast %485 : vector<8xf32> to vector<8x1xf32>
    %cst_191 = arith.constant 0.0069444445 : f32
    %487 = vector.broadcast %cst_191 : f32 to vector<8x1xf32>
    %488 = arith.mulf %486, %487 : vector<8x1xf32>
    %489 = arith.mulf %483, %483 : vector<8x1xf32>
    %490 = arith.subf %488, %489 : vector<8x1xf32>
    %cst_192 = arith.constant 0.000000e+00 : f32
    %491 = vector.broadcast %cst_192 : f32 to vector<8x1xf32>
    %492 = arith.maximumf %490, %491 : vector<8x1xf32>
    %493 = vector.broadcast %483 : vector<8x1xf32> to vector<8x144xf32>
    %494 = arith.subf %473, %493 : vector<8x144xf32>
    %cst_193 = arith.constant 9.99999974E-6 : f32
    %495 = vector.broadcast %cst_193 : f32 to vector<8x1xf32>
    %496 = arith.addf %492, %495 : vector<8x1xf32>
    %497 = math.rsqrt %496 : vector<8x1xf32>
    %498 = vector.broadcast %497 : vector<8x1xf32> to vector<8x144xf32>
    %499 = arith.mulf %494, %498 : vector<8x144xf32>
    %500 = vector.broadcast %476 : vector<1x144xf32> to vector<8x144xf32>
    %501 = arith.mulf %499, %500 : vector<8x144xf32>
    %502 = vector.broadcast %479 : vector<1x144xf32> to vector<8x144xf32>
    %503 = arith.addf %501, %502 : vector<8x144xf32>
    %cst_194 = arith.constant 0.000000e+00 : f32
    %504 = vector.broadcast %cst_194 : f32 to vector<8x144xf32>
    %505 = arith.maximumf %503, %504 : vector<8x144xf32>
    %506 = arith.index_cast %423 : i32 to index
    %c0_195 = arith.constant 0 : index
    %c0_196 = arith.constant 0 : index
    %507 = vector.load %arg14[%506, %c0_195, %c0_196] : memref<32x144x96xf32, #tpu.memory_space<vmem>>, vector<1x144x96xf32>
    %508 = vector.shape_cast %507 : vector<1x144x96xf32> to vector<144x96xf32>
    %cst_197 = arith.constant dense<0.000000e+00> : vector<8x96xf32>
    %509 = tpu.matmul %505, %508, %cst_197 {dimension_numbers = #tpu.dot_dimension_numbers<[1], [0], [0], [1], [0, 0, 1, 1], [], []>} : vector<8x144xf32>, vector<144x96xf32>, vector<8x96xf32> -> vector<8x96xf32>
    %510 = arith.index_cast %423 : i32 to index
    %c0_198 = arith.constant 0 : index
    %c0_199 = arith.constant 0 : index
    %511 = vector.load %arg15[%510, %c0_198, %c0_199] : memref<32x1x96xf32, #tpu.memory_space<vmem>>, vector<1x1x96xf32>
    %512 = vector.shape_cast %511 : vector<1x1x96xf32> to vector<1x96xf32>
    %513 = vector.broadcast %512 : vector<1x96xf32> to vector<8x96xf32>
    %514 = arith.addf %509, %513 : vector<8x96xf32>
    %515 = arith.index_cast %423 : i32 to index
    %c0_200 = arith.constant 0 : index
    %c0_201 = arith.constant 0 : index
    %516 = vector.load %arg16[%515, %c0_200, %c0_201] : memref<32x1x96xf32, #tpu.memory_space<vmem>>, vector<1x1x96xf32>
    %517 = vector.shape_cast %516 : vector<1x1x96xf32> to vector<1x96xf32>
    %518 = arith.index_cast %423 : i32 to index
    %c0_202 = arith.constant 0 : index
    %c0_203 = arith.constant 0 : index
    %519 = vector.load %arg17[%518, %c0_202, %c0_203] : memref<32x1x96xf32, #tpu.memory_space<vmem>>, vector<1x1x96xf32>
    %520 = vector.shape_cast %519 : vector<1x1x96xf32> to vector<1x96xf32>
    %cst_204 = arith.constant dense<0.000000e+00> : vector<8xf32>
    %521 = vector.multi_reduction <add>, %514, %cst_204 [1] : vector<8x96xf32> to vector<8xf32>
    %522 = vector.shape_cast %521 : vector<8xf32> to vector<8x1xf32>
    %cst_205 = arith.constant 0.010416667 : f32
    %523 = vector.broadcast %cst_205 : f32 to vector<8x1xf32>
    %524 = arith.mulf %522, %523 : vector<8x1xf32>
    %525 = arith.mulf %514, %514 : vector<8x96xf32>
    %cst_206 = arith.constant dense<0.000000e+00> : vector<8xf32>
    %526 = vector.multi_reduction <add>, %525, %cst_206 [1] : vector<8x96xf32> to vector<8xf32>
    %527 = vector.shape_cast %526 : vector<8xf32> to vector<8x1xf32>
    %cst_207 = arith.constant 0.010416667 : f32
    %528 = vector.broadcast %cst_207 : f32 to vector<8x1xf32>
    %529 = arith.mulf %527, %528 : vector<8x1xf32>
    %530 = arith.mulf %524, %524 : vector<8x1xf32>
    %531 = arith.subf %529, %530 : vector<8x1xf32>
    %cst_208 = arith.constant 0.000000e+00 : f32
    %532 = vector.broadcast %cst_208 : f32 to vector<8x1xf32>
    %533 = arith.maximumf %531, %532 : vector<8x1xf32>
    %534 = vector.broadcast %524 : vector<8x1xf32> to vector<8x96xf32>
    %535 = arith.subf %514, %534 : vector<8x96xf32>
    %cst_209 = arith.constant 9.99999974E-6 : f32
    %536 = vector.broadcast %cst_209 : f32 to vector<8x1xf32>
    %537 = arith.addf %533, %536 : vector<8x1xf32>
    %538 = math.rsqrt %537 : vector<8x1xf32>
    %539 = vector.broadcast %538 : vector<8x1xf32> to vector<8x96xf32>
    %540 = arith.mulf %535, %539 : vector<8x96xf32>
    %541 = vector.broadcast %517 : vector<1x96xf32> to vector<8x96xf32>
    %542 = arith.mulf %540, %541 : vector<8x96xf32>
    %543 = vector.broadcast %520 : vector<1x96xf32> to vector<8x96xf32>
    %544 = arith.addf %542, %543 : vector<8x96xf32>
    %545 = arith.addf %421, %544 : vector<8x96xf32>
    %cst_210 = arith.constant 0.000000e+00 : f32
    %546 = vector.broadcast %cst_210 : f32 to vector<8x96xf32>
    %547 = arith.maximumf %545, %546 : vector<8x96xf32>
    %548 = arith.index_cast %arg0 : i32 to index
    %c0_211 = arith.constant 0 : index
    %c0_212 = arith.constant 0 : index
    %549 = vector.load %arg18[%548, %c0_211, %c0_212] : memref<8x96x48xf32, #tpu.memory_space<vmem>>, vector<1x96x48xf32>
    %550 = vector.shape_cast %549 : vector<1x96x48xf32> to vector<96x48xf32>
    %cst_213 = arith.constant dense<0.000000e+00> : vector<8x48xf32>
    %551 = tpu.matmul %547, %550, %cst_213 {dimension_numbers = #tpu.dot_dimension_numbers<[1], [0], [0], [1], [0, 0, 1, 1], [], []>} : vector<8x96xf32>, vector<96x48xf32>, vector<8x48xf32> -> vector<8x48xf32>
    %552 = arith.index_cast %arg0 : i32 to index
    %c0_214 = arith.constant 0 : index
    %c0_215 = arith.constant 0 : index
    %553 = vector.load %arg19[%552, %c0_214, %c0_215] : memref<8x1x48xf32, #tpu.memory_space<vmem>>, vector<1x1x48xf32>
    %554 = vector.shape_cast %553 : vector<1x1x48xf32> to vector<1x48xf32>
    %555 = vector.broadcast %554 : vector<1x48xf32> to vector<8x48xf32>
    %556 = arith.addf %551, %555 : vector<8x48xf32>
    %cst_216 = arith.constant 0.000000e+00 : f32
    %557 = vector.broadcast %cst_216 : f32 to vector<8x48xf32>
    %558 = arith.maximumf %556, %557 : vector<8x48xf32>
    %559 = arith.index_cast %arg0 : i32 to index
    %c0_217 = arith.constant 0 : index
    %c0_218 = arith.constant 0 : index
    %560 = vector.load %arg20[%559, %c0_217, %c0_218] : memref<8x48x96xf32, #tpu.memory_space<vmem>>, vector<1x48x96xf32>
    %561 = vector.shape_cast %560 : vector<1x48x96xf32> to vector<48x96xf32>
    %cst_219 = arith.constant dense<0.000000e+00> : vector<8x96xf32>
    %562 = tpu.matmul %558, %561, %cst_219 {dimension_numbers = #tpu.dot_dimension_numbers<[1], [0], [0], [1], [0, 0, 1, 1], [], []>} : vector<8x48xf32>, vector<48x96xf32>, vector<8x96xf32> -> vector<8x96xf32>
    %563 = arith.index_cast %arg0 : i32 to index
    %c0_220 = arith.constant 0 : index
    %c0_221 = arith.constant 0 : index
    %564 = vector.load %arg21[%563, %c0_220, %c0_221] : memref<8x1x96xf32, #tpu.memory_space<vmem>>, vector<1x1x96xf32>
    %565 = vector.shape_cast %564 : vector<1x1x96xf32> to vector<1x96xf32>
    %566 = vector.broadcast %565 : vector<1x96xf32> to vector<8x96xf32>
    %567 = arith.addf %562, %566 : vector<8x96xf32>
    %568 = arith.addf %547, %567 : vector<8x96xf32>
    %cst_222 = arith.constant 0.000000e+00 : f32
    %569 = vector.broadcast %cst_222 : f32 to vector<8x96xf32>
    %570 = arith.maximumf %568, %569 : vector<8x96xf32>
    %571 = arith.index_cast %arg0 : i32 to index
    %c0_223 = arith.constant 0 : index
    %c0_224 = arith.constant 0 : index
    %572 = vector.load %arg22[%571, %c0_223, %c0_224] : memref<8x96x96xf32, #tpu.memory_space<vmem>>, vector<1x96x96xf32>
    %573 = vector.shape_cast %572 : vector<1x96x96xf32> to vector<96x96xf32>
    %cst_225 = arith.constant dense<0.000000e+00> : vector<8x96xf32>
    %574 = tpu.matmul %570, %573, %cst_225 {dimension_numbers = #tpu.dot_dimension_numbers<[1], [0], [0], [1], [0, 0, 1, 1], [], []>} : vector<8x96xf32>, vector<96x96xf32>, vector<8x96xf32> -> vector<8x96xf32>
    %575 = arith.index_cast %arg0 : i32 to index
    %c0_226 = arith.constant 0 : index
    %c0_227 = arith.constant 0 : index
    %576 = vector.load %arg23[%575, %c0_226, %c0_227] : memref<8x1x96xf32, #tpu.memory_space<vmem>>, vector<1x1x96xf32>
    %577 = vector.shape_cast %576 : vector<1x1x96xf32> to vector<1x96xf32>
    %578 = vector.broadcast %577 : vector<1x96xf32> to vector<8x96xf32>
    %579 = arith.addf %574, %578 : vector<8x96xf32>
    %cst_228 = arith.constant 0.000000e+00 : f32
    %580 = vector.broadcast %cst_228 : f32 to vector<8x96xf32>
    %581 = arith.maximumf %579, %580 : vector<8x96xf32>
    %582 = arith.index_cast %arg0 : i32 to index
    %c0_229 = arith.constant 0 : index
    %c0_230 = arith.constant 0 : index
    %583 = vector.load %arg24[%582, %c0_229, %c0_230] : memref<8x1x96xf32, #tpu.memory_space<vmem>>, vector<1x1x96xf32>
    %584 = vector.shape_cast %583 : vector<1x1x96xf32> to vector<1x96xf32>
    %585 = vector.broadcast %584 : vector<1x96xf32> to vector<8x96xf32>
    %586 = arith.mulf %581, %585 : vector<8x96xf32>
    %cst_231 = arith.constant dense<0.000000e+00> : vector<8xf32>
    %587 = vector.multi_reduction <add>, %586, %cst_231 [1] : vector<8x96xf32> to vector<8xf32>
    %588 = vector.shape_cast %587 : vector<8xf32> to vector<8x1xf32>
    %589 = arith.index_cast %arg0 : i32 to index
    %c0_232 = arith.constant 0 : index
    %c0_233 = arith.constant 0 : index
    %590 = vector.load %arg25[%589, %c0_232, %c0_233] : memref<8x1x1xf32, #tpu.memory_space<vmem>>, vector<1x1x1xf32>
    %591 = vector.shape_cast %590 : vector<1x1x1xf32> to vector<1x1xf32>
    %592 = vector.broadcast %591 : vector<1x1xf32> to vector<8x1xf32>
    %593 = arith.addf %588, %592 : vector<8x1xf32>
    %c4_i32_234 = arith.constant 4 : i32
    %594 = arith.addi %arg0, %c4_i32_234 : i32
    %595 = arith.index_cast %594 : i32 to index
    %c0_235 = arith.constant 0 : index
    %c0_236 = arith.constant 0 : index
    %596 = vector.load %arg2[%595, %c0_235, %c0_236] : memref<8x10x96xf32, #tpu.memory_space<vmem>>, vector<1x10x96xf32>
    %597 = vector.shape_cast %596 : vector<1x10x96xf32> to vector<10x96xf32>
    %cst_237 = arith.constant dense<0.000000e+00> : vector<8x96xf32>
    %598 = tpu.matmul %2, %597, %cst_237 {dimension_numbers = #tpu.dot_dimension_numbers<[1], [0], [0], [1], [0, 0, 1, 1], [], []>} : vector<8x10xf32>, vector<10x96xf32>, vector<8x96xf32> -> vector<8x96xf32>
    %599 = arith.index_cast %594 : i32 to index
    %c0_238 = arith.constant 0 : index
    %c0_239 = arith.constant 0 : index
    %600 = vector.load %arg3[%599, %c0_238, %c0_239] : memref<8x1x96xf32, #tpu.memory_space<vmem>>, vector<1x1x96xf32>
    %601 = vector.shape_cast %600 : vector<1x1x96xf32> to vector<1x96xf32>
    %602 = vector.broadcast %601 : vector<1x96xf32> to vector<8x96xf32>
    %603 = arith.addf %598, %602 : vector<8x96xf32>
    %604 = arith.index_cast %594 : i32 to index
    %c0_240 = arith.constant 0 : index
    %c0_241 = arith.constant 0 : index
    %605 = vector.load %arg4[%604, %c0_240, %c0_241] : memref<8x1x96xf32, #tpu.memory_space<vmem>>, vector<1x1x96xf32>
    %606 = vector.shape_cast %605 : vector<1x1x96xf32> to vector<1x96xf32>
    %607 = arith.index_cast %594 : i32 to index
    %c0_242 = arith.constant 0 : index
    %c0_243 = arith.constant 0 : index
    %608 = vector.load %arg5[%607, %c0_242, %c0_243] : memref<8x1x96xf32, #tpu.memory_space<vmem>>, vector<1x1x96xf32>
    %609 = vector.shape_cast %608 : vector<1x1x96xf32> to vector<1x96xf32>
    %cst_244 = arith.constant dense<0.000000e+00> : vector<8xf32>
    %610 = vector.multi_reduction <add>, %603, %cst_244 [1] : vector<8x96xf32> to vector<8xf32>
    %611 = vector.shape_cast %610 : vector<8xf32> to vector<8x1xf32>
    %cst_245 = arith.constant 0.010416667 : f32
    %612 = vector.broadcast %cst_245 : f32 to vector<8x1xf32>
    %613 = arith.mulf %611, %612 : vector<8x1xf32>
    %614 = arith.mulf %603, %603 : vector<8x96xf32>
    %cst_246 = arith.constant dense<0.000000e+00> : vector<8xf32>
    %615 = vector.multi_reduction <add>, %614, %cst_246 [1] : vector<8x96xf32> to vector<8xf32>
    %616 = vector.shape_cast %615 : vector<8xf32> to vector<8x1xf32>
    %cst_247 = arith.constant 0.010416667 : f32
    %617 = vector.broadcast %cst_247 : f32 to vector<8x1xf32>
    %618 = arith.mulf %616, %617 : vector<8x1xf32>
    %619 = arith.mulf %613, %613 : vector<8x1xf32>
    %620 = arith.subf %618, %619 : vector<8x1xf32>
    %cst_248 = arith.constant 0.000000e+00 : f32
    %621 = vector.broadcast %cst_248 : f32 to vector<8x1xf32>
    %622 = arith.maximumf %620, %621 : vector<8x1xf32>
    %623 = vector.broadcast %613 : vector<8x1xf32> to vector<8x96xf32>
    %624 = arith.subf %603, %623 : vector<8x96xf32>
    %cst_249 = arith.constant 9.99999974E-6 : f32
    %625 = vector.broadcast %cst_249 : f32 to vector<8x1xf32>
    %626 = arith.addf %622, %625 : vector<8x1xf32>
    %627 = math.rsqrt %626 : vector<8x1xf32>
    %628 = vector.broadcast %627 : vector<8x1xf32> to vector<8x96xf32>
    %629 = arith.mulf %624, %628 : vector<8x96xf32>
    %630 = vector.broadcast %606 : vector<1x96xf32> to vector<8x96xf32>
    %631 = arith.mulf %629, %630 : vector<8x96xf32>
    %632 = vector.broadcast %609 : vector<1x96xf32> to vector<8x96xf32>
    %633 = arith.addf %631, %632 : vector<8x96xf32>
    %cst_250 = arith.constant 0.000000e+00 : f32
    %634 = vector.broadcast %cst_250 : f32 to vector<8x96xf32>
    %635 = arith.maximumf %633, %634 : vector<8x96xf32>
    %c4_i32_251 = arith.constant 4 : i32
    %636 = arith.muli %594, %c4_i32_251 : i32
    %c0_i32_252 = arith.constant 0 : i32
    %637 = arith.addi %636, %c0_i32_252 : i32
    %638 = arith.index_cast %637 : i32 to index
    %c0_253 = arith.constant 0 : index
    %c0_254 = arith.constant 0 : index
    %639 = vector.load %arg6[%638, %c0_253, %c0_254] : memref<32x96x96xf32, #tpu.memory_space<vmem>>, vector<1x96x96xf32>
    %640 = vector.shape_cast %639 : vector<1x96x96xf32> to vector<96x96xf32>
    %cst_255 = arith.constant dense<0.000000e+00> : vector<8x96xf32>
    %641 = tpu.matmul %635, %640, %cst_255 {dimension_numbers = #tpu.dot_dimension_numbers<[1], [0], [0], [1], [0, 0, 1, 1], [], []>} : vector<8x96xf32>, vector<96x96xf32>, vector<8x96xf32> -> vector<8x96xf32>
    %642 = arith.index_cast %637 : i32 to index
    %c0_256 = arith.constant 0 : index
    %c0_257 = arith.constant 0 : index
    %643 = vector.load %arg7[%642, %c0_256, %c0_257] : memref<32x1x96xf32, #tpu.memory_space<vmem>>, vector<1x1x96xf32>
    %644 = vector.shape_cast %643 : vector<1x1x96xf32> to vector<1x96xf32>
    %645 = vector.broadcast %644 : vector<1x96xf32> to vector<8x96xf32>
    %646 = arith.addf %641, %645 : vector<8x96xf32>
    %647 = arith.index_cast %637 : i32 to index
    %c0_258 = arith.constant 0 : index
    %c0_259 = arith.constant 0 : index
    %648 = vector.load %arg8[%647, %c0_258, %c0_259] : memref<32x1x96xf32, #tpu.memory_space<vmem>>, vector<1x1x96xf32>
    %649 = vector.shape_cast %648 : vector<1x1x96xf32> to vector<1x96xf32>
    %650 = arith.index_cast %637 : i32 to index
    %c0_260 = arith.constant 0 : index
    %c0_261 = arith.constant 0 : index
    %651 = vector.load %arg9[%650, %c0_260, %c0_261] : memref<32x1x96xf32, #tpu.memory_space<vmem>>, vector<1x1x96xf32>
    %652 = vector.shape_cast %651 : vector<1x1x96xf32> to vector<1x96xf32>
    %cst_262 = arith.constant dense<0.000000e+00> : vector<8xf32>
    %653 = vector.multi_reduction <add>, %646, %cst_262 [1] : vector<8x96xf32> to vector<8xf32>
    %654 = vector.shape_cast %653 : vector<8xf32> to vector<8x1xf32>
    %cst_263 = arith.constant 0.010416667 : f32
    %655 = vector.broadcast %cst_263 : f32 to vector<8x1xf32>
    %656 = arith.mulf %654, %655 : vector<8x1xf32>
    %657 = arith.mulf %646, %646 : vector<8x96xf32>
    %cst_264 = arith.constant dense<0.000000e+00> : vector<8xf32>
    %658 = vector.multi_reduction <add>, %657, %cst_264 [1] : vector<8x96xf32> to vector<8xf32>
    %659 = vector.shape_cast %658 : vector<8xf32> to vector<8x1xf32>
    %cst_265 = arith.constant 0.010416667 : f32
    %660 = vector.broadcast %cst_265 : f32 to vector<8x1xf32>
    %661 = arith.mulf %659, %660 : vector<8x1xf32>
    %662 = arith.mulf %656, %656 : vector<8x1xf32>
    %663 = arith.subf %661, %662 : vector<8x1xf32>
    %cst_266 = arith.constant 0.000000e+00 : f32
    %664 = vector.broadcast %cst_266 : f32 to vector<8x1xf32>
    %665 = arith.maximumf %663, %664 : vector<8x1xf32>
    %666 = vector.broadcast %656 : vector<8x1xf32> to vector<8x96xf32>
    %667 = arith.subf %646, %666 : vector<8x96xf32>
    %cst_267 = arith.constant 9.99999974E-6 : f32
    %668 = vector.broadcast %cst_267 : f32 to vector<8x1xf32>
    %669 = arith.addf %665, %668 : vector<8x1xf32>
    %670 = math.rsqrt %669 : vector<8x1xf32>
    %671 = vector.broadcast %670 : vector<8x1xf32> to vector<8x96xf32>
    %672 = arith.mulf %667, %671 : vector<8x96xf32>
    %673 = vector.broadcast %649 : vector<1x96xf32> to vector<8x96xf32>
    %674 = arith.mulf %672, %673 : vector<8x96xf32>
    %675 = vector.broadcast %652 : vector<1x96xf32> to vector<8x96xf32>
    %676 = arith.addf %674, %675 : vector<8x96xf32>
    %cst_268 = arith.constant 0.000000e+00 : f32
    %677 = vector.broadcast %cst_268 : f32 to vector<8x96xf32>
    %678 = arith.maximumf %676, %677 : vector<8x96xf32>
    %679 = arith.index_cast %637 : i32 to index
    %c0_269 = arith.constant 0 : index
    %c0_270 = arith.constant 0 : index
    %680 = vector.load %arg10[%679, %c0_269, %c0_270] : memref<32x96x144xf32, #tpu.memory_space<vmem>>, vector<1x96x144xf32>
    %681 = vector.shape_cast %680 : vector<1x96x144xf32> to vector<96x144xf32>
    %cst_271 = arith.constant dense<0.000000e+00> : vector<8x144xf32>
    %682 = tpu.matmul %678, %681, %cst_271 {dimension_numbers = #tpu.dot_dimension_numbers<[1], [0], [0], [1], [0, 0, 1, 1], [], []>} : vector<8x96xf32>, vector<96x144xf32>, vector<8x144xf32> -> vector<8x144xf32>
    %683 = arith.index_cast %637 : i32 to index
    %c0_272 = arith.constant 0 : index
    %c0_273 = arith.constant 0 : index
    %684 = vector.load %arg11[%683, %c0_272, %c0_273] : memref<32x1x144xf32, #tpu.memory_space<vmem>>, vector<1x1x144xf32>
    %685 = vector.shape_cast %684 : vector<1x1x144xf32> to vector<1x144xf32>
    %686 = vector.broadcast %685 : vector<1x144xf32> to vector<8x144xf32>
    %687 = arith.addf %682, %686 : vector<8x144xf32>
    %688 = arith.index_cast %637 : i32 to index
    %c0_274 = arith.constant 0 : index
    %c0_275 = arith.constant 0 : index
    %689 = vector.load %arg12[%688, %c0_274, %c0_275] : memref<32x1x144xf32, #tpu.memory_space<vmem>>, vector<1x1x144xf32>
    %690 = vector.shape_cast %689 : vector<1x1x144xf32> to vector<1x144xf32>
    %691 = arith.index_cast %637 : i32 to index
    %c0_276 = arith.constant 0 : index
    %c0_277 = arith.constant 0 : index
    %692 = vector.load %arg13[%691, %c0_276, %c0_277] : memref<32x1x144xf32, #tpu.memory_space<vmem>>, vector<1x1x144xf32>
    %693 = vector.shape_cast %692 : vector<1x1x144xf32> to vector<1x144xf32>
    %cst_278 = arith.constant dense<0.000000e+00> : vector<8xf32>
    %694 = vector.multi_reduction <add>, %687, %cst_278 [1] : vector<8x144xf32> to vector<8xf32>
    %695 = vector.shape_cast %694 : vector<8xf32> to vector<8x1xf32>
    %cst_279 = arith.constant 0.0069444445 : f32
    %696 = vector.broadcast %cst_279 : f32 to vector<8x1xf32>
    %697 = arith.mulf %695, %696 : vector<8x1xf32>
    %698 = arith.mulf %687, %687 : vector<8x144xf32>
    %cst_280 = arith.constant dense<0.000000e+00> : vector<8xf32>
    %699 = vector.multi_reduction <add>, %698, %cst_280 [1] : vector<8x144xf32> to vector<8xf32>
    %700 = vector.shape_cast %699 : vector<8xf32> to vector<8x1xf32>
    %cst_281 = arith.constant 0.0069444445 : f32
    %701 = vector.broadcast %cst_281 : f32 to vector<8x1xf32>
    %702 = arith.mulf %700, %701 : vector<8x1xf32>
    %703 = arith.mulf %697, %697 : vector<8x1xf32>
    %704 = arith.subf %702, %703 : vector<8x1xf32>
    %cst_282 = arith.constant 0.000000e+00 : f32
    %705 = vector.broadcast %cst_282 : f32 to vector<8x1xf32>
    %706 = arith.maximumf %704, %705 : vector<8x1xf32>
    %707 = vector.broadcast %697 : vector<8x1xf32> to vector<8x144xf32>
    %708 = arith.subf %687, %707 : vector<8x144xf32>
    %cst_283 = arith.constant 9.99999974E-6 : f32
    %709 = vector.broadcast %cst_283 : f32 to vector<8x1xf32>
    %710 = arith.addf %706, %709 : vector<8x1xf32>
    %711 = math.rsqrt %710 : vector<8x1xf32>
    %712 = vector.broadcast %711 : vector<8x1xf32> to vector<8x144xf32>
    %713 = arith.mulf %708, %712 : vector<8x144xf32>
    %714 = vector.broadcast %690 : vector<1x144xf32> to vector<8x144xf32>
    %715 = arith.mulf %713, %714 : vector<8x144xf32>
    %716 = vector.broadcast %693 : vector<1x144xf32> to vector<8x144xf32>
    %717 = arith.addf %715, %716 : vector<8x144xf32>
    %cst_284 = arith.constant 0.000000e+00 : f32
    %718 = vector.broadcast %cst_284 : f32 to vector<8x144xf32>
    %719 = arith.maximumf %717, %718 : vector<8x144xf32>
    %720 = arith.index_cast %637 : i32 to index
    %c0_285 = arith.constant 0 : index
    %c0_286 = arith.constant 0 : index
    %721 = vector.load %arg14[%720, %c0_285, %c0_286] : memref<32x144x96xf32, #tpu.memory_space<vmem>>, vector<1x144x96xf32>
    %722 = vector.shape_cast %721 : vector<1x144x96xf32> to vector<144x96xf32>
    %cst_287 = arith.constant dense<0.000000e+00> : vector<8x96xf32>
    %723 = tpu.matmul %719, %722, %cst_287 {dimension_numbers = #tpu.dot_dimension_numbers<[1], [0], [0], [1], [0, 0, 1, 1], [], []>} : vector<8x144xf32>, vector<144x96xf32>, vector<8x96xf32> -> vector<8x96xf32>
    %724 = arith.index_cast %637 : i32 to index
    %c0_288 = arith.constant 0 : index
    %c0_289 = arith.constant 0 : index
    %725 = vector.load %arg15[%724, %c0_288, %c0_289] : memref<32x1x96xf32, #tpu.memory_space<vmem>>, vector<1x1x96xf32>
    %726 = vector.shape_cast %725 : vector<1x1x96xf32> to vector<1x96xf32>
    %727 = vector.broadcast %726 : vector<1x96xf32> to vector<8x96xf32>
    %728 = arith.addf %723, %727 : vector<8x96xf32>
    %729 = arith.index_cast %637 : i32 to index
    %c0_290 = arith.constant 0 : index
    %c0_291 = arith.constant 0 : index
    %730 = vector.load %arg16[%729, %c0_290, %c0_291] : memref<32x1x96xf32, #tpu.memory_space<vmem>>, vector<1x1x96xf32>
    %731 = vector.shape_cast %730 : vector<1x1x96xf32> to vector<1x96xf32>
    %732 = arith.index_cast %637 : i32 to index
    %c0_292 = arith.constant 0 : index
    %c0_293 = arith.constant 0 : index
    %733 = vector.load %arg17[%732, %c0_292, %c0_293] : memref<32x1x96xf32, #tpu.memory_space<vmem>>, vector<1x1x96xf32>
    %734 = vector.shape_cast %733 : vector<1x1x96xf32> to vector<1x96xf32>
    %cst_294 = arith.constant dense<0.000000e+00> : vector<8xf32>
    %735 = vector.multi_reduction <add>, %728, %cst_294 [1] : vector<8x96xf32> to vector<8xf32>
    %736 = vector.shape_cast %735 : vector<8xf32> to vector<8x1xf32>
    %cst_295 = arith.constant 0.010416667 : f32
    %737 = vector.broadcast %cst_295 : f32 to vector<8x1xf32>
    %738 = arith.mulf %736, %737 : vector<8x1xf32>
    %739 = arith.mulf %728, %728 : vector<8x96xf32>
    %cst_296 = arith.constant dense<0.000000e+00> : vector<8xf32>
    %740 = vector.multi_reduction <add>, %739, %cst_296 [1] : vector<8x96xf32> to vector<8xf32>
    %741 = vector.shape_cast %740 : vector<8xf32> to vector<8x1xf32>
    %cst_297 = arith.constant 0.010416667 : f32
    %742 = vector.broadcast %cst_297 : f32 to vector<8x1xf32>
    %743 = arith.mulf %741, %742 : vector<8x1xf32>
    %744 = arith.mulf %738, %738 : vector<8x1xf32>
    %745 = arith.subf %743, %744 : vector<8x1xf32>
    %cst_298 = arith.constant 0.000000e+00 : f32
    %746 = vector.broadcast %cst_298 : f32 to vector<8x1xf32>
    %747 = arith.maximumf %745, %746 : vector<8x1xf32>
    %748 = vector.broadcast %738 : vector<8x1xf32> to vector<8x96xf32>
    %749 = arith.subf %728, %748 : vector<8x96xf32>
    %cst_299 = arith.constant 9.99999974E-6 : f32
    %750 = vector.broadcast %cst_299 : f32 to vector<8x1xf32>
    %751 = arith.addf %747, %750 : vector<8x1xf32>
    %752 = math.rsqrt %751 : vector<8x1xf32>
    %753 = vector.broadcast %752 : vector<8x1xf32> to vector<8x96xf32>
    %754 = arith.mulf %749, %753 : vector<8x96xf32>
    %755 = vector.broadcast %731 : vector<1x96xf32> to vector<8x96xf32>
    %756 = arith.mulf %754, %755 : vector<8x96xf32>
    %757 = vector.broadcast %734 : vector<1x96xf32> to vector<8x96xf32>
    %758 = arith.addf %756, %757 : vector<8x96xf32>
    %759 = arith.addf %635, %758 : vector<8x96xf32>
    %cst_300 = arith.constant 0.000000e+00 : f32
    %760 = vector.broadcast %cst_300 : f32 to vector<8x96xf32>
    %761 = arith.maximumf %759, %760 : vector<8x96xf32>
    %c4_i32_301 = arith.constant 4 : i32
    %762 = arith.muli %594, %c4_i32_301 : i32
    %c1_i32_302 = arith.constant 1 : i32
    %763 = arith.addi %762, %c1_i32_302 : i32
    %764 = arith.index_cast %763 : i32 to index
    %c0_303 = arith.constant 0 : index
    %c0_304 = arith.constant 0 : index
    %765 = vector.load %arg6[%764, %c0_303, %c0_304] : memref<32x96x96xf32, #tpu.memory_space<vmem>>, vector<1x96x96xf32>
    %766 = vector.shape_cast %765 : vector<1x96x96xf32> to vector<96x96xf32>
    %cst_305 = arith.constant dense<0.000000e+00> : vector<8x96xf32>
    %767 = tpu.matmul %761, %766, %cst_305 {dimension_numbers = #tpu.dot_dimension_numbers<[1], [0], [0], [1], [0, 0, 1, 1], [], []>} : vector<8x96xf32>, vector<96x96xf32>, vector<8x96xf32> -> vector<8x96xf32>
    %768 = arith.index_cast %763 : i32 to index
    %c0_306 = arith.constant 0 : index
    %c0_307 = arith.constant 0 : index
    %769 = vector.load %arg7[%768, %c0_306, %c0_307] : memref<32x1x96xf32, #tpu.memory_space<vmem>>, vector<1x1x96xf32>
    %770 = vector.shape_cast %769 : vector<1x1x96xf32> to vector<1x96xf32>
    %771 = vector.broadcast %770 : vector<1x96xf32> to vector<8x96xf32>
    %772 = arith.addf %767, %771 : vector<8x96xf32>
    %773 = arith.index_cast %763 : i32 to index
    %c0_308 = arith.constant 0 : index
    %c0_309 = arith.constant 0 : index
    %774 = vector.load %arg8[%773, %c0_308, %c0_309] : memref<32x1x96xf32, #tpu.memory_space<vmem>>, vector<1x1x96xf32>
    %775 = vector.shape_cast %774 : vector<1x1x96xf32> to vector<1x96xf32>
    %776 = arith.index_cast %763 : i32 to index
    %c0_310 = arith.constant 0 : index
    %c0_311 = arith.constant 0 : index
    %777 = vector.load %arg9[%776, %c0_310, %c0_311] : memref<32x1x96xf32, #tpu.memory_space<vmem>>, vector<1x1x96xf32>
    %778 = vector.shape_cast %777 : vector<1x1x96xf32> to vector<1x96xf32>
    %cst_312 = arith.constant dense<0.000000e+00> : vector<8xf32>
    %779 = vector.multi_reduction <add>, %772, %cst_312 [1] : vector<8x96xf32> to vector<8xf32>
    %780 = vector.shape_cast %779 : vector<8xf32> to vector<8x1xf32>
    %cst_313 = arith.constant 0.010416667 : f32
    %781 = vector.broadcast %cst_313 : f32 to vector<8x1xf32>
    %782 = arith.mulf %780, %781 : vector<8x1xf32>
    %783 = arith.mulf %772, %772 : vector<8x96xf32>
    %cst_314 = arith.constant dense<0.000000e+00> : vector<8xf32>
    %784 = vector.multi_reduction <add>, %783, %cst_314 [1] : vector<8x96xf32> to vector<8xf32>
    %785 = vector.shape_cast %784 : vector<8xf32> to vector<8x1xf32>
    %cst_315 = arith.constant 0.010416667 : f32
    %786 = vector.broadcast %cst_315 : f32 to vector<8x1xf32>
    %787 = arith.mulf %785, %786 : vector<8x1xf32>
    %788 = arith.mulf %782, %782 : vector<8x1xf32>
    %789 = arith.subf %787, %788 : vector<8x1xf32>
    %cst_316 = arith.constant 0.000000e+00 : f32
    %790 = vector.broadcast %cst_316 : f32 to vector<8x1xf32>
    %791 = arith.maximumf %789, %790 : vector<8x1xf32>
    %792 = vector.broadcast %782 : vector<8x1xf32> to vector<8x96xf32>
    %793 = arith.subf %772, %792 : vector<8x96xf32>
    %cst_317 = arith.constant 9.99999974E-6 : f32
    %794 = vector.broadcast %cst_317 : f32 to vector<8x1xf32>
    %795 = arith.addf %791, %794 : vector<8x1xf32>
    %796 = math.rsqrt %795 : vector<8x1xf32>
    %797 = vector.broadcast %796 : vector<8x1xf32> to vector<8x96xf32>
    %798 = arith.mulf %793, %797 : vector<8x96xf32>
    %799 = vector.broadcast %775 : vector<1x96xf32> to vector<8x96xf32>
    %800 = arith.mulf %798, %799 : vector<8x96xf32>
    %801 = vector.broadcast %778 : vector<1x96xf32> to vector<8x96xf32>
    %802 = arith.addf %800, %801 : vector<8x96xf32>
    %cst_318 = arith.constant 0.000000e+00 : f32
    %803 = vector.broadcast %cst_318 : f32 to vector<8x96xf32>
    %804 = arith.maximumf %802, %803 : vector<8x96xf32>
    %805 = arith.index_cast %763 : i32 to index
    %c0_319 = arith.constant 0 : index
    %c0_320 = arith.constant 0 : index
    %806 = vector.load %arg10[%805, %c0_319, %c0_320] : memref<32x96x144xf32, #tpu.memory_space<vmem>>, vector<1x96x144xf32>
    %807 = vector.shape_cast %806 : vector<1x96x144xf32> to vector<96x144xf32>
    %cst_321 = arith.constant dense<0.000000e+00> : vector<8x144xf32>
    %808 = tpu.matmul %804, %807, %cst_321 {dimension_numbers = #tpu.dot_dimension_numbers<[1], [0], [0], [1], [0, 0, 1, 1], [], []>} : vector<8x96xf32>, vector<96x144xf32>, vector<8x144xf32> -> vector<8x144xf32>
    %809 = arith.index_cast %763 : i32 to index
    %c0_322 = arith.constant 0 : index
    %c0_323 = arith.constant 0 : index
    %810 = vector.load %arg11[%809, %c0_322, %c0_323] : memref<32x1x144xf32, #tpu.memory_space<vmem>>, vector<1x1x144xf32>
    %811 = vector.shape_cast %810 : vector<1x1x144xf32> to vector<1x144xf32>
    %812 = vector.broadcast %811 : vector<1x144xf32> to vector<8x144xf32>
    %813 = arith.addf %808, %812 : vector<8x144xf32>
    %814 = arith.index_cast %763 : i32 to index
    %c0_324 = arith.constant 0 : index
    %c0_325 = arith.constant 0 : index
    %815 = vector.load %arg12[%814, %c0_324, %c0_325] : memref<32x1x144xf32, #tpu.memory_space<vmem>>, vector<1x1x144xf32>
    %816 = vector.shape_cast %815 : vector<1x1x144xf32> to vector<1x144xf32>
    %817 = arith.index_cast %763 : i32 to index
    %c0_326 = arith.constant 0 : index
    %c0_327 = arith.constant 0 : index
    %818 = vector.load %arg13[%817, %c0_326, %c0_327] : memref<32x1x144xf32, #tpu.memory_space<vmem>>, vector<1x1x144xf32>
    %819 = vector.shape_cast %818 : vector<1x1x144xf32> to vector<1x144xf32>
    %cst_328 = arith.constant dense<0.000000e+00> : vector<8xf32>
    %820 = vector.multi_reduction <add>, %813, %cst_328 [1] : vector<8x144xf32> to vector<8xf32>
    %821 = vector.shape_cast %820 : vector<8xf32> to vector<8x1xf32>
    %cst_329 = arith.constant 0.0069444445 : f32
    %822 = vector.broadcast %cst_329 : f32 to vector<8x1xf32>
    %823 = arith.mulf %821, %822 : vector<8x1xf32>
    %824 = arith.mulf %813, %813 : vector<8x144xf32>
    %cst_330 = arith.constant dense<0.000000e+00> : vector<8xf32>
    %825 = vector.multi_reduction <add>, %824, %cst_330 [1] : vector<8x144xf32> to vector<8xf32>
    %826 = vector.shape_cast %825 : vector<8xf32> to vector<8x1xf32>
    %cst_331 = arith.constant 0.0069444445 : f32
    %827 = vector.broadcast %cst_331 : f32 to vector<8x1xf32>
    %828 = arith.mulf %826, %827 : vector<8x1xf32>
    %829 = arith.mulf %823, %823 : vector<8x1xf32>
    %830 = arith.subf %828, %829 : vector<8x1xf32>
    %cst_332 = arith.constant 0.000000e+00 : f32
    %831 = vector.broadcast %cst_332 : f32 to vector<8x1xf32>
    %832 = arith.maximumf %830, %831 : vector<8x1xf32>
    %833 = vector.broadcast %823 : vector<8x1xf32> to vector<8x144xf32>
    %834 = arith.subf %813, %833 : vector<8x144xf32>
    %cst_333 = arith.constant 9.99999974E-6 : f32
    %835 = vector.broadcast %cst_333 : f32 to vector<8x1xf32>
    %836 = arith.addf %832, %835 : vector<8x1xf32>
    %837 = math.rsqrt %836 : vector<8x1xf32>
    %838 = vector.broadcast %837 : vector<8x1xf32> to vector<8x144xf32>
    %839 = arith.mulf %834, %838 : vector<8x144xf32>
    %840 = vector.broadcast %816 : vector<1x144xf32> to vector<8x144xf32>
    %841 = arith.mulf %839, %840 : vector<8x144xf32>
    %842 = vector.broadcast %819 : vector<1x144xf32> to vector<8x144xf32>
    %843 = arith.addf %841, %842 : vector<8x144xf32>
    %cst_334 = arith.constant 0.000000e+00 : f32
    %844 = vector.broadcast %cst_334 : f32 to vector<8x144xf32>
    %845 = arith.maximumf %843, %844 : vector<8x144xf32>
    %846 = arith.index_cast %763 : i32 to index
    %c0_335 = arith.constant 0 : index
    %c0_336 = arith.constant 0 : index
    %847 = vector.load %arg14[%846, %c0_335, %c0_336] : memref<32x144x96xf32, #tpu.memory_space<vmem>>, vector<1x144x96xf32>
    %848 = vector.shape_cast %847 : vector<1x144x96xf32> to vector<144x96xf32>
    %cst_337 = arith.constant dense<0.000000e+00> : vector<8x96xf32>
    %849 = tpu.matmul %845, %848, %cst_337 {dimension_numbers = #tpu.dot_dimension_numbers<[1], [0], [0], [1], [0, 0, 1, 1], [], []>} : vector<8x144xf32>, vector<144x96xf32>, vector<8x96xf32> -> vector<8x96xf32>
    %850 = arith.index_cast %763 : i32 to index
    %c0_338 = arith.constant 0 : index
    %c0_339 = arith.constant 0 : index
    %851 = vector.load %arg15[%850, %c0_338, %c0_339] : memref<32x1x96xf32, #tpu.memory_space<vmem>>, vector<1x1x96xf32>
    %852 = vector.shape_cast %851 : vector<1x1x96xf32> to vector<1x96xf32>
    %853 = vector.broadcast %852 : vector<1x96xf32> to vector<8x96xf32>
    %854 = arith.addf %849, %853 : vector<8x96xf32>
    %855 = arith.index_cast %763 : i32 to index
    %c0_340 = arith.constant 0 : index
    %c0_341 = arith.constant 0 : index
    %856 = vector.load %arg16[%855, %c0_340, %c0_341] : memref<32x1x96xf32, #tpu.memory_space<vmem>>, vector<1x1x96xf32>
    %857 = vector.shape_cast %856 : vector<1x1x96xf32> to vector<1x96xf32>
    %858 = arith.index_cast %763 : i32 to index
    %c0_342 = arith.constant 0 : index
    %c0_343 = arith.constant 0 : index
    %859 = vector.load %arg17[%858, %c0_342, %c0_343] : memref<32x1x96xf32, #tpu.memory_space<vmem>>, vector<1x1x96xf32>
    %860 = vector.shape_cast %859 : vector<1x1x96xf32> to vector<1x96xf32>
    %cst_344 = arith.constant dense<0.000000e+00> : vector<8xf32>
    %861 = vector.multi_reduction <add>, %854, %cst_344 [1] : vector<8x96xf32> to vector<8xf32>
    %862 = vector.shape_cast %861 : vector<8xf32> to vector<8x1xf32>
    %cst_345 = arith.constant 0.010416667 : f32
    %863 = vector.broadcast %cst_345 : f32 to vector<8x1xf32>
    %864 = arith.mulf %862, %863 : vector<8x1xf32>
    %865 = arith.mulf %854, %854 : vector<8x96xf32>
    %cst_346 = arith.constant dense<0.000000e+00> : vector<8xf32>
    %866 = vector.multi_reduction <add>, %865, %cst_346 [1] : vector<8x96xf32> to vector<8xf32>
    %867 = vector.shape_cast %866 : vector<8xf32> to vector<8x1xf32>
    %cst_347 = arith.constant 0.010416667 : f32
    %868 = vector.broadcast %cst_347 : f32 to vector<8x1xf32>
    %869 = arith.mulf %867, %868 : vector<8x1xf32>
    %870 = arith.mulf %864, %864 : vector<8x1xf32>
    %871 = arith.subf %869, %870 : vector<8x1xf32>
    %cst_348 = arith.constant 0.000000e+00 : f32
    %872 = vector.broadcast %cst_348 : f32 to vector<8x1xf32>
    %873 = arith.maximumf %871, %872 : vector<8x1xf32>
    %874 = vector.broadcast %864 : vector<8x1xf32> to vector<8x96xf32>
    %875 = arith.subf %854, %874 : vector<8x96xf32>
    %cst_349 = arith.constant 9.99999974E-6 : f32
    %876 = vector.broadcast %cst_349 : f32 to vector<8x1xf32>
    %877 = arith.addf %873, %876 : vector<8x1xf32>
    %878 = math.rsqrt %877 : vector<8x1xf32>
    %879 = vector.broadcast %878 : vector<8x1xf32> to vector<8x96xf32>
    %880 = arith.mulf %875, %879 : vector<8x96xf32>
    %881 = vector.broadcast %857 : vector<1x96xf32> to vector<8x96xf32>
    %882 = arith.mulf %880, %881 : vector<8x96xf32>
    %883 = vector.broadcast %860 : vector<1x96xf32> to vector<8x96xf32>
    %884 = arith.addf %882, %883 : vector<8x96xf32>
    %885 = arith.addf %761, %884 : vector<8x96xf32>
    %cst_350 = arith.constant 0.000000e+00 : f32
    %886 = vector.broadcast %cst_350 : f32 to vector<8x96xf32>
    %887 = arith.maximumf %885, %886 : vector<8x96xf32>
    %c4_i32_351 = arith.constant 4 : i32
    %888 = arith.muli %594, %c4_i32_351 : i32
    %c2_i32_352 = arith.constant 2 : i32
    %889 = arith.addi %888, %c2_i32_352 : i32
    %890 = arith.index_cast %889 : i32 to index
    %c0_353 = arith.constant 0 : index
    %c0_354 = arith.constant 0 : index
    %891 = vector.load %arg6[%890, %c0_353, %c0_354] : memref<32x96x96xf32, #tpu.memory_space<vmem>>, vector<1x96x96xf32>
    %892 = vector.shape_cast %891 : vector<1x96x96xf32> to vector<96x96xf32>
    %cst_355 = arith.constant dense<0.000000e+00> : vector<8x96xf32>
    %893 = tpu.matmul %887, %892, %cst_355 {dimension_numbers = #tpu.dot_dimension_numbers<[1], [0], [0], [1], [0, 0, 1, 1], [], []>} : vector<8x96xf32>, vector<96x96xf32>, vector<8x96xf32> -> vector<8x96xf32>
    %894 = arith.index_cast %889 : i32 to index
    %c0_356 = arith.constant 0 : index
    %c0_357 = arith.constant 0 : index
    %895 = vector.load %arg7[%894, %c0_356, %c0_357] : memref<32x1x96xf32, #tpu.memory_space<vmem>>, vector<1x1x96xf32>
    %896 = vector.shape_cast %895 : vector<1x1x96xf32> to vector<1x96xf32>
    %897 = vector.broadcast %896 : vector<1x96xf32> to vector<8x96xf32>
    %898 = arith.addf %893, %897 : vector<8x96xf32>
    %899 = arith.index_cast %889 : i32 to index
    %c0_358 = arith.constant 0 : index
    %c0_359 = arith.constant 0 : index
    %900 = vector.load %arg8[%899, %c0_358, %c0_359] : memref<32x1x96xf32, #tpu.memory_space<vmem>>, vector<1x1x96xf32>
    %901 = vector.shape_cast %900 : vector<1x1x96xf32> to vector<1x96xf32>
    %902 = arith.index_cast %889 : i32 to index
    %c0_360 = arith.constant 0 : index
    %c0_361 = arith.constant 0 : index
    %903 = vector.load %arg9[%902, %c0_360, %c0_361] : memref<32x1x96xf32, #tpu.memory_space<vmem>>, vector<1x1x96xf32>
    %904 = vector.shape_cast %903 : vector<1x1x96xf32> to vector<1x96xf32>
    %cst_362 = arith.constant dense<0.000000e+00> : vector<8xf32>
    %905 = vector.multi_reduction <add>, %898, %cst_362 [1] : vector<8x96xf32> to vector<8xf32>
    %906 = vector.shape_cast %905 : vector<8xf32> to vector<8x1xf32>
    %cst_363 = arith.constant 0.010416667 : f32
    %907 = vector.broadcast %cst_363 : f32 to vector<8x1xf32>
    %908 = arith.mulf %906, %907 : vector<8x1xf32>
    %909 = arith.mulf %898, %898 : vector<8x96xf32>
    %cst_364 = arith.constant dense<0.000000e+00> : vector<8xf32>
    %910 = vector.multi_reduction <add>, %909, %cst_364 [1] : vector<8x96xf32> to vector<8xf32>
    %911 = vector.shape_cast %910 : vector<8xf32> to vector<8x1xf32>
    %cst_365 = arith.constant 0.010416667 : f32
    %912 = vector.broadcast %cst_365 : f32 to vector<8x1xf32>
    %913 = arith.mulf %911, %912 : vector<8x1xf32>
    %914 = arith.mulf %908, %908 : vector<8x1xf32>
    %915 = arith.subf %913, %914 : vector<8x1xf32>
    %cst_366 = arith.constant 0.000000e+00 : f32
    %916 = vector.broadcast %cst_366 : f32 to vector<8x1xf32>
    %917 = arith.maximumf %915, %916 : vector<8x1xf32>
    %918 = vector.broadcast %908 : vector<8x1xf32> to vector<8x96xf32>
    %919 = arith.subf %898, %918 : vector<8x96xf32>
    %cst_367 = arith.constant 9.99999974E-6 : f32
    %920 = vector.broadcast %cst_367 : f32 to vector<8x1xf32>
    %921 = arith.addf %917, %920 : vector<8x1xf32>
    %922 = math.rsqrt %921 : vector<8x1xf32>
    %923 = vector.broadcast %922 : vector<8x1xf32> to vector<8x96xf32>
    %924 = arith.mulf %919, %923 : vector<8x96xf32>
    %925 = vector.broadcast %901 : vector<1x96xf32> to vector<8x96xf32>
    %926 = arith.mulf %924, %925 : vector<8x96xf32>
    %927 = vector.broadcast %904 : vector<1x96xf32> to vector<8x96xf32>
    %928 = arith.addf %926, %927 : vector<8x96xf32>
    %cst_368 = arith.constant 0.000000e+00 : f32
    %929 = vector.broadcast %cst_368 : f32 to vector<8x96xf32>
    %930 = arith.maximumf %928, %929 : vector<8x96xf32>
    %931 = arith.index_cast %889 : i32 to index
    %c0_369 = arith.constant 0 : index
    %c0_370 = arith.constant 0 : index
    %932 = vector.load %arg10[%931, %c0_369, %c0_370] : memref<32x96x144xf32, #tpu.memory_space<vmem>>, vector<1x96x144xf32>
    %933 = vector.shape_cast %932 : vector<1x96x144xf32> to vector<96x144xf32>
    %cst_371 = arith.constant dense<0.000000e+00> : vector<8x144xf32>
    %934 = tpu.matmul %930, %933, %cst_371 {dimension_numbers = #tpu.dot_dimension_numbers<[1], [0], [0], [1], [0, 0, 1, 1], [], []>} : vector<8x96xf32>, vector<96x144xf32>, vector<8x144xf32> -> vector<8x144xf32>
    %935 = arith.index_cast %889 : i32 to index
    %c0_372 = arith.constant 0 : index
    %c0_373 = arith.constant 0 : index
    %936 = vector.load %arg11[%935, %c0_372, %c0_373] : memref<32x1x144xf32, #tpu.memory_space<vmem>>, vector<1x1x144xf32>
    %937 = vector.shape_cast %936 : vector<1x1x144xf32> to vector<1x144xf32>
    %938 = vector.broadcast %937 : vector<1x144xf32> to vector<8x144xf32>
    %939 = arith.addf %934, %938 : vector<8x144xf32>
    %940 = arith.index_cast %889 : i32 to index
    %c0_374 = arith.constant 0 : index
    %c0_375 = arith.constant 0 : index
    %941 = vector.load %arg12[%940, %c0_374, %c0_375] : memref<32x1x144xf32, #tpu.memory_space<vmem>>, vector<1x1x144xf32>
    %942 = vector.shape_cast %941 : vector<1x1x144xf32> to vector<1x144xf32>
    %943 = arith.index_cast %889 : i32 to index
    %c0_376 = arith.constant 0 : index
    %c0_377 = arith.constant 0 : index
    %944 = vector.load %arg13[%943, %c0_376, %c0_377] : memref<32x1x144xf32, #tpu.memory_space<vmem>>, vector<1x1x144xf32>
    %945 = vector.shape_cast %944 : vector<1x1x144xf32> to vector<1x144xf32>
    %cst_378 = arith.constant dense<0.000000e+00> : vector<8xf32>
    %946 = vector.multi_reduction <add>, %939, %cst_378 [1] : vector<8x144xf32> to vector<8xf32>
    %947 = vector.shape_cast %946 : vector<8xf32> to vector<8x1xf32>
    %cst_379 = arith.constant 0.0069444445 : f32
    %948 = vector.broadcast %cst_379 : f32 to vector<8x1xf32>
    %949 = arith.mulf %947, %948 : vector<8x1xf32>
    %950 = arith.mulf %939, %939 : vector<8x144xf32>
    %cst_380 = arith.constant dense<0.000000e+00> : vector<8xf32>
    %951 = vector.multi_reduction <add>, %950, %cst_380 [1] : vector<8x144xf32> to vector<8xf32>
    %952 = vector.shape_cast %951 : vector<8xf32> to vector<8x1xf32>
    %cst_381 = arith.constant 0.0069444445 : f32
    %953 = vector.broadcast %cst_381 : f32 to vector<8x1xf32>
    %954 = arith.mulf %952, %953 : vector<8x1xf32>
    %955 = arith.mulf %949, %949 : vector<8x1xf32>
    %956 = arith.subf %954, %955 : vector<8x1xf32>
    %cst_382 = arith.constant 0.000000e+00 : f32
    %957 = vector.broadcast %cst_382 : f32 to vector<8x1xf32>
    %958 = arith.maximumf %956, %957 : vector<8x1xf32>
    %959 = vector.broadcast %949 : vector<8x1xf32> to vector<8x144xf32>
    %960 = arith.subf %939, %959 : vector<8x144xf32>
    %cst_383 = arith.constant 9.99999974E-6 : f32
    %961 = vector.broadcast %cst_383 : f32 to vector<8x1xf32>
    %962 = arith.addf %958, %961 : vector<8x1xf32>
    %963 = math.rsqrt %962 : vector<8x1xf32>
    %964 = vector.broadcast %963 : vector<8x1xf32> to vector<8x144xf32>
    %965 = arith.mulf %960, %964 : vector<8x144xf32>
    %966 = vector.broadcast %942 : vector<1x144xf32> to vector<8x144xf32>
    %967 = arith.mulf %965, %966 : vector<8x144xf32>
    %968 = vector.broadcast %945 : vector<1x144xf32> to vector<8x144xf32>
    %969 = arith.addf %967, %968 : vector<8x144xf32>
    %cst_384 = arith.constant 0.000000e+00 : f32
    %970 = vector.broadcast %cst_384 : f32 to vector<8x144xf32>
    %971 = arith.maximumf %969, %970 : vector<8x144xf32>
    %972 = arith.index_cast %889 : i32 to index
    %c0_385 = arith.constant 0 : index
    %c0_386 = arith.constant 0 : index
    %973 = vector.load %arg14[%972, %c0_385, %c0_386] : memref<32x144x96xf32, #tpu.memory_space<vmem>>, vector<1x144x96xf32>
    %974 = vector.shape_cast %973 : vector<1x144x96xf32> to vector<144x96xf32>
    %cst_387 = arith.constant dense<0.000000e+00> : vector<8x96xf32>
    %975 = tpu.matmul %971, %974, %cst_387 {dimension_numbers = #tpu.dot_dimension_numbers<[1], [0], [0], [1], [0, 0, 1, 1], [], []>} : vector<8x144xf32>, vector<144x96xf32>, vector<8x96xf32> -> vector<8x96xf32>
    %976 = arith.index_cast %889 : i32 to index
    %c0_388 = arith.constant 0 : index
    %c0_389 = arith.constant 0 : index
    %977 = vector.load %arg15[%976, %c0_388, %c0_389] : memref<32x1x96xf32, #tpu.memory_space<vmem>>, vector<1x1x96xf32>
    %978 = vector.shape_cast %977 : vector<1x1x96xf32> to vector<1x96xf32>
    %979 = vector.broadcast %978 : vector<1x96xf32> to vector<8x96xf32>
    %980 = arith.addf %975, %979 : vector<8x96xf32>
    %981 = arith.index_cast %889 : i32 to index
    %c0_390 = arith.constant 0 : index
    %c0_391 = arith.constant 0 : index
    %982 = vector.load %arg16[%981, %c0_390, %c0_391] : memref<32x1x96xf32, #tpu.memory_space<vmem>>, vector<1x1x96xf32>
    %983 = vector.shape_cast %982 : vector<1x1x96xf32> to vector<1x96xf32>
    %984 = arith.index_cast %889 : i32 to index
    %c0_392 = arith.constant 0 : index
    %c0_393 = arith.constant 0 : index
    %985 = vector.load %arg17[%984, %c0_392, %c0_393] : memref<32x1x96xf32, #tpu.memory_space<vmem>>, vector<1x1x96xf32>
    %986 = vector.shape_cast %985 : vector<1x1x96xf32> to vector<1x96xf32>
    %cst_394 = arith.constant dense<0.000000e+00> : vector<8xf32>
    %987 = vector.multi_reduction <add>, %980, %cst_394 [1] : vector<8x96xf32> to vector<8xf32>
    %988 = vector.shape_cast %987 : vector<8xf32> to vector<8x1xf32>
    %cst_395 = arith.constant 0.010416667 : f32
    %989 = vector.broadcast %cst_395 : f32 to vector<8x1xf32>
    %990 = arith.mulf %988, %989 : vector<8x1xf32>
    %991 = arith.mulf %980, %980 : vector<8x96xf32>
    %cst_396 = arith.constant dense<0.000000e+00> : vector<8xf32>
    %992 = vector.multi_reduction <add>, %991, %cst_396 [1] : vector<8x96xf32> to vector<8xf32>
    %993 = vector.shape_cast %992 : vector<8xf32> to vector<8x1xf32>
    %cst_397 = arith.constant 0.010416667 : f32
    %994 = vector.broadcast %cst_397 : f32 to vector<8x1xf32>
    %995 = arith.mulf %993, %994 : vector<8x1xf32>
    %996 = arith.mulf %990, %990 : vector<8x1xf32>
    %997 = arith.subf %995, %996 : vector<8x1xf32>
    %cst_398 = arith.constant 0.000000e+00 : f32
    %998 = vector.broadcast %cst_398 : f32 to vector<8x1xf32>
    %999 = arith.maximumf %997, %998 : vector<8x1xf32>
    %1000 = vector.broadcast %990 : vector<8x1xf32> to vector<8x96xf32>
    %1001 = arith.subf %980, %1000 : vector<8x96xf32>
    %cst_399 = arith.constant 9.99999974E-6 : f32
    %1002 = vector.broadcast %cst_399 : f32 to vector<8x1xf32>
    %1003 = arith.addf %999, %1002 : vector<8x1xf32>
    %1004 = math.rsqrt %1003 : vector<8x1xf32>
    %1005 = vector.broadcast %1004 : vector<8x1xf32> to vector<8x96xf32>
    %1006 = arith.mulf %1001, %1005 : vector<8x96xf32>
    %1007 = vector.broadcast %983 : vector<1x96xf32> to vector<8x96xf32>
    %1008 = arith.mulf %1006, %1007 : vector<8x96xf32>
    %1009 = vector.broadcast %986 : vector<1x96xf32> to vector<8x96xf32>
    %1010 = arith.addf %1008, %1009 : vector<8x96xf32>
    %1011 = arith.addf %887, %1010 : vector<8x96xf32>
    %cst_400 = arith.constant 0.000000e+00 : f32
    %1012 = vector.broadcast %cst_400 : f32 to vector<8x96xf32>
    %1013 = arith.maximumf %1011, %1012 : vector<8x96xf32>
    %c4_i32_401 = arith.constant 4 : i32
    %1014 = arith.muli %594, %c4_i32_401 : i32
    %c3_i32_402 = arith.constant 3 : i32
    %1015 = arith.addi %1014, %c3_i32_402 : i32
    %1016 = arith.index_cast %1015 : i32 to index
    %c0_403 = arith.constant 0 : index
    %c0_404 = arith.constant 0 : index
    %1017 = vector.load %arg6[%1016, %c0_403, %c0_404] : memref<32x96x96xf32, #tpu.memory_space<vmem>>, vector<1x96x96xf32>
    %1018 = vector.shape_cast %1017 : vector<1x96x96xf32> to vector<96x96xf32>
    %cst_405 = arith.constant dense<0.000000e+00> : vector<8x96xf32>
    %1019 = tpu.matmul %1013, %1018, %cst_405 {dimension_numbers = #tpu.dot_dimension_numbers<[1], [0], [0], [1], [0, 0, 1, 1], [], []>} : vector<8x96xf32>, vector<96x96xf32>, vector<8x96xf32> -> vector<8x96xf32>
    %1020 = arith.index_cast %1015 : i32 to index
    %c0_406 = arith.constant 0 : index
    %c0_407 = arith.constant 0 : index
    %1021 = vector.load %arg7[%1020, %c0_406, %c0_407] : memref<32x1x96xf32, #tpu.memory_space<vmem>>, vector<1x1x96xf32>
    %1022 = vector.shape_cast %1021 : vector<1x1x96xf32> to vector<1x96xf32>
    %1023 = vector.broadcast %1022 : vector<1x96xf32> to vector<8x96xf32>
    %1024 = arith.addf %1019, %1023 : vector<8x96xf32>
    %1025 = arith.index_cast %1015 : i32 to index
    %c0_408 = arith.constant 0 : index
    %c0_409 = arith.constant 0 : index
    %1026 = vector.load %arg8[%1025, %c0_408, %c0_409] : memref<32x1x96xf32, #tpu.memory_space<vmem>>, vector<1x1x96xf32>
    %1027 = vector.shape_cast %1026 : vector<1x1x96xf32> to vector<1x96xf32>
    %1028 = arith.index_cast %1015 : i32 to index
    %c0_410 = arith.constant 0 : index
    %c0_411 = arith.constant 0 : index
    %1029 = vector.load %arg9[%1028, %c0_410, %c0_411] : memref<32x1x96xf32, #tpu.memory_space<vmem>>, vector<1x1x96xf32>
    %1030 = vector.shape_cast %1029 : vector<1x1x96xf32> to vector<1x96xf32>
    %cst_412 = arith.constant dense<0.000000e+00> : vector<8xf32>
    %1031 = vector.multi_reduction <add>, %1024, %cst_412 [1] : vector<8x96xf32> to vector<8xf32>
    %1032 = vector.shape_cast %1031 : vector<8xf32> to vector<8x1xf32>
    %cst_413 = arith.constant 0.010416667 : f32
    %1033 = vector.broadcast %cst_413 : f32 to vector<8x1xf32>
    %1034 = arith.mulf %1032, %1033 : vector<8x1xf32>
    %1035 = arith.mulf %1024, %1024 : vector<8x96xf32>
    %cst_414 = arith.constant dense<0.000000e+00> : vector<8xf32>
    %1036 = vector.multi_reduction <add>, %1035, %cst_414 [1] : vector<8x96xf32> to vector<8xf32>
    %1037 = vector.shape_cast %1036 : vector<8xf32> to vector<8x1xf32>
    %cst_415 = arith.constant 0.010416667 : f32
    %1038 = vector.broadcast %cst_415 : f32 to vector<8x1xf32>
    %1039 = arith.mulf %1037, %1038 : vector<8x1xf32>
    %1040 = arith.mulf %1034, %1034 : vector<8x1xf32>
    %1041 = arith.subf %1039, %1040 : vector<8x1xf32>
    %cst_416 = arith.constant 0.000000e+00 : f32
    %1042 = vector.broadcast %cst_416 : f32 to vector<8x1xf32>
    %1043 = arith.maximumf %1041, %1042 : vector<8x1xf32>
    %1044 = vector.broadcast %1034 : vector<8x1xf32> to vector<8x96xf32>
    %1045 = arith.subf %1024, %1044 : vector<8x96xf32>
    %cst_417 = arith.constant 9.99999974E-6 : f32
    %1046 = vector.broadcast %cst_417 : f32 to vector<8x1xf32>
    %1047 = arith.addf %1043, %1046 : vector<8x1xf32>
    %1048 = math.rsqrt %1047 : vector<8x1xf32>
    %1049 = vector.broadcast %1048 : vector<8x1xf32> to vector<8x96xf32>
    %1050 = arith.mulf %1045, %1049 : vector<8x96xf32>
    %1051 = vector.broadcast %1027 : vector<1x96xf32> to vector<8x96xf32>
    %1052 = arith.mulf %1050, %1051 : vector<8x96xf32>
    %1053 = vector.broadcast %1030 : vector<1x96xf32> to vector<8x96xf32>
    %1054 = arith.addf %1052, %1053 : vector<8x96xf32>
    %cst_418 = arith.constant 0.000000e+00 : f32
    %1055 = vector.broadcast %cst_418 : f32 to vector<8x96xf32>
    %1056 = arith.maximumf %1054, %1055 : vector<8x96xf32>
    %1057 = arith.index_cast %1015 : i32 to index
    %c0_419 = arith.constant 0 : index
    %c0_420 = arith.constant 0 : index
    %1058 = vector.load %arg10[%1057, %c0_419, %c0_420] : memref<32x96x144xf32, #tpu.memory_space<vmem>>, vector<1x96x144xf32>
    %1059 = vector.shape_cast %1058 : vector<1x96x144xf32> to vector<96x144xf32>
    %cst_421 = arith.constant dense<0.000000e+00> : vector<8x144xf32>
    %1060 = tpu.matmul %1056, %1059, %cst_421 {dimension_numbers = #tpu.dot_dimension_numbers<[1], [0], [0], [1], [0, 0, 1, 1], [], []>} : vector<8x96xf32>, vector<96x144xf32>, vector<8x144xf32> -> vector<8x144xf32>
    %1061 = arith.index_cast %1015 : i32 to index
    %c0_422 = arith.constant 0 : index
    %c0_423 = arith.constant 0 : index
    %1062 = vector.load %arg11[%1061, %c0_422, %c0_423] : memref<32x1x144xf32, #tpu.memory_space<vmem>>, vector<1x1x144xf32>
    %1063 = vector.shape_cast %1062 : vector<1x1x144xf32> to vector<1x144xf32>
    %1064 = vector.broadcast %1063 : vector<1x144xf32> to vector<8x144xf32>
    %1065 = arith.addf %1060, %1064 : vector<8x144xf32>
    %1066 = arith.index_cast %1015 : i32 to index
    %c0_424 = arith.constant 0 : index
    %c0_425 = arith.constant 0 : index
    %1067 = vector.load %arg12[%1066, %c0_424, %c0_425] : memref<32x1x144xf32, #tpu.memory_space<vmem>>, vector<1x1x144xf32>
    %1068 = vector.shape_cast %1067 : vector<1x1x144xf32> to vector<1x144xf32>
    %1069 = arith.index_cast %1015 : i32 to index
    %c0_426 = arith.constant 0 : index
    %c0_427 = arith.constant 0 : index
    %1070 = vector.load %arg13[%1069, %c0_426, %c0_427] : memref<32x1x144xf32, #tpu.memory_space<vmem>>, vector<1x1x144xf32>
    %1071 = vector.shape_cast %1070 : vector<1x1x144xf32> to vector<1x144xf32>
    %cst_428 = arith.constant dense<0.000000e+00> : vector<8xf32>
    %1072 = vector.multi_reduction <add>, %1065, %cst_428 [1] : vector<8x144xf32> to vector<8xf32>
    %1073 = vector.shape_cast %1072 : vector<8xf32> to vector<8x1xf32>
    %cst_429 = arith.constant 0.0069444445 : f32
    %1074 = vector.broadcast %cst_429 : f32 to vector<8x1xf32>
    %1075 = arith.mulf %1073, %1074 : vector<8x1xf32>
    %1076 = arith.mulf %1065, %1065 : vector<8x144xf32>
    %cst_430 = arith.constant dense<0.000000e+00> : vector<8xf32>
    %1077 = vector.multi_reduction <add>, %1076, %cst_430 [1] : vector<8x144xf32> to vector<8xf32>
    %1078 = vector.shape_cast %1077 : vector<8xf32> to vector<8x1xf32>
    %cst_431 = arith.constant 0.0069444445 : f32
    %1079 = vector.broadcast %cst_431 : f32 to vector<8x1xf32>
    %1080 = arith.mulf %1078, %1079 : vector<8x1xf32>
    %1081 = arith.mulf %1075, %1075 : vector<8x1xf32>
    %1082 = arith.subf %1080, %1081 : vector<8x1xf32>
    %cst_432 = arith.constant 0.000000e+00 : f32
    %1083 = vector.broadcast %cst_432 : f32 to vector<8x1xf32>
    %1084 = arith.maximumf %1082, %1083 : vector<8x1xf32>
    %1085 = vector.broadcast %1075 : vector<8x1xf32> to vector<8x144xf32>
    %1086 = arith.subf %1065, %1085 : vector<8x144xf32>
    %cst_433 = arith.constant 9.99999974E-6 : f32
    %1087 = vector.broadcast %cst_433 : f32 to vector<8x1xf32>
    %1088 = arith.addf %1084, %1087 : vector<8x1xf32>
    %1089 = math.rsqrt %1088 : vector<8x1xf32>
    %1090 = vector.broadcast %1089 : vector<8x1xf32> to vector<8x144xf32>
    %1091 = arith.mulf %1086, %1090 : vector<8x144xf32>
    %1092 = vector.broadcast %1068 : vector<1x144xf32> to vector<8x144xf32>
    %1093 = arith.mulf %1091, %1092 : vector<8x144xf32>
    %1094 = vector.broadcast %1071 : vector<1x144xf32> to vector<8x144xf32>
    %1095 = arith.addf %1093, %1094 : vector<8x144xf32>
    %cst_434 = arith.constant 0.000000e+00 : f32
    %1096 = vector.broadcast %cst_434 : f32 to vector<8x144xf32>
    %1097 = arith.maximumf %1095, %1096 : vector<8x144xf32>
    %1098 = arith.index_cast %1015 : i32 to index
    %c0_435 = arith.constant 0 : index
    %c0_436 = arith.constant 0 : index
    %1099 = vector.load %arg14[%1098, %c0_435, %c0_436] : memref<32x144x96xf32, #tpu.memory_space<vmem>>, vector<1x144x96xf32>
    %1100 = vector.shape_cast %1099 : vector<1x144x96xf32> to vector<144x96xf32>
    %cst_437 = arith.constant dense<0.000000e+00> : vector<8x96xf32>
    %1101 = tpu.matmul %1097, %1100, %cst_437 {dimension_numbers = #tpu.dot_dimension_numbers<[1], [0], [0], [1], [0, 0, 1, 1], [], []>} : vector<8x144xf32>, vector<144x96xf32>, vector<8x96xf32> -> vector<8x96xf32>
    %1102 = arith.index_cast %1015 : i32 to index
    %c0_438 = arith.constant 0 : index
    %c0_439 = arith.constant 0 : index
    %1103 = vector.load %arg15[%1102, %c0_438, %c0_439] : memref<32x1x96xf32, #tpu.memory_space<vmem>>, vector<1x1x96xf32>
    %1104 = vector.shape_cast %1103 : vector<1x1x96xf32> to vector<1x96xf32>
    %1105 = vector.broadcast %1104 : vector<1x96xf32> to vector<8x96xf32>
    %1106 = arith.addf %1101, %1105 : vector<8x96xf32>
    %1107 = arith.index_cast %1015 : i32 to index
    %c0_440 = arith.constant 0 : index
    %c0_441 = arith.constant 0 : index
    %1108 = vector.load %arg16[%1107, %c0_440, %c0_441] : memref<32x1x96xf32, #tpu.memory_space<vmem>>, vector<1x1x96xf32>
    %1109 = vector.shape_cast %1108 : vector<1x1x96xf32> to vector<1x96xf32>
    %1110 = arith.index_cast %1015 : i32 to index
    %c0_442 = arith.constant 0 : index
    %c0_443 = arith.constant 0 : index
    %1111 = vector.load %arg17[%1110, %c0_442, %c0_443] : memref<32x1x96xf32, #tpu.memory_space<vmem>>, vector<1x1x96xf32>
    %1112 = vector.shape_cast %1111 : vector<1x1x96xf32> to vector<1x96xf32>
    %cst_444 = arith.constant dense<0.000000e+00> : vector<8xf32>
    %1113 = vector.multi_reduction <add>, %1106, %cst_444 [1] : vector<8x96xf32> to vector<8xf32>
    %1114 = vector.shape_cast %1113 : vector<8xf32> to vector<8x1xf32>
    %cst_445 = arith.constant 0.010416667 : f32
    %1115 = vector.broadcast %cst_445 : f32 to vector<8x1xf32>
    %1116 = arith.mulf %1114, %1115 : vector<8x1xf32>
    %1117 = arith.mulf %1106, %1106 : vector<8x96xf32>
    %cst_446 = arith.constant dense<0.000000e+00> : vector<8xf32>
    %1118 = vector.multi_reduction <add>, %1117, %cst_446 [1] : vector<8x96xf32> to vector<8xf32>
    %1119 = vector.shape_cast %1118 : vector<8xf32> to vector<8x1xf32>
    %cst_447 = arith.constant 0.010416667 : f32
    %1120 = vector.broadcast %cst_447 : f32 to vector<8x1xf32>
    %1121 = arith.mulf %1119, %1120 : vector<8x1xf32>
    %1122 = arith.mulf %1116, %1116 : vector<8x1xf32>
    %1123 = arith.subf %1121, %1122 : vector<8x1xf32>
    %cst_448 = arith.constant 0.000000e+00 : f32
    %1124 = vector.broadcast %cst_448 : f32 to vector<8x1xf32>
    %1125 = arith.maximumf %1123, %1124 : vector<8x1xf32>
    %1126 = vector.broadcast %1116 : vector<8x1xf32> to vector<8x96xf32>
    %1127 = arith.subf %1106, %1126 : vector<8x96xf32>
    %cst_449 = arith.constant 9.99999974E-6 : f32
    %1128 = vector.broadcast %cst_449 : f32 to vector<8x1xf32>
    %1129 = arith.addf %1125, %1128 : vector<8x1xf32>
    %1130 = math.rsqrt %1129 : vector<8x1xf32>
    %1131 = vector.broadcast %1130 : vector<8x1xf32> to vector<8x96xf32>
    %1132 = arith.mulf %1127, %1131 : vector<8x96xf32>
    %1133 = vector.broadcast %1109 : vector<1x96xf32> to vector<8x96xf32>
    %1134 = arith.mulf %1132, %1133 : vector<8x96xf32>
    %1135 = vector.broadcast %1112 : vector<1x96xf32> to vector<8x96xf32>
    %1136 = arith.addf %1134, %1135 : vector<8x96xf32>
    %1137 = arith.addf %1013, %1136 : vector<8x96xf32>
    %cst_450 = arith.constant 0.000000e+00 : f32
    %1138 = vector.broadcast %cst_450 : f32 to vector<8x96xf32>
    %1139 = arith.maximumf %1137, %1138 : vector<8x96xf32>
    %1140 = arith.index_cast %594 : i32 to index
    %c0_451 = arith.constant 0 : index
    %c0_452 = arith.constant 0 : index
    %1141 = vector.load %arg18[%1140, %c0_451, %c0_452] : memref<8x96x48xf32, #tpu.memory_space<vmem>>, vector<1x96x48xf32>
    %1142 = vector.shape_cast %1141 : vector<1x96x48xf32> to vector<96x48xf32>
    %cst_453 = arith.constant dense<0.000000e+00> : vector<8x48xf32>
    %1143 = tpu.matmul %1139, %1142, %cst_453 {dimension_numbers = #tpu.dot_dimension_numbers<[1], [0], [0], [1], [0, 0, 1, 1], [], []>} : vector<8x96xf32>, vector<96x48xf32>, vector<8x48xf32> -> vector<8x48xf32>
    %1144 = arith.index_cast %594 : i32 to index
    %c0_454 = arith.constant 0 : index
    %c0_455 = arith.constant 0 : index
    %1145 = vector.load %arg19[%1144, %c0_454, %c0_455] : memref<8x1x48xf32, #tpu.memory_space<vmem>>, vector<1x1x48xf32>
    %1146 = vector.shape_cast %1145 : vector<1x1x48xf32> to vector<1x48xf32>
    %1147 = vector.broadcast %1146 : vector<1x48xf32> to vector<8x48xf32>
    %1148 = arith.addf %1143, %1147 : vector<8x48xf32>
    %cst_456 = arith.constant 0.000000e+00 : f32
    %1149 = vector.broadcast %cst_456 : f32 to vector<8x48xf32>
    %1150 = arith.maximumf %1148, %1149 : vector<8x48xf32>
    %1151 = arith.index_cast %594 : i32 to index
    %c0_457 = arith.constant 0 : index
    %c0_458 = arith.constant 0 : index
    %1152 = vector.load %arg20[%1151, %c0_457, %c0_458] : memref<8x48x96xf32, #tpu.memory_space<vmem>>, vector<1x48x96xf32>
    %1153 = vector.shape_cast %1152 : vector<1x48x96xf32> to vector<48x96xf32>
    %cst_459 = arith.constant dense<0.000000e+00> : vector<8x96xf32>
    %1154 = tpu.matmul %1150, %1153, %cst_459 {dimension_numbers = #tpu.dot_dimension_numbers<[1], [0], [0], [1], [0, 0, 1, 1], [], []>} : vector<8x48xf32>, vector<48x96xf32>, vector<8x96xf32> -> vector<8x96xf32>
    %1155 = arith.index_cast %594 : i32 to index
    %c0_460 = arith.constant 0 : index
    %c0_461 = arith.constant 0 : index
    %1156 = vector.load %arg21[%1155, %c0_460, %c0_461] : memref<8x1x96xf32, #tpu.memory_space<vmem>>, vector<1x1x96xf32>
    %1157 = vector.shape_cast %1156 : vector<1x1x96xf32> to vector<1x96xf32>
    %1158 = vector.broadcast %1157 : vector<1x96xf32> to vector<8x96xf32>
    %1159 = arith.addf %1154, %1158 : vector<8x96xf32>
    %1160 = arith.addf %1139, %1159 : vector<8x96xf32>
    %cst_462 = arith.constant 0.000000e+00 : f32
    %1161 = vector.broadcast %cst_462 : f32 to vector<8x96xf32>
    %1162 = arith.maximumf %1160, %1161 : vector<8x96xf32>
    %1163 = arith.index_cast %594 : i32 to index
    %c0_463 = arith.constant 0 : index
    %c0_464 = arith.constant 0 : index
    %1164 = vector.load %arg22[%1163, %c0_463, %c0_464] : memref<8x96x96xf32, #tpu.memory_space<vmem>>, vector<1x96x96xf32>
    %1165 = vector.shape_cast %1164 : vector<1x96x96xf32> to vector<96x96xf32>
    %cst_465 = arith.constant dense<0.000000e+00> : vector<8x96xf32>
    %1166 = tpu.matmul %1162, %1165, %cst_465 {dimension_numbers = #tpu.dot_dimension_numbers<[1], [0], [0], [1], [0, 0, 1, 1], [], []>} : vector<8x96xf32>, vector<96x96xf32>, vector<8x96xf32> -> vector<8x96xf32>
    %1167 = arith.index_cast %594 : i32 to index
    %c0_466 = arith.constant 0 : index
    %c0_467 = arith.constant 0 : index
    %1168 = vector.load %arg23[%1167, %c0_466, %c0_467] : memref<8x1x96xf32, #tpu.memory_space<vmem>>, vector<1x1x96xf32>
    %1169 = vector.shape_cast %1168 : vector<1x1x96xf32> to vector<1x96xf32>
    %1170 = vector.broadcast %1169 : vector<1x96xf32> to vector<8x96xf32>
    %1171 = arith.addf %1166, %1170 : vector<8x96xf32>
    %cst_468 = arith.constant 0.000000e+00 : f32
    %1172 = vector.broadcast %cst_468 : f32 to vector<8x96xf32>
    %1173 = arith.maximumf %1171, %1172 : vector<8x96xf32>
    %1174 = arith.index_cast %594 : i32 to index
    %c0_469 = arith.constant 0 : index
    %c0_470 = arith.constant 0 : index
    %1175 = vector.load %arg24[%1174, %c0_469, %c0_470] : memref<8x1x96xf32, #tpu.memory_space<vmem>>, vector<1x1x96xf32>
    %1176 = vector.shape_cast %1175 : vector<1x1x96xf32> to vector<1x96xf32>
    %1177 = vector.broadcast %1176 : vector<1x96xf32> to vector<8x96xf32>
    %1178 = arith.mulf %1173, %1177 : vector<8x96xf32>
    %cst_471 = arith.constant dense<0.000000e+00> : vector<8xf32>
    %1179 = vector.multi_reduction <add>, %1178, %cst_471 [1] : vector<8x96xf32> to vector<8xf32>
    %1180 = vector.shape_cast %1179 : vector<8xf32> to vector<8x1xf32>
    %1181 = arith.index_cast %594 : i32 to index
    %c0_472 = arith.constant 0 : index
    %c0_473 = arith.constant 0 : index
    %1182 = vector.load %arg25[%1181, %c0_472, %c0_473] : memref<8x1x1xf32, #tpu.memory_space<vmem>>, vector<1x1x1xf32>
    %1183 = vector.shape_cast %1182 : vector<1x1x1xf32> to vector<1x1xf32>
    %1184 = vector.broadcast %1183 : vector<1x1xf32> to vector<8x1xf32>
    %1185 = arith.addf %1180, %1184 : vector<8x1xf32>
    %1186 = arith.addf %593, %1185 : vector<8x1xf32>
    %cst_474 = arith.constant 5.000000e-01 : f32
    %1187 = vector.broadcast %cst_474 : f32 to vector<8x1xf32>
    %1188 = arith.mulf %1186, %1187 : vector<8x1xf32>
    %1189 = tpu.iota {dimensions = array<i32: 1>} : vector<8x128xi32>
    %c0_i32_475 = arith.constant 0 : i32
    %1190 = vector.broadcast %c0_i32_475 : i32 to vector<8x128xi32>
    %1191 = arith.cmpi eq, %1189, %1190 : vector<8x128xi32>
    %cst_476 = arith.constant 0.000000e+00 : f32
    %1192 = vector.shape_cast %1188 : vector<8x1xf32> to vector<8x1xf32>
    %1193 = vector.broadcast %1192 : vector<8x1xf32> to vector<8x128xf32>
    %1194 = vector.broadcast %cst_476 : f32 to vector<8x128xf32>
    %1195 = arith.select %1191, %1193, %1194 : vector<8x128xi1>, vector<8x128xf32>
    %c0_477 = arith.constant 0 : index
    %c0_478 = arith.constant 0 : index
    %c0_479 = arith.constant 0 : index
    %1196 = vector.load %arg26[%c0_477, %c0_478, %c0_479] : memref<1x8x128xf32, #tpu.memory_space<vmem>>, vector<1x8x128xf32>
    %1197 = vector.shape_cast %1196 : vector<1x8x128xf32> to vector<8x128xf32>
    %1198 = vector.shape_cast %1195 : vector<8x128xf32> to vector<1x8x128xf32>
    tpu.vector_store %arg26[%c0_477, %c0_478, %c0_479], %1198 {strides = array<i32>} : memref<1x8x128xf32, #tpu.memory_space<vmem>>, vector<1x8x128xf32>,
    return
  }
  func.func @transform_0(%arg0: i32) -> (i32, i32, i32) {
    %c0_i32 = arith.constant 0 : i32
    %c0_i32_0 = arith.constant 0 : i32
    %c0_i32_1 = arith.constant 0 : i32
    %c0_i32_2 = arith.constant 0 : i32
    return %c0_i32, %c0_i32_0, %c0_i32_1 : i32, i32, i32
  }
  func.func @transform_1(%arg0: i32) -> (i32, i32, i32) {
    %c0_i32 = arith.constant 0 : i32
    %c0_i32_0 = arith.constant 0 : i32
    %c0_i32_1 = arith.constant 0 : i32
    %c0_i32_2 = arith.constant 0 : i32
    return %c0_i32, %c0_i32_0, %c0_i32_1 : i32, i32, i32
  }
  func.func @transform_2(%arg0: i32) -> (i32, i32, i32) {
    %c0_i32 = arith.constant 0 : i32
    %c0_i32_0 = arith.constant 0 : i32
    %c0_i32_1 = arith.constant 0 : i32
    %c0_i32_2 = arith.constant 0 : i32
    return %c0_i32, %c0_i32_0, %c0_i32_1 : i32, i32, i32
  }
  func.func @transform_3(%arg0: i32) -> (i32, i32, i32) {
    %c0_i32 = arith.constant 0 : i32
    %c0_i32_0 = arith.constant 0 : i32
    %c0_i32_1 = arith.constant 0 : i32
    %c0_i32_2 = arith.constant 0 : i32
    return %c0_i32, %c0_i32_0, %c0_i32_1 : i32, i32, i32
  }
  func.func @transform_4(%arg0: i32) -> (i32, i32, i32) {
    %c0_i32 = arith.constant 0 : i32
    %c0_i32_0 = arith.constant 0 : i32
    %c0_i32_1 = arith.constant 0 : i32
    %c0_i32_2 = arith.constant 0 : i32
    return %c0_i32, %c0_i32_0, %c0_i32_1 : i32, i32, i32
  }
  func.func @transform_5(%arg0: i32) -> (i32, i32, i32) {
    %c0_i32 = arith.constant 0 : i32
    %c0_i32_0 = arith.constant 0 : i32
    %c0_i32_1 = arith.constant 0 : i32
    %c0_i32_2 = arith.constant 0 : i32
    return %c0_i32, %c0_i32_0, %c0_i32_1 : i32, i32, i32
  }
  func.func @transform_6(%arg0: i32) -> (i32, i32, i32) {
    %c0_i32 = arith.constant 0 : i32
    %c0_i32_0 = arith.constant 0 : i32
    %c0_i32_1 = arith.constant 0 : i32
    %c0_i32_2 = arith.constant 0 : i32
    return %c0_i32, %c0_i32_0, %c0_i32_1 : i32, i32, i32
  }
  func.func @transform_7(%arg0: i32) -> (i32, i32, i32) {
    %c0_i32 = arith.constant 0 : i32
    %c0_i32_0 = arith.constant 0 : i32
    %c0_i32_1 = arith.constant 0 : i32
    %c0_i32_2 = arith.constant 0 : i32
    return %c0_i32, %c0_i32_0, %c0_i32_1 : i32, i32, i32
  }
  func.func @transform_8(%arg0: i32) -> (i32, i32, i32) {
    %c0_i32 = arith.constant 0 : i32
    %c0_i32_0 = arith.constant 0 : i32
    %c0_i32_1 = arith.constant 0 : i32
    %c0_i32_2 = arith.constant 0 : i32
    return %c0_i32, %c0_i32_0, %c0_i32_1 : i32, i32, i32
  }
  func.func @transform_9(%arg0: i32) -> (i32, i32, i32) {
    %c0_i32 = arith.constant 0 : i32
    %c0_i32_0 = arith.constant 0 : i32
    %c0_i32_1 = arith.constant 0 : i32
    %c0_i32_2 = arith.constant 0 : i32
    return %c0_i32, %c0_i32_0, %c0_i32_1 : i32, i32, i32
  }
  func.func @transform_10(%arg0: i32) -> (i32, i32, i32) {
    %c0_i32 = arith.constant 0 : i32
    %c0_i32_0 = arith.constant 0 : i32
    %c0_i32_1 = arith.constant 0 : i32
    %c0_i32_2 = arith.constant 0 : i32
    return %c0_i32, %c0_i32_0, %c0_i32_1 : i32, i32, i32
  }
  func.func @transform_11(%arg0: i32) -> (i32, i32, i32) {
    %c0_i32 = arith.constant 0 : i32
    %c0_i32_0 = arith.constant 0 : i32
    %c0_i32_1 = arith.constant 0 : i32
    %c0_i32_2 = arith.constant 0 : i32
    return %c0_i32, %c0_i32_0, %c0_i32_1 : i32, i32, i32
  }
  func.func @transform_12(%arg0: i32) -> (i32, i32, i32) {
    %c0_i32 = arith.constant 0 : i32
    %c0_i32_0 = arith.constant 0 : i32
    %c0_i32_1 = arith.constant 0 : i32
    %c0_i32_2 = arith.constant 0 : i32
    return %c0_i32, %c0_i32_0, %c0_i32_1 : i32, i32, i32
  }
  func.func @transform_13(%arg0: i32) -> (i32, i32, i32) {
    %c0_i32 = arith.constant 0 : i32
    %c0_i32_0 = arith.constant 0 : i32
    %c0_i32_1 = arith.constant 0 : i32
    %c0_i32_2 = arith.constant 0 : i32
    return %c0_i32, %c0_i32_0, %c0_i32_1 : i32, i32, i32
  }
  func.func @transform_14(%arg0: i32) -> (i32, i32, i32) {
    %c0_i32 = arith.constant 0 : i32
    %c0_i32_0 = arith.constant 0 : i32
    %c0_i32_1 = arith.constant 0 : i32
    %c0_i32_2 = arith.constant 0 : i32
    return %c0_i32, %c0_i32_0, %c0_i32_1 : i32, i32, i32
  }
  func.func @transform_15(%arg0: i32) -> (i32, i32, i32) {
    %c0_i32 = arith.constant 0 : i32
    %c0_i32_0 = arith.constant 0 : i32
    %c0_i32_1 = arith.constant 0 : i32
    %c0_i32_2 = arith.constant 0 : i32
    return %c0_i32, %c0_i32_0, %c0_i32_1 : i32, i32, i32
  }
  func.func @transform_16(%arg0: i32) -> (i32, i32, i32) {
    %c0_i32 = arith.constant 0 : i32
    %c0_i32_0 = arith.constant 0 : i32
    %c0_i32_1 = arith.constant 0 : i32
    %c0_i32_2 = arith.constant 0 : i32
    return %c0_i32, %c0_i32_0, %c0_i32_1 : i32, i32, i32
  }
  func.func @transform_17(%arg0: i32) -> (i32, i32, i32) {
    %c0_i32 = arith.constant 0 : i32
    %c0_i32_0 = arith.constant 0 : i32
    %c0_i32_1 = arith.constant 0 : i32
    %c0_i32_2 = arith.constant 0 : i32
    return %c0_i32, %c0_i32_0, %c0_i32_1 : i32, i32, i32
  }
  func.func @transform_18(%arg0: i32) -> (i32, i32, i32) {
    %c0_i32 = arith.constant 0 : i32
    %c0_i32_0 = arith.constant 0 : i32
    %c0_i32_1 = arith.constant 0 : i32
    %c0_i32_2 = arith.constant 0 : i32
    return %c0_i32, %c0_i32_0, %c0_i32_1 : i32, i32, i32
  }
  func.func @transform_19(%arg0: i32) -> (i32, i32, i32) {
    %c0_i32 = arith.constant 0 : i32
    %c0_i32_0 = arith.constant 0 : i32
    %c0_i32_1 = arith.constant 0 : i32
    %c0_i32_2 = arith.constant 0 : i32
    return %c0_i32, %c0_i32_0, %c0_i32_1 : i32, i32, i32
  }
  func.func @transform_20(%arg0: i32) -> (i32, i32, i32) {
    %c0_i32 = arith.constant 0 : i32
    %c0_i32_0 = arith.constant 0 : i32
    %c0_i32_1 = arith.constant 0 : i32
    %c0_i32_2 = arith.constant 0 : i32
    return %c0_i32, %c0_i32_0, %c0_i32_1 : i32, i32, i32
  }
  func.func @transform_21(%arg0: i32) -> (i32, i32, i32) {
    %c0_i32 = arith.constant 0 : i32
    %c0_i32_0 = arith.constant 0 : i32
    %c0_i32_1 = arith.constant 0 : i32
    %c0_i32_2 = arith.constant 0 : i32
    return %c0_i32, %c0_i32_0, %c0_i32_1 : i32, i32, i32
  }
  func.func @transform_22(%arg0: i32) -> (i32, i32, i32) {
    %c0_i32 = arith.constant 0 : i32
    %c0_i32_0 = arith.constant 0 : i32
    %c0_i32_1 = arith.constant 0 : i32
    %c0_i32_2 = arith.constant 0 : i32
    return %c0_i32, %c0_i32_0, %c0_i32_1 : i32, i32, i32
  }
  func.func @transform_23(%arg0: i32) -> (i32, i32, i32) {
    %c0_i32 = arith.constant 0 : i32
    %c0_i32_0 = arith.constant 0 : i32
    %c0_i32_1 = arith.constant 0 : i32
    %c0_i32_2 = arith.constant 0 : i32
    return %c0_i32, %c0_i32_0, %c0_i32_1 : i32, i32, i32
  }
  func.func @transform_24(%arg0: i32) -> (i32, i32, i32) {
    %c0_i32 = arith.constant 0 : i32
    %c0_i32_0 = arith.constant 0 : i32
    %c0_i32_1 = arith.constant 0 : i32
    %c0_i32_2 = arith.constant 0 : i32
    return %c0_i32, %c0_i32_0, %c0_i32_1 : i32, i32, i32
  }
  func.func @transform_25(%arg0: i32) -> (i32, i32, i32) {
    %c0_i32 = arith.constant 0 : i32
    %c0_i32_0 = arith.constant 0 : i32
    %c0_i32_1 = arith.constant 0 : i32
    return %arg0, %c0_i32, %c0_i32_0 : i32, i32, i32
  }
}

</mosaic_0001>

<llo_original>
// kernel: doranet_forward.1
$region0: #{doranet_forward.1}
  #allocation0 [shape = 'u32[]', space=smem, size = 0x4, offset = 0x4, fixed_abs, tag = 'smem constant byte address 0x4 - core index']
  #allocation1 [shape = 'u32[144,128]{1,0:T(1,128)}', space=vmem, size = 0x12000, scoped, tag = 'internal scratch']
  %s0 = inlined_call_operand.vmem [shape: f32[4,8,10], index: 0, kind: input, shape index: {}]
  %s1 = inlined_call_operand.vmem [shape: f32[8,10,96], index: 1, kind: input, shape index: {}]
  %s2 = inlined_call_operand.vmem [shape: f32[8,1,96], index: 2, kind: input, shape index: {}]
  %s3 = inlined_call_operand.vmem [shape: f32[8,1,96], index: 3, kind: input, shape index: {}]
  %s4 = inlined_call_operand.vmem [shape: f32[8,1,96], index: 4, kind: input, shape index: {}]
  %s5 = inlined_call_operand.vmem [shape: f32[32,96,96], index: 5, kind: input, shape index: {}]
  %s6 = inlined_call_operand.vmem [shape: f32[32,1,96], index: 6, kind: input, shape index: {}]
  %s7 = inlined_call_operand.vmem [shape: f32[32,1,96], index: 7, kind: input, shape index: {}]
  %s8 = inlined_call_operand.vmem [shape: f32[32,1,96], index: 8, kind: input, shape index: {}]
  %s9 = inlined_call_operand.vmem [shape: f32[32,96,144], index: 9, kind: input, shape index: {}]
  %s10 = inlined_call_operand.vmem [shape: f32[32,1,144], index: 10, kind: input, shape index: {}]
  %s11 = inlined_call_operand.vmem [shape: f32[32,1,144], index: 11, kind: input, shape index: {}]
  %s12 = inlined_call_operand.vmem [shape: f32[32,1,144], index: 12, kind: input, shape index: {}]
  %s13 = inlined_call_operand.vmem [shape: f32[32,144,96], index: 13, kind: input, shape index: {}]
  %s14 = inlined_call_operand.vmem [shape: f32[32,1,96], index: 14, kind: input, shape index: {}]
  %s15 = inlined_call_operand.vmem [shape: f32[32,1,96], index: 15, kind: input, shape index: {}]
  %s16 = inlined_call_operand.vmem [shape: f32[32,1,96], index: 16, kind: input, shape index: {}]
  %s17 = inlined_call_operand.vmem [shape: f32[8,96,48], index: 17, kind: input, shape index: {}]
  %s18 = inlined_call_operand.vmem [shape: f32[8,1,48], index: 18, kind: input, shape index: {}]
  %s19 = inlined_call_operand.vmem [shape: f32[8,48,96], index: 19, kind: input, shape index: {}]
  %s20 = inlined_call_operand.vmem [shape: f32[8,1,96], index: 20, kind: input, shape index: {}]
  %s21 = inlined_call_operand.vmem [shape: f32[8,96,96], index: 21, kind: input, shape index: {}]
  %s22 = inlined_call_operand.vmem [shape: f32[8,1,96], index: 22, kind: input, shape index: {}]
  %s23 = inlined_call_operand.vmem [shape: f32[8,1,96], index: 23, kind: input, shape index: {}]
  %s24 = inlined_call_operand.vmem [shape: f32[8,1,1], index: 24, kind: input, shape index: {}]
  %s25 = inlined_call_operand.vmem [shape: f32[4,8,128], index: 25, kind: output, shape index: {}]
  %s26 = sld [smem:[#allocation0]]
  $region133: #{doranet_forward.1} parent=0
    _
  %s28 = ssub.s32 1, %s26
  %s29 = scalar_select 0, %s28, %s26
  loop: start=0, step=1, limit=6
  $region2: #{doranet_forward.1} parent=0 // loop_pre_header
    _
  $region3: #{doranet_forward.1} parent=0 // loop_header
    %s31 = sphi 0, %s35
    %p32 = scmp.ge.s32.totalorder %s31, 6
    %s39 = sphi 0, %s39
    %s41 = sphi 0, %s39
    %s42 = sphi 0, %s41
    %s56 = sphi 0, %s42
    %s60 = sphi 0, %s60
    %s62 = sphi 0, %s60
    %s63 = sphi 0, %s62
    %s77 = sphi 0, %s63
    %s81 = sphi 0, %s81
    %s83 = sphi 0, %s81
    %s84 = sphi 0, %s83
    %s98 = sphi 0, %s84
    %s102 = sphi 0, %s102
    %s104 = sphi 0, %s102
    %s105 = sphi 0, %s104
    %s119 = sphi 0, %s105
    %s123 = sphi 0, %s123
    %s125 = sphi 0, %s123
    %s126 = sphi 0, %s125
    %s140 = sphi 0, %s126
    %s144 = sphi 0, %s144
    %s146 = sphi 0, %s144
    %s147 = sphi 0, %s146
    %s161 = sphi 0, %s147
    %s165 = sphi 0, %s165
    %s167 = sphi 0, %s165
    %s168 = sphi 0, %s167
    %s182 = sphi 0, %s168
    %s186 = sphi 0, %s186
    %s188 = sphi 0, %s186
    %s189 = sphi 0, %s188
    %s203 = sphi 0, %s189
    %s207 = sphi 0, %s207
    %s209 = sphi 0, %s207
    %s210 = sphi 0, %s209
    %s224 = sphi 0, %s210
    %s228 = sphi 0, %s228
    %s230 = sphi 0, %s228
    %s231 = sphi 0, %s230
    %s245 = sphi 0, %s231
    %s249 = sphi 0, %s249
    %s251 = sphi 0, %s249
    %s252 = sphi 0, %s251
    %s266 = sphi 0, %s252
    %s270 = sphi 0, %s270
    %s272 = sphi 0, %s270
    %s273 = sphi 0, %s272
    %s287 = sphi 0, %s273
    %s291 = sphi 0, %s291
    %s293 = sphi 0, %s291
    %s294 = sphi 0, %s293
    %s308 = sphi 0, %s294
    %s312 = sphi 0, %s312
    %s314 = sphi 0, %s312
    %s315 = sphi 0, %s314
    %s329 = sphi 0, %s315
    %s333 = sphi 0, %s333
    %s335 = sphi 0, %s333
    %s336 = sphi 0, %s335
    %s350 = sphi 0, %s336
    %s354 = sphi 0, %s354
    %s356 = sphi 0, %s354
    %s357 = sphi 0, %s356
    %s371 = sphi 0, %s357
    %s375 = sphi 0, %s375
    %s377 = sphi 0, %s375
    %s378 = sphi 0, %s377
    %s392 = sphi 0, %s378
    %s396 = sphi 0, %s396
    %s398 = sphi 0, %s396
    %s399 = sphi 0, %s398
    %s413 = sphi 0, %s399
    %s417 = sphi 0, %s417
    %s419 = sphi 0, %s417
    %s420 = sphi 0, %s419
    %s434 = sphi 0, %s420
    %s438 = sphi 0, %s438
    %s440 = sphi 0, %s438
    %s441 = sphi 0, %s440
    %s455 = sphi 0, %s441
    %s459 = sphi 0, %s459
    %s461 = sphi 0, %s459
    %s462 = sphi 0, %s461
    %s476 = sphi 0, %s462
    %s480 = sphi 0, %s480
    %s482 = sphi 0, %s480
    %s483 = sphi 0, %s482
    %s497 = sphi 0, %s483
    %s501 = sphi 0, %s501
    %s503 = sphi 0, %s501
    %s504 = sphi 0, %s503
    %s518 = sphi 0, %s504
    %s522 = sphi 0, %s522
    %s524 = sphi 0, %s522
    %s525 = sphi 0, %s524
    %s539 = sphi 0, %s525
    %s543 = sphi 0, %s543
    %s545 = sphi 0, %s543
    %s546 = sphi 0, %s545
    %s560 = sphi 0, %s546
    %s566 = sphi 0, %s568
    %s569 = sphi 0, %s566
    %s570 = sphi 0, %s569
    %s586 = sphi 0, %s570
  $region4: #{doranet_forward.1} parent=0 // loop_header_branch
    %34 = sbr.rel (%p32) target = $region8
  $region5: #{doranet_forward.1} parent=0 // loop_body
    %s36 = ssub.s32 %s31, 1
    %s37 = ssub.s32 %s31, 2
    %s38 = sadd.s32 %s31, 1
    %s40 = sadd.s32 %s39, 1
    %p43 = scmp.eq.s32.totalorder %s31, 3
    %p44 = scmp.ne.s32.totalorder %s39, %s41
    %p45 = scmp.eq.s32.totalorder %s31, 0
    %p46 = por %p44, %p45
    %p47 = scmp.ne.s32.totalorder %s39, %s41
    %p48 = scmp.eq.s32.totalorder %s36, 3
    %p49 = por %p47, %p48
    %p50 = scmp.ne.s32.totalorder %s41, %s42
    %p51 = scmp.eq.s32.totalorder %s36, 0
    %p52 = por %p50, %p51
    %p53 = scmp.ne.s32.totalorder %s41, %s42
    %p54 = scmp.eq.s32.totalorder %s37, 3
    %p55 = por %p53, %p54
    %p57 = scmp.ne.s32.totalorder %s42, %s56
    %p58 = scmp.eq.s32.totalorder %s37, 0
    %p59 = por %p57, %p58
    %s61 = sadd.s32 %s60, 1
    %p64 = scmp.eq.s32.totalorder %s31, 3
    %p65 = scmp.ne.s32.totalorder %s60, %s62
    %p66 = scmp.eq.s32.totalorder %s31, 0
    %p67 = por %p65, %p66
    %p68 = scmp.ne.s32.totalorder %s60, %s62
    %p69 = scmp.eq.s32.totalorder %s36, 3
    %p70 = por %p68, %p69
    %p71 = scmp.ne.s32.totalorder %s62, %s63
    %p72 = scmp.eq.s32.totalorder %s36, 0
    %p73 = por %p71, %p72
    %p74 = scmp.ne.s32.totalorder %s62, %s63
    %p75 = scmp.eq.s32.totalorder %s37, 3
    %p76 = por %p74, %p75
    %p78 = scmp.ne.s32.totalorder %s63, %s77
    %p79 = scmp.eq.s32.totalorder %s37, 0
    %p80 = por %p78, %p79
    %s82 = sadd.s32 %s81, 1
    %p85 = scmp.eq.s32.totalorder %s31, 3
    %p86 = scmp.ne.s32.totalorder %s81, %s83
    %p87 = scmp.eq.s32.totalorder %s31, 0
    %p88 = por %p86, %p87
    %p89 = scmp.ne.s32.totalorder %s81, %s83
    %p90 = scmp.eq.s32.totalorder %s36, 3
    %p91 = por %p89, %p90
    %p92 = scmp.ne.s32.totalorder %s83, %s84
    %p93 = scmp.eq.s32.totalorder %s36, 0
    %p94 = por %p92, %p93
    %p95 = scmp.ne.s32.totalorder %s83, %s84
    %p96 = scmp.eq.s32.totalorder %s37, 3
    %p97 = por %p95, %p96
    %p99 = scmp.ne.s32.totalorder %s84, %s98
    %p100 = scmp.eq.s32.totalorder %s37, 0
    %p101 = por %p99, %p100
    %s103 = sadd.s32 %s102, 1
    %p106 = scmp.eq.s32.totalorder %s31, 3
    %p107 = scmp.ne.s32.totalorder %s102, %s104
    %p108 = scmp.eq.s32.totalorder %s31, 0
    %p109 = por %p107, %p108
    %p110 = scmp.ne.s32.totalorder %s102, %s104
    %p111 = scmp.eq.s32.totalorder %s36, 3
    %p112 = por %p110, %p111
    %p113 = scmp.ne.s32.totalorder %s104, %s105
    %p114 = scmp.eq.s32.totalorder %s36, 0
    %p115 = por %p113, %p114
    %p116 = scmp.ne.s32.totalorder %s104, %s105
    %p117 = scmp.eq.s32.totalorder %s37, 3
    %p118 = por %p116, %p117
    %p120 = scmp.ne.s32.totalorder %s105, %s119
    %p121 = scmp.eq.s32.totalorder %s37, 0
    %p122 = por %p120, %p121
    %s124 = sadd.s32 %s123, 1
    %p127 = scmp.eq.s32.totalorder %s31, 3
    %p128 = scmp.ne.s32.totalorder %s123, %s125
    %p129 = scmp.eq.s32.totalorder %s31, 0
    %p130 = por %p128, %p129
    %p131 = scmp.ne.s32.totalorder %s123, %s125
    %p132 = scmp.eq.s32.totalorder %s36, 3
    %p133 = por %p131, %p132
    %p134 = scmp.ne.s32.totalorder %s125, %s126
    %p135 = scmp.eq.s32.totalorder %s36, 0
    %p136 = por %p134, %p135
    %p137 = scmp.ne.s32.totalorder %s125, %s126
    %p138 = scmp.eq.s32.totalorder %s37, 3
    %p139 = por %p137, %p138
    %p141 = scmp.ne.s32.totalorder %s126, %s140
    %p142 = scmp.eq.s32.totalorder %s37, 0
    %p143 = por %p141, %p142
    %s145 = sadd.s32 %s144, 1
    %p148 = scmp.eq.s32.totalorder %s31, 3
    %p149 = scmp.ne.s32.totalorder %s144, %s146
    %p150 = scmp.eq.s32.totalorder %s31, 0
    %p151 = por %p149, %p150
    %p152 = scmp.ne.s32.totalorder %s144, %s146
    %p153 = scmp.eq.s32.totalorder %s36, 3
    %p154 = por %p152, %p153
    %p155 = scmp.ne.s32.totalorder %s146, %s147
    %p156 = scmp.eq.s32.totalorder %s36, 0
    %p157 = por %p155, %p156
    %p158 = scmp.ne.s32.totalorder %s146, %s147
    %p159 = scmp.eq.s32.totalorder %s37, 3
    %p160 = por %p158, %p159
    %p162 = scmp.ne.s32.totalorder %s147, %s161
    %p163 = scmp.eq.s32.totalorder %s37, 0
    %p164 = por %p162, %p163
    %s166 = sadd.s32 %s165, 1
    %p169 = scmp.eq.s32.totalorder %s31, 3
    %p170 = scmp.ne.s32.totalorder %s165, %s167
    %p171 = scmp.eq.s32.totalorder %s31, 0
    %p172 = por %p170, %p171
    %p173 = scmp.ne.s32.totalorder %s165, %s167
    %p174 = scmp.eq.s32.totalorder %s36, 3
    %p175 = por %p173, %p174
    %p176 = scmp.ne.s32.totalorder %s167, %s168
    %p177 = scmp.eq.s32.totalorder %s36, 0
    %p178 = por %p176, %p177
    %p179 = scmp.ne.s32.totalorder %s167, %s168
    %p180 = scmp.eq.s32.totalorder %s37, 3
    %p181 = por %p179, %p180
    %p183 = scmp.ne.s32.totalorder %s168, %s182
    %p184 = scmp.eq.s32.totalorder %s37, 0
    %p185 = por %p183, %p184
    %s187 = sadd.s32 %s186, 1
    %p190 = scmp.eq.s32.totalorder %s31, 3
    %p191 = scmp.ne.s32.totalorder %s186, %s188
    %p192 = scmp.eq.s32.totalorder %s31, 0
    %p193 = por %p191, %p192
    %p194 = scmp.ne.s32.totalorder %s186, %s188
    %p195 = scmp.eq.s32.totalorder %s36, 3
    %p196 = por %p194, %p195
    %p197 = scmp.ne.s32.totalorder %s188, %s189
    %p198 = scmp.eq.s32.totalorder %s36, 0
    %p199 = por %p197, %p198
    %p200 = scmp.ne.s32.totalorder %s188, %s189
    %p201 = scmp.eq.s32.totalorder %s37, 3
    %p202 = por %p200, %p201
    %p204 = scmp.ne.s32.totalorder %s189, %s203
    %p205 = scmp.eq.s32.totalorder %s37, 0
    %p206 = por %p204, %p205
    %s208 = sadd.s32 %s207, 1
    %p211 = scmp.eq.s32.totalorder %s31, 3
    %p212 = scmp.ne.s32.totalorder %s207, %s209
    %p213 = scmp.eq.s32.totalorder %s31, 0
    %p214 = por %p212, %p213
    %p215 = scmp.ne.s32.totalorder %s207, %s209
    %p216 = scmp.eq.s32.totalorder %s36, 3
    %p217 = por %p215, %p216
    %p218 = scmp.ne.s32.totalorder %s209, %s210
    %p219 = scmp.eq.s32.totalorder %s36, 0
    %p220 = por %p218, %p219
    %p221 = scmp.ne.s32.totalorder %s209, %s210
    %p222 = scmp.eq.s32.totalorder %s37, 3
    %p223 = por %p221, %p222
    %p225 = scmp.ne.s32.totalorder %s210, %s224
    %p226 = scmp.eq.s32.totalorder %s37, 0
    %p227 = por %p225, %p226
    %s229 = sadd.s32 %s228, 1
    %p232 = scmp.eq.s32.totalorder %s31, 3
    %p233 = scmp.ne.s32.totalorder %s228, %s230
    %p234 = scmp.eq.s32.totalorder %s31, 0
    %p235 = por %p233, %p234
    %p236 = scmp.ne.s32.totalorder %s228, %s230
    %p237 = scmp.eq.s32.totalorder %s36, 3
    %p238 = por %p236, %p237
    %p239 = scmp.ne.s32.totalorder %s230, %s231
    %p240 = scmp.eq.s32.totalorder %s36, 0
    %p241 = por %p239, %p240
    %p242 = scmp.ne.s32.totalorder %s230, %s231
    %p243 = scmp.eq.s32.totalorder %s37, 3
    %p244 = por %p242, %p243
    %p246 = scmp.ne.s32.totalorder %s231, %s245
    %p247 = scmp.eq.s32.totalorder %s37, 0
    %p248 = por %p246, %p247
    %s250 = sadd.s32 %s249, 1
    %p253 = scmp.eq.s32.totalorder %s31, 3
    %p254 = scmp.ne.s32.totalorder %s249, %s251
    %p255 = scmp.eq.s32.totalorder %s31, 0
    %p256 = por %p254, %p255
    %p257 = scmp.ne.s32.totalorder %s249, %s251
    %p258 = scmp.eq.s32.totalorder %s36, 3
    %p259 = por %p257, %p258
    %p260 = scmp.ne.s32.totalorder %s251, %s252
    %p261 = scmp.eq.s32.totalorder %s36, 0
    %p262 = por %p260, %p261
    %p263 = scmp.ne.s32.totalorder %s251, %s252
    %p264 = scmp.eq.s32.totalorder %s37, 3
    %p265 = por %p263, %p264
    %p267 = scmp.ne.s32.totalorder %s252, %s266
    %p268 = scmp.eq.s32.totalorder %s37, 0
    %p269 = por %p267, %p268
    %s271 = sadd.s32 %s270, 1
    %p274 = scmp.eq.s32.totalorder %s31, 3
    %p275 = scmp.ne.s32.totalorder %s270, %s272
    %p276 = scmp.eq.s32.totalorder %s31, 0
    %p277 = por %p275, %p276
    %p278 = scmp.ne.s32.totalorder %s270, %s272
    %p279 = scmp.eq.s32.totalorder %s36, 3
    %p280 = por %p278, %p279
    %p281 = scmp.ne.s32.totalorder %s272, %s273
    %p282 = scmp.eq.s32.totalorder %s36, 0
    %p283 = por %p281, %p282
    %p284 = scmp.ne.s32.totalorder %s272, %s273
    %p285 = scmp.eq.s32.totalorder %s37, 3
    %p286 = por %p284, %p285
    %p288 = scmp.ne.s32.totalorder %s273, %s287
    %p289 = scmp.eq.s32.totalorder %s37, 0
    %p290 = por %p288, %p289
    %s292 = sadd.s32 %s291, 1
    %p295 = scmp.eq.s32.totalorder %s31, 3
    %p296 = scmp.ne.s32.totalorder %s291, %s293
    %p297 = scmp.eq.s32.totalorder %s31, 0
    %p298 = por %p296, %p297
    %p299 = scmp.ne.s32.totalorder %s291, %s293
    %p300 = scmp.eq.s32.totalorder %s36, 3
    %p301 = por %p299, %p300
    %p302 = scmp.ne.s32.totalorder %s293, %s294
    %p303 = scmp.eq.s32.totalorder %s36, 0
    %p304 = por %p302, %p303
    %p305 = scmp.ne.s32.totalorder %s293, %s294
    %p306 = scmp.eq.s32.totalorder %s37, 3
    %p307 = por %p305, %p306
    %p309 = scmp.ne.s32.totalorder %s294, %s308
    %p310 = scmp.eq.s32.totalorder %s37, 0
    %p311 = por %p309, %p310
    %s313 = sadd.s32 %s312, 1
    %p316 = scmp.eq.s32.totalorder %s31, 3
    %p317 = scmp.ne.s32.totalorder %s312, %s314
    %p318 = scmp.eq.s32.totalorder %s31, 0
    %p319 = por %p317, %p318
    %p320 = scmp.ne.s32.totalorder %s312, %s314
    %p321 = scmp.eq.s32.totalorder %s36, 3
    %p322 = por %p320, %p321
    %p323 = scmp.ne.s32.totalorder %s314, %s315
    %p324 = scmp.eq.s32.totalorder %s36, 0
    %p325 = por %p323, %p324
    %p326 = scmp.ne.s32.totalorder %s314, %s315
    %p327 = scmp.eq.s32.totalorder %s37, 3
    %p328 = por %p326, %p327
    %p330 = scmp.ne.s32.totalorder %s315, %s329
    %p331 = scmp.eq.s32.totalorder %s37, 0
    %p332 = por %p330, %p331
    %s334 = sadd.s32 %s333, 1
    %p337 = scmp.eq.s32.totalorder %s31, 3
    %p338 = scmp.ne.s32.totalorder %s333, %s335
    %p339 = scmp.eq.s32.totalorder %s31, 0
    %p340 = por %p338, %p339
    %p341 = scmp.ne.s32.totalorder %s333, %s335
    %p342 = scmp.eq.s32.totalorder %s36, 3
    %p343 = por %p341, %p342
    %p344 = scmp.ne.s32.totalorder %s335, %s336
    %p345 = scmp.eq.s32.totalorder %s36, 0
    %p346 = por %p344, %p345
    %p347 = scmp.ne.s32.totalorder %s335, %s336
    %p348 = scmp.eq.s32.totalorder %s37, 3
    %p349 = por %p347, %p348
    %p351 = scmp.ne.s32.totalorder %s336, %s350
    %p352 = scmp.eq.s32.totalorder %s37, 0
    %p353 = por %p351, %p352
    %s355 = sadd.s32 %s354, 1
    %p358 = scmp.eq.s32.totalorder %s31, 3
    %p359 = scmp.ne.s32.totalorder %s354, %s356
    %p360 = scmp.eq.s32.totalorder %s31, 0
    %p361 = por %p359, %p360
    %p362 = scmp.ne.s32.totalorder %s354, %s356
    %p363 = scmp.eq.s32.totalorder %s36, 3
    %p364 = por %p362, %p363
    %p365 = scmp.ne.s32.totalorder %s356, %s357
    %p366 = scmp.eq.s32.totalorder %s36, 0
    %p367 = por %p365, %p366
    %p368 = scmp.ne.s32.totalorder %s356, %s357
    %p369 = scmp.eq.s32.totalorder %s37, 3
    %p370 = por %p368, %p369
    %p372 = scmp.ne.s32.totalorder %s357, %s371
    %p373 = scmp.eq.s32.totalorder %s37, 0
    %p374 = por %p372, %p373
    %s376 = sadd.s32 %s375, 1
    %p379 = scmp.eq.s32.totalorder %s31, 3
    %p380 = scmp.ne.s32.totalorder %s375, %s377
    %p381 = scmp.eq.s32.totalorder %s31, 0
    %p382 = por %p380, %p381
    %p383 = scmp.ne.s32.totalorder %s375, %s377
    %p384 = scmp.eq.s32.totalorder %s36, 3
    %p385 = por %p383, %p384
    %p386 = scmp.ne.s32.totalorder %s377, %s378
    %p387 = scmp.eq.s32.totalorder %s36, 0
    %p388 = por %p386, %p387
    %p389 = scmp.ne.s32.totalorder %s377, %s378
    %p390 = scmp.eq.s32.totalorder %s37, 3
    %p391 = por %p389, %p390
    %p393 = scmp.ne.s32.totalorder %s378, %s392
    %p394 = scmp.eq.s32.totalorder %s37, 0
    %p395 = por %p393, %p394
    %s397 = sadd.s32 %s396, 1
    %p400 = scmp.eq.s32.totalorder %s31, 3
    %p401 = scmp.ne.s32.totalorder %s396, %s398
    %p402 = scmp.eq.s32.totalorder %s31, 0
    %p403 = por %p401, %p402
    %p404 = scmp.ne.s32.totalorder %s396, %s398
    %p405 = scmp.eq.s32.totalorder %s36, 3
    %p406 = por %p404, %p405
    %p407 = scmp.ne.s32.totalorder %s398, %s399
    %p408 = scmp.eq.s32.totalorder %s36, 0
    %p409 = por %p407, %p408
    %p410 = scmp.ne.s32.totalorder %s398, %s399
    %p411 = scmp.eq.s32.totalorder %s37, 3
    %p412 = por %p410, %p411
    %p414 = scmp.ne.s32.totalorder %s399, %s413
    %p415 = scmp.eq.s32.totalorder %s37, 0
    %p416 = por %p414, %p415
    %s418 = sadd.s32 %s417, 1
    %p421 = scmp.eq.s32.totalorder %s31, 3
    %p422 = scmp.ne.s32.totalorder %s417, %s419
    %p423 = scmp.eq.s32.totalorder %s31, 0
    %p424 = por %p422, %p423
    %p425 = scmp.ne.s32.totalorder %s417, %s419
    %p426 = scmp.eq.s32.totalorder %s36, 3
    %p427 = por %p425, %p426
    %p428 = scmp.ne.s32.totalorder %s419, %s420
    %p429 = scmp.eq.s32.totalorder %s36, 0
    %p430 = por %p428, %p429
    %p431 = scmp.ne.s32.totalorder %s419, %s420
    %p432 = scmp.eq.s32.totalorder %s37, 3
    %p433 = por %p431, %p432
    %p435 = scmp.ne.s32.totalorder %s420, %s434
    %p436 = scmp.eq.s32.totalorder %s37, 0
    %p437 = por %p435, %p436
    %s439 = sadd.s32 %s438, 1
    %p442 = scmp.eq.s32.totalorder %s31, 3
    %p443 = scmp.ne.s32.totalorder %s438, %s440
    %p444 = scmp.eq.s32.totalorder %s31, 0
    %p445 = por %p443, %p444
    %p446 = scmp.ne.s32.totalorder %s438, %s440
    %p447 = scmp.eq.s32.totalorder %s36, 3
    %p448 = por %p446, %p447
    %p449 = scmp.ne.s32.totalorder %s440, %s441
    %p450 = scmp.eq.s32.totalorder %s36, 0
    %p451 = por %p449, %p450
    %p452 = scmp.ne.s32.totalorder %s440, %s441
    %p453 = scmp.eq.s32.totalorder %s37, 3
    %p454 = por %p452, %p453
    %p456 = scmp.ne.s32.totalorder %s441, %s455
    %p457 = scmp.eq.s32.totalorder %s37, 0
    %p458 = por %p456, %p457
    %s460 = sadd.s32 %s459, 1
    %p463 = scmp.eq.s32.totalorder %s31, 3
    %p464 = scmp.ne.s32.totalorder %s459, %s461
    %p465 = scmp.eq.s32.totalorder %s31, 0
    %p466 = por %p464, %p465
    %p467 = scmp.ne.s32.totalorder %s459, %s461
    %p468 = scmp.eq.s32.totalorder %s36, 3
    %p469 = por %p467, %p468
    %p470 = scmp.ne.s32.totalorder %s461, %s462
    %p471 = scmp.eq.s32.totalorder %s36, 0
    %p472 = por %p470, %p471
    %p473 = scmp.ne.s32.totalorder %s461, %s462
    %p474 = scmp.eq.s32.totalorder %s37, 3
    %p475 = por %p473, %p474
    %p477 = scmp.ne.s32.totalorder %s462, %s476
    %p478 = scmp.eq.s32.totalorder %s37, 0
    %p479 = por %p477, %p478
    %s481 = sadd.s32 %s480, 1
    %p484 = scmp.eq.s32.totalorder %s31, 3
    %p485 = scmp.ne.s32.totalorder %s480, %s482
    %p486 = scmp.eq.s32.totalorder %s31, 0
    %p487 = por %p485, %p486
    %p488 = scmp.ne.s32.totalorder %s480, %s482
    %p489 = scmp.eq.s32.totalorder %s36, 3
    %p490 = por %p488, %p489
    %p491 = scmp.ne.s32.totalorder %s482, %s483
    %p492 = scmp.eq.s32.totalorder %s36, 0
    %p493 = por %p491, %p492
    %p494 = scmp.ne.s32.totalorder %s482, %s483
    %p495 = scmp.eq.s32.totalorder %s37, 3
    %p496 = por %p494, %p495
    %p498 = scmp.ne.s32.totalorder %s483, %s497
    %p499 = scmp.eq.s32.totalorder %s37, 0
    %p500 = por %p498, %p499
    %s502 = sadd.s32 %s501, 1
    %p505 = scmp.eq.s32.totalorder %s31, 3
    %p506 = scmp.ne.s32.totalorder %s501, %s503
    %p507 = scmp.eq.s32.totalorder %s31, 0
    %p508 = por %p506, %p507
    %p509 = scmp.ne.s32.totalorder %s501, %s503
    %p510 = scmp.eq.s32.totalorder %s36, 3
    %p511 = por %p509, %p510
    %p512 = scmp.ne.s32.totalorder %s503, %s504
    %p513 = scmp.eq.s32.totalorder %s36, 0
    %p514 = por %p512, %p513
    %p515 = scmp.ne.s32.totalorder %s503, %s504
    %p516 = scmp.eq.s32.totalorder %s37, 3
    %p517 = por %p515, %p516
    %p519 = scmp.ne.s32.totalorder %s504, %s518
    %p520 = scmp.eq.s32.totalorder %s37, 0
    %p521 = por %p519, %p520
    %s523 = sadd.s32 %s522, 1
    %p526 = scmp.eq.s32.totalorder %s31, 3
    %p527 = scmp.ne.s32.totalorder %s522, %s524
    %p528 = scmp.eq.s32.totalorder %s31, 0
    %p529 = por %p527, %p528
    %p530 = scmp.ne.s32.totalorder %s522, %s524
    %p531 = scmp.eq.s32.totalorder %s36, 3
    %p532 = por %p530, %p531
    %p533 = scmp.ne.s32.totalorder %s524, %s525
    %p534 = scmp.eq.s32.totalorder %s36, 0
    %p535 = por %p533, %p534
    %p536 = scmp.ne.s32.totalorder %s524, %s525
    %p537 = scmp.eq.s32.totalorder %s37, 3
    %p538 = por %p536, %p537
    %p540 = scmp.ne.s32.totalorder %s525, %s539
    %p541 = scmp.eq.s32.totalorder %s37, 0
    %p542 = por %p540, %p541
    %s544 = sadd.s32 %s543, 1
    %p547 = scmp.eq.s32.totalorder %s31, 3
    %p548 = scmp.ne.s32.totalorder %s543, %s545
    %p549 = scmp.eq.s32.totalorder %s31, 0
    %p550 = por %p548, %p549
    %p551 = scmp.ne.s32.totalorder %s543, %s545
    %p552 = scmp.eq.s32.totalorder %s36, 3
    %p553 = por %p551, %p552
    %p554 = scmp.ne.s32.totalorder %s545, %s546
    %p555 = scmp.eq.s32.totalorder %s36, 0
    %p556 = por %p554, %p555
    %p557 = scmp.ne.s32.totalorder %s545, %s546
    %p558 = scmp.eq.s32.totalorder %s37, 3
    %p559 = por %p557, %p558
    %p561 = scmp.ne.s32.totalorder %s546, %s560
    %p562 = scmp.eq.s32.totalorder %s37, 0
    %p563 = por %p561, %p562
    %s564 = ssub.s32 %s31, %s38
    %p565 = scmp.eq.s32.totalorder %s564, 0
    %s567 = sadd.s32 %s566, 1
    %s568 = scalar_select %p565, %s566, %s567
    %p571 = pneg %p565
    %p572 = scmp.eq.s32.totalorder %s31, 3
    %p573 = por %p571, %p572
    %p574 = scmp.ne.s32.totalorder %s566, %s569
    %p575 = scmp.eq.s32.totalorder %s31, 0
    %p576 = por %p574, %p575
    %p577 = scmp.ne.s32.totalorder %s566, %s569
    %p578 = scmp.eq.s32.totalorder %s36, 3
    %p579 = por %p577, %p578
    %p580 = scmp.ne.s32.totalorder %s569, %s570
    %p581 = scmp.eq.s32.totalorder %s36, 0
    %p582 = por %p580, %p581
    %p583 = scmp.ne.s32.totalorder %s569, %s570
    %p584 = scmp.eq.s32.totalorder %s37, 3
    %p585 = por %p583, %p584
    %p587 = scmp.ne.s32.totalorder %s570, %s586
    %p588 = scmp.eq.s32.totalorder %s37, 0
    %p589 = por %p587, %p588
    %p590 = scmp.le.s32.totalorder 1, %s31
    %p591 = scmp.lt.s32.totalorder %s31, 5
    %p592 = pnand %p590, %p591
    %p593 = pneg %p592
    // Predicated region
    $region9: #{doranet_forward.1} parent=5 // pred_check
      _
    $region10: #{doranet_forward.1} parent=5 // pred_check_branch
      %595 = sbr.rel (%p592) target = $region12
    $region11: #{doranet_forward.1} parent=5 // pred_region
      %s596 = ssub.s32 %s31, 1
      // Predicated region
      $region13: #{doranet_forward.1} parent=11 // pred_check
        %p597 = pneg %p52
      $region14: #{doranet_forward.1} parent=11 // pred_check_branch
        %599 = sbr.rel (%p597) target = $region16
      $region15: #{doranet_forward.1} parent=11 // pred_region
        _
      $region16: #{doranet_forward.1} parent=11 // pred_fallthru
        _
      // Predicated region
      $region17: #{doranet_forward.1} parent=11 // pred_check
        %p600 = pneg %p73
      $region18: #{doranet_forward.1} parent=11 // pred_check_branch
        %602 = sbr.rel (%p600) target = $region20
      $region19: #{doranet_forward.1} parent=11 // pred_region
        _
      $region20: #{doranet_forward.1} parent=11 // pred_fallthru
        _
      // Predicated region
      $region21: #{doranet_forward.1} parent=11 // pred_check
        %p603 = pneg %p94
      $region22: #{doranet_forward.1} parent=11 // pred_check_branch
        %605 = sbr.rel (%p603) target = $region24
      $region23: #{doranet_forward.1} parent=11 // pred_region
        _
      $region24: #{doranet_forward.1} parent=11 // pred_fallthru
        _
      // Predicated region
      $region25: #{doranet_forward.1} parent=11 // pred_check
        %p606 = pneg %p115
      $region26: #{doranet_forward.1} parent=11 // pred_check_branch
        %608 = sbr.rel (%p606) target = $region28
      $region27: #{doranet_forward.1} parent=11 // pred_region
        _
      $region28: #{doranet_forward.1} parent=11 // pred_fallthru
        _
      // Predicated region
      $region29: #{doranet_forward.1} parent=11 // pred_check
        %p609 = pneg %p136
      $region30: #{doranet_forward.1} parent=11 // pred_check_branch
        %611 = sbr.rel (%p609) target = $region32
      $region31: #{doranet_forward.1} parent=11 // pred_region
        _
      $region32: #{doranet_forward.1} parent=11 // pred_fallthru
        _
      // Predicated region
      $region33: #{doranet_forward.1} parent=11 // pred_check
        %p612 = pneg %p157
      $region34: #{doranet_forward.1} parent=11 // pred_check_branch
        %614 = sbr.rel (%p612) target = $region36
      $region35: #{doranet_forward.1} parent=11 // pred_region
        _
      $region36: #{doranet_forward.1} parent=11 // pred_fallthru
        _
      // Predicated region
      $region37: #{doranet_forward.1} parent=11 // pred_check
        %p615 = pneg %p178
      $region38: #{doranet_forward.1} parent=11 // pred_check_branch
        %617 = sbr.rel (%p615) target = $region40
      $region39: #{doranet_forward.1} parent=11 // pred_region
        _
      $region40: #{doranet_forward.1} parent=11 // pred_fallthru
        _
      // Predicated region
      $region41: #{doranet_forward.1} parent=11 // pred_check
        %p618 = pneg %p199
      $region42: #{doranet_forward.1} parent=11 // pred_check_branch
        %620 = sbr.rel (%p618) target = $region44
      $region43: #{doranet_forward.1} parent=11 // pred_region
        _
      $region44: #{doranet_forward.1} parent=11 // pred_fallthru
        _
      // Predicated region
      $region45: #{doranet_forward.1} parent=11 // pred_check
        %p621 = pneg %p220
      $region46: #{doranet_forward.1} parent=11 // pred_check_branch
        %623 = sbr.rel (%p621) target = $region48
      $region47: #{doranet_forward.1} parent=11 // pred_region
        _
      $region48: #{doranet_forward.1} parent=11 // pred_fallthru
        _
      // Predicated region
      $region49: #{doranet_forward.1} parent=11 // pred_check
        %p624 = pneg %p241
      $region50: #{doranet_forward.1} parent=11 // pred_check_branch
        %626 = sbr.rel (%p624) target = $region52
      $region51: #{doranet_forward.1} parent=11 // pred_region
        _
      $region52: #{doranet_forward.1} parent=11 // pred_fallthru
        _
      // Predicated region
      $region53: #{doranet_forward.1} parent=11 // pred_check
        %p627 = pneg %p262
      $region54: #{doranet_forward.1} parent=11 // pred_check_branch
        %629 = sbr.rel (%p627) target = $region56
      $region55: #{doranet_forward.1} parent=11 // pred_region
        _
      $region56: #{doranet_forward.1} parent=11 // pred_fallthru
        _
      // Predicated region
      $region57: #{doranet_forward.1} parent=11 // pred_check
        %p630 = pneg %p283
      $region58: #{doranet_forward.1} parent=11 // pred_check_branch
        %632 = sbr.rel (%p630) target = $region60
      $region59: #{doranet_forward.1} parent=11 // pred_region
        _
      $region60: #{doranet_forward.1} parent=11 // pred_fallthru
        _
      // Predicated region
      $region61: #{doranet_forward.1} parent=11 // pred_check
        %p633 = pneg %p304
      $region62: #{doranet_forward.1} parent=11 // pred_check_branch
        %635 = sbr.rel (%p633) target = $region64
      $region63: #{doranet_forward.1} parent=11 // pred_region
        _
      $region64: #{doranet_forward.1} parent=11 // pred_fallthru
        _
      // Predicated region
      $region65: #{doranet_forward.1} parent=11 // pred_check
        %p636 = pneg %p325
      $region66: #{doranet_forward.1} parent=11 // pred_check_branch
        %638 = sbr.rel (%p636) target = $region68
      $region67: #{doranet_forward.1} parent=11 // pred_region
        _
      $region68: #{doranet_forward.1} parent=11 // pred_fallthru
        _
      // Predicated region
      $region69: #{doranet_forward.1} parent=11 // pred_check
        %p639 = pneg %p346
      $region70: #{doranet_forward.1} parent=11 // pred_check_branch
        %641 = sbr.rel (%p639) target = $region72
      $region71: #{doranet_forward.1} parent=11 // pred_region
        _
      $region72: #{doranet_forward.1} parent=11 // pred_fallthru
        _
      // Predicated region
      $region73: #{doranet_forward.1} parent=11 // pred_check
        %p642 = pneg %p367
      $region74: #{doranet_forward.1} parent=11 // pred_check_branch
        %644 = sbr.rel (%p642) target = $region76
      $region75: #{doranet_forward.1} parent=11 // pred_region
        _
      $region76: #{doranet_forward.1} parent=11 // pred_fallthru
        _
      // Predicated region
      $region77: #{doranet_forward.1} parent=11 // pred_check
        %p645 = pneg %p388
      $region78: #{doranet_forward.1} parent=11 // pred_check_branch
        %647 = sbr.rel (%p645) target = $region80
      $region79: #{doranet_forward.1} parent=11 // pred_region
        _
      $region80: #{doranet_forward.1} parent=11 // pred_fallthru
        _
      // Predicated region
      $region81: #{doranet_forward.1} parent=11 // pred_check
        %p648 = pneg %p409
      $region82: #{doranet_forward.1} parent=11 // pred_check_branch
        %650 = sbr.rel (%p648) target = $region84
      $region83: #{doranet_forward.1} parent=11 // pred_region
        _
      $region84: #{doranet_forward.1} parent=11 // pred_fallthru
        _
      // Predicated region
      $region85: #{doranet_forward.1} parent=11 // pred_check
        %p651 = pneg %p430
      $region86: #{doranet_forward.1} parent=11 // pred_check_branch
        %653 = sbr.rel (%p651) target = $region88
      $region87: #{doranet_forward.1} parent=11 // pred_region
        _
      $region88: #{doranet_forward.1} parent=11 // pred_fallthru
        _
      // Predicated region
      $region89: #{doranet_forward.1} parent=11 // pred_check
        %p654 = pneg %p451
      $region90: #{doranet_forward.1} parent=11 // pred_check_branch
        %656 = sbr.rel (%p654) target = $region92
      $region91: #{doranet_forward.1} parent=11 // pred_region
        _
      $region92: #{doranet_forward.1} parent=11 // pred_fallthru
        _
      // Predicated region
      $region93: #{doranet_forward.1} parent=11 // pred_check
        %p657 = pneg %p472
      $region94: #{doranet_forward.1} parent=11 // pred_check_branch
        %659 = sbr.rel (%p657) target = $region96
      $region95: #{doranet_forward.1} parent=11 // pred_region
        _
      $region96: #{doranet_forward.1} parent=11 // pred_fallthru
        _
      // Predicated region
      $region97: #{doranet_forward.1} parent=11 // pred_check
        %p660 = pneg %p493
      $region98: #{doranet_forward.1} parent=11 // pred_check_branch
        %662 = sbr.rel (%p660) target = $region100
      $region99: #{doranet_forward.1} parent=11 // pred_region
        _
      $region100: #{doranet_forward.1} parent=11 // pred_fallthru
        _
      // Predicated region
      $region101: #{doranet_forward.1} parent=11 // pred_check
        %p663 = pneg %p514
      $region102: #{doranet_forward.1} parent=11 // pred_check_branch
        %665 = sbr.rel (%p663) target = $region104
      $region103: #{doranet_forward.1} parent=11 // pred_region
        _
      $region104: #{doranet_forward.1} parent=11 // pred_fallthru
        _
      // Predicated region
      $region105: #{doranet_forward.1} parent=11 // pred_check
        %p666 = pneg %p535
      $region106: #{doranet_forward.1} parent=11 // pred_check_branch
        %668 = sbr.rel (%p666) target = $region108
      $region107: #{doranet_forward.1} parent=11 // pred_region
        _
      $region108: #{doranet_forward.1} parent=11 // pred_fallthru
        _
      // Predicated region
      $region109: #{doranet_forward.1} parent=11 // pred_check
        %p669 = pneg %p556
      $region110: #{doranet_forward.1} parent=11 // pred_check_branch
        %671 = sbr.rel (%p669) target = $region112
      $region111: #{doranet_forward.1} parent=11 // pred_region
        _
      $region112: #{doranet_forward.1} parent=11 // pred_fallthru
        _
    $region12: #{doranet_forward.1} parent=5 // pred_fallthru
      _
    %p672 = scmp.lt.s32.totalorder %s31, 4
    // Predicated region
    $region113: #{doranet_forward.1} parent=5 // pred_check
      %p673 = pneg %p672
    $region114: #{doranet_forward.1} parent=5 // pred_check_branch
      %675 = sbr.rel (%p673) target = $region116
    $region115: #{doranet_forward.1} parent=5 // pred_region
      _
    $region116: #{doranet_forward.1} parent=5 // pred_fallthru
      _
    %p676 = scmp.le.s32.totalorder 1, %s31
    %p677 = scmp.lt.s32.totalorder %s31, 5
    %p678 = pnand %p676, %p677
    %p679 = pneg %p678
    // Predicated region
    $region117: #{doranet_forward.1} parent=5 // pred_check
      _
    $region118: #{doranet_forward.1} parent=5 // pred_check_branch
      %681 = sbr.rel (%p678) target = $region120
    $region119: #{doranet_forward.1} parent=5 // pred_region
      %s682 = ssub.s32 %s31, 1
      %p683 = pneg %p52
      %p684 = pneg %p49
      %p685 = pneg %p73
      %p686 = pneg %p70
      %p687 = pneg %p94
      %p688 = pneg %p91
      %p689 = pneg %p115
      %p690 = pneg %p112
      %p691 = pneg %p136
      %p692 = pneg %p133
      %p693 = pneg %p157
      %p694 = pneg %p154
      %p695 = pneg %p178
      %p696 = pneg %p175
      %p697 = pneg %p199
      %p698 = pneg %p196
      %p699 = pneg %p220
      %p700 = pneg %p217
      %p701 = pneg %p241
      %p702 = pneg %p238
      %p703 = pneg %p262
      %p704 = pneg %p259
      %p705 = pneg %p283
      %p706 = pneg %p280
      %p707 = pneg %p304
      %p708 = pneg %p301
      %p709 = pneg %p325
      %p710 = pneg %p322
      %p711 = pneg %p346
      %p712 = pneg %p343
      %p713 = pneg %p367
      %p714 = pneg %p364
      %p715 = pneg %p388
      %p716 = pneg %p385
      %p717 = pneg %p409
      %p718 = pneg %p406
      %p719 = pneg %p430
      %p720 = pneg %p427
      %p721 = pneg %p451
      %p722 = pneg %p448
      %p723 = pneg %p472
      %p724 = pneg %p469
      %p725 = pneg %p493
      %p726 = pneg %p490
      %p727 = pneg %p514
      %p728 = pneg %p511
      %p729 = pneg %p535
      %p730 = pneg %p532
      %p731 = pneg %p556
      %p732 = pneg %p553
      %p733 = pneg %p582
      %p734 = pneg %p579
      %p735 = scmp.lt.s32.totalorder %s36, 3
      %s736 = scalar_select %p735, %s36, 3
      %s737 = smul.addr %s736, 8
      %s738 = scalar_lea.vmem %s25, %s737
      %p739 = scmp.lt.s32.totalorder %s36, 3
      %s740 = scalar_select %p739, %s36, 3
      %s741 = smul.addr %s740, 8
      %s742 = scalar_lea.vmem %s25, %s741
      %s743 = smul.u32 %s36, 8
      %s744 = scalar_lea.vmem %s0, %s743
      %v745 = vld [vmem:[%s744] sm:$0xff]
      %s746 = smul.u32 %s36, 16
      %s747 = scalar_lea.vmem %s1, %s746
      %v748 = vld [vmem:[%s747] sm:$0xff]
      %v749 = vld [vmem:[%s747 + $0x8] sm:$0x3]
      %s750 = scalar_lea.vmem %s2, %s36
      %v751 = vld [vmem:[%s750] sm:$0x1]
      %v753 = vlaneseq
      %v754 = vshrl.u32 %v753, 7
      %v755 = vsub.s32 0, %v754
      %v756 = vrot.slane %v751, %v755
      %vm758 = vcmask 80896
      %v760 = vsel %vm758, %v745, 0
      %vm762 = vcmask 1041408
      %v764 = vsel %vm762, %v749, 0
      %766 = vmatprep.subr.mxu0 0.0
      %767 = vmatpush1.msra.mxu0 %v748
      %768 = vmatprep.subr.mxu0 0.0
      %769 = vmatpush1.msra.mxu0 %v764
      %770 = vmatprep.subr.mxu0 0.0
      %771 = vmatpush1.msra.mxu0 0.0
      %772 = vmatprep.subr.mxu0 0.0
      %773 = vmatpush1.msra.mxu0 0.0
      %774 = vmatprep.subr.mxu0 0.0
      %775 = vmatpush1.msra.mxu0 0.0
      %776 = vmatprep.subr.mxu0 0.0
      %777 = vmatpush1.msra.mxu0 0.0
      %778 = vmatprep.subr.mxu0 0.0
      %779 = vmatpush1.msra.mxu0 0.0
      %780 = vmatprep.subr.mxu0 0.0
      %781 = vmatpush1.msra.mxu0 0.0
      %782 = vmatprep.subr.mxu0 0.0
      %783 = vmatpush1.msra.mxu0 0.0
      %784 = vmatprep.subr.mxu0 0.0
      %785 = vmatpush1.msra.mxu0 0.0
      %786 = vmatprep.subr.mxu0 0.0
      %787 = vmatpush1.msra.mxu0 0.0
      %788 = vmatprep.subr.mxu0 0.0
      %789 = vmatpush1.msra.mxu0 0.0
      %790 = vmatprep.subr.mxu0 0.0
      %791 = vmatpush1.msra.mxu0 0.0
      %792 = vmatprep.subr.mxu0 0.0
      %793 = vmatpush1.msra.mxu0 0.0
      %794 = vmatprep.subr.mxu0 0.0
      %795 = vmatpush1.msra.mxu0 0.0
      %796 = vmatprep.subr.mxu0 0.0
      %797 = vmatpush1.msra.mxu0 0.0
      %798 = vmatprep.subr.mxu0 0.0
      %799 = vmatpush1.msra.mxu0 0.0
      %800 = vmatprep.subr.mxu0 0.0
      %801 = vmatpush1.msra.mxu0 0.0
      %802 = vmatprep.subr.mxu0 0.0
      %803 = vmatpush1.msra.mxu0 0.0
      %804 = vmatprep.subr.mxu0 0.0
      %805 = vmatpush1.msra.mxu0 0.0
      %806 = vmatprep.subr.mxu0 0.0
      %807 = vmatpush1.msra.mxu0 0.0
      %808 = vmatprep.subr.mxu0 0.0
      %809 = vmatpush1.msra.mxu0 0.0
      %810 = vmatprep.subr.mxu0 0.0
      %811 = vmatpush1.msra.mxu0 0.0
      %812 = vmatprep.subr.mxu0 0.0
      %813 = vmatpush1.msra.mxu0 0.0
      %814 = vmatprep.subr.mxu0 0.0
      %815 = vmatpush1.msra.mxu0 0.0
      %816 = vmatprep.subr.mxu0 0.0
      %817 = vmatpush1.msra.mxu0 0.0
      %818 = vmatprep.subr.mxu0 0.0
      %819 = vmatpush1.msra.mxu0 0.0
      %820 = vmatprep.subr.mxu0 0.0
      %821 = vmatpush1.msra.mxu0 0.0
      %822 = vmatprep.subr.mxu0 0.0
      %823 = vmatpush1.msra.mxu0 0.0
      %824 = vmatprep.subr.mxu0 0.0
      %825 = vmatpush1.msra.mxu0 0.0
      %826 = vmatprep.subr.mxu0 0.0
      %827 = vmatpush1.msra.mxu0 0.0
      %828 = vmatprep.subr.mxu0 0.0
      %829 = vmatpush1.msra.mxu0 0.0
      %830 = vmatprep.mubr.f32.mxu0 0.0
      %831 = vmatmul.mubr.f32.gmra.mrb[0].mxu0 %v760
      %v832 = vpop.f32.mrb[0].mxu0
      %v833 = vadd.f32 %v756, %v832
      %v834 = vpop.f32.mrb[0].mxu0
      %835 = vdwg.mxu0
      %s836 = scalar_lea.vmem %s3, %s36
      %v837 = vld [vmem:[%s836] sm:$0x1]
      %s838 = scalar_lea.vmem %s4, %s36
      %v839 = vld [vmem:[%s838] sm:$0x1]
      %vm840 = vcmask 785408
      %v841 = vsel %vm840, %v833, 0.0
      %842 = vadd.xlane.f32.xlu0 %v841
      %v843 = vpop.xlane.xlu0 %842
      %v844 = vmul.f32 %v843, 0.010416667
      %v845 = vmul.f32 %v833, %v833
      %v846 = vsel %vm840, %v845, 0.0
      %847 = vadd.xlane.f32.xlu0 %v846
      %v848 = vpop.xlane.xlu0 %847
      %v849 = vmul.f32 %v848, 0.010416667
      %v850 = vmul.f32 %v844, %v844
      %v851 = vsub.f32 %v849, %v850
      %v852 = vmax.f32 %v851, 0.0
      %v853 = vsub.f32 %v833, %v844
      %v854 = vadd.f32 %v852, 1e-05
      %v855 = vrsqrt.pop %v854
      %v856 = vmul.f32 %v853, %v855
      %v858 = vlaneseq
      %v859 = vshrl.u32 %v858, 7
      %v860 = vsub.s32 0, %v859
      %v861 = vrot.slane %v837, %v860
      %v863 = vmul.f32 %v856, %v861
      %v865 = vlaneseq
      %v866 = vshrl.u32 %v865, 7
      %v867 = vsub.s32 0, %v866
      %v868 = vrot.slane %v839, %v867
      %v870 = vadd.f32 %v863, %v868
      %v871 = vmax.f32 %v870, 0.0
      %s872 = smul.u32 %s36, 4
      %s873 = smul.u32 %s872, 96
      %s874 = scalar_lea.vmem %s5, %s873
      %v875 = vld [vmem:[%s874] sm:$0xff]
      %v876 = vld [vmem:[%s874 + $0x8] sm:$0xff]
      %v877 = vld [vmem:[%s874 + $0x10] sm:$0xff]
      %v878 = vld [vmem:[%s874 + $0x18] sm:$0xff]
      %v879 = vld [vmem:[%s874 + $0x20] sm:$0xff]
      %v880 = vld [vmem:[%s874 + $0x28] sm:$0xff]
      %v881 = vld [vmem:[%s874 + $0x30] sm:$0xff]
      %v882 = vld [vmem:[%s874 + $0x38] sm:$0xff]
      %v883 = vld [vmem:[%s874 + $0x40] sm:$0xff]
      %v884 = vld [vmem:[%s874 + $0x48] sm:$0xff]
      %v885 = vld [vmem:[%s874 + $0x50] sm:$0xff]
      %v886 = vld [vmem:[%s874 + $0x58] sm:$0xff]
      %s887 = scalar_lea.vmem %s6, %s872
      %v888 = vld [vmem:[%s887] sm:$0x1]
      %v890 = vlaneseq
      %v891 = vshrl.u32 %v890, 7
      %v892 = vsub.s32 0, %v891
      %v893 = vrot.slane %v888, %v892
      %v896 = vsel %vm840, %v871, 0
      %898 = vmatprep.subr.mxu0 0.0
      %899 = vmatpush1.msra.mxu0 %v875
      %900 = vmatprep.subr.mxu0 0.0
      %901 = vmatpush1.msra.mxu0 %v876
      %902 = vmatprep.subr.mxu0 0.0
      %903 = vmatpush1.msra.mxu0 %v877
      %904 = vmatprep.subr.mxu0 0.0
      %905 = vmatpush1.msra.mxu0 %v878
      %906 = vmatprep.subr.mxu0 0.0
      %907 = vmatpush1.msra.mxu0 %v879
      %908 = vmatprep.subr.mxu0 0.0
      %909 = vmatpush1.msra.mxu0 %v880
      %910 = vmatprep.subr.mxu0 0.0
      %911 = vmatpush1.msra.mxu0 %v881
      %912 = vmatprep.subr.mxu0 0.0
      %913 = vmatpush1.msra.mxu0 %v882
      %914 = vmatprep.subr.mxu0 0.0
      %915 = vmatpush1.msra.mxu0 %v883
      %916 = vmatprep.subr.mxu0 0.0
      %917 = vmatpush1.msra.mxu0 %v884
      %918 = vmatprep.subr.mxu0 0.0
      %919 = vmatpush1.msra.mxu0 %v885
      %920 = vmatprep.subr.mxu0 0.0
      %921 = vmatpush1.msra.mxu0 %v886
      %922 = vmatprep.subr.mxu0 0.0
      %923 = vmatpush1.msra.mxu0 0.0
      %924 = vmatprep.subr.mxu0 0.0
      %925 = vmatpush1.msra.mxu0 0.0
      %926 = vmatprep.subr.mxu0 0.0
      %927 = vmatpush1.msra.mxu0 0.0
      %928 = vmatprep.subr.mxu0 0.0
      %929 = vmatpush1.msra.mxu0 0.0
      %930 = vmatprep.subr.mxu0 0.0
      %931 = vmatpush1.msra.mxu0 0.0
      %932 = vmatprep.subr.mxu0 0.0
      %933 = vmatpush1.msra.mxu0 0.0
      %934 = vmatprep.subr.mxu0 0.0
      %935 = vmatpush1.msra.mxu0 0.0
      %936 = vmatprep.subr.mxu0 0.0
      %937 = vmatpush1.msra.mxu0 0.0
      %938 = vmatprep.subr.mxu0 0.0
      %939 = vmatpush1.msra.mxu0 0.0
      %940 = vmatprep.subr.mxu0 0.0
      %941 = vmatpush1.msra.mxu0 0.0
      %942 = vmatprep.subr.mxu0 0.0
      %943 = vmatpush1.msra.mxu0 0.0
      %944 = vmatprep.subr.mxu0 0.0
      %945 = vmatpush1.msra.mxu0 0.0
      %946 = vmatprep.subr.mxu0 0.0
      %947 = vmatpush1.msra.mxu0 0.0
      %948 = vmatprep.subr.mxu0 0.0
      %949 = vmatpush1.msra.mxu0 0.0
      %950 = vmatprep.subr.mxu0 0.0
      %951 = vmatpush1.msra.mxu0 0.0
      %952 = vmatprep.subr.mxu0 0.0
      %953 = vmatpush1.msra.mxu0 0.0
      %954 = vmatprep.subr.mxu0 0.0
      %955 = vmatpush1.msra.mxu0 0.0
      %956 = vmatprep.subr.mxu0 0.0
      %957 = vmatpush1.msra.mxu0 0.0
      %958 = vmatprep.subr.mxu0 0.0
      %959 = vmatpush1.msra.mxu0 0.0
      %960 = vmatprep.subr.mxu0 0.0
      %961 = vmatpush1.msra.mxu0 0.0
      %962 = vmatprep.mubr.f32.mxu0 0.0
      %963 = vmatmul.mubr.f32.gmra.mrb[0].mxu0 %v896
      %v964 = vpop.f32.mrb[0].mxu0
      %v965 = vadd.f32 %v893, %v964
      %v966 = vpop.f32.mrb[0].mxu0
      %967 = vdwg.mxu0
      %s968 = scalar_lea.vmem %s7, %s872
      %v969 = vld [vmem:[%s968] sm:$0x1]
      %s970 = scalar_lea.vmem %s8, %s872
      %v971 = vld [vmem:[%s970] sm:$0x1]
      %v972 = vsel %vm840, %v965, 0.0
      %973 = vadd.xlane.f32.xlu0 %v972
      %v974 = vpop.xlane.xlu0 %973
      %v975 = vmul.f32 %v974, 0.010416667
      %v976 = vmul.f32 %v965, %v965
      %v977 = vsel %vm840, %v976, 0.0
      %978 = vadd.xlane.f32.xlu0 %v977
      %v979 = vpop.xlane.xlu0 %978
      %v980 = vmul.f32 %v979, 0.010416667
      %v981 = vmul.f32 %v975, %v975
      %v982 = vsub.f32 %v980, %v981
      %v983 = vmax.f32 %v982, 0.0
      %v984 = vsub.f32 %v965, %v975
      %v985 = vadd.f32 %v983, 1e-05
      %v986 = vrsqrt.pop %v985
      %v987 = vmul.f32 %v984, %v986
      %v989 = vlaneseq
      %v990 = vshrl.u32 %v989, 7
      %v991 = vsub.s32 0, %v990
      %v992 = vrot.slane %v969, %v991
      %v994 = vmul.f32 %v987, %v992
      %v996 = vlaneseq
      %v997 = vshrl.u32 %v996, 7
      %v998 = vsub.s32 0, %v997
      %v999 = vrot.slane %v971, %v998
      %v1001 = vadd.f32 %v994, %v999
      %v1002 = vmax.f32 %v1001, 0.0
      %s1003 = smul.u32 %s872, 24
      %s1004 = smul.addr %s1003, 8
      %s1005 = scalar_lea.vmem %s9, %s1004
      %v1006 = vld [vmem:[%s1005] sm:$0xff]
      %v1007 = vld [vmem:[%s1005 + $0x8] sm:$0xff]
      %v1008 = vld [vmem:[%s1005 + $0x10] sm:$0xff]
      %v1009 = vld [vmem:[%s1005 + $0x18] sm:$0xff]
      %v1010 = vld [vmem:[%s1005 + $0x20] sm:$0xff]
      %v1011 = vld [vmem:[%s1005 + $0x28] sm:$0xff]
      %v1012 = vld [vmem:[%s1005 + $0x30] sm:$0xff]
      %v1013 = vld [vmem:[%s1005 + $0x38] sm:$0xff]
      %v1014 = vld [vmem:[%s1005 + $0x40] sm:$0xff]
      %v1015 = vld [vmem:[%s1005 + $0x48] sm:$0xff]
      %v1016 = vld [vmem:[%s1005 + $0x50] sm:$0xff]
      %v1017 = vld [vmem:[%s1005 + $0x58] sm:$0xff]
      %v1018 = vld [vmem:[%s1005 + $0x60] sm:$0xff]
      %v1019 = vld [vmem:[%s1005 + $0x68] sm:$0xff]
      %v1020 = vld [vmem:[%s1005 + $0x70] sm:$0xff]
      %v1021 = vld [vmem:[%s1005 + $0x78] sm:$0xff]
      %v1022 = vld [vmem:[%s1005 + $0x80] sm:$0xff]
      %v1023 = vld [vmem:[%s1005 + $0x88] sm:$0xff]
      %v1024 = vld [vmem:[%s1005 + $0x90] sm:$0xff]
      %v1025 = vld [vmem:[%s1005 + $0x98] sm:$0xff]
      %v1026 = vld [vmem:[%s1005 + $0xa0] sm:$0xff]
      %v1027 = vld [vmem:[%s1005 + $0xa8] sm:$0xff]
      %v1028 = vld [vmem:[%s1005 + $0xb0] sm:$0xff]
      %v1029 = vld [vmem:[%s1005 + $0xb8] sm:$0xff]
      %s1030 = smul.u32 %s872, 2
      %s1031 = scalar_lea.vmem %s10, %s1030
      %v1032 = vld [vmem:[%s1031] sm:$0x3]
      %v1034 = vlaneseq
      %v1035 = vshrl.u32 %v1034, 7
      %v1036 = vsub.s32 0, %v1035
      %v1037 = vrot.slane %v1032, %v1036
      %v1038 = vlaneseq
      %v1039 = vshrl.u32 %v1038, 7
      %v1040 = vsub.s32 1, %v1039
      %v1041 = vrot.slane %v1032, %v1040
      %v1045 = vsel %vm840, %v1002, 0
      %1047 = vmatprep.subr.mxu0 %v1007
      %1048 = vmatpush1.msra.mxu0 %v1006
      %1049 = vmatprep.subr.mxu0 %v1009
      %1050 = vmatpush1.msra.mxu0 %v1008
      %1051 = vmatprep.subr.mxu0 %v1011
      %1052 = vmatpush1.msra.mxu0 %v1010
      %1053 = vmatprep.subr.mxu0 %v1013
      %1054 = vmatpush1.msra.mxu0 %v1012
      %1055 = vmatprep.subr.mxu0 %v1015
      %1056 = vmatpush1.msra.mxu0 %v1014
      %1057 = vmatprep.subr.mxu0 %v1017
      %1058 = vmatpush1.msra.mxu0 %v1016
      %1059 = vmatprep.subr.mxu0 %v1019
      %1060 = vmatpush1.msra.mxu0 %v1018
      %1061 = vmatprep.subr.mxu0 %v1021
      %1062 = vmatpush1.msra.mxu0 %v1020
      %1063 = vmatprep.subr.mxu0 %v1023
      %1064 = vmatpush1.msra.mxu0 %v1022
      %1065 = vmatprep.subr.mxu0 %v1025
      %1066 = vmatpush1.msra.mxu0 %v1024
      %1067 = vmatprep.subr.mxu0 %v1027
      %1068 = vmatpush1.msra.mxu0 %v1026
      %1069 = vmatprep.subr.mxu0 %v1029
      %1070 = vmatpush1.msra.mxu0 %v1028
      %1071 = vmatprep.subr.mxu0 0.0
      %1072 = vmatpush1.msra.mxu0 0.0
      %1073 = vmatprep.subr.mxu0 0.0
      %1074 = vmatpush1.msra.mxu0 0.0
      %1075 = vmatprep.subr.mxu0 0.0
      %1076 = vmatpush1.msra.mxu0 0.0
      %1077 = vmatprep.subr.mxu0 0.0
      %1078 = vmatpush1.msra.mxu0 0.0
      %1079 = vmatprep.subr.mxu0 0.0
      %1080 = vmatpush1.msra.mxu0 0.0
      %1081 = vmatprep.subr.mxu0 0.0
      %1082 = vmatpush1.msra.mxu0 0.0
      %1083 = vmatprep.subr.mxu0 0.0
      %1084 = vmatpush1.msra.mxu0 0.0
      %1085 = vmatprep.subr.mxu0 0.0
      %1086 = vmatpush1.msra.mxu0 0.0
      %1087 = vmatprep.subr.mxu0 0.0
      %1088 = vmatpush1.msra.mxu0 0.0
      %1089 = vmatprep.subr.mxu0 0.0
      %1090 = vmatpush1.msra.mxu0 0.0
      %1091 = vmatprep.subr.mxu0 0.0
      %1092 = vmatpush1.msra.mxu0 0.0
      %1093 = vmatprep.subr.mxu0 0.0
      %1094 = vmatpush1.msra.mxu0 0.0
      %1095 = vmatprep.subr.mxu0 0.0
      %1096 = vmatpush1.msra.mxu0 0.0
      %1097 = vmatprep.subr.mxu0 0.0
      %1098 = vmatpush1.msra.mxu0 0.0
      %1099 = vmatprep.subr.mxu0 0.0
      %1100 = vmatpush1.msra.mxu0 0.0
      %1101 = vmatprep.subr.mxu0 0.0
      %1102 = vmatpush1.msra.mxu0 0.0
      %1103 = vmatprep.subr.mxu0 0.0
      %1104 = vmatpush1.msra.mxu0 0.0
      %1105 = vmatprep.subr.mxu0 0.0
      %1106 = vmatpush1.msra.mxu0 0.0
      %1107 = vmatprep.subr.mxu0 0.0
      %1108 = vmatpush1.msra.mxu0 0.0
      %1109 = vmatprep.subr.mxu0 0.0
      %1110 = vmatpush1.msra.mxu0 0.0
      %1111 = vmatprep.mubr.f32.mxu0 0.0
      %1112 = vmatmul.mubr.f32.gmra.mrb[0].mxu0 %v1045
      %v1113 = vpop.f32.mrb[0].mxu0
      %v1114 = vadd.f32 %v1037, %v1113
      %v1115 = vpop.f32.mrb[0].mxu0
      %v1116 = vadd.f32 %v1041, %v1115
      %1117 = vdwg.mxu0
      %s1118 = scalar_lea.vmem %s11, %s1030
      %v1119 = vld [vmem:[%s1118] sm:$0x3]
      %s1120 = scalar_lea.vmem %s12, %s1030
      %v1121 = vld [vmem:[%s1120] sm:$0x3]
      %vm1122 = vcmask 130048
      %v1123 = vsel %vm1122, %v1116, 0.0
      %v1124 = vadd.f32 %v1114, %v1123
      %1125 = vadd.xlane.f32.xlu0 %v1124
      %v1126 = vpop.xlane.xlu0 %1125
      %v1127 = vmul.f32 %v1126, 0.0069444445
      %v1128 = vmul.f32 %v1114, %v1114
      %v1129 = vmul.f32 %v1116, %v1116
      %v1130 = vsel %vm1122, %v1129, 0.0
      %v1131 = vadd.f32 %v1128, %v1130
      %1132 = vadd.xlane.f32.xlu0 %v1131
      %v1133 = vpop.xlane.xlu0 %1132
      %v1134 = vmul.f32 %v1133, 0.0069444445
      %v1135 = vmul.f32 %v1127, %v1127
      %v1136 = vsub.f32 %v1134, %v1135
      %v1137 = vmax.f32 %v1136, 0.0
      %v1138 = vsub.f32 %v1114, %v1127
      %v1139 = vsub.f32 %v1116, %v1127
      %v1140 = vadd.f32 %v1137, 1e-05
      %v1141 = vrsqrt.pop %v1140
      %v1142 = vmul.f32 %v1138, %v1141
      %v1143 = vmul.f32 %v1139, %v1141
      %v1145 = vlaneseq
      %v1146 = vshrl.u32 %v1145, 7
      %v1147 = vsub.s32 0, %v1146
      %v1148 = vrot.slane %v1119, %v1147
      %v1149 = vlaneseq
      %v1150 = vshrl.u32 %v1149, 7
      %v1151 = vsub.s32 1, %v1150
      %v1152 = vrot.slane %v1119, %v1151
      %v1155 = vmul.f32 %v1142, %v1148
      %v1156 = vmul.f32 %v1143, %v1152
      %v1158 = vlaneseq
      %v1159 = vshrl.u32 %v1158, 7
      %v1160 = vsub.s32 0, %v1159
      %v1161 = vrot.slane %v1121, %v1160
      %v1162 = vlaneseq
      %v1163 = vshrl.u32 %v1162, 7
      %v1164 = vsub.s32 1, %v1163
      %v1165 = vrot.slane %v1121, %v1164
      %v1168 = vadd.f32 %v1155, %v1161
      %v1169 = vadd.f32 %v1156, %v1165
      %v1170 = vmax.f32 %v1168, 0.0
      %v1171 = vmax.f32 %v1169, 0.0
      %s1172 = smul.u32 %s872, 144
      %s1173 = scalar_lea.vmem %s13, %s1172
      %v1174 = vld [vmem:[%s1173] sm:$0xff]
      %v1175 = vld [vmem:[%s1173 + $0x8] sm:$0xff]
      %v1176 = vld [vmem:[%s1173 + $0x10] sm:$0xff]
      %v1177 = vld [vmem:[%s1173 + $0x18] sm:$0xff]
      %v1178 = vld [vmem:[%s1173 + $0x20] sm:$0xff]
      %v1179 = vld [vmem:[%s1173 + $0x28] sm:$0xff]
      %v1180 = vld [vmem:[%s1173 + $0x30] sm:$0xff]
      %v1181 = vld [vmem:[%s1173 + $0x38] sm:$0xff]
      %v1182 = vld [vmem:[%s1173 + $0x40] sm:$0xff]
      %v1183 = vld [vmem:[%s1173 + $0x48] sm:$0xff]
      %v1184 = vld [vmem:[%s1173 + $0x50] sm:$0xff]
      %v1185 = vld [vmem:[%s1173 + $0x58] sm:$0xff]
      %v1186 = vld [vmem:[%s1173 + $0x60] sm:$0xff]
      %v1187 = vld [vmem:[%s1173 + $0x68] sm:$0xff]
      %v1188 = vld [vmem:[%s1173 + $0x70] sm:$0xff]
      %v1189 = vld [vmem:[%s1173 + $0x78] sm:$0xff]
      %v1190 = vld [vmem:[%s1173 + $0x80] sm:$0xff]
      %v1191 = vld [vmem:[%s1173 + $0x88] sm:$0xff]
      %s1192 = scalar_lea.vmem %s14, %s872
      %v1193 = vld [vmem:[%s1192] sm:$0x1]
      %v1195 = vlaneseq
      %v1196 = vshrl.u32 %v1195, 7
      %v1197 = vsub.s32 0, %v1196
      %v1198 = vrot.slane %v1193, %v1197
      %v1201 = vsel %vm1122, %v1171, 0
      %1203 = vmatprep.subr.mxu0 0.0
      %1204 = vmatpush1.msra.mxu0 %v1174
      %1205 = vmatprep.subr.mxu0 0.0
      %1206 = vmatpush1.msra.mxu0 %v1175
      %1207 = vmatprep.subr.mxu0 0.0
      %1208 = vmatpush1.msra.mxu0 %v1176
      %1209 = vmatprep.subr.mxu0 0.0
      %1210 = vmatpush1.msra.mxu0 %v1177
      %1211 = vmatprep.subr.mxu0 0.0
      %1212 = vmatpush1.msra.mxu0 %v1178
      %1213 = vmatprep.subr.mxu0 0.0
      %1214 = vmatpush1.msra.mxu0 %v1179
      %1215 = vmatprep.subr.mxu0 0.0
      %1216 = vmatpush1.msra.mxu0 %v1180
      %1217 = vmatprep.subr.mxu0 0.0
      %1218 = vmatpush1.msra.mxu0 %v1181
      %1219 = vmatprep.subr.mxu0 0.0
      %1220 = vmatpush1.msra.mxu0 %v1182
      %1221 = vmatprep.subr.mxu0 0.0
      %1222 = vmatpush1.msra.mxu0 %v1183
      %1223 = vmatprep.subr.mxu0 0.0
      %1224 = vmatpush1.msra.mxu0 %v1184
      %1225 = vmatprep.subr.mxu0 0.0
      %1226 = vmatpush1.msra.mxu0 %v1185
      %1227 = vmatprep.subr.mxu0 0.0
      %1228 = vmatpush1.msra.mxu0 %v1186
      %1229 = vmatprep.subr.mxu0 0.0
      %1230 = vmatpush1.msra.mxu0 %v1187
      %1231 = vmatprep.subr.mxu0 0.0
      %1232 = vmatpush1.msra.mxu0 %v1188
      %1233 = vmatprep.subr.mxu0 0.0
      %1234 = vmatpush1.msra.mxu0 %v1189
      %1235 = vmatprep.subr.mxu0 0.0
      %1236 = vmatpush1.msra.mxu0 %v1190
      %1237 = vmatprep.subr.mxu0 0.0
      %1238 = vmatpush1.msra.mxu0 %v1191
      %1239 = vmatprep.subr.mxu0 0.0
      %1240 = vmatpush1.msra.mxu0 0.0
      %1241 = vmatprep.subr.mxu0 0.0
      %1242 = vmatpush1.msra.mxu0 0.0
      %1243 = vmatprep.subr.mxu0 0.0
      %1244 = vmatpush1.msra.mxu0 0.0
      %1245 = vmatprep.subr.mxu0 0.0
      %1246 = vmatpush1.msra.mxu0 0.0
      %1247 = vmatprep.subr.mxu0 0.0
      %1248 = vmatpush1.msra.mxu0 0.0
      %1249 = vmatprep.subr.mxu0 0.0
      %1250 = vmatpush1.msra.mxu0 0.0
      %1251 = vmatprep.subr.mxu0 0.0
      %1252 = vmatpush1.msra.mxu0 0.0
      %1253 = vmatprep.subr.mxu0 0.0
      %1254 = vmatpush1.msra.mxu0 0.0
      %1255 = vmatprep.subr.mxu0 0.0
      %1256 = vmatpush1.msra.mxu0 0.0
      %1257 = vmatprep.subr.mxu0 0.0
      %1258 = vmatpush1.msra.mxu0 0.0
      %1259 = vmatprep.subr.mxu0 0.0
      %1260 = vmatpush1.msra.mxu0 0.0
      %1261 = vmatprep.subr.mxu0 0.0
      %1262 = vmatpush1.msra.mxu0 0.0
      %1263 = vmatprep.subr.mxu0 0.0
      %1264 = vmatpush1.msra.mxu0 0.0
      %1265 = vmatprep.subr.mxu0 0.0
      %1266 = vmatpush1.msra.mxu0 0.0
      %1267 = vmatprep.mubr.f32.mxu0 %v1201
      %1268 = vmatmul.mubr.f32.gmra.mrb[0].mxu0 %v1170
      %v1269 = vpop.f32.mrb[0].mxu0
      %v1270 = vadd.f32 %v1198, %v1269
      %v1271 = vpop.f32.mrb[0].mxu0
      %1272 = vdwg.mxu0
      %s1273 = scalar_lea.vmem %s15, %s872
      %v1274 = vld [vmem:[%s1273] sm:$0x1]
      %s1275 = scalar_lea.vmem %s16, %s872
      %v1276 = vld [vmem:[%s1275] sm:$0x1]
      %v1277 = vsel %vm840, %v1270, 0.0
      %1278 = vadd.xlane.f32.xlu0 %v1277
      %v1279 = vpop.xlane.xlu0 %1278
      %v1280 = vmul.f32 %v1279, 0.010416667
      %v1281 = vmul.f32 %v1270, %v1270
      %v1282 = vsel %vm840, %v1281, 0.0
      %1283 = vadd.xlane.f32.xlu0 %v1282
      %v1284 = vpop.xlane.xlu0 %1283
      %v1285 = vmul.f32 %v1284, 0.010416667
      %v1286 = vmul.f32 %v1280, %v1280
      %v1287 = vsub.f32 %v1285, %v1286
      %v1288 = vmax.f32 %v1287, 0.0
      %v1289 = vsub.f32 %v1270, %v1280
      %v1290 = vadd.f32 %v1288, 1e-05
      %v1291 = vrsqrt.pop %v1290
      %v1292 = vmul.f32 %v1289, %v1291
      %v1294 = vlaneseq
      %v1295 = vshrl.u32 %v1294, 7
      %v1296 = vsub.s32 0, %v1295
      %v1297 = vrot.slane %v1274, %v1296
      %v1299 = vmul.f32 %v1292, %v1297
      %v1301 = vlaneseq
      %v1302 = vshrl.u32 %v1301, 7
      %v1303 = vsub.s32 0, %v1302
      %v1304 = vrot.slane %v1276, %v1303
      %v1306 = vadd.f32 %v1299, %v1304
      %v1307 = vadd.f32 %v871, %v1306
      %v1308 = vmax.f32 %v1307, 0.0
      %s1309 = sadd.s32 %s872, 1
      %s1310 = smul.u32 %s1309, 96
      %s1311 = scalar_lea.vmem %s5, %s1310
      %v1312 = vld [vmem:[%s1311] sm:$0xff]
      %v1313 = vld [vmem:[%s1311 + $0x8] sm:$0xff]
      %v1314 = vld [vmem:[%s1311 + $0x10] sm:$0xff]
      %v1315 = vld [vmem:[%s1311 + $0x18] sm:$0xff]
      %v1316 = vld [vmem:[%s1311 + $0x20] sm:$0xff]
      %v1317 = vld [vmem:[%s1311 + $0x28] sm:$0xff]
      %v1318 = vld [vmem:[%s1311 + $0x30] sm:$0xff]
      %v1319 = vld [vmem:[%s1311 + $0x38] sm:$0xff]
      %v1320 = vld [vmem:[%s1311 + $0x40] sm:$0xff]
      %v1321 = vld [vmem:[%s1311 + $0x48] sm:$0xff]
      %v1322 = vld [vmem:[%s1311 + $0x50] sm:$0xff]
      %v1323 = vld [vmem:[%s1311 + $0x58] sm:$0xff]
      %s1324 = scalar_lea.vmem %s6, %s1309
      %v1325 = vld [vmem:[%s1324] sm:$0x1]
      %v1327 = vlaneseq
      %v1328 = vshrl.u32 %v1327, 7
      %v1329 = vsub.s32 0, %v1328
      %v1330 = vrot.slane %v1325, %v1329
      %v1333 = vsel %vm840, %v1308, 0
      %1335 = vmatprep.subr.mxu0 0.0
      %1336 = vmatpush1.msra.mxu0 %v1312
      %1337 = vmatprep.subr.mxu0 0.0
      %1338 = vmatpush1.msra.mxu0 %v1313
      %1339 = vmatprep.subr.mxu0 0.0
      %1340 = vmatpush1.msra.mxu0 %v1314
      %1341 = vmatprep.subr.mxu0 0.0
      %1342 = vmatpush1.msra.mxu0 %v1315
      %1343 = vmatprep.subr.mxu0 0.0
      %1344 = vmatpush1.msra.mxu0 %v1316
      %1345 = vmatprep.subr.mxu0 0.0
      %1346 = vmatpush1.msra.mxu0 %v1317
      %1347 = vmatprep.subr.mxu0 0.0
      %1348 = vmatpush1.msra.mxu0 %v1318
      %1349 = vmatprep.subr.mxu0 0.0
      %1350 = vmatpush1.msra.mxu0 %v1319
      %1351 = vmatprep.subr.mxu0 0.0
      %1352 = vmatpush1.msra.mxu0 %v1320
      %1353 = vmatprep.subr.mxu0 0.0
      %1354 = vmatpush1.msra.mxu0 %v1321
      %1355 = vmatprep.subr.mxu0 0.0
      %1356 = vmatpush1.msra.mxu0 %v1322
      %1357 = vmatprep.subr.mxu0 0.0
      %1358 = vmatpush1.msra.mxu0 %v1323
      %1359 = vmatprep.subr.mxu0 0.0
      %1360 = vmatpush1.msra.mxu0 0.0
      %1361 = vmatprep.subr.mxu0 0.0
      %1362 = vmatpush1.msra.mxu0 0.0
      %1363 = vmatprep.subr.mxu0 0.0
      %1364 = vmatpush1.msra.mxu0 0.0
      %1365 = vmatprep.subr.mxu0 0.0
      %1366 = vmatpush1.msra.mxu0 0.0
      %1367 = vmatprep.subr.mxu0 0.0
      %1368 = vmatpush1.msra.mxu0 0.0
      %1369 = vmatprep.subr.mxu0 0.0
      %1370 = vmatpush1.msra.mxu0 0.0
      %1371 = vmatprep.subr.mxu0 0.0
      %1372 = vmatpush1.msra.mxu0 0.0
      %1373 = vmatprep.subr.mxu0 0.0
      %1374 = vmatpush1.msra.mxu0 0.0
      %1375 = vmatprep.subr.mxu0 0.0
      %1376 = vmatpush1.msra.mxu0 0.0
      %1377 = vmatprep.subr.mxu0 0.0
      %1378 = vmatpush1.msra.mxu0 0.0
      %1379 = vmatprep.subr.mxu0 0.0
      %1380 = vmatpush1.msra.mxu0 0.0
      %1381 = vmatprep.subr.mxu0 0.0
      %1382 = vmatpush1.msra.mxu0 0.0
      %1383 = vmatprep.subr.mxu0 0.0
      %1384 = vmatpush1.msra.mxu0 0.0
      %1385 = vmatprep.subr.mxu0 0.0
      %1386 = vmatpush1.msra.mxu0 0.0
      %1387 = vmatprep.subr.mxu0 0.0
      %1388 = vmatpush1.msra.mxu0 0.0
      %1389 = vmatprep.subr.mxu0 0.0
      %1390 = vmatpush1.msra.mxu0 0.0
      %1391 = vmatprep.subr.mxu0 0.0
      %1392 = vmatpush1.msra.mxu0 0.0
      %1393 = vmatprep.subr.mxu0 0.0
      %1394 = vmatpush1.msra.mxu0 0.0
      %1395 = vmatprep.subr.mxu0 0.0
      %1396 = vmatpush1.msra.mxu0 0.0
      %1397 = vmatprep.subr.mxu0 0.0
      %1398 = vmatpush1.msra.mxu0 0.0
      %1399 = vmatprep.mubr.f32.mxu0 0.0
      %1400 = vmatmul.mubr.f32.gmra.mrb[0].mxu0 %v1333
      %v1401 = vpop.f32.mrb[0].mxu0
      %v1402 = vadd.f32 %v1330, %v1401
      %v1403 = vpop.f32.mrb[0].mxu0
      %1404 = vdwg.mxu0
      %s1405 = scalar_lea.vmem %s7, %s1309
      %v1406 = vld [vmem:[%s1405] sm:$0x1]
      %s1407 = scalar_lea.vmem %s8, %s1309
      %v1408 = vld [vmem:[%s1407] sm:$0x1]
      %v1409 = vsel %vm840, %v1402, 0.0
      %1410 = vadd.xlane.f32.xlu0 %v1409
      %v1411 = vpop.xlane.xlu0 %1410
      %v1412 = vmul.f32 %v1411, 0.010416667
      %v1413 = vmul.f32 %v1402, %v1402
      %v1414 = vsel %vm840, %v1413, 0.0
      %1415 = vadd.xlane.f32.xlu0 %v1414
      %v1416 = vpop.xlane.xlu0 %1415
      %v1417 = vmul.f32 %v1416, 0.010416667
      %v1418 = vmul.f32 %v1412, %v1412
      %v1419 = vsub.f32 %v1417, %v1418
      %v1420 = vmax.f32 %v1419, 0.0
      %v1421 = vsub.f32 %v1402, %v1412
      %v1422 = vadd.f32 %v1420, 1e-05
      %v1423 = vrsqrt.pop %v1422
      %v1424 = vmul.f32 %v1421, %v1423
      %v1426 = vlaneseq
      %v1427 = vshrl.u32 %v1426, 7
      %v1428 = vsub.s32 0, %v1427
      %v1429 = vrot.slane %v1406, %v1428
      %v1431 = vmul.f32 %v1424, %v1429
      %v1433 = vlaneseq
      %v1434 = vshrl.u32 %v1433, 7
      %v1435 = vsub.s32 0, %v1434
      %v1436 = vrot.slane %v1408, %v1435
      %v1438 = vadd.f32 %v1431, %v1436
      %v1439 = vmax.f32 %v1438, 0.0
      %s1440 = smul.u32 %s1309, 24
      %s1441 = smul.addr %s1440, 8
      %s1442 = scalar_lea.vmem %s9, %s1441
      %v1443 = vld [vmem:[%s1442] sm:$0xff]
      %v1444 = vld [vmem:[%s1442 + $0x8] sm:$0xff]
      %v1445 = vld [vmem:[%s1442 + $0x10] sm:$0xff]
      %v1446 = vld [vmem:[%s1442 + $0x18] sm:$0xff]
      %v1447 = vld [vmem:[%s1442 + $0x20] sm:$0xff]
      %v1448 = vld [vmem:[%s1442 + $0x28] sm:$0xff]
      %v1449 = vld [vmem:[%s1442 + $0x30] sm:$0xff]
      %v1450 = vld [vmem:[%s1442 + $0x38] sm:$0xff]
      %v1451 = vld [vmem:[%s1442 + $0x40] sm:$0xff]
      %v1452 = vld [vmem:[%s1442 + $0x48] sm:$0xff]
      %v1453 = vld [vmem:[%s1442 + $0x50] sm:$0xff]
      %v1454 = vld [vmem:[%s1442 + $0x58] sm:$0xff]
      %v1455 = vld [vmem:[%s1442 + $0x60] sm:$0xff]
      %v1456 = vld [vmem:[%s1442 + $0x68] sm:$0xff]
      %v1457 = vld [vmem:[%s1442 + $0x70] sm:$0xff]
      %v1458 = vld [vmem:[%s1442 + $0x78] sm:$0xff]
      %v1459 = vld [vmem:[%s1442 + $0x80] sm:$0xff]
      %v1460 = vld [vmem:[%s1442 + $0x88] sm:$0xff]
      %v1461 = vld [vmem:[%s1442 + $0x90] sm:$0xff]
      %v1462 = vld [vmem:[%s1442 + $0x98] sm:$0xff]
      %v1463 = vld [vmem:[%s1442 + $0xa0] sm:$0xff]
      %v1464 = vld [vmem:[%s1442 + $0xa8] sm:$0xff]
      %v1465 = vld [vmem:[%s1442 + $0xb0] sm:$0xff]
      %v1466 = vld [vmem:[%s1442 + $0xb8] sm:$0xff]
      %s1467 = smul.u32 %s1309, 2
      %s1468 = scalar_lea.vmem %s10, %s1467
      %v1469 = vld [vmem:[%s1468] sm:$0x3]
      %v1471 = vlaneseq
      %v1472 = vshrl.u32 %v1471, 7
      %v1473 = vsub.s32 0, %v1472
      %v1474 = vrot.slane %v1469, %v1473
      %v1475 = vlaneseq
      %v1476 = vshrl.u32 %v1475, 7
      %v1477 = vsub.s32 1, %v1476
      %v1478 = vrot.slane %v1469, %v1477
      %v1482 = vsel %vm840, %v1439, 0
      %1484 = vmatprep.subr.mxu0 %v1444
      %1485 = vmatpush1.msra.mxu0 %v1443
      %1486 = vmatprep.subr.mxu0 %v1446
      %1487 = vmatpush1.msra.mxu0 %v1445
      %1488 = vmatprep.subr.mxu0 %v1448
      %1489 = vmatpush1.msra.mxu0 %v1447
      %1490 = vmatprep.subr.mxu0 %v1450
      %1491 = vmatpush1.msra.mxu0 %v1449
      %1492 = vmatprep.subr.mxu0 %v1452
      %1493 = vmatpush1.msra.mxu0 %v1451
      %1494 = vmatprep.subr.mxu0 %v1454
      %1495 = vmatpush1.msra.mxu0 %v1453
      %1496 = vmatprep.subr.mxu0 %v1456
      %1497 = vmatpush1.msra.mxu0 %v1455
      %1498 = vmatprep.subr.mxu0 %v1458
      %1499 = vmatpush1.msra.mxu0 %v1457
      %1500 = vmatprep.subr.mxu0 %v1460
      %1501 = vmatpush1.msra.mxu0 %v1459
      %1502 = vmatprep.subr.mxu0 %v1462
      %1503 = vmatpush1.msra.mxu0 %v1461
      %1504 = vmatprep.subr.mxu0 %v1464
      %1505 = vmatpush1.msra.mxu0 %v1463
      %1506 = vmatprep.subr.mxu0 %v1466
      %1507 = vmatpush1.msra.mxu0 %v1465
      %1508 = vmatprep.subr.mxu0 0.0
      %1509 = vmatpush1.msra.mxu0 0.0
      %1510 = vmatprep.subr.mxu0 0.0
      %1511 = vmatpush1.msra.mxu0 0.0
      %1512 = vmatprep.subr.mxu0 0.0
      %1513 = vmatpush1.msra.mxu0 0.0
      %1514 = vmatprep.subr.mxu0 0.0
      %1515 = vmatpush1.msra.mxu0 0.0
      %1516 = vmatprep.subr.mxu0 0.0
      %1517 = vmatpush1.msra.mxu0 0.0
      %1518 = vmatprep.subr.mxu0 0.0
      %1519 = vmatpush1.msra.mxu0 0.0
      %1520 = vmatprep.subr.mxu0 0.0
      %1521 = vmatpush1.msra.mxu0 0.0
      %1522 = vmatprep.subr.mxu0 0.0
      %1523 = vmatpush1.msra.mxu0 0.0
      %1524 = vmatprep.subr.mxu0 0.0
      %1525 = vmatpush1.msra.mxu0 0.0
      %1526 = vmatprep.subr.mxu0 0.0
      %1527 = vmatpush1.msra.mxu0 0.0
      %1528 = vmatprep.subr.mxu0 0.0
      %1529 = vmatpush1.msra.mxu0 0.0
      %1530 = vmatprep.subr.mxu0 0.0
      %1531 = vmatpush1.msra.mxu0 0.0
      %1532 = vmatprep.subr.mxu0 0.0
      %1533 = vmatpush1.msra.mxu0 0.0
      %1534 = vmatprep.subr.mxu0 0.0
      %1535 = vmatpush1.msra.mxu0 0.0
      %1536 = vmatprep.subr.mxu0 0.0
      %1537 = vmatpush1.msra.mxu0 0.0
      %1538 = vmatprep.subr.mxu0 0.0
      %1539 = vmatpush1.msra.mxu0 0.0
      %1540 = vmatprep.subr.mxu0 0.0
      %1541 = vmatpush1.msra.mxu0 0.0
      %1542 = vmatprep.subr.mxu0 0.0
      %1543 = vmatpush1.msra.mxu0 0.0
      %1544 = vmatprep.subr.mxu0 0.0
      %1545 = vmatpush1.msra.mxu0 0.0
      %1546 = vmatprep.subr.mxu0 0.0
      %1547 = vmatpush1.msra.mxu0 0.0
      %1548 = vmatprep.mubr.f32.mxu0 0.0
      %1549 = vmatmul.mubr.f32.gmra.mrb[0].mxu0 %v1482
      %v1550 = vpop.f32.mrb[0].mxu0
      %v1551 = vadd.f32 %v1474, %v1550
      %v1552 = vpop.f32.mrb[0].mxu0
      %v1553 = vadd.f32 %v1478, %v1552
      %1554 = vdwg.mxu0
      %s1555 = scalar_lea.vmem %s11, %s1467
      %v1556 = vld [vmem:[%s1555] sm:$0x3]
      %s1557 = scalar_lea.vmem %s12, %s1467
      %v1558 = vld [vmem:[%s1557] sm:$0x3]
      %v1559 = vsel %vm1122, %v1553, 0.0
      %v1560 = vadd.f32 %v1551, %v1559
      %1561 = vadd.xlane.f32.xlu0 %v1560
      %v1562 = vpop.xlane.xlu0 %1561
      %v1563 = vmul.f32 %v1562, 0.0069444445
      %v1564 = vmul.f32 %v1551, %v1551
      %v1565 = vmul.f32 %v1553, %v1553
      %v1566 = vsel %vm1122, %v1565, 0.0
      %v1567 = vadd.f32 %v1564, %v1566
      %1568 = vadd.xlane.f32.xlu0 %v1567
      %v1569 = vpop.xlane.xlu0 %1568
      %v1570 = vmul.f32 %v1569, 0.0069444445
      %v1571 = vmul.f32 %v1563, %v1563
      %v1572 = vsub.f32 %v1570, %v1571
      %v1573 = vmax.f32 %v1572, 0.0
      %v1574 = vsub.f32 %v1551, %v1563
      %v1575 = vsub.f32 %v1553, %v1563
      %v1576 = vadd.f32 %v1573, 1e-05
      %v1577 = vrsqrt.pop %v1576
      %v1578 = vmul.f32 %v1574, %v1577
      %v1579 = vmul.f32 %v1575, %v1577
      %v1581 = vlaneseq
      %v1582 = vshrl.u32 %v1581, 7
      %v1583 = vsub.s32 0, %v1582
      %v1584 = vrot.slane %v1556, %v1583
      %v1585 = vlaneseq
      %v1586 = vshrl.u32 %v1585, 7
      %v1587 = vsub.s32 1, %v1586
      %v1588 = vrot.slane %v1556, %v1587
      %v1591 = vmul.f32 %v1578, %v1584
      %v1592 = vmul.f32 %v1579, %v1588
      %v1594 = vlaneseq
      %v1595 = vshrl.u32 %v1594, 7
      %v1596 = vsub.s32 0, %v1595
      %v1597 = vrot.slane %v1558, %v1596
      %v1598 = vlaneseq
      %v1599 = vshrl.u32 %v1598, 7
      %v1600 = vsub.s32 1, %v1599
      %v1601 = vrot.slane %v1558, %v1600
      %v1604 = vadd.f32 %v1591, %v1597
      %v1605 = vadd.f32 %v1592, %v1601
      %v1606 = vmax.f32 %v1604, 0.0
      %v1607 = vmax.f32 %v1605, 0.0
      %s1608 = smul.u32 %s1309, 144
      %s1609 = scalar_lea.vmem %s13, %s1608
      %v1610 = vld [vmem:[%s1609] sm:$0xff]
      %v1611 = vld [vmem:[%s1609 + $0x8] sm:$0xff]
      %v1612 = vld [vmem:[%s1609 + $0x10] sm:$0xff]
      %v1613 = vld [vmem:[%s1609 + $0x18] sm:$0xff]
      %v1614 = vld [vmem:[%s1609 + $0x20] sm:$0xff]
      %v1615 = vld [vmem:[%s1609 + $0x28] sm:$0xff]
      %v1616 = vld [vmem:[%s1609 + $0x30] sm:$0xff]
      %v1617 = vld [vmem:[%s1609 + $0x38] sm:$0xff]
      %v1618 = vld [vmem:[%s1609 + $0x40] sm:$0xff]
      %v1619 = vld [vmem:[%s1609 + $0x48] sm:$0xff]
      %v1620 = vld [vmem:[%s1609 + $0x50] sm:$0xff]
      %v1621 = vld [vmem:[%s1609 + $0x58] sm:$0xff]
      %v1622 = vld [vmem:[%s1609 + $0x60] sm:$0xff]
      %v1623 = vld [vmem:[%s1609 + $0x68] sm:$0xff]
      %v1624 = vld [vmem:[%s1609 + $0x70] sm:$0xff]
      %v1625 = vld [vmem:[%s1609 + $0x78] sm:$0xff]
      %v1626 = vld [vmem:[%s1609 + $0x80] sm:$0xff]
      %v1627 = vld [vmem:[%s1609 + $0x88] sm:$0xff]
      %s1628 = scalar_lea.vmem %s14, %s1309
      %v1629 = vld [vmem:[%s1628] sm:$0x1]
      %v1631 = vlaneseq
      %v1632 = vshrl.u32 %v1631, 7
      %v1633 = vsub.s32 0, %v1632
      %v1634 = vrot.slane %v1629, %v1633
      %v1637 = vsel %vm1122, %v1607, 0
      %1639 = vmatprep.subr.mxu0 0.0
      %1640 = vmatpush1.msra.mxu0 %v1610
      %1641 = vmatprep.subr.mxu0 0.0
      %1642 = vmatpush1.msra.mxu0 %v1611
      %1643 = vmatprep.subr.mxu0 0.0
      %1644 = vmatpush1.msra.mxu0 %v1612
      %1645 = vmatprep.subr.mxu0 0.0
      %1646 = vmatpush1.msra.mxu0 %v1613
      %1647 = vmatprep.subr.mxu0 0.0
      %1648 = vmatpush1.msra.mxu0 %v1614
      %1649 = vmatprep.subr.mxu0 0.0
      %1650 = vmatpush1.msra.mxu0 %v1615
      %1651 = vmatprep.subr.mxu0 0.0
      %1652 = vmatpush1.msra.mxu0 %v1616
      %1653 = vmatprep.subr.mxu0 0.0
      %1654 = vmatpush1.msra.mxu0 %v1617
      %1655 = vmatprep.subr.mxu0 0.0
      %1656 = vmatpush1.msra.mxu0 %v1618
      %1657 = vmatprep.subr.mxu0 0.0
      %1658 = vmatpush1.msra.mxu0 %v1619
      %1659 = vmatprep.subr.mxu0 0.0
      %1660 = vmatpush1.msra.mxu0 %v1620
      %1661 = vmatprep.subr.mxu0 0.0
      %1662 = vmatpush1.msra.mxu0 %v1621
      %1663 = vmatprep.subr.mxu0 0.0
      %1664 = vmatpush1.msra.mxu0 %v1622
      %1665 = vmatprep.subr.mxu0 0.0
      %1666 = vmatpush1.msra.mxu0 %v1623
      %1667 = vmatprep.subr.mxu0 0.0
      %1668 = vmatpush1.msra.mxu0 %v1624
      %1669 = vmatprep.subr.mxu0 0.0
      %1670 = vmatpush1.msra.mxu0 %v1625
      %1671 = vmatprep.subr.mxu0 0.0
      %1672 = vmatpush1.msra.mxu0 %v1626
      %1673 = vmatprep.subr.mxu0 0.0
      %1674 = vmatpush1.msra.mxu0 %v1627
      %1675 = vmatprep.subr.mxu0 0.0
      %1676 = vmatpush1.msra.mxu0 0.0
      %1677 = vmatprep.subr.mxu0 0.0
      %1678 = vmatpush1.msra.mxu0 0.0
      %1679 = vmatprep.subr.mxu0 0.0
      %1680 = vmatpush1.msra.mxu0 0.0
      %1681 = vmatprep.subr.mxu0 0.0
      %1682 = vmatpush1.msra.mxu0 0.0
      %1683 = vmatprep.subr.mxu0 0.0
      %1684 = vmatpush1.msra.mxu0 0.0
      %1685 = vmatprep.subr.mxu0 0.0
      %1686 = vmatpush1.msra.mxu0 0.0
      %1687 = vmatprep.subr.mxu0 0.0
      %1688 = vmatpush1.msra.mxu0 0.0
      %1689 = vmatprep.subr.mxu0 0.0
      %1690 = vmatpush1.msra.mxu0 0.0
      %1691 = vmatprep.subr.mxu0 0.0
      %1692 = vmatpush1.msra.mxu0 0.0
      %1693 = vmatprep.subr.mxu0 0.0
      %1694 = vmatpush1.msra.mxu0 0.0
      %1695 = vmatprep.subr.mxu0 0.0
      %1696 = vmatpush1.msra.mxu0 0.0
      %1697 = vmatprep.subr.mxu0 0.0
      %1698 = vmatpush1.msra.mxu0 0.0
      %1699 = vmatprep.subr.mxu0 0.0
      %1700 = vmatpush1.msra.mxu0 0.0
      %1701 = vmatprep.subr.mxu0 0.0
      %1702 = vmatpush1.msra.mxu0 0.0
      %1703 = vmatprep.mubr.f32.mxu0 %v1637
      %1704 = vmatmul.mubr.f32.gmra.mrb[0].mxu0 %v1606
      %v1705 = vpop.f32.mrb[0].mxu0
      %v1706 = vadd.f32 %v1634, %v1705
      %v1707 = vpop.f32.mrb[0].mxu0
      %1708 = vdwg.mxu0
      %s1709 = scalar_lea.vmem %s15, %s1309
      %v1710 = vld [vmem:[%s1709] sm:$0x1]
      %s1711 = scalar_lea.vmem %s16, %s1309
      %v1712 = vld [vmem:[%s1711] sm:$0x1]
      %v1713 = vsel %vm840, %v1706, 0.0
      %1714 = vadd.xlane.f32.xlu0 %v1713
      %v1715 = vpop.xlane.xlu0 %1714
      %v1716 = vmul.f32 %v1715, 0.010416667
      %v1717 = vmul.f32 %v1706, %v1706
      %v1718 = vsel %vm840, %v1717, 0.0
      %1719 = vadd.xlane.f32.xlu0 %v1718
      %v1720 = vpop.xlane.xlu0 %1719
      %v1721 = vmul.f32 %v1720, 0.010416667
      %v1722 = vmul.f32 %v1716, %v1716
      %v1723 = vsub.f32 %v1721, %v1722
      %v1724 = vmax.f32 %v1723, 0.0
      %v1725 = vsub.f32 %v1706, %v1716
      %v1726 = vadd.f32 %v1724, 1e-05
      %v1727 = vrsqrt.pop %v1726
      %v1728 = vmul.f32 %v1725, %v1727
      %v1730 = vlaneseq
      %v1731 = vshrl.u32 %v1730, 7
      %v1732 = vsub.s32 0, %v1731
      %v1733 = vrot.slane %v1710, %v1732
      %v1735 = vmul.f32 %v1728, %v1733
      %v1737 = vlaneseq
      %v1738 = vshrl.u32 %v1737, 7
      %v1739 = vsub.s32 0, %v1738
      %v1740 = vrot.slane %v1712, %v1739
      %v1742 = vadd.f32 %v1735, %v1740
      %v1743 = vadd.f32 %v1308, %v1742
      %v1744 = vmax.f32 %v1743, 0.0
      %s1745 = sadd.s32 %s872, 2
      %s1746 = smul.u32 %s1745, 96
      %s1747 = scalar_lea.vmem %s5, %s1746
      %v1748 = vld [vmem:[%s1747] sm:$0xff]
      %v1749 = vld [vmem:[%s1747 + $0x8] sm:$0xff]
      %v1750 = vld [vmem:[%s1747 + $0x10] sm:$0xff]
      %v1751 = vld [vmem:[%s1747 + $0x18] sm:$0xff]
      %v1752 = vld [vmem:[%s1747 + $0x20] sm:$0xff]
      %v1753 = vld [vmem:[%s1747 + $0x28] sm:$0xff]
      %v1754 = vld [vmem:[%s1747 + $0x30] sm:$0xff]
      %v1755 = vld [vmem:[%s1747 + $0x38] sm:$0xff]
      %v1756 = vld [vmem:[%s1747 + $0x40] sm:$0xff]
      %v1757 = vld [vmem:[%s1747 + $0x48] sm:$0xff]
      %v1758 = vld [vmem:[%s1747 + $0x50] sm:$0xff]
      %v1759 = vld [vmem:[%s1747 + $0x58] sm:$0xff]
      %s1760 = scalar_lea.vmem %s6, %s1745
      %v1761 = vld [vmem:[%s1760] sm:$0x1]
      %v1763 = vlaneseq
      %v1764 = vshrl.u32 %v1763, 7
      %v1765 = vsub.s32 0, %v1764
      %v1766 = vrot.slane %v1761, %v1765
      %v1769 = vsel %vm840, %v1744, 0
      %1771 = vmatprep.subr.mxu0 0.0
      %1772 = vmatpush1.msra.mxu0 %v1748
      %1773 = vmatprep.subr.mxu0 0.0
      %1774 = vmatpush1.msra.mxu0 %v1749
      %1775 = vmatprep.subr.mxu0 0.0
      %1776 = vmatpush1.msra.mxu0 %v1750
      %1777 = vmatprep.subr.mxu0 0.0
      %1778 = vmatpush1.msra.mxu0 %v1751
      %1779 = vmatprep.subr.mxu0 0.0
      %1780 = vmatpush1.msra.mxu0 %v1752
      %1781 = vmatprep.subr.mxu0 0.0
      %1782 = vmatpush1.msra.mxu0 %v1753
      %1783 = vmatprep.subr.mxu0 0.0
      %1784 = vmatpush1.msra.mxu0 %v1754
      %1785 = vmatprep.subr.mxu0 0.0
      %1786 = vmatpush1.msra.mxu0 %v1755
      %1787 = vmatprep.subr.mxu0 0.0
      %1788 = vmatpush1.msra.mxu0 %v1756
      %1789 = vmatprep.subr.mxu0 0.0
      %1790 = vmatpush1.msra.mxu0 %v1757
      %1791 = vmatprep.subr.mxu0 0.0
      %1792 = vmatpush1.msra.mxu0 %v1758
      %1793 = vmatprep.subr.mxu0 0.0
      %1794 = vmatpush1.msra.mxu0 %v1759
      %1795 = vmatprep.subr.mxu0 0.0
      %1796 = vmatpush1.msra.mxu0 0.0
      %1797 = vmatprep.subr.mxu0 0.0
      %1798 = vmatpush1.msra.mxu0 0.0
      %1799 = vmatprep.subr.mxu0 0.0
      %1800 = vmatpush1.msra.mxu0 0.0
      %1801 = vmatprep.subr.mxu0 0.0
      %1802 = vmatpush1.msra.mxu0 0.0
      %1803 = vmatprep.subr.mxu0 0.0
      %1804 = vmatpush1.msra.mxu0 0.0
      %1805 = vmatprep.subr.mxu0 0.0
      %1806 = vmatpush1.msra.mxu0 0.0
      %1807 = vmatprep.subr.mxu0 0.0
      %1808 = vmatpush1.msra.mxu0 0.0
      %1809 = vmatprep.subr.mxu0 0.0
      %1810 = vmatpush1.msra.mxu0 0.0
      %1811 = vmatprep.subr.mxu0 0.0
      %1812 = vmatpush1.msra.mxu0 0.0
      %1813 = vmatprep.subr.mxu0 0.0
      %1814 = vmatpush1.msra.mxu0 0.0
      %1815 = vmatprep.subr.mxu0 0.0
      %1816 = vmatpush1.msra.mxu0 0.0
      %1817 = vmatprep.subr.mxu0 0.0
      %1818 = vmatpush1.msra.mxu0 0.0
      %1819 = vmatprep.subr.mxu0 0.0
      %1820 = vmatpush1.msra.mxu0 0.0
      %1821 = vmatprep.subr.mxu0 0.0
      %1822 = vmatpush1.msra.mxu0 0.0
      %1823 = vmatprep.subr.mxu0 0.0
      %1824 = vmatpush1.msra.mxu0 0.0
      %1825 = vmatprep.subr.mxu0 0.0
      %1826 = vmatpush1.msra.mxu0 0.0
      %1827 = vmatprep.subr.mxu0 0.0
      %1828 = vmatpush1.msra.mxu0 0.0
      %1829 = vmatprep.subr.mxu0 0.0
      %1830 = vmatpush1.msra.mxu0 0.0
      %1831 = vmatprep.subr.mxu0 0.0
      %1832 = vmatpush1.msra.mxu0 0.0
      %1833 = vmatprep.subr.mxu0 0.0
      %1834 = vmatpush1.msra.mxu0 0.0
      %1835 = vmatprep.mubr.f32.mxu0 0.0
      %1836 = vmatmul.mubr.f32.gmra.mrb[0].mxu0 %v1769
      %v1837 = vpop.f32.mrb[0].mxu0
      %v1838 = vadd.f32 %v1766, %v1837
      %v1839 = vpop.f32.mrb[0].mxu0
      %1840 = vdwg.mxu0
      %s1841 = scalar_lea.vmem %s7, %s1745
      %v1842 = vld [vmem:[%s1841] sm:$0x1]
      %s1843 = scalar_lea.vmem %s8, %s1745
      %v1844 = vld [vmem:[%s1843] sm:$0x1]
      %v1845 = vsel %vm840, %v1838, 0.0
      %1846 = vadd.xlane.f32.xlu0 %v1845
      %v1847 = vpop.xlane.xlu0 %1846
      %v1848 = vmul.f32 %v1847, 0.010416667
      %v1849 = vmul.f32 %v1838, %v1838
      %v1850 = vsel %vm840, %v1849, 0.0
      %1851 = vadd.xlane.f32.xlu0 %v1850
      %v1852 = vpop.xlane.xlu0 %1851
      %v1853 = vmul.f32 %v1852, 0.010416667
      %v1854 = vmul.f32 %v1848, %v1848
      %v1855 = vsub.f32 %v1853, %v1854
      %v1856 = vmax.f32 %v1855, 0.0
      %v1857 = vsub.f32 %v1838, %v1848
      %v1858 = vadd.f32 %v1856, 1e-05
      %v1859 = vrsqrt.pop %v1858
      %v1860 = vmul.f32 %v1857, %v1859
      %v1862 = vlaneseq
      %v1863 = vshrl.u32 %v1862, 7
      %v1864 = vsub.s32 0, %v1863
      %v1865 = vrot.slane %v1842, %v1864
      %v1867 = vmul.f32 %v1860, %v1865
      %v1869 = vlaneseq
      %v1870 = vshrl.u32 %v1869, 7
      %v1871 = vsub.s32 0, %v1870
      %v1872 = vrot.slane %v1844, %v1871
      %v1874 = vadd.f32 %v1867, %v1872
      %v1875 = vmax.f32 %v1874, 0.0
      %s1876 = smul.u32 %s1745, 24
      %s1877 = smul.addr %s1876, 8
      %s1878 = scalar_lea.vmem %s9, %s1877
      %v1879 = vld [vmem:[%s1878] sm:$0xff]
      %v1880 = vld [vmem:[%s1878 + $0x8] sm:$0xff]
      %v1881 = vld [vmem:[%s1878 + $0x10] sm:$0xff]
      %v1882 = vld [vmem:[%s1878 + $0x18] sm:$0xff]
      %v1883 = vld [vmem:[%s1878 + $0x20] sm:$0xff]
      %v1884 = vld [vmem:[%s1878 + $0x28] sm:$0xff]
      %v1885 = vld [vmem:[%s1878 + $0x30] sm:$0xff]
      %v1886 = vld [vmem:[%s1878 + $0x38] sm:$0xff]
      %v1887 = vld [vmem:[%s1878 + $0x40] sm:$0xff]
      %v1888 = vld [vmem:[%s1878 + $0x48] sm:$0xff]
      %v1889 = vld [vmem:[%s1878 + $0x50] sm:$0xff]
      %v1890 = vld [vmem:[%s1878 + $0x58] sm:$0xff]
      %v1891 = vld [vmem:[%s1878 + $0x60] sm:$0xff]
      %v1892 = vld [vmem:[%s1878 + $0x68] sm:$0xff]
      %v1893 = vld [vmem:[%s1878 + $0x70] sm:$0xff]
      %v1894 = vld [vmem:[%s1878 + $0x78] sm:$0xff]
      %v1895 = vld [vmem:[%s1878 + $0x80] sm:$0xff]
      %v1896 = vld [vmem:[%s1878 + $0x88] sm:$0xff]
      %v1897 = vld [vmem:[%s1878 + $0x90] sm:$0xff]
      %v1898 = vld [vmem:[%s1878 + $0x98] sm:$0xff]
      %v1899 = vld [vmem:[%s1878 + $0xa0] sm:$0xff]
      %v1900 = vld [vmem:[%s1878 + $0xa8] sm:$0xff]
      %v1901 = vld [vmem:[%s1878 + $0xb0] sm:$0xff]
      %v1902 = vld [vmem:[%s1878 + $0xb8] sm:$0xff]
      %s1903 = smul.u32 %s1745, 2
      %s1904 = scalar_lea.vmem %s10, %s1903
      %v1905 = vld [vmem:[%s1904] sm:$0x3]
      %v1907 = vlaneseq
      %v1908 = vshrl.u32 %v1907, 7
      %v1909 = vsub.s32 0, %v1908
      %v1910 = vrot.slane %v1905, %v1909
      %v1911 = vlaneseq
      %v1912 = vshrl.u32 %v1911, 7
      %v1913 = vsub.s32 1, %v1912
      %v1914 = vrot.slane %v1905, %v1913
      %v1918 = vsel %vm840, %v1875, 0
      %1920 = vmatprep.subr.mxu0 %v1880
      %1921 = vmatpush1.msra.mxu0 %v1879
      %1922 = vmatprep.subr.mxu0 %v1882
      %1923 = vmatpush1.msra.mxu0 %v1881
      %1924 = vmatprep.subr.mxu0 %v1884
      %1925 = vmatpush1.msra.mxu0 %v1883
      %1926 = vmatprep.subr.mxu0 %v1886
      %1927 = vmatpush1.msra.mxu0 %v1885
      %1928 = vmatprep.subr.mxu0 %v1888
      %1929 = vmatpush1.msra.mxu0 %v1887
      %1930 = vmatprep.subr.mxu0 %v1890
      %1931 = vmatpush1.msra.mxu0 %v1889
      %1932 = vmatprep.subr.mxu0 %v1892
      %1933 = vmatpush1.msra.mxu0 %v1891
      %1934 = vmatprep.subr.mxu0 %v1894
      %1935 = vmatpush1.msra.mxu0 %v1893
      %1936 = vmatprep.subr.mxu0 %v1896
      %1937 = vmatpush1.msra.mxu0 %v1895
      %1938 = vmatprep.subr.mxu0 %v1898
      %1939 = vmatpush1.msra.mxu0 %v1897
      %1940 = vmatprep.subr.mxu0 %v1900
      %1941 = vmatpush1.msra.mxu0 %v1899
      %1942 = vmatprep.subr.mxu0 %v1902
      %1943 = vmatpush1.msra.mxu0 %v1901
      %1944 = vmatprep.subr.mxu0 0.0
      %1945 = vmatpush1.msra.mxu0 0.0
      %1946 = vmatprep.subr.mxu0 0.0
      %1947 = vmatpush1.msra.mxu0 0.0
      %1948 = vmatprep.subr.mxu0 0.0
      %1949 = vmatpush1.msra.mxu0 0.0
      %1950 = vmatprep.subr.mxu0 0.0
      %1951 = vmatpush1.msra.mxu0 0.0
      %1952 = vmatprep.subr.mxu0 0.0
      %1953 = vmatpush1.msra.mxu0 0.0
      %1954 = vmatprep.subr.mxu0 0.0
      %1955 = vmatpush1.msra.mxu0 0.0
      %1956 = vmatprep.subr.mxu0 0.0
      %1957 = vmatpush1.msra.mxu0 0.0
      %1958 = vmatprep.subr.mxu0 0.0
      %1959 = vmatpush1.msra.mxu0 0.0
      %1960 = vmatprep.subr.mxu0 0.0
      %1961 = vmatpush1.msra.mxu0 0.0
      %1962 = vmatprep.subr.mxu0 0.0
      %1963 = vmatpush1.msra.mxu0 0.0
      %1964 = vmatprep.subr.mxu0 0.0
      %1965 = vmatpush1.msra.mxu0 0.0
      %1966 = vmatprep.subr.mxu0 0.0
      %1967 = vmatpush1.msra.mxu0 0.0
      %1968 = vmatprep.subr.mxu0 0.0
      %1969 = vmatpush1.msra.mxu0 0.0
      %1970 = vmatprep.subr.mxu0 0.0
      %1971 = vmatpush1.msra.mxu0 0.0
      %1972 = vmatprep.subr.mxu0 0.0
      %1973 = vmatpush1.msra.mxu0 0.0
      %1974 = vmatprep.subr.mxu0 0.0
      %1975 = vmatpush1.msra.mxu0 0.0
      %1976 = vmatprep.subr.mxu0 0.0
      %1977 = vmatpush1.msra.mxu0 0.0
      %1978 = vmatprep.subr.mxu0 0.0
      %1979 = vmatpush1.msra.mxu0 0.0
      %1980 = vmatprep.subr.mxu0 0.0
      %1981 = vmatpush1.msra.mxu0 0.0
      %1982 = vmatprep.subr.mxu0 0.0
      %1983 = vmatpush1.msra.mxu0 0.0
      %1984 = vmatprep.mubr.f32.mxu0 0.0
      %1985 = vmatmul.mubr.f32.gmra.mrb[0].mxu0 %v1918
      %v1986 = vpop.f32.mrb[0].mxu0
      %v1987 = vadd.f32 %v1910, %v1986
      %v1988 = vpop.f32.mrb[0].mxu0
      %v1989 = vadd.f32 %v1914, %v1988
      %1990 = vdwg.mxu0
      %s1991 = scalar_lea.vmem %s11, %s1903
      %v1992 = vld [vmem:[%s1991] sm:$0x3]
      %s1993 = scalar_lea.vmem %s12, %s1903
      %v1994 = vld [vmem:[%s1993] sm:$0x3]
      %v1995 = vsel %vm1122, %v1989, 0.0
      %v1996 = vadd.f32 %v1987, %v1995
      %1997 = vadd.xlane.f32.xlu0 %v1996
      %v1998 = vpop.xlane.xlu0 %1997
      %v1999 = vmul.f32 %v1998, 0.0069444445
      %v2000 = vmul.f32 %v1987, %v1987
      %v2001 = vmul.f32 %v1989, %v1989
      %v2002 = vsel %vm1122, %v2001, 0.0
      %v2003 = vadd.f32 %v2000, %v2002
      %2004 = vadd.xlane.f32.xlu0 %v2003
      %v2005 = vpop.xlane.xlu0 %2004
      %v2006 = vmul.f32 %v2005, 0.0069444445
      %v2007 = vmul.f32 %v1999, %v1999
      %v2008 = vsub.f32 %v2006, %v2007
      %v2009 = vmax.f32 %v2008, 0.0
      %v2010 = vsub.f32 %v1987, %v1999
      %v2011 = vsub.f32 %v1989, %v1999
      %v2012 = vadd.f32 %v2009, 1e-05
      %v2013 = vrsqrt.pop %v2012
      %v2014 = vmul.f32 %v2010, %v2013
      %v2015 = vmul.f32 %v2011, %v2013
      %v2017 = vlaneseq
      %v2018 = vshrl.u32 %v2017, 7
      %v2019 = vsub.s32 0, %v2018
      %v2020 = vrot.slane %v1992, %v2019
      %v2021 = vlaneseq
      %v2022 = vshrl.u32 %v2021, 7
      %v2023 = vsub.s32 1, %v2022
      %v2024 = vrot.slane %v1992, %v2023
      %v2027 = vmul.f32 %v2014, %v2020
      %v2028 = vmul.f32 %v2015, %v2024
      %v2030 = vlaneseq
      %v2031 = vshrl.u32 %v2030, 7
      %v2032 = vsub.s32 0, %v2031
      %v2033 = vrot.slane %v1994, %v2032
      %v2034 = vlaneseq
      %v2035 = vshrl.u32 %v2034, 7
      %v2036 = vsub.s32 1, %v2035
      %v2037 = vrot.slane %v1994, %v2036
      %v2040 = vadd.f32 %v2027, %v2033
      %v2041 = vadd.f32 %v2028, %v2037
      %v2042 = vmax.f32 %v2040, 0.0
      %v2043 = vmax.f32 %v2041, 0.0
      %s2044 = smul.u32 %s1745, 144
      %s2045 = scalar_lea.vmem %s13, %s2044
      %v2046 = vld [vmem:[%s2045] sm:$0xff]
      %v2047 = vld [vmem:[%s2045 + $0x8] sm:$0xff]
      %v2048 = vld [vmem:[%s2045 + $0x10] sm:$0xff]
      %v2049 = vld [vmem:[%s2045 + $0x18] sm:$0xff]
      %v2050 = vld [vmem:[%s2045 + $0x20] sm:$0xff]
      %v2051 = vld [vmem:[%s2045 + $0x28] sm:$0xff]
      %v2052 = vld [vmem:[%s2045 + $0x30] sm:$0xff]
      %v2053 = vld [vmem:[%s2045 + $0x38] sm:$0xff]
      %v2054 = vld [vmem:[%s2045 + $0x40] sm:$0xff]
      %v2055 = vld [vmem:[%s2045 + $0x48] sm:$0xff]
      %v2056 = vld [vmem:[%s2045 + $0x50] sm:$0xff]
      %v2057 = vld [vmem:[%s2045 + $0x58] sm:$0xff]
      %v2058 = vld [vmem:[%s2045 + $0x60] sm:$0xff]
      %v2059 = vld [vmem:[%s2045 + $0x68] sm:$0xff]
      %v2060 = vld [vmem:[%s2045 + $0x70] sm:$0xff]
      %v2061 = vld [vmem:[%s2045 + $0x78] sm:$0xff]
      %v2062 = vld [vmem:[%s2045 + $0x80] sm:$0xff]
      %v2063 = vld [vmem:[%s2045 + $0x88] sm:$0xff]
      %s2064 = scalar_lea.vmem %s14, %s1745
      %v2065 = vld [vmem:[%s2064] sm:$0x1]
      %v2067 = vlaneseq
      %v2068 = vshrl.u32 %v2067, 7
      %v2069 = vsub.s32 0, %v2068
      %v2070 = vrot.slane %v2065, %v2069
      %v2073 = vsel %vm1122, %v2043, 0
      %2075 = vmatprep.subr.mxu0 0.0
      %2076 = vmatpush1.msra.mxu0 %v2046
      %2077 = vmatprep.subr.mxu0 0.0
      %2078 = vmatpush1.msra.mxu0 %v2047
      %2079 = vmatprep.subr.mxu0 0.0
      %2080 = vmatpush1.msra.mxu0 %v2048
      %2081 = vmatprep.subr.mxu0 0.0
      %2082 = vmatpush1.msra.mxu0 %v2049
      %2083 = vmatprep.subr.mxu0 0.0
      %2084 = vmatpush1.msra.mxu0 %v2050
      %2085 = vmatprep.subr.mxu0 0.0
      %2086 = vmatpush1.msra.mxu0 %v2051
      %2087 = vmatprep.subr.mxu0 0.0
      %2088 = vmatpush1.msra.mxu0 %v2052
      %2089 = vmatprep.subr.mxu0 0.0
      %2090 = vmatpush1.msra.mxu0 %v2053
      %2091 = vmatprep.subr.mxu0 0.0
      %2092 = vmatpush1.msra.mxu0 %v2054
      %2093 = vmatprep.subr.mxu0 0.0
      %2094 = vmatpush1.msra.mxu0 %v2055
      %2095 = vmatprep.subr.mxu0 0.0
      %2096 = vmatpush1.msra.mxu0 %v2056
      %2097 = vmatprep.subr.mxu0 0.0
      %2098 = vmatpush1.msra.mxu0 %v2057
      %2099 = vmatprep.subr.mxu0 0.0
      %2100 = vmatpush1.msra.mxu0 %v2058
      %2101 = vmatprep.subr.mxu0 0.0
      %2102 = vmatpush1.msra.mxu0 %v2059
      %2103 = vmatprep.subr.mxu0 0.0
      %2104 = vmatpush1.msra.mxu0 %v2060
      %2105 = vmatprep.subr.mxu0 0.0
      %2106 = vmatpush1.msra.mxu0 %v2061
      %2107 = vmatprep.subr.mxu0 0.0
      %2108 = vmatpush1.msra.mxu0 %v2062
      %2109 = vmatprep.subr.mxu0 0.0
      %2110 = vmatpush1.msra.mxu0 %v2063
      %2111 = vmatprep.subr.mxu0 0.0
      %2112 = vmatpush1.msra.mxu0 0.0
      %2113 = vmatprep.subr.mxu0 0.0
      %2114 = vmatpush1.msra.mxu0 0.0
      %2115 = vmatprep.subr.mxu0 0.0
      %2116 = vmatpush1.msra.mxu0 0.0
      %2117 = vmatprep.subr.mxu0 0.0
      %2118 = vmatpush1.msra.mxu0 0.0
      %2119 = vmatprep.subr.mxu0 0.0
      %2120 = vmatpush1.msra.mxu0 0.0
      %2121 = vmatprep.subr.mxu0 0.0
      %2122 = vmatpush1.msra.mxu0 0.0
      %2123 = vmatprep.subr.mxu0 0.0
      %2124 = vmatpush1.msra.mxu0 0.0
      %2125 = vmatprep.subr.mxu0 0.0
      %2126 = vmatpush1.msra.mxu0 0.0
      %2127 = vmatprep.subr.mxu0 0.0
      %2128 = vmatpush1.msra.mxu0 0.0
      %2129 = vmatprep.subr.mxu0 0.0
      %2130 = vmatpush1.msra.mxu0 0.0
      %2131 = vmatprep.subr.mxu0 0.0
      %2132 = vmatpush1.msra.mxu0 0.0
      %2133 = vmatprep.subr.mxu0 0.0
      %2134 = vmatpush1.msra.mxu0 0.0
      %2135 = vmatprep.subr.mxu0 0.0
      %2136 = vmatpush1.msra.mxu0 0.0
      %2137 = vmatprep.subr.mxu0 0.0
      %2138 = vmatpush1.msra.mxu0 0.0
      %2139 = vmatprep.mubr.f32.mxu0 %v2073
      %2140 = vmatmul.mubr.f32.gmra.mrb[0].mxu0 %v2042
      %v2141 = vpop.f32.mrb[0].mxu0
      %v2142 = vadd.f32 %v2070, %v2141
      %v2143 = vpop.f32.mrb[0].mxu0
      %2144 = vdwg.mxu0
      %s2145 = scalar_lea.vmem %s15, %s1745
      %v2146 = vld [vmem:[%s2145] sm:$0x1]
      %s2147 = scalar_lea.vmem %s16, %s1745
      %v2148 = vld [vmem:[%s2147] sm:$0x1]
      %v2149 = vsel %vm840, %v2142, 0.0
      %2150 = vadd.xlane.f32.xlu0 %v2149
      %v2151 = vpop.xlane.xlu0 %2150
      %v2152 = vmul.f32 %v2151, 0.010416667
      %v2153 = vmul.f32 %v2142, %v2142
      %v2154 = vsel %vm840, %v2153, 0.0
      %2155 = vadd.xlane.f32.xlu0 %v2154
      %v2156 = vpop.xlane.xlu0 %2155
      %v2157 = vmul.f32 %v2156, 0.010416667
      %v2158 = vmul.f32 %v2152, %v2152
      %v2159 = vsub.f32 %v2157, %v2158
      %v2160 = vmax.f32 %v2159, 0.0
      %v2161 = vsub.f32 %v2142, %v2152
      %v2162 = vadd.f32 %v2160, 1e-05
      %v2163 = vrsqrt.pop %v2162
      %v2164 = vmul.f32 %v2161, %v2163
      %v2166 = vlaneseq
      %v2167 = vshrl.u32 %v2166, 7
      %v2168 = vsub.s32 0, %v2167
      %v2169 = vrot.slane %v2146, %v2168
      %v2171 = vmul.f32 %v2164, %v2169
      %v2173 = vlaneseq
      %v2174 = vshrl.u32 %v2173, 7
      %v2175 = vsub.s32 0, %v2174
      %v2176 = vrot.slane %v2148, %v2175
      %v2178 = vadd.f32 %v2171, %v2176
      %v2179 = vadd.f32 %v1744, %v2178
      %v2180 = vmax.f32 %v2179, 0.0
      %s2181 = sadd.s32 %s872, 3
      %s2182 = smul.u32 %s2181, 96
      %s2183 = scalar_lea.vmem %s5, %s2182
      %v2184 = vld [vmem:[%s2183] sm:$0xff]
      %v2185 = vld [vmem:[%s2183 + $0x8] sm:$0xff]
      %v2186 = vld [vmem:[%s2183 + $0x10] sm:$0xff]
      %v2187 = vld [vmem:[%s2183 + $0x18] sm:$0xff]
      %v2188 = vld [vmem:[%s2183 + $0x20] sm:$0xff]
      %v2189 = vld [vmem:[%s2183 + $0x28] sm:$0xff]
      %v2190 = vld [vmem:[%s2183 + $0x30] sm:$0xff]
      %v2191 = vld [vmem:[%s2183 + $0x38] sm:$0xff]
      %v2192 = vld [vmem:[%s2183 + $0x40] sm:$0xff]
      %v2193 = vld [vmem:[%s2183 + $0x48] sm:$0xff]
      %v2194 = vld [vmem:[%s2183 + $0x50] sm:$0xff]
      %v2195 = vld [vmem:[%s2183 + $0x58] sm:$0xff]
      %s2196 = scalar_lea.vmem %s6, %s2181
      %v2197 = vld [vmem:[%s2196] sm:$0x1]
      %v2199 = vlaneseq
      %v2200 = vshrl.u32 %v2199, 7
      %v2201 = vsub.s32 0, %v2200
      %v2202 = vrot.slane %v2197, %v2201
      %v2205 = vsel %vm840, %v2180, 0
      %2207 = vmatprep.subr.mxu0 0.0
      %2208 = vmatpush1.msra.mxu0 %v2184
      %2209 = vmatprep.subr.mxu0 0.0
      %2210 = vmatpush1.msra.mxu0 %v2185
      %2211 = vmatprep.subr.mxu0 0.0
      %2212 = vmatpush1.msra.mxu0 %v2186
      %2213 = vmatprep.subr.mxu0 0.0
      %2214 = vmatpush1.msra.mxu0 %v2187
      %2215 = vmatprep.subr.mxu0 0.0
      %2216 = vmatpush1.msra.mxu0 %v2188
      %2217 = vmatprep.subr.mxu0 0.0
      %2218 = vmatpush1.msra.mxu0 %v2189
      %2219 = vmatprep.subr.mxu0 0.0
      %2220 = vmatpush1.msra.mxu0 %v2190
      %2221 = vmatprep.subr.mxu0 0.0
      %2222 = vmatpush1.msra.mxu0 %v2191
      %2223 = vmatprep.subr.mxu0 0.0
      %2224 = vmatpush1.msra.mxu0 %v2192
      %2225 = vmatprep.subr.mxu0 0.0
      %2226 = vmatpush1.msra.mxu0 %v2193
      %2227 = vmatprep.subr.mxu0 0.0
      %2228 = vmatpush1.msra.mxu0 %v2194
      %2229 = vmatprep.subr.mxu0 0.0
      %2230 = vmatpush1.msra.mxu0 %v2195
      %2231 = vmatprep.subr.mxu0 0.0
      %2232 = vmatpush1.msra.mxu0 0.0
      %2233 = vmatprep.subr.mxu0 0.0
      %2234 = vmatpush1.msra.mxu0 0.0
      %2235 = vmatprep.subr.mxu0 0.0
      %2236 = vmatpush1.msra.mxu0 0.0
      %2237 = vmatprep.subr.mxu0 0.0
      %2238 = vmatpush1.msra.mxu0 0.0
      %2239 = vmatprep.subr.mxu0 0.0
      %2240 = vmatpush1.msra.mxu0 0.0
      %2241 = vmatprep.subr.mxu0 0.0
      %2242 = vmatpush1.msra.mxu0 0.0
      %2243 = vmatprep.subr.mxu0 0.0
      %2244 = vmatpush1.msra.mxu0 0.0
      %2245 = vmatprep.subr.mxu0 0.0
      %2246 = vmatpush1.msra.mxu0 0.0
      %2247 = vmatprep.subr.mxu0 0.0
      %2248 = vmatpush1.msra.mxu0 0.0
      %2249 = vmatprep.subr.mxu0 0.0
      %2250 = vmatpush1.msra.mxu0 0.0
      %2251 = vmatprep.subr.mxu0 0.0
      %2252 = vmatpush1.msra.mxu0 0.0
      %2253 = vmatprep.subr.mxu0 0.0
      %2254 = vmatpush1.msra.mxu0 0.0
      %2255 = vmatprep.subr.mxu0 0.0
      %2256 = vmatpush1.msra.mxu0 0.0
      %2257 = vmatprep.subr.mxu0 0.0
      %2258 = vmatpush1.msra.mxu0 0.0
      %2259 = vmatprep.subr.mxu0 0.0
      %2260 = vmatpush1.msra.mxu0 0.0
      %2261 = vmatprep.subr.mxu0 0.0
      %2262 = vmatpush1.msra.mxu0 0.0
      %2263 = vmatprep.subr.mxu0 0.0
      %2264 = vmatpush1.msra.mxu0 0.0
      %2265 = vmatprep.subr.mxu0 0.0
      %2266 = vmatpush1.msra.mxu0 0.0
      %2267 = vmatprep.subr.mxu0 0.0
      %2268 = vmatpush1.msra.mxu0 0.0
      %2269 = vmatprep.subr.mxu0 0.0
      %2270 = vmatpush1.msra.mxu0 0.0
      %2271 = vmatprep.mubr.f32.mxu0 0.0
      %2272 = vmatmul.mubr.f32.gmra.mrb[0].mxu0 %v2205
      %v2273 = vpop.f32.mrb[0].mxu0
      %v2274 = vadd.f32 %v2202, %v2273
      %v2275 = vpop.f32.mrb[0].mxu0
      %2276 = vdwg.mxu0
      %s2277 = scalar_lea.vmem %s7, %s2181
      %v2278 = vld [vmem:[%s2277] sm:$0x1]
      %s2279 = scalar_lea.vmem %s8, %s2181
      %v2280 = vld [vmem:[%s2279] sm:$0x1]
      %v2281 = vsel %vm840, %v2274, 0.0
      %2282 = vadd.xlane.f32.xlu0 %v2281
      %v2283 = vpop.xlane.xlu0 %2282
      %v2284 = vmul.f32 %v2283, 0.010416667
      %v2285 = vmul.f32 %v2274, %v2274
      %v2286 = vsel %vm840, %v2285, 0.0
      %2287 = vadd.xlane.f32.xlu0 %v2286
      %v2288 = vpop.xlane.xlu0 %2287
      %v2289 = vmul.f32 %v2288, 0.010416667
      %v2290 = vmul.f32 %v2284, %v2284
      %v2291 = vsub.f32 %v2289, %v2290
      %v2292 = vmax.f32 %v2291, 0.0
      %v2293 = vsub.f32 %v2274, %v2284
      %v2294 = vadd.f32 %v2292, 1e-05
      %v2295 = vrsqrt.pop %v2294
      %v2296 = vmul.f32 %v2293, %v2295
      %v2298 = vlaneseq
      %v2299 = vshrl.u32 %v2298, 7
      %v2300 = vsub.s32 0, %v2299
      %v2301 = vrot.slane %v2278, %v2300
      %v2303 = vmul.f32 %v2296, %v2301
      %v2305 = vlaneseq
      %v2306 = vshrl.u32 %v2305, 7
      %v2307 = vsub.s32 0, %v2306
      %v2308 = vrot.slane %v2280, %v2307
      %v2310 = vadd.f32 %v2303, %v2308
      %v2311 = vmax.f32 %v2310, 0.0
      %s2312 = smul.u32 %s2181, 24
      %s2313 = smul.addr %s2312, 8
      %s2314 = scalar_lea.vmem %s9, %s2313
      %v2315 = vld [vmem:[%s2314] sm:$0xff]
      %v2316 = vld [vmem:[%s2314 + $0x8] sm:$0xff]
      %v2317 = vld [vmem:[%s2314 + $0x10] sm:$0xff]
      %v2318 = vld [vmem:[%s2314 + $0x18] sm:$0xff]
      %v2319 = vld [vmem:[%s2314 + $0x20] sm:$0xff]
      %v2320 = vld [vmem:[%s2314 + $0x28] sm:$0xff]
      %v2321 = vld [vmem:[%s2314 + $0x30] sm:$0xff]
      %v2322 = vld [vmem:[%s2314 + $0x38] sm:$0xff]
      %v2323 = vld [vmem:[%s2314 + $0x40] sm:$0xff]
      %v2324 = vld [vmem:[%s2314 + $0x48] sm:$0xff]
      %v2325 = vld [vmem:[%s2314 + $0x50] sm:$0xff]
      %v2326 = vld [vmem:[%s2314 + $0x58] sm:$0xff]
      %v2327 = vld [vmem:[%s2314 + $0x60] sm:$0xff]
      %v2328 = vld [vmem:[%s2314 + $0x68] sm:$0xff]
      %v2329 = vld [vmem:[%s2314 + $0x70] sm:$0xff]
      %v2330 = vld [vmem:[%s2314 + $0x78] sm:$0xff]
      %v2331 = vld [vmem:[%s2314 + $0x80] sm:$0xff]
      %v2332 = vld [vmem:[%s2314 + $0x88] sm:$0xff]
      %v2333 = vld [vmem:[%s2314 + $0x90] sm:$0xff]
      %v2334 = vld [vmem:[%s2314 + $0x98] sm:$0xff]
      %v2335 = vld [vmem:[%s2314 + $0xa0] sm:$0xff]
      %v2336 = vld [vmem:[%s2314 + $0xa8] sm:$0xff]
      %v2337 = vld [vmem:[%s2314 + $0xb0] sm:$0xff]
      %v2338 = vld [vmem:[%s2314 + $0xb8] sm:$0xff]
      %s2339 = smul.u32 %s2181, 2
      %s2340 = scalar_lea.vmem %s10, %s2339
      %v2341 = vld [vmem:[%s2340] sm:$0x3]
      %v2343 = vlaneseq
      %v2344 = vshrl.u32 %v2343, 7
      %v2345 = vsub.s32 0, %v2344
      %v2346 = vrot.slane %v2341, %v2345
      %v2347 = vlaneseq
      %v2348 = vshrl.u32 %v2347, 7
      %v2349 = vsub.s32 1, %v2348
      %v2350 = vrot.slane %v2341, %v2349
      %v2354 = vsel %vm840, %v2311, 0
      %2356 = vmatprep.subr.mxu0 %v2316
      %2357 = vmatpush1.msra.mxu0 %v2315
      %2358 = vmatprep.subr.mxu0 %v2318
      %2359 = vmatpush1.msra.mxu0 %v2317
      %2360 = vmatprep.subr.mxu0 %v2320
      %2361 = vmatpush1.msra.mxu0 %v2319
      %2362 = vmatprep.subr.mxu0 %v2322
      %2363 = vmatpush1.msra.mxu0 %v2321
      %2364 = vmatprep.subr.mxu0 %v2324
      %2365 = vmatpush1.msra.mxu0 %v2323
      %2366 = vmatprep.subr.mxu0 %v2326
      %2367 = vmatpush1.msra.mxu0 %v2325
      %2368 = vmatprep.subr.mxu0 %v2328
      %2369 = vmatpush1.msra.mxu0 %v2327
      %2370 = vmatprep.subr.mxu0 %v2330
      %2371 = vmatpush1.msra.mxu0 %v2329
      %2372 = vmatprep.subr.mxu0 %v2332
      %2373 = vmatpush1.msra.mxu0 %v2331
      %2374 = vmatprep.subr.mxu0 %v2334
      %2375 = vmatpush1.msra.mxu0 %v2333
      %2376 = vmatprep.subr.mxu0 %v2336
      %2377 = vmatpush1.msra.mxu0 %v2335
      %2378 = vmatprep.subr.mxu0 %v2338
      %2379 = vmatpush1.msra.mxu0 %v2337
      %2380 = vmatprep.subr.mxu0 0.0
      %2381 = vmatpush1.msra.mxu0 0.0
      %2382 = vmatprep.subr.mxu0 0.0
      %2383 = vmatpush1.msra.mxu0 0.0
      %2384 = vmatprep.subr.mxu0 0.0
      %2385 = vmatpush1.msra.mxu0 0.0
      %2386 = vmatprep.subr.mxu0 0.0
      %2387 = vmatpush1.msra.mxu0 0.0
      %2388 = vmatprep.subr.mxu0 0.0
      %2389 = vmatpush1.msra.mxu0 0.0
      %2390 = vmatprep.subr.mxu0 0.0
      %2391 = vmatpush1.msra.mxu0 0.0
      %2392 = vmatprep.subr.mxu0 0.0
      %2393 = vmatpush1.msra.mxu0 0.0
      %2394 = vmatprep.subr.mxu0 0.0
      %2395 = vmatpush1.msra.mxu0 0.0
      %2396 = vmatprep.subr.mxu0 0.0
      %2397 = vmatpush1.msra.mxu0 0.0
      %2398 = vmatprep.subr.mxu0 0.0
      %2399 = vmatpush1.msra.mxu0 0.0
      %2400 = vmatprep.subr.mxu0 0.0
      %2401 = vmatpush1.msra.mxu0 0.0
      %2402 = vmatprep.subr.mxu0 0.0
      %2403 = vmatpush1.msra.mxu0 0.0
      %2404 = vmatprep.subr.mxu0 0.0
      %2405 = vmatpush1.msra.mxu0 0.0
      %2406 = vmatprep.subr.mxu0 0.0
      %2407 = vmatpush1.msra.mxu0 0.0
      %2408 = vmatprep.subr.mxu0 0.0
      %2409 = vmatpush1.msra.mxu0 0.0
      %2410 = vmatprep.subr.mxu0 0.0
      %2411 = vmatpush1.msra.mxu0 0.0
      %2412 = vmatprep.subr.mxu0 0.0
      %2413 = vmatpush1.msra.mxu0 0.0
      %2414 = vmatprep.subr.mxu0 0.0
      %2415 = vmatpush1.msra.mxu0 0.0
      %2416 = vmatprep.subr.mxu0 0.0
      %2417 = vmatpush1.msra.mxu0 0.0
      %2418 = vmatprep.subr.mxu0 0.0
      %2419 = vmatpush1.msra.mxu0 0.0
      %2420 = vmatprep.mubr.f32.mxu0 0.0
      %2421 = vmatmul.mubr.f32.gmra.mrb[0].mxu0 %v2354
      %v2422 = vpop.f32.mrb[0].mxu0
      %v2423 = vadd.f32 %v2346, %v2422
      %v2424 = vpop.f32.mrb[0].mxu0
      %v2425 = vadd.f32 %v2350, %v2424
      %2426 = vdwg.mxu0
      %s2427 = scalar_lea.vmem %s11, %s2339
      %v2428 = vld [vmem:[%s2427] sm:$0x3]
      %s2429 = scalar_lea.vmem %s12, %s2339
      %v2430 = vld [vmem:[%s2429] sm:$0x3]
      %v2431 = vsel %vm1122, %v2425, 0.0
      %v2432 = vadd.f32 %v2423, %v2431
      %2433 = vadd.xlane.f32.xlu0 %v2432
      %v2434 = vpop.xlane.xlu0 %2433
      %v2435 = vmul.f32 %v2434, 0.0069444445
      %v2436 = vmul.f32 %v2423, %v2423
      %v2437 = vmul.f32 %v2425, %v2425
      %v2438 = vsel %vm1122, %v2437, 0.0
      %v2439 = vadd.f32 %v2436, %v2438
      %2440 = vadd.xlane.f32.xlu0 %v2439
      %v2441 = vpop.xlane.xlu0 %2440
      %v2442 = vmul.f32 %v2441, 0.0069444445
      %v2443 = vmul.f32 %v2435, %v2435
      %v2444 = vsub.f32 %v2442, %v2443
      %v2445 = vmax.f32 %v2444, 0.0
      %v2446 = vsub.f32 %v2423, %v2435
      %v2447 = vsub.f32 %v2425, %v2435
      %v2448 = vadd.f32 %v2445, 1e-05
      %v2449 = vrsqrt.pop %v2448
      %v2450 = vmul.f32 %v2446, %v2449
      %v2451 = vmul.f32 %v2447, %v2449
      %v2453 = vlaneseq
      %v2454 = vshrl.u32 %v2453, 7
      %v2455 = vsub.s32 0, %v2454
      %v2456 = vrot.slane %v2428, %v2455
      %v2457 = vlaneseq
      %v2458 = vshrl.u32 %v2457, 7
      %v2459 = vsub.s32 1, %v2458
      %v2460 = vrot.slane %v2428, %v2459
      %v2463 = vmul.f32 %v2450, %v2456
      %v2464 = vmul.f32 %v2451, %v2460
      %v2466 = vlaneseq
      %v2467 = vshrl.u32 %v2466, 7
      %v2468 = vsub.s32 0, %v2467
      %v2469 = vrot.slane %v2430, %v2468
      %v2470 = vlaneseq
      %v2471 = vshrl.u32 %v2470, 7
      %v2472 = vsub.s32 1, %v2471
      %v2473 = vrot.slane %v2430, %v2472
      %v2476 = vadd.f32 %v2463, %v2469
      %v2477 = vadd.f32 %v2464, %v2473
      %v2478 = vmax.f32 %v2476, 0.0
      %v2479 = vmax.f32 %v2477, 0.0
      %s2480 = smul.u32 %s2181, 144
      %s2481 = scalar_lea.vmem %s13, %s2480
      %v2482 = vld [vmem:[%s2481] sm:$0xff]
      %v2483 = vld [vmem:[%s2481 + $0x8] sm:$0xff]
      %v2484 = vld [vmem:[%s2481 + $0x10] sm:$0xff]
      %v2485 = vld [vmem:[%s2481 + $0x18] sm:$0xff]
      %v2486 = vld [vmem:[%s2481 + $0x20] sm:$0xff]
      %v2487 = vld [vmem:[%s2481 + $0x28] sm:$0xff]
      %v2488 = vld [vmem:[%s2481 + $0x30] sm:$0xff]
      %v2489 = vld [vmem:[%s2481 + $0x38] sm:$0xff]
      %v2490 = vld [vmem:[%s2481 + $0x40] sm:$0xff]
      %v2491 = vld [vmem:[%s2481 + $0x48] sm:$0xff]
      %v2492 = vld [vmem:[%s2481 + $0x50] sm:$0xff]
      %v2493 = vld [vmem:[%s2481 + $0x58] sm:$0xff]
      %v2494 = vld [vmem:[%s2481 + $0x60] sm:$0xff]
      %v2495 = vld [vmem:[%s2481 + $0x68] sm:$0xff]
      %v2496 = vld [vmem:[%s2481 + $0x70] sm:$0xff]
      %v2497 = vld [vmem:[%s2481 + $0x78] sm:$0xff]
      %v2498 = vld [vmem:[%s2481 + $0x80] sm:$0xff]
      %v2499 = vld [vmem:[%s2481 + $0x88] sm:$0xff]
      %s2500 = scalar_lea.vmem %s14, %s2181
      %v2501 = vld [vmem:[%s2500] sm:$0x1]
      %v2503 = vlaneseq
      %v2504 = vshrl.u32 %v2503, 7
      %v2505 = vsub.s32 0, %v2504
      %v2506 = vrot.slane %v2501, %v2505
      %v2509 = vsel %vm1122, %v2479, 0
      %2511 = vmatprep.subr.mxu0 0.0
      %2512 = vmatpush1.msra.mxu0 %v2482
      %2513 = vmatprep.subr.mxu0 0.0
      %2514 = vmatpush1.msra.mxu0 %v2483
      %2515 = vmatprep.subr.mxu0 0.0
      %2516 = vmatpush1.msra.mxu0 %v2484
      %2517 = vmatprep.subr.mxu0 0.0
      %2518 = vmatpush1.msra.mxu0 %v2485
      %2519 = vmatprep.subr.mxu0 0.0
      %2520 = vmatpush1.msra.mxu0 %v2486
      %2521 = vmatprep.subr.mxu0 0.0
      %2522 = vmatpush1.msra.mxu0 %v2487
      %2523 = vmatprep.subr.mxu0 0.0
      %2524 = vmatpush1.msra.mxu0 %v2488
      %2525 = vmatprep.subr.mxu0 0.0
      %2526 = vmatpush1.msra.mxu0 %v2489
      %2527 = vmatprep.subr.mxu0 0.0
      %2528 = vmatpush1.msra.mxu0 %v2490
      %2529 = vmatprep.subr.mxu0 0.0
      %2530 = vmatpush1.msra.mxu0 %v2491
      %2531 = vmatprep.subr.mxu0 0.0
      %2532 = vmatpush1.msra.mxu0 %v2492
      %2533 = vmatprep.subr.mxu0 0.0
      %2534 = vmatpush1.msra.mxu0 %v2493
      %2535 = vmatprep.subr.mxu0 0.0
      %2536 = vmatpush1.msra.mxu0 %v2494
      %2537 = vmatprep.subr.mxu0 0.0
      %2538 = vmatpush1.msra.mxu0 %v2495
      %2539 = vmatprep.subr.mxu0 0.0
      %2540 = vmatpush1.msra.mxu0 %v2496
      %2541 = vmatprep.subr.mxu0 0.0
      %2542 = vmatpush1.msra.mxu0 %v2497
      %2543 = vmatprep.subr.mxu0 0.0
      %2544 = vmatpush1.msra.mxu0 %v2498
      %2545 = vmatprep.subr.mxu0 0.0
      %2546 = vmatpush1.msra.mxu0 %v2499
      %2547 = vmatprep.subr.mxu0 0.0
      %2548 = vmatpush1.msra.mxu0 0.0
      %2549 = vmatprep.subr.mxu0 0.0
      %2550 = vmatpush1.msra.mxu0 0.0
      %2551 = vmatprep.subr.mxu0 0.0
      %2552 = vmatpush1.msra.mxu0 0.0
      %2553 = vmatprep.subr.mxu0 0.0
      %2554 = vmatpush1.msra.mxu0 0.0
      %2555 = vmatprep.subr.mxu0 0.0
      %2556 = vmatpush1.msra.mxu0 0.0
      %2557 = vmatprep.subr.mxu0 0.0
      %2558 = vmatpush1.msra.mxu0 0.0
      %2559 = vmatprep.subr.mxu0 0.0
      %2560 = vmatpush1.msra.mxu0 0.0
      %2561 = vmatprep.subr.mxu0 0.0
      %2562 = vmatpush1.msra.mxu0 0.0
      %2563 = vmatprep.subr.mxu0 0.0
      %2564 = vmatpush1.msra.mxu0 0.0
      %2565 = vmatprep.subr.mxu0 0.0
      %2566 = vmatpush1.msra.mxu0 0.0
      %2567 = vmatprep.subr.mxu0 0.0
      %2568 = vmatpush1.msra.mxu0 0.0
      %2569 = vmatprep.subr.mxu0 0.0
      %2570 = vmatpush1.msra.mxu0 0.0
      %2571 = vmatprep.subr.mxu0 0.0
      %2572 = vmatpush1.msra.mxu0 0.0
      %2573 = vmatprep.subr.mxu0 0.0
      %2574 = vmatpush1.msra.mxu0 0.0
      %2575 = vmatprep.mubr.f32.mxu0 %v2509
      %2576 = vmatmul.mubr.f32.gmra.mrb[0].mxu0 %v2478
      %v2577 = vpop.f32.mrb[0].mxu0
      %v2578 = vadd.f32 %v2506, %v2577
      %v2579 = vpop.f32.mrb[0].mxu0
      %2580 = vdwg.mxu0
      %s2581 = scalar_lea.vmem %s15, %s2181
      %v2582 = vld [vmem:[%s2581] sm:$0x1]
      %s2583 = scalar_lea.vmem %s16, %s2181
      %v2584 = vld [vmem:[%s2583] sm:$0x1]
      %v2585 = vsel %vm840, %v2578, 0.0
      %2586 = vadd.xlane.f32.xlu0 %v2585
      %v2587 = vpop.xlane.xlu0 %2586
      %v2588 = vmul.f32 %v2587, 0.010416667
      %v2589 = vmul.f32 %v2578, %v2578
      %v2590 = vsel %vm840, %v2589, 0.0
      %2591 = vadd.xlane.f32.xlu0 %v2590
      %v2592 = vpop.xlane.xlu0 %2591
      %v2593 = vmul.f32 %v2592, 0.010416667
      %v2594 = vmul.f32 %v2588, %v2588
      %v2595 = vsub.f32 %v2593, %v2594
      %v2596 = vmax.f32 %v2595, 0.0
      %v2597 = vsub.f32 %v2578, %v2588
      %v2598 = vadd.f32 %v2596, 1e-05
      %v2599 = vrsqrt.pop %v2598
      %v2600 = vmul.f32 %v2597, %v2599
      %v2602 = vlaneseq
      %v2603 = vshrl.u32 %v2602, 7
      %v2604 = vsub.s32 0, %v2603
      %v2605 = vrot.slane %v2582, %v2604
      %v2607 = vmul.f32 %v2600, %v2605
      %v2609 = vlaneseq
      %v2610 = vshrl.u32 %v2609, 7
      %v2611 = vsub.s32 0, %v2610
      %v2612 = vrot.slane %v2584, %v2611
      %v2614 = vadd.f32 %v2607, %v2612
      %v2615 = vadd.f32 %v2180, %v2614
      %v2616 = vmax.f32 %v2615, 0.0
      %s2617 = smul.u32 %s36, 96
      %s2618 = scalar_lea.vmem %s17, %s2617
      %v2619 = vld [vmem:[%s2618] sm:$0xff]
      %v2620 = vld [vmem:[%s2618 + $0x8] sm:$0xff]
      %v2621 = vld [vmem:[%s2618 + $0x10] sm:$0xff]
      %v2622 = vld [vmem:[%s2618 + $0x18] sm:$0xff]
      %v2623 = vld [vmem:[%s2618 + $0x20] sm:$0xff]
      %v2624 = vld [vmem:[%s2618 + $0x28] sm:$0xff]
      %v2625 = vld [vmem:[%s2618 + $0x30] sm:$0xff]
      %v2626 = vld [vmem:[%s2618 + $0x38] sm:$0xff]
      %v2627 = vld [vmem:[%s2618 + $0x40] sm:$0xff]
      %v2628 = vld [vmem:[%s2618 + $0x48] sm:$0xff]
      %v2629 = vld [vmem:[%s2618 + $0x50] sm:$0xff]
      %v2630 = vld [vmem:[%s2618 + $0x58] sm:$0xff]
      %s2631 = scalar_lea.vmem %s18, %s36
      %v2632 = vld [vmem:[%s2631] sm:$0x1]
      %v2634 = vlaneseq
      %v2635 = vshrl.u32 %v2634, 7
      %v2636 = vsub.s32 0, %v2635
      %v2637 = vrot.slane %v2632, %v2636
      %v2640 = vsel %vm840, %v2616, 0
      %2642 = vmatprep.subr.mxu0 0.0
      %2643 = vmatpush1.msra.mxu0 %v2619
      %2644 = vmatprep.subr.mxu0 0.0
      %2645 = vmatpush1.msra.mxu0 %v2620
      %2646 = vmatprep.subr.mxu0 0.0
      %2647 = vmatpush1.msra.mxu0 %v2621
      %2648 = vmatprep.subr.mxu0 0.0
      %2649 = vmatpush1.msra.mxu0 %v2622
      %2650 = vmatprep.subr.mxu0 0.0
      %2651 = vmatpush1.msra.mxu0 %v2623
      %2652 = vmatprep.subr.mxu0 0.0
      %2653 = vmatpush1.msra.mxu0 %v2624
      %2654 = vmatprep.subr.mxu0 0.0
      %2655 = vmatpush1.msra.mxu0 %v2625
      %2656 = vmatprep.subr.mxu0 0.0
      %2657 = vmatpush1.msra.mxu0 %v2626
      %2658 = vmatprep.subr.mxu0 0.0
      %2659 = vmatpush1.msra.mxu0 %v2627
      %2660 = vmatprep.subr.mxu0 0.0
      %2661 = vmatpush1.msra.mxu0 %v2628
      %2662 = vmatprep.subr.mxu0 0.0
      %2663 = vmatpush1.msra.mxu0 %v2629
      %2664 = vmatprep.subr.mxu0 0.0
      %2665 = vmatpush1.msra.mxu0 %v2630
      %2666 = vmatprep.subr.mxu0 0.0
      %2667 = vmatpush1.msra.mxu0 0.0
      %2668 = vmatprep.subr.mxu0 0.0
      %2669 = vmatpush1.msra.mxu0 0.0
      %2670 = vmatprep.subr.mxu0 0.0
      %2671 = vmatpush1.msra.mxu0 0.0
      %2672 = vmatprep.subr.mxu0 0.0
      %2673 = vmatpush1.msra.mxu0 0.0
      %2674 = vmatprep.subr.mxu0 0.0
      %2675 = vmatpush1.msra.mxu0 0.0
      %2676 = vmatprep.subr.mxu0 0.0
      %2677 = vmatpush1.msra.mxu0 0.0
      %2678 = vmatprep.subr.mxu0 0.0
      %2679 = vmatpush1.msra.mxu0 0.0
      %2680 = vmatprep.subr.mxu0 0.0
      %2681 = vmatpush1.msra.mxu0 0.0
      %2682 = vmatprep.subr.mxu0 0.0
      %2683 = vmatpush1.msra.mxu0 0.0
      %2684 = vmatprep.subr.mxu0 0.0
      %2685 = vmatpush1.msra.mxu0 0.0
      %2686 = vmatprep.subr.mxu0 0.0
      %2687 = vmatpush1.msra.mxu0 0.0
      %2688 = vmatprep.subr.mxu0 0.0
      %2689 = vmatpush1.msra.mxu0 0.0
      %2690 = vmatprep.subr.mxu0 0.0
      %2691 = vmatpush1.msra.mxu0 0.0
      %2692 = vmatprep.subr.mxu0 0.0
      %2693 = vmatpush1.msra.mxu0 0.0
      %2694 = vmatprep.subr.mxu0 0.0
      %2695 = vmatpush1.msra.mxu0 0.0
      %2696 = vmatprep.subr.mxu0 0.0
      %2697 = vmatpush1.msra.mxu0 0.0
      %2698 = vmatprep.subr.mxu0 0.0
      %2699 = vmatpush1.msra.mxu0 0.0
      %2700 = vmatprep.subr.mxu0 0.0
      %2701 = vmatpush1.msra.mxu0 0.0
      %2702 = vmatprep.subr.mxu0 0.0
      %2703 = vmatpush1.msra.mxu0 0.0
      %2704 = vmatprep.subr.mxu0 0.0
      %2705 = vmatpush1.msra.mxu0 0.0
      %2706 = vmatprep.mubr.f32.mxu0 0.0
      %2707 = vmatmul.mubr.f32.gmra.mrb[0].mxu0 %v2640
      %v2708 = vpop.f32.mrb[0].mxu0
      %v2709 = vadd.f32 %v2637, %v2708
      %v2710 = vpop.f32.mrb[0].mxu0
      %2711 = vdwg.mxu0
      %v2712 = vmax.f32 %v2709, 0.0
      %s2713 = smul.u32 %s36, 48
      %s2714 = scalar_lea.vmem %s19, %s2713
      %v2715 = vld [vmem:[%s2714] sm:$0xff]
      %v2716 = vld [vmem:[%s2714 + $0x8] sm:$0xff]
      %v2717 = vld [vmem:[%s2714 + $0x10] sm:$0xff]
      %v2718 = vld [vmem:[%s2714 + $0x18] sm:$0xff]
      %v2719 = vld [vmem:[%s2714 + $0x20] sm:$0xff]
      %v2720 = vld [vmem:[%s2714 + $0x28] sm:$0xff]
      %s2721 = scalar_lea.vmem %s20, %s36
      %v2722 = vld [vmem:[%s2721] sm:$0x1]
      %v2724 = vlaneseq
      %v2725 = vshrl.u32 %v2724, 7
      %v2726 = vsub.s32 0, %v2725
      %v2727 = vrot.slane %v2722, %v2726
      %vm2729 = vcmask 392192
      %v2731 = vsel %vm2729, %v2712, 0
      %2733 = vmatprep.subr.mxu0 0.0
      %2734 = vmatpush1.msra.mxu0 %v2715
      %2735 = vmatprep.subr.mxu0 0.0
      %2736 = vmatpush1.msra.mxu0 %v2716
      %2737 = vmatprep.subr.mxu0 0.0
      %2738 = vmatpush1.msra.mxu0 %v2717
      %2739 = vmatprep.subr.mxu0 0.0
      %2740 = vmatpush1.msra.mxu0 %v2718
      %2741 = vmatprep.subr.mxu0 0.0
      %2742 = vmatpush1.msra.mxu0 %v2719
      %2743 = vmatprep.subr.mxu0 0.0
      %2744 = vmatpush1.msra.mxu0 %v2720
      %2745 = vmatprep.subr.mxu0 0.0
      %2746 = vmatpush1.msra.mxu0 0.0
      %2747 = vmatprep.subr.mxu0 0.0
      %2748 = vmatpush1.msra.mxu0 0.0
      %2749 = vmatprep.subr.mxu0 0.0
      %2750 = vmatpush1.msra.mxu0 0.0
      %2751 = vmatprep.subr.mxu0 0.0
      %2752 = vmatpush1.msra.mxu0 0.0
      %2753 = vmatprep.subr.mxu0 0.0
      %2754 = vmatpush1.msra.mxu0 0.0
      %2755 = vmatprep.subr.mxu0 0.0
      %2756 = vmatpush1.msra.mxu0 0.0
      %2757 = vmatprep.subr.mxu0 0.0
      %2758 = vmatpush1.msra.mxu0 0.0
      %2759 = vmatprep.subr.mxu0 0.0
      %2760 = vmatpush1.msra.mxu0 0.0
      %2761 = vmatprep.subr.mxu0 0.0
      %2762 = vmatpush1.msra.mxu0 0.0
      %2763 = vmatprep.subr.mxu0 0.0
      %2764 = vmatpush1.msra.mxu0 0.0
      %2765 = vmatprep.subr.mxu0 0.0
      %2766 = vmatpush1.msra.mxu0 0.0
      %2767 = vmatprep.subr.mxu0 0.0
      %2768 = vmatpush1.msra.mxu0 0.0
      %2769 = vmatprep.subr.mxu0 0.0
      %2770 = vmatpush1.msra.mxu0 0.0
      %2771 = vmatprep.subr.mxu0 0.0
      %2772 = vmatpush1.msra.mxu0 0.0
      %2773 = vmatprep.subr.mxu0 0.0
      %2774 = vmatpush1.msra.mxu0 0.0
      %2775 = vmatprep.subr.mxu0 0.0
      %2776 = vmatpush1.msra.mxu0 0.0
      %2777 = vmatprep.subr.mxu0 0.0
      %2778 = vmatpush1.msra.mxu0 0.0
      %2779 = vmatprep.subr.mxu0 0.0
      %2780 = vmatpush1.msra.mxu0 0.0
      %2781 = vmatprep.subr.mxu0 0.0
      %2782 = vmatpush1.msra.mxu0 0.0
      %2783 = vmatprep.subr.mxu0 0.0
      %2784 = vmatpush1.msra.mxu0 0.0
      %2785 = vmatprep.subr.mxu0 0.0
      %2786 = vmatpush1.msra.mxu0 0.0
      %2787 = vmatprep.subr.mxu0 0.0
      %2788 = vmatpush1.msra.mxu0 0.0
      %2789 = vmatprep.subr.mxu0 0.0
      %2790 = vmatpush1.msra.mxu0 0.0
      %2791 = vmatprep.subr.mxu0 0.0
      %2792 = vmatpush1.msra.mxu0 0.0
      %2793 = vmatprep.subr.mxu0 0.0
      %2794 = vmatpush1.msra.mxu0 0.0
      %2795 = vmatprep.subr.mxu0 0.0
      %2796 = vmatpush1.msra.mxu0 0.0
      %2797 = vmatprep.mubr.f32.mxu0 0.0
      %2798 = vmatmul.mubr.f32.gmra.mrb[0].mxu0 %v2731
      %v2799 = vpop.f32.mrb[0].mxu0
      %v2800 = vadd.f32 %v2727, %v2799
      %v2801 = vpop.f32.mrb[0].mxu0
      %2802 = vdwg.mxu0
      %v2803 = vadd.f32 %v2616, %v2800
      %v2804 = vmax.f32 %v2803, 0.0
      %s2805 = scalar_lea.vmem %s21, %s2617
      %v2806 = vld [vmem:[%s2805] sm:$0xff]
      %v2807 = vld [vmem:[%s2805 + $0x8] sm:$0xff]
      %v2808 = vld [vmem:[%s2805 + $0x10] sm:$0xff]
      %v2809 = vld [vmem:[%s2805 + $0x18] sm:$0xff]
      %v2810 = vld [vmem:[%s2805 + $0x20] sm:$0xff]
      %v2811 = vld [vmem:[%s2805 + $0x28] sm:$0xff]
      %v2812 = vld [vmem:[%s2805 + $0x30] sm:$0xff]
      %v2813 = vld [vmem:[%s2805 + $0x38] sm:$0xff]
      %v2814 = vld [vmem:[%s2805 + $0x40] sm:$0xff]
      %v2815 = vld [vmem:[%s2805 + $0x48] sm:$0xff]
      %v2816 = vld [vmem:[%s2805 + $0x50] sm:$0xff]
      %v2817 = vld [vmem:[%s2805 + $0x58] sm:$0xff]
      %s2818 = scalar_lea.vmem %s22, %s36
      %v2819 = vld [vmem:[%s2818] sm:$0x1]
      %v2821 = vlaneseq
      %v2822 = vshrl.u32 %v2821, 7
      %v2823 = vsub.s32 0, %v2822
      %v2824 = vrot.slane %v2819, %v2823
      %v2827 = vsel %vm840, %v2804, 0
      %2829 = vmatprep.subr.mxu0 0.0
      %2830 = vmatpush1.msra.mxu0 %v2806
      %2831 = vmatprep.subr.mxu0 0.0
      %2832 = vmatpush1.msra.mxu0 %v2807
      %2833 = vmatprep.subr.mxu0 0.0
      %2834 = vmatpush1.msra.mxu0 %v2808
      %2835 = vmatprep.subr.mxu0 0.0
      %2836 = vmatpush1.msra.mxu0 %v2809
      %2837 = vmatprep.subr.mxu0 0.0
      %2838 = vmatpush1.msra.mxu0 %v2810
      %2839 = vmatprep.subr.mxu0 0.0
      %2840 = vmatpush1.msra.mxu0 %v2811
      %2841 = vmatprep.subr.mxu0 0.0
      %2842 = vmatpush1.msra.mxu0 %v2812
      %2843 = vmatprep.subr.mxu0 0.0
      %2844 = vmatpush1.msra.mxu0 %v2813
      %2845 = vmatprep.subr.mxu0 0.0
      %2846 = vmatpush1.msra.mxu0 %v2814
      %2847 = vmatprep.subr.mxu0 0.0
      %2848 = vmatpush1.msra.mxu0 %v2815
      %2849 = vmatprep.subr.mxu0 0.0
      %2850 = vmatpush1.msra.mxu0 %v2816
      %2851 = vmatprep.subr.mxu0 0.0
      %2852 = vmatpush1.msra.mxu0 %v2817
      %2853 = vmatprep.subr.mxu0 0.0
      %2854 = vmatpush1.msra.mxu0 0.0
      %2855 = vmatprep.subr.mxu0 0.0
      %2856 = vmatpush1.msra.mxu0 0.0
      %2857 = vmatprep.subr.mxu0 0.0
      %2858 = vmatpush1.msra.mxu0 0.0
      %2859 = vmatprep.subr.mxu0 0.0
      %2860 = vmatpush1.msra.mxu0 0.0
      %2861 = vmatprep.subr.mxu0 0.0
      %2862 = vmatpush1.msra.mxu0 0.0
      %2863 = vmatprep.subr.mxu0 0.0
      %2864 = vmatpush1.msra.mxu0 0.0
      %2865 = vmatprep.subr.mxu0 0.0
      %2866 = vmatpush1.msra.mxu0 0.0
      %2867 = vmatprep.subr.mxu0 0.0
      %2868 = vmatpush1.msra.mxu0 0.0
      %2869 = vmatprep.subr.mxu0 0.0
      %2870 = vmatpush1.msra.mxu0 0.0
      %2871 = vmatprep.subr.mxu0 0.0
      %2872 = vmatpush1.msra.mxu0 0.0
      %2873 = vmatprep.subr.mxu0 0.0
      %2874 = vmatpush1.msra.mxu0 0.0
      %2875 = vmatprep.subr.mxu0 0.0
      %2876 = vmatpush1.msra.mxu0 0.0
      %2877 = vmatprep.subr.mxu0 0.0
      %2878 = vmatpush1.msra.mxu0 0.0
      %2879 = vmatprep.subr.mxu0 0.0
      %2880 = vmatpush1.msra.mxu0 0.0
      %2881 = vmatprep.subr.mxu0 0.0
      %2882 = vmatpush1.msra.mxu0 0.0
      %2883 = vmatprep.subr.mxu0 0.0
      %2884 = vmatpush1.msra.mxu0 0.0
      %2885 = vmatprep.subr.mxu0 0.0
      %2886 = vmatpush1.msra.mxu0 0.0
      %2887 = vmatprep.subr.mxu0 0.0
      %2888 = vmatpush1.msra.mxu0 0.0
      %2889 = vmatprep.subr.mxu0 0.0
      %2890 = vmatpush1.msra.mxu0 0.0
      %2891 = vmatprep.subr.mxu0 0.0
      %2892 = vmatpush1.msra.mxu0 0.0
      %2893 = vmatprep.mubr.f32.mxu0 0.0
      %2894 = vmatmul.mubr.f32.gmra.mrb[0].mxu0 %v2827
      %v2895 = vpop.f32.mrb[0].mxu0
      %v2896 = vadd.f32 %v2824, %v2895
      %v2897 = vpop.f32.mrb[0].mxu0
      %2898 = vdwg.mxu0
      %v2899 = vmax.f32 %v2896, 0.0
      %s2900 = scalar_lea.vmem %s23, %s36
      %v2901 = vld [vmem:[%s2900] sm:$0x1]
      %v2903 = vlaneseq
      %v2904 = vshrl.u32 %v2903, 7
      %v2905 = vsub.s32 0, %v2904
      %v2906 = vrot.slane %v2901, %v2905
      %v2908 = vmul.f32 %v2899, %v2906
      %v2909 = vsel %vm840, %v2908, 0.0
      %2910 = vadd.xlane.f32.xlu0 %v2909
      %v2911 = vpop.xlane.xlu0 %2910
      %s2912 = scalar_lea.vmem %s24, %s36
      %v2913 = vld [vmem:[%s2912] sm:$0x1]
      %v2915 = vlaneseq
      %v2916 = vshrl.u32 %v2915, 7
      %v2917 = vsub.s32 0, %v2916
      %v2918 = vrot.slane %v2913, %v2917
      %v2920 = vadd.f32 %v2911, %v2918
      %s2921 = sadd.s32 %s36, 4
      %s2922 = smul.u32 %s2921, 16
      %s2923 = scalar_lea.vmem %s1, %s2922
      %v2924 = vld [vmem:[%s2923] sm:$0xff]
      %v2925 = vld [vmem:[%s2923 + $0x8] sm:$0x3]
      %s2926 = scalar_lea.vmem %s2, %s2921
      %v2927 = vld [vmem:[%s2926] sm:$0x1]
      %v2929 = vlaneseq
      %v2930 = vshrl.u32 %v2929, 7
      %v2931 = vsub.s32 0, %v2930
      %v2932 = vrot.slane %v2927, %v2931
      %v2935 = vsel %vm762, %v2925, 0
      %2937 = vmatprep.subr.mxu0 0.0
      %2938 = vmatpush1.msra.mxu0 %v2924
      %2939 = vmatprep.subr.mxu0 0.0
      %2940 = vmatpush1.msra.mxu0 %v2935
      %2941 = vmatprep.subr.mxu0 0.0
      %2942 = vmatpush1.msra.mxu0 0.0
      %2943 = vmatprep.subr.mxu0 0.0
      %2944 = vmatpush1.msra.mxu0 0.0
      %2945 = vmatprep.subr.mxu0 0.0
      %2946 = vmatpush1.msra.mxu0 0.0
      %2947 = vmatprep.subr.mxu0 0.0
      %2948 = vmatpush1.msra.mxu0 0.0
      %2949 = vmatprep.subr.mxu0 0.0
      %2950 = vmatpush1.msra.mxu0 0.0
      %2951 = vmatprep.subr.mxu0 0.0
      %2952 = vmatpush1.msra.mxu0 0.0
      %2953 = vmatprep.subr.mxu0 0.0
      %2954 = vmatpush1.msra.mxu0 0.0
      %2955 = vmatprep.subr.mxu0 0.0
      %2956 = vmatpush1.msra.mxu0 0.0
      %2957 = vmatprep.subr.mxu0 0.0
      %2958 = vmatpush1.msra.mxu0 0.0
      %2959 = vmatprep.subr.mxu0 0.0
      %2960 = vmatpush1.msra.mxu0 0.0
      %2961 = vmatprep.subr.mxu0 0.0
      %2962 = vmatpush1.msra.mxu0 0.0
      %2963 = vmatprep.subr.mxu0 0.0
      %2964 = vmatpush1.msra.mxu0 0.0
      %2965 = vmatprep.subr.mxu0 0.0
      %2966 = vmatpush1.msra.mxu0 0.0
      %2967 = vmatprep.subr.mxu0 0.0
      %2968 = vmatpush1.msra.mxu0 0.0
      %2969 = vmatprep.subr.mxu0 0.0
      %2970 = vmatpush1.msra.mxu0 0.0
      %2971 = vmatprep.subr.mxu0 0.0
      %2972 = vmatpush1.msra.mxu0 0.0
      %2973 = vmatprep.subr.mxu0 0.0
      %2974 = vmatpush1.msra.mxu0 0.0
      %2975 = vmatprep.subr.mxu0 0.0
      %2976 = vmatpush1.msra.mxu0 0.0
      %2977 = vmatprep.subr.mxu0 0.0
      %2978 = vmatpush1.msra.mxu0 0.0
      %2979 = vmatprep.subr.mxu0 0.0
      %2980 = vmatpush1.msra.mxu0 0.0
      %2981 = vmatprep.subr.mxu0 0.0
      %2982 = vmatpush1.msra.mxu0 0.0
      %2983 = vmatprep.subr.mxu0 0.0
      %2984 = vmatpush1.msra.mxu0 0.0
      %2985 = vmatprep.subr.mxu0 0.0
      %2986 = vmatpush1.msra.mxu0 0.0
      %2987 = vmatprep.subr.mxu0 0.0
      %2988 = vmatpush1.msra.mxu0 0.0
      %2989 = vmatprep.subr.mxu0 0.0
      %2990 = vmatpush1.msra.mxu0 0.0
      %2991 = vmatprep.subr.mxu0 0.0
      %2992 = vmatpush1.msra.mxu0 0.0
      %2993 = vmatprep.subr.mxu0 0.0
      %2994 = vmatpush1.msra.mxu0 0.0
      %2995 = vmatprep.subr.mxu0 0.0
      %2996 = vmatpush1.msra.mxu0 0.0
      %2997 = vmatprep.subr.mxu0 0.0
      %2998 = vmatpush1.msra.mxu0 0.0
      %2999 = vmatprep.subr.mxu0 0.0
      %3000 = vmatpush1.msra.mxu0 0.0
      %3001 = vmatprep.mubr.f32.mxu0 0.0
      %3002 = vmatmul.mubr.f32.gmra.mrb[0].mxu0 %v760
      %v3003 = vpop.f32.mrb[0].mxu0
      %v3004 = vadd.f32 %v2932, %v3003
      %v3005 = vpop.f32.mrb[0].mxu0
      %3006 = vdwg.mxu0
      %s3007 = scalar_lea.vmem %s3, %s2921
      %v3008 = vld [vmem:[%s3007] sm:$0x1]
      %s3009 = scalar_lea.vmem %s4, %s2921
      %v3010 = vld [vmem:[%s3009] sm:$0x1]
      %v3011 = vsel %vm840, %v3004, 0.0
      %3012 = vadd.xlane.f32.xlu0 %v3011
      %v3013 = vpop.xlane.xlu0 %3012
      %v3014 = vmul.f32 %v3013, 0.010416667
      %v3015 = vmul.f32 %v3004, %v3004
      %v3016 = vsel %vm840, %v3015, 0.0
      %3017 = vadd.xlane.f32.xlu0 %v3016
      %v3018 = vpop.xlane.xlu0 %3017
      %v3019 = vmul.f32 %v3018, 0.010416667
      %v3020 = vmul.f32 %v3014, %v3014
      %v3021 = vsub.f32 %v3019, %v3020
      %v3022 = vmax.f32 %v3021, 0.0
      %v3023 = vsub.f32 %v3004, %v3014
      %v3024 = vadd.f32 %v3022, 1e-05
      %v3025 = vrsqrt.pop %v3024
      %v3026 = vmul.f32 %v3023, %v3025
      %v3028 = vlaneseq
      %v3029 = vshrl.u32 %v3028, 7
      %v3030 = vsub.s32 0, %v3029
      %v3031 = vrot.slane %v3008, %v3030
      %v3033 = vmul.f32 %v3026, %v3031
      %v3035 = vlaneseq
      %v3036 = vshrl.u32 %v3035, 7
      %v3037 = vsub.s32 0, %v3036
      %v3038 = vrot.slane %v3010, %v3037
      %v3040 = vadd.f32 %v3033, %v3038
      %v3041 = vmax.f32 %v3040, 0.0
      %s3042 = smul.u32 %s2921, 4
      %s3043 = smul.u32 %s3042, 96
      %s3044 = scalar_lea.vmem %s5, %s3043
      %v3045 = vld [vmem:[%s3044] sm:$0xff]
      %v3046 = vld [vmem:[%s3044 + $0x8] sm:$0xff]
      %v3047 = vld [vmem:[%s3044 + $0x10] sm:$0xff]
      %v3048 = vld [vmem:[%s3044 + $0x18] sm:$0xff]
      %v3049 = vld [vmem:[%s3044 + $0x20] sm:$0xff]
      %v3050 = vld [vmem:[%s3044 + $0x28] sm:$0xff]
      %v3051 = vld [vmem:[%s3044 + $0x30] sm:$0xff]
      %v3052 = vld [vmem:[%s3044 + $0x38] sm:$0xff]
      %v3053 = vld [vmem:[%s3044 + $0x40] sm:$0xff]
      %v3054 = vld [vmem:[%s3044 + $0x48] sm:$0xff]
      %v3055 = vld [vmem:[%s3044 + $0x50] sm:$0xff]
      %v3056 = vld [vmem:[%s3044 + $0x58] sm:$0xff]
      %s3057 = scalar_lea.vmem %s6, %s3042
      %v3058 = vld [vmem:[%s3057] sm:$0x1]
      %v3060 = vlaneseq
      %v3061 = vshrl.u32 %v3060, 7
      %v3062 = vsub.s32 0, %v3061
      %v3063 = vrot.slane %v3058, %v3062
      %v3066 = vsel %vm840, %v3041, 0
      %3068 = vmatprep.subr.mxu0 0.0
      %3069 = vmatpush1.msra.mxu0 %v3045
      %3070 = vmatprep.subr.mxu0 0.0
      %3071 = vmatpush1.msra.mxu0 %v3046
      %3072 = vmatprep.subr.mxu0 0.0
      %3073 = vmatpush1.msra.mxu0 %v3047
      %3074 = vmatprep.subr.mxu0 0.0
      %3075 = vmatpush1.msra.mxu0 %v3048
      %3076 = vmatprep.subr.mxu0 0.0
      %3077 = vmatpush1.msra.mxu0 %v3049
      %3078 = vmatprep.subr.mxu0 0.0
      %3079 = vmatpush1.msra.mxu0 %v3050
      %3080 = vmatprep.subr.mxu0 0.0
      %3081 = vmatpush1.msra.mxu0 %v3051
      %3082 = vmatprep.subr.mxu0 0.0
      %3083 = vmatpush1.msra.mxu0 %v3052
      %3084 = vmatprep.subr.mxu0 0.0
      %3085 = vmatpush1.msra.mxu0 %v3053
      %3086 = vmatprep.subr.mxu0 0.0
      %3087 = vmatpush1.msra.mxu0 %v3054
      %3088 = vmatprep.subr.mxu0 0.0
      %3089 = vmatpush1.msra.mxu0 %v3055
      %3090 = vmatprep.subr.mxu0 0.0
      %3091 = vmatpush1.msra.mxu0 %v3056
      %3092 = vmatprep.subr.mxu0 0.0
      %3093 = vmatpush1.msra.mxu0 0.0
      %3094 = vmatprep.subr.mxu0 0.0
      %3095 = vmatpush1.msra.mxu0 0.0
      %3096 = vmatprep.subr.mxu0 0.0
      %3097 = vmatpush1.msra.mxu0 0.0
      %3098 = vmatprep.subr.mxu0 0.0
      %3099 = vmatpush1.msra.mxu0 0.0
      %3100 = vmatprep.subr.mxu0 0.0
      %3101 = vmatpush1.msra.mxu0 0.0
      %3102 = vmatprep.subr.mxu0 0.0
      %3103 = vmatpush1.msra.mxu0 0.0
      %3104 = vmatprep.subr.mxu0 0.0
      %3105 = vmatpush1.msra.mxu0 0.0
      %3106 = vmatprep.subr.mxu0 0.0
      %3107 = vmatpush1.msra.mxu0 0.0
      %3108 = vmatprep.subr.mxu0 0.0
      %3109 = vmatpush1.msra.mxu0 0.0
      %3110 = vmatprep.subr.mxu0 0.0
      %3111 = vmatpush1.msra.mxu0 0.0
      %3112 = vmatprep.subr.mxu0 0.0
      %3113 = vmatpush1.msra.mxu0 0.0
      %3114 = vmatprep.subr.mxu0 0.0
      %3115 = vmatpush1.msra.mxu0 0.0
      %3116 = vmatprep.subr.mxu0 0.0
      %3117 = vmatpush1.msra.mxu0 0.0
      %3118 = vmatprep.subr.mxu0 0.0
      %3119 = vmatpush1.msra.mxu0 0.0
      %3120 = vmatprep.subr.mxu0 0.0
      %3121 = vmatpush1.msra.mxu0 0.0
      %3122 = vmatprep.subr.mxu0 0.0
      %3123 = vmatpush1.msra.mxu0 0.0
      %3124 = vmatprep.subr.mxu0 0.0
      %3125 = vmatpush1.msra.mxu0 0.0
      %3126 = vmatprep.subr.mxu0 0.0
      %3127 = vmatpush1.msra.mxu0 0.0
      %3128 = vmatprep.subr.mxu0 0.0
      %3129 = vmatpush1.msra.mxu0 0.0
      %3130 = vmatprep.subr.mxu0 0.0
      %3131 = vmatpush1.msra.mxu0 0.0
      %3132 = vmatprep.mubr.f32.mxu0 0.0
      %3133 = vmatmul.mubr.f32.gmra.mrb[0].mxu0 %v3066
      %v3134 = vpop.f32.mrb[0].mxu0
      %v3135 = vadd.f32 %v3063, %v3134
      %v3136 = vpop.f32.mrb[0].mxu0
      %3137 = vdwg.mxu0
      %s3138 = scalar_lea.vmem %s7, %s3042
      %v3139 = vld [vmem:[%s3138] sm:$0x1]
      %s3140 = scalar_lea.vmem %s8, %s3042
      %v3141 = vld [vmem:[%s3140] sm:$0x1]
      %v3142 = vsel %vm840, %v3135, 0.0
      %3143 = vadd.xlane.f32.xlu0 %v3142
      %v3144 = vpop.xlane.xlu0 %3143
      %v3145 = vmul.f32 %v3144, 0.010416667
      %v3146 = vmul.f32 %v3135, %v3135
      %v3147 = vsel %vm840, %v3146, 0.0
      %3148 = vadd.xlane.f32.xlu0 %v3147
      %v3149 = vpop.xlane.xlu0 %3148
      %v3150 = vmul.f32 %v3149, 0.010416667
      %v3151 = vmul.f32 %v3145, %v3145
      %v3152 = vsub.f32 %v3150, %v3151
      %v3153 = vmax.f32 %v3152, 0.0
      %v3154 = vsub.f32 %v3135, %v3145
      %v3155 = vadd.f32 %v3153, 1e-05
      %v3156 = vrsqrt.pop %v3155
      %v3157 = vmul.f32 %v3154, %v3156
      %v3159 = vlaneseq
      %v3160 = vshrl.u32 %v3159, 7
      %v3161 = vsub.s32 0, %v3160
      %v3162 = vrot.slane %v3139, %v3161
      %v3164 = vmul.f32 %v3157, %v3162
      %v3166 = vlaneseq
      %v3167 = vshrl.u32 %v3166, 7
      %v3168 = vsub.s32 0, %v3167
      %v3169 = vrot.slane %v3141, %v3168
      %v3171 = vadd.f32 %v3164, %v3169
      %v3172 = vmax.f32 %v3171, 0.0
      %s3173 = smul.u32 %s3042, 24
      %s3174 = smul.addr %s3173, 8
      %s3175 = scalar_lea.vmem %s9, %s3174
      %v3176 = vld [vmem:[%s3175] sm:$0xff]
      %v3177 = vld [vmem:[%s3175 + $0x8] sm:$0xff]
      %v3178 = vld [vmem:[%s3175 + $0x10] sm:$0xff]
      %v3179 = vld [vmem:[%s3175 + $0x18] sm:$0xff]
      %v3180 = vld [vmem:[%s3175 + $0x20] sm:$0xff]
      %v3181 = vld [vmem:[%s3175 + $0x28] sm:$0xff]
      %v3182 = vld [vmem:[%s3175 + $0x30] sm:$0xff]
      %v3183 = vld [vmem:[%s3175 + $0x38] sm:$0xff]
      %v3184 = vld [vmem:[%s3175 + $0x40] sm:$0xff]
      %v3185 = vld [vmem:[%s3175 + $0x48] sm:$0xff]
      %v3186 = vld [vmem:[%s3175 + $0x50] sm:$0xff]
      %v3187 = vld [vmem:[%s3175 + $0x58] sm:$0xff]
      %v3188 = vld [vmem:[%s3175 + $0x60] sm:$0xff]
      %v3189 = vld [vmem:[%s3175 + $0x68] sm:$0xff]
      %v3190 = vld [vmem:[%s3175 + $0x70] sm:$0xff]
      %v3191 = vld [vmem:[%s3175 + $0x78] sm:$0xff]
      %v3192 = vld [vmem:[%s3175 + $0x80] sm:$0xff]
      %v3193 = vld [vmem:[%s3175 + $0x88] sm:$0xff]
      %v3194 = vld [vmem:[%s3175 + $0x90] sm:$0xff]
      %v3195 = vld [vmem:[%s3175 + $0x98] sm:$0xff]
      %v3196 = vld [vmem:[%s3175 + $0xa0] sm:$0xff]
      %v3197 = vld [vmem:[%s3175 + $0xa8] sm:$0xff]
      %v3198 = vld [vmem:[%s3175 + $0xb0] sm:$0xff]
      %v3199 = vld [vmem:[%s3175 + $0xb8] sm:$0xff]
      %s3200 = smul.u32 %s3042, 2
      %s3201 = scalar_lea.vmem %s10, %s3200
      %v3202 = vld [vmem:[%s3201] sm:$0x3]
      %v3204 = vlaneseq
      %v3205 = vshrl.u32 %v3204, 7
      %v3206 = vsub.s32 0, %v3205
      %v3207 = vrot.slane %v3202, %v3206
      %v3208 = vlaneseq
      %v3209 = vshrl.u32 %v3208, 7
      %v3210 = vsub.s32 1, %v3209
      %v3211 = vrot.slane %v3202, %v3210
      %v3215 = vsel %vm840, %v3172, 0
      %3217 = vmatprep.subr.mxu0 %v3177
      %3218 = vmatpush1.msra.mxu0 %v3176
      %3219 = vmatprep.subr.mxu0 %v3179
      %3220 = vmatpush1.msra.mxu0 %v3178
      %3221 = vmatprep.subr.mxu0 %v3181
      %3222 = vmatpush1.msra.mxu0 %v3180
      %3223 = vmatprep.subr.mxu0 %v3183
      %3224 = vmatpush1.msra.mxu0 %v3182
      %3225 = vmatprep.subr.mxu0 %v3185
      %3226 = vmatpush1.msra.mxu0 %v3184
      %3227 = vmatprep.subr.mxu0 %v3187
      %3228 = vmatpush1.msra.mxu0 %v3186
      %3229 = vmatprep.subr.mxu0 %v3189
      %3230 = vmatpush1.msra.mxu0 %v3188
      %3231 = vmatprep.subr.mxu0 %v3191
      %3232 = vmatpush1.msra.mxu0 %v3190
      %3233 = vmatprep.subr.mxu0 %v3193
      %3234 = vmatpush1.msra.mxu0 %v3192
      %3235 = vmatprep.subr.mxu0 %v3195
      %3236 = vmatpush1.msra.mxu0 %v3194
      %3237 = vmatprep.subr.mxu0 %v3197
      %3238 = vmatpush1.msra.mxu0 %v3196
      %3239 = vmatprep.subr.mxu0 %v3199
      %3240 = vmatpush1.msra.mxu0 %v3198
      %3241 = vmatprep.subr.mxu0 0.0
      %3242 = vmatpush1.msra.mxu0 0.0
      %3243 = vmatprep.subr.mxu0 0.0
      %3244 = vmatpush1.msra.mxu0 0.0
      %3245 = vmatprep.subr.mxu0 0.0
      %3246 = vmatpush1.msra.mxu0 0.0
      %3247 = vmatprep.subr.mxu0 0.0
      %3248 = vmatpush1.msra.mxu0 0.0
      %3249 = vmatprep.subr.mxu0 0.0
      %3250 = vmatpush1.msra.mxu0 0.0
      %3251 = vmatprep.subr.mxu0 0.0
      %3252 = vmatpush1.msra.mxu0 0.0
      %3253 = vmatprep.subr.mxu0 0.0
      %3254 = vmatpush1.msra.mxu0 0.0
      %3255 = vmatprep.subr.mxu0 0.0
      %3256 = vmatpush1.msra.mxu0 0.0
      %3257 = vmatprep.subr.mxu0 0.0
      %3258 = vmatpush1.msra.mxu0 0.0
      %3259 = vmatprep.subr.mxu0 0.0
      %3260 = vmatpush1.msra.mxu0 0.0
      %3261 = vmatprep.subr.mxu0 0.0
      %3262 = vmatpush1.msra.mxu0 0.0
      %3263 = vmatprep.subr.mxu0 0.0
      %3264 = vmatpush1.msra.mxu0 0.0
      %3265 = vmatprep.subr.mxu0 0.0
      %3266 = vmatpush1.msra.mxu0 0.0
      %3267 = vmatprep.subr.mxu0 0.0
      %3268 = vmatpush1.msra.mxu0 0.0
      %3269 = vmatprep.subr.mxu0 0.0
      %3270 = vmatpush1.msra.mxu0 0.0
      %3271 = vmatprep.subr.mxu0 0.0
      %3272 = vmatpush1.msra.mxu0 0.0
      %3273 = vmatprep.subr.mxu0 0.0
      %3274 = vmatpush1.msra.mxu0 0.0
      %3275 = vmatprep.subr.mxu0 0.0
      %3276 = vmatpush1.msra.mxu0 0.0
      %3277 = vmatprep.subr.mxu0 0.0
      %3278 = vmatpush1.msra.mxu0 0.0
      %3279 = vmatprep.subr.mxu0 0.0
      %3280 = vmatpush1.msra.mxu0 0.0
      %3281 = vmatprep.mubr.f32.mxu0 0.0
      %3282 = vmatmul.mubr.f32.gmra.mrb[0].mxu0 %v3215
      %v3283 = vpop.f32.mrb[0].mxu0
      %v3284 = vadd.f32 %v3207, %v3283
      %v3285 = vpop.f32.mrb[0].mxu0
      %v3286 = vadd.f32 %v3211, %v3285
      %3287 = vdwg.mxu0
      %s3288 = scalar_lea.vmem %s11, %s3200
      %v3289 = vld [vmem:[%s3288] sm:$0x3]
      %s3290 = scalar_lea.vmem %s12, %s3200
      %v3291 = vld [vmem:[%s3290] sm:$0x3]
      %v3292 = vsel %vm1122, %v3286, 0.0
      %v3293 = vadd.f32 %v3284, %v3292
      %3294 = vadd.xlane.f32.xlu0 %v3293
      %v3295 = vpop.xlane.xlu0 %3294
      %v3296 = vmul.f32 %v3295, 0.0069444445
      %v3297 = vmul.f32 %v3284, %v3284
      %v3298 = vmul.f32 %v3286, %v3286
      %v3299 = vsel %vm1122, %v3298, 0.0
      %v3300 = vadd.f32 %v3297, %v3299
      %3301 = vadd.xlane.f32.xlu0 %v3300
      %v3302 = vpop.xlane.xlu0 %3301
      %v3303 = vmul.f32 %v3302, 0.0069444445
      %v3304 = vmul.f32 %v3296, %v3296
      %v3305 = vsub.f32 %v3303, %v3304
      %v3306 = vmax.f32 %v3305, 0.0
      %v3307 = vsub.f32 %v3284, %v3296
      %v3308 = vsub.f32 %v3286, %v3296
      %v3309 = vadd.f32 %v3306, 1e-05
      %v3310 = vrsqrt.pop %v3309
      %v3311 = vmul.f32 %v3307, %v3310
      %v3312 = vmul.f32 %v3308, %v3310
      %v3314 = vlaneseq
      %v3315 = vshrl.u32 %v3314, 7
      %v3316 = vsub.s32 0, %v3315
      %v3317 = vrot.slane %v3289, %v3316
      %v3318 = vlaneseq
      %v3319 = vshrl.u32 %v3318, 7
      %v3320 = vsub.s32 1, %v3319
      %v3321 = vrot.slane %v3289, %v3320
      %v3324 = vmul.f32 %v3311, %v3317
      %v3325 = vmul.f32 %v3312, %v3321
      %v3327 = vlaneseq
      %v3328 = vshrl.u32 %v3327, 7
      %v3329 = vsub.s32 0, %v3328
      %v3330 = vrot.slane %v3291, %v3329
      %v3331 = vlaneseq
      %v3332 = vshrl.u32 %v3331, 7
      %v3333 = vsub.s32 1, %v3332
      %v3334 = vrot.slane %v3291, %v3333
      %v3337 = vadd.f32 %v3324, %v3330
      %v3338 = vadd.f32 %v3325, %v3334
      %v3339 = vmax.f32 %v3337, 0.0
      %v3340 = vmax.f32 %v3338, 0.0
      %s3341 = smul.u32 %s3042, 144
      %s3342 = scalar_lea.vmem %s13, %s3341
      %v3343 = vld [vmem:[%s3342] sm:$0xff]
      %v3344 = vld [vmem:[%s3342 + $0x8] sm:$0xff]
      %v3345 = vld [vmem:[%s3342 + $0x10] sm:$0xff]
      %v3346 = vld [vmem:[%s3342 + $0x18] sm:$0xff]
      %v3347 = vld [vmem:[%s3342 + $0x20] sm:$0xff]
      %v3348 = vld [vmem:[%s3342 + $0x28] sm:$0xff]
      %v3349 = vld [vmem:[%s3342 + $0x30] sm:$0xff]
      %v3350 = vld [vmem:[%s3342 + $0x38] sm:$0xff]
      %v3351 = vld [vmem:[%s3342 + $0x40] sm:$0xff]
      %v3352 = vld [vmem:[%s3342 + $0x48] sm:$0xff]
      %v3353 = vld [vmem:[%s3342 + $0x50] sm:$0xff]
      %v3354 = vld [vmem:[%s3342 + $0x58] sm:$0xff]
      %v3355 = vld [vmem:[%s3342 + $0x60] sm:$0xff]
      %v3356 = vld [vmem:[%s3342 + $0x68] sm:$0xff]
      %v3357 = vld [vmem:[%s3342 + $0x70] sm:$0xff]
      %v3358 = vld [vmem:[%s3342 + $0x78] sm:$0xff]
      %v3359 = vld [vmem:[%s3342 + $0x80] sm:$0xff]
      %v3360 = vld [vmem:[%s3342 + $0x88] sm:$0xff]
      %s3361 = scalar_lea.vmem %s14, %s3042
      %v3362 = vld [vmem:[%s3361] sm:$0x1]
      %v3364 = vlaneseq
      %v3365 = vshrl.u32 %v3364, 7
      %v3366 = vsub.s32 0, %v3365
      %v3367 = vrot.slane %v3362, %v3366
      %v3370 = vsel %vm1122, %v3340, 0
      %3372 = vmatprep.subr.mxu0 0.0
      %3373 = vmatpush1.msra.mxu0 %v3343
      %3374 = vmatprep.subr.mxu0 0.0
      %3375 = vmatpush1.msra.mxu0 %v3344
      %3376 = vmatprep.subr.mxu0 0.0
      %3377 = vmatpush1.msra.mxu0 %v3345
      %3378 = vmatprep.subr.mxu0 0.0
      %3379 = vmatpush1.msra.mxu0 %v3346
      %3380 = vmatprep.subr.mxu0 0.0
      %3381 = vmatpush1.msra.mxu0 %v3347
      %3382 = vmatprep.subr.mxu0 0.0
      %3383 = vmatpush1.msra.mxu0 %v3348
      %3384 = vmatprep.subr.mxu0 0.0
      %3385 = vmatpush1.msra.mxu0 %v3349
      %3386 = vmatprep.subr.mxu0 0.0
      %3387 = vmatpush1.msra.mxu0 %v3350
      %3388 = vmatprep.subr.mxu0 0.0
      %3389 = vmatpush1.msra.mxu0 %v3351
      %3390 = vmatprep.subr.mxu0 0.0
      %3391 = vmatpush1.msra.mxu0 %v3352
      %3392 = vmatprep.subr.mxu0 0.0
      %3393 = vmatpush1.msra.mxu0 %v3353
      %3394 = vmatprep.subr.mxu0 0.0
      %3395 = vmatpush1.msra.mxu0 %v3354
      %3396 = vmatprep.subr.mxu0 0.0
      %3397 = vmatpush1.msra.mxu0 %v3355
      %3398 = vmatprep.subr.mxu0 0.0
      %3399 = vmatpush1.msra.mxu0 %v3356
      %3400 = vmatprep.subr.mxu0 0.0
      %3401 = vmatpush1.msra.mxu0 %v3357
      %3402 = vmatprep.subr.mxu0 0.0
      %3403 = vmatpush1.msra.mxu0 %v3358
      %3404 = vmatprep.subr.mxu0 0.0
      %3405 = vmatpush1.msra.mxu0 %v3359
      %3406 = vmatprep.subr.mxu0 0.0
      %3407 = vmatpush1.msra.mxu0 %v3360
      %3408 = vmatprep.subr.mxu0 0.0
      %3409 = vmatpush1.msra.mxu0 0.0
      %3410 = vmatprep.subr.mxu0 0.0
      %3411 = vmatpush1.msra.mxu0 0.0
      %3412 = vmatprep.subr.mxu0 0.0
      %3413 = vmatpush1.msra.mxu0 0.0
      %3414 = vmatprep.subr.mxu0 0.0
      %3415 = vmatpush1.msra.mxu0 0.0
      %3416 = vmatprep.subr.mxu0 0.0
      %3417 = vmatpush1.msra.mxu0 0.0
      %3418 = vmatprep.subr.mxu0 0.0
      %3419 = vmatpush1.msra.mxu0 0.0
      %3420 = vmatprep.subr.mxu0 0.0
      %3421 = vmatpush1.msra.mxu0 0.0
      %3422 = vmatprep.subr.mxu0 0.0
      %3423 = vmatpush1.msra.mxu0 0.0
      %3424 = vmatprep.subr.mxu0 0.0
      %3425 = vmatpush1.msra.mxu0 0.0
      %3426 = vmatprep.subr.mxu0 0.0
      %3427 = vmatpush1.msra.mxu0 0.0
      %3428 = vmatprep.subr.mxu0 0.0
      %3429 = vmatpush1.msra.mxu0 0.0
      %3430 = vmatprep.subr.mxu0 0.0
      %3431 = vmatpush1.msra.mxu0 0.0
      %3432 = vmatprep.subr.mxu0 0.0
      %3433 = vmatpush1.msra.mxu0 0.0
      %3434 = vmatprep.subr.mxu0 0.0
      %3435 = vmatpush1.msra.mxu0 0.0
      %3436 = vmatprep.mubr.f32.mxu0 %v3370
      %3437 = vmatmul.mubr.f32.gmra.mrb[0].mxu0 %v3339
      %v3438 = vpop.f32.mrb[0].mxu0
      %v3439 = vadd.f32 %v3367, %v3438
      %v3440 = vpop.f32.mrb[0].mxu0
      %3441 = vdwg.mxu0
      %s3442 = scalar_lea.vmem %s15, %s3042
      %v3443 = vld [vmem:[%s3442] sm:$0x1]
      %s3444 = scalar_lea.vmem %s16, %s3042
      %v3445 = vld [vmem:[%s3444] sm:$0x1]
      %v3446 = vsel %vm840, %v3439, 0.0
      %3447 = vadd.xlane.f32.xlu0 %v3446
      %v3448 = vpop.xlane.xlu0 %3447
      %v3449 = vmul.f32 %v3448, 0.010416667
      %v3450 = vmul.f32 %v3439, %v3439
      %v3451 = vsel %vm840, %v3450, 0.0
      %3452 = vadd.xlane.f32.xlu0 %v3451
      %v3453 = vpop.xlane.xlu0 %3452
      %v3454 = vmul.f32 %v3453, 0.010416667
      %v3455 = vmul.f32 %v3449, %v3449
      %v3456 = vsub.f32 %v3454, %v3455
      %v3457 = vmax.f32 %v3456, 0.0
      %v3458 = vsub.f32 %v3439, %v3449
      %v3459 = vadd.f32 %v3457, 1e-05
      %v3460 = vrsqrt.pop %v3459
      %v3461 = vmul.f32 %v3458, %v3460
      %v3463 = vlaneseq
      %v3464 = vshrl.u32 %v3463, 7
      %v3465 = vsub.s32 0, %v3464
      %v3466 = vrot.slane %v3443, %v3465
      %v3468 = vmul.f32 %v3461, %v3466
      %v3470 = vlaneseq
      %v3471 = vshrl.u32 %v3470, 7
      %v3472 = vsub.s32 0, %v3471
      %v3473 = vrot.slane %v3445, %v3472
      %v3475 = vadd.f32 %v3468, %v3473
      %v3476 = vadd.f32 %v3041, %v3475
      %v3477 = vmax.f32 %v3476, 0.0
      %s3478 = sadd.s32 %s3042, 1
      %s3479 = smul.u32 %s3478, 96
      %s3480 = scalar_lea.vmem %s5, %s3479
      %v3481 = vld [vmem:[%s3480] sm:$0xff]
      %v3482 = vld [vmem:[%s3480 + $0x8] sm:$0xff]
      %v3483 = vld [vmem:[%s3480 + $0x10] sm:$0xff]
      %v3484 = vld [vmem:[%s3480 + $0x18] sm:$0xff]
      %v3485 = vld [vmem:[%s3480 + $0x20] sm:$0xff]
      %v3486 = vld [vmem:[%s3480 + $0x28] sm:$0xff]
      %v3487 = vld [vmem:[%s3480 + $0x30] sm:$0xff]
      %v3488 = vld [vmem:[%s3480 + $0x38] sm:$0xff]
      %v3489 = vld [vmem:[%s3480 + $0x40] sm:$0xff]
      %v3490 = vld [vmem:[%s3480 + $0x48] sm:$0xff]
      %v3491 = vld [vmem:[%s3480 + $0x50] sm:$0xff]
      %v3492 = vld [vmem:[%s3480 + $0x58] sm:$0xff]
      %s3493 = scalar_lea.vmem %s6, %s3478
      %v3494 = vld [vmem:[%s3493] sm:$0x1]
      %v3496 = vlaneseq
      %v3497 = vshrl.u32 %v3496, 7
      %v3498 = vsub.s32 0, %v3497
      %v3499 = vrot.slane %v3494, %v3498
      %v3502 = vsel %vm840, %v3477, 0
      %3504 = vmatprep.subr.mxu0 0.0
      %3505 = vmatpush1.msra.mxu0 %v3481
      %3506 = vmatprep.subr.mxu0 0.0
      %3507 = vmatpush1.msra.mxu0 %v3482
      %3508 = vmatprep.subr.mxu0 0.0
      %3509 = vmatpush1.msra.mxu0 %v3483
      %3510 = vmatprep.subr.mxu0 0.0
      %3511 = vmatpush1.msra.mxu0 %v3484
      %3512 = vmatprep.subr.mxu0 0.0
      %3513 = vmatpush1.msra.mxu0 %v3485
      %3514 = vmatprep.subr.mxu0 0.0
      %3515 = vmatpush1.msra.mxu0 %v3486
      %3516 = vmatprep.subr.mxu0 0.0
      %3517 = vmatpush1.msra.mxu0 %v3487
      %3518 = vmatprep.subr.mxu0 0.0
      %3519 = vmatpush1.msra.mxu0 %v3488
      %3520 = vmatprep.subr.mxu0 0.0
      %3521 = vmatpush1.msra.mxu0 %v3489
      %3522 = vmatprep.subr.mxu0 0.0
      %3523 = vmatpush1.msra.mxu0 %v3490
      %3524 = vmatprep.subr.mxu0 0.0
      %3525 = vmatpush1.msra.mxu0 %v3491
      %3526 = vmatprep.subr.mxu0 0.0
      %3527 = vmatpush1.msra.mxu0 %v3492
      %3528 = vmatprep.subr.mxu0 0.0
      %3529 = vmatpush1.msra.mxu0 0.0
      %3530 = vmatprep.subr.mxu0 0.0
      %3531 = vmatpush1.msra.mxu0 0.0
      %3532 = vmatprep.subr.mxu0 0.0
      %3533 = vmatpush1.msra.mxu0 0.0
      %3534 = vmatprep.subr.mxu0 0.0
      %3535 = vmatpush1.msra.mxu0 0.0
      %3536 = vmatprep.subr.mxu0 0.0
      %3537 = vmatpush1.msra.mxu0 0.0
      %3538 = vmatprep.subr.mxu0 0.0
      %3539 = vmatpush1.msra.mxu0 0.0
      %3540 = vmatprep.subr.mxu0 0.0
      %3541 = vmatpush1.msra.mxu0 0.0
      %3542 = vmatprep.subr.mxu0 0.0
      %3543 = vmatpush1.msra.mxu0 0.0
      %3544 = vmatprep.subr.mxu0 0.0
      %3545 = vmatpush1.msra.mxu0 0.0
      %3546 = vmatprep.subr.mxu0 0.0
      %3547 = vmatpush1.msra.mxu0 0.0
      %3548 = vmatprep.subr.mxu0 0.0
      %3549 = vmatpush1.msra.mxu0 0.0
      %3550 = vmatprep.subr.mxu0 0.0
      %3551 = vmatpush1.msra.mxu0 0.0
      %3552 = vmatprep.subr.mxu0 0.0
      %3553 = vmatpush1.msra.mxu0 0.0
      %3554 = vmatprep.subr.mxu0 0.0
      %3555 = vmatpush1.msra.mxu0 0.0
      %3556 = vmatprep.subr.mxu0 0.0
      %3557 = vmatpush1.msra.mxu0 0.0
      %3558 = vmatprep.subr.mxu0 0.0
      %3559 = vmatpush1.msra.mxu0 0.0
      %3560 = vmatprep.subr.mxu0 0.0
      %3561 = vmatpush1.msra.mxu0 0.0
      %3562 = vmatprep.subr.mxu0 0.0
      %3563 = vmatpush1.msra.mxu0 0.0
      %3564 = vmatprep.subr.mxu0 0.0
      %3565 = vmatpush1.msra.mxu0 0.0
      %3566 = vmatprep.subr.mxu0 0.0
      %3567 = vmatpush1.msra.mxu0 0.0
      %3568 = vmatprep.mubr.f32.mxu0 0.0
      %3569 = vmatmul.mubr.f32.gmra.mrb[0].mxu0 %v3502
      %v3570 = vpop.f32.mrb[0].mxu0
      %v3571 = vadd.f32 %v3499, %v3570
      %v3572 = vpop.f32.mrb[0].mxu0
      %3573 = vdwg.mxu0
      %s3574 = scalar_lea.vmem %s7, %s3478
      %v3575 = vld [vmem:[%s3574] sm:$0x1]
      %s3576 = scalar_lea.vmem %s8, %s3478
      %v3577 = vld [vmem:[%s3576] sm:$0x1]
      %v3578 = vsel %vm840, %v3571, 0.0
      %3579 = vadd.xlane.f32.xlu0 %v3578
      %v3580 = vpop.xlane.xlu0 %3579
      %v3581 = vmul.f32 %v3580, 0.010416667
      %v3582 = vmul.f32 %v3571, %v3571
      %v3583 = vsel %vm840, %v3582, 0.0
      %3584 = vadd.xlane.f32.xlu0 %v3583
      %v3585 = vpop.xlane.xlu0 %3584
      %v3586 = vmul.f32 %v3585, 0.010416667
      %v3587 = vmul.f32 %v3581, %v3581
      %v3588 = vsub.f32 %v3586, %v3587
      %v3589 = vmax.f32 %v3588, 0.0
      %v3590 = vsub.f32 %v3571, %v3581
      %v3591 = vadd.f32 %v3589, 1e-05
      %v3592 = vrsqrt.pop %v3591
      %v3593 = vmul.f32 %v3590, %v3592
      %v3595 = vlaneseq
      %v3596 = vshrl.u32 %v3595, 7
      %v3597 = vsub.s32 0, %v3596
      %v3598 = vrot.slane %v3575, %v3597
      %v3600 = vmul.f32 %v3593, %v3598
      %v3602 = vlaneseq
      %v3603 = vshrl.u32 %v3602, 7
      %v3604 = vsub.s32 0, %v3603
      %v3605 = vrot.slane %v3577, %v3604
      %v3607 = vadd.f32 %v3600, %v3605
      %v3608 = vmax.f32 %v3607, 0.0
      %s3609 = smul.u32 %s3478, 24
      %s3610 = smul.addr %s3609, 8
      %s3611 = scalar_lea.vmem %s9, %s3610
      %v3612 = vld [vmem:[%s3611] sm:$0xff]
      %v3613 = vld [vmem:[%s3611 + $0x8] sm:$0xff]
      %v3614 = vld [vmem:[%s3611 + $0x10] sm:$0xff]
      %v3615 = vld [vmem:[%s3611 + $0x18] sm:$0xff]
      %v3616 = vld [vmem:[%s3611 + $0x20] sm:$0xff]
      %v3617 = vld [vmem:[%s3611 + $0x28] sm:$0xff]
      %v3618 = vld [vmem:[%s3611 + $0x30] sm:$0xff]
      %v3619 = vld [vmem:[%s3611 + $0x38] sm:$0xff]
      %v3620 = vld [vmem:[%s3611 + $0x40] sm:$0xff]
      %v3621 = vld [vmem:[%s3611 + $0x48] sm:$0xff]
      %v3622 = vld [vmem:[%s3611 + $0x50] sm:$0xff]
      %v3623 = vld [vmem:[%s3611 + $0x58] sm:$0xff]
      %v3624 = vld [vmem:[%s3611 + $0x60] sm:$0xff]
      %v3625 = vld [vmem:[%s3611 + $0x68] sm:$0xff]
      %v3626 = vld [vmem:[%s3611 + $0x70] sm:$0xff]
      %v3627 = vld [vmem:[%s3611 + $0x78] sm:$0xff]
      %v3628 = vld [vmem:[%s3611 + $0x80] sm:$0xff]
      %v3629 = vld [vmem:[%s3611 + $0x88] sm:$0xff]
      %v3630 = vld [vmem:[%s3611 + $0x90] sm:$0xff]
      %v3631 = vld [vmem:[%s3611 + $0x98] sm:$0xff]
      %v3632 = vld [vmem:[%s3611 + $0xa0] sm:$0xff]
      %v3633 = vld [vmem:[%s3611 + $0xa8] sm:$0xff]
      %v3634 = vld [vmem:[%s3611 + $0xb0] sm:$0xff]
      %v3635 = vld [vmem:[%s3611 + $0xb8] sm:$0xff]
      %s3636 = smul.u32 %s3478, 2
      %s3637 = scalar_lea.vmem %s10, %s3636
      %v3638 = vld [vmem:[%s3637] sm:$0x3]
      %v3640 = vlaneseq
      %v3641 = vshrl.u32 %v3640, 7
      %v3642 = vsub.s32 0, %v3641
      %v3643 = vrot.slane %v3638, %v3642
      %v3644 = vlaneseq
      %v3645 = vshrl.u32 %v3644, 7
      %v3646 = vsub.s32 1, %v3645
      %v3647 = vrot.slane %v3638, %v3646
      %v3651 = vsel %vm840, %v3608, 0
      %3653 = vmatprep.subr.mxu0 %v3613
      %3654 = vmatpush1.msra.mxu0 %v3612
      %3655 = vmatprep.subr.mxu0 %v3615
      %3656 = vmatpush1.msra.mxu0 %v3614
      %3657 = vmatprep.subr.mxu0 %v3617
      %3658 = vmatpush1.msra.mxu0 %v3616
      %3659 = vmatprep.subr.mxu0 %v3619
      %3660 = vmatpush1.msra.mxu0 %v3618
      %3661 = vmatprep.subr.mxu0 %v3621
      %3662 = vmatpush1.msra.mxu0 %v3620
      %3663 = vmatprep.subr.mxu0 %v3623
      %3664 = vmatpush1.msra.mxu0 %v3622
      %3665 = vmatprep.subr.mxu0 %v3625
      %3666 = vmatpush1.msra.mxu0 %v3624
      %3667 = vmatprep.subr.mxu0 %v3627
      %3668 = vmatpush1.msra.mxu0 %v3626
      %3669 = vmatprep.subr.mxu0 %v3629
      %3670 = vmatpush1.msra.mxu0 %v3628
      %3671 = vmatprep.subr.mxu0 %v3631
      %3672 = vmatpush1.msra.mxu0 %v3630
      %3673 = vmatprep.subr.mxu0 %v3633
      %3674 = vmatpush1.msra.mxu0 %v3632
      %3675 = vmatprep.subr.mxu0 %v3635
      %3676 = vmatpush1.msra.mxu0 %v3634
      %3677 = vmatprep.subr.mxu0 0.0
      %3678 = vmatpush1.msra.mxu0 0.0
      %3679 = vmatprep.subr.mxu0 0.0
      %3680 = vmatpush1.msra.mxu0 0.0
      %3681 = vmatprep.subr.mxu0 0.0
      %3682 = vmatpush1.msra.mxu0 0.0
      %3683 = vmatprep.subr.mxu0 0.0
      %3684 = vmatpush1.msra.mxu0 0.0
      %3685 = vmatprep.subr.mxu0 0.0
      %3686 = vmatpush1.msra.mxu0 0.0
      %3687 = vmatprep.subr.mxu0 0.0
      %3688 = vmatpush1.msra.mxu0 0.0
      %3689 = vmatprep.subr.mxu0 0.0
      %3690 = vmatpush1.msra.mxu0 0.0
      %3691 = vmatprep.subr.mxu0 0.0
      %3692 = vmatpush1.msra.mxu0 0.0
      %3693 = vmatprep.subr.mxu0 0.0
      %3694 = vmatpush1.msra.mxu0 0.0
      %3695 = vmatprep.subr.mxu0 0.0
      %3696 = vmatpush1.msra.mxu0 0.0
      %3697 = vmatprep.subr.mxu0 0.0
      %3698 = vmatpush1.msra.mxu0 0.0
      %3699 = vmatprep.subr.mxu0 0.0
      %3700 = vmatpush1.msra.mxu0 0.0
      %3701 = vmatprep.subr.mxu0 0.0
      %3702 = vmatpush1.msra.mxu0 0.0
      %3703 = vmatprep.subr.mxu0 0.0
      %3704 = vmatpush1.msra.mxu0 0.0
      %3705 = vmatprep.subr.mxu0 0.0
      %3706 = vmatpush1.msra.mxu0 0.0
      %3707 = vmatprep.subr.mxu0 0.0
      %3708 = vmatpush1.msra.mxu0 0.0
      %3709 = vmatprep.subr.mxu0 0.0
      %3710 = vmatpush1.msra.mxu0 0.0
      %3711 = vmatprep.subr.mxu0 0.0
      %3712 = vmatpush1.msra.mxu0 0.0
      %3713 = vmatprep.subr.mxu0 0.0
      %3714 = vmatpush1.msra.mxu0 0.0
      %3715 = vmatprep.subr.mxu0 0.0
      %3716 = vmatpush1.msra.mxu0 0.0
      %3717 = vmatprep.mubr.f32.mxu0 0.0
      %3718 = vmatmul.mubr.f32.gmra.mrb[0].mxu0 %v3651
      %v3719 = vpop.f32.mrb[0].mxu0
      %v3720 = vadd.f32 %v3643, %v3719
      %v3721 = vpop.f32.mrb[0].mxu0
      %v3722 = vadd.f32 %v3647, %v3721
      %3723 = vdwg.mxu0
      %s3724 = scalar_lea.vmem %s11, %s3636
      %v3725 = vld [vmem:[%s3724] sm:$0x3]
      %s3726 = scalar_lea.vmem %s12, %s3636
      %v3727 = vld [vmem:[%s3726] sm:$0x3]
      %v3728 = vsel %vm1122, %v3722, 0.0
      %v3729 = vadd.f32 %v3720, %v3728
      %3730 = vadd.xlane.f32.xlu0 %v3729
      %v3731 = vpop.xlane.xlu0 %3730
      %v3732 = vmul.f32 %v3731, 0.0069444445
      %v3733 = vmul.f32 %v3720, %v3720
      %v3734 = vmul.f32 %v3722, %v3722
      %v3735 = vsel %vm1122, %v3734, 0.0
      %v3736 = vadd.f32 %v3733, %v3735
      %3737 = vadd.xlane.f32.xlu0 %v3736
      %v3738 = vpop.xlane.xlu0 %3737
      %v3739 = vmul.f32 %v3738, 0.0069444445
      %v3740 = vmul.f32 %v3732, %v3732
      %v3741 = vsub.f32 %v3739, %v3740
      %v3742 = vmax.f32 %v3741, 0.0
      %v3743 = vsub.f32 %v3720, %v3732
      %v3744 = vsub.f32 %v3722, %v3732
      %v3745 = vadd.f32 %v3742, 1e-05
      %v3746 = vrsqrt.pop %v3745
      %v3747 = vmul.f32 %v3743, %v3746
      %v3748 = vmul.f32 %v3744, %v3746
      %v3750 = vlaneseq
      %v3751 = vshrl.u32 %v3750, 7
      %v3752 = vsub.s32 0, %v3751
      %v3753 = vrot.slane %v3725, %v3752
      %v3754 = vlaneseq
      %v3755 = vshrl.u32 %v3754, 7
      %v3756 = vsub.s32 1, %v3755
      %v3757 = vrot.slane %v3725, %v3756
      %v3760 = vmul.f32 %v3747, %v3753
      %v3761 = vmul.f32 %v3748, %v3757
      %v3763 = vlaneseq
      %v3764 = vshrl.u32 %v3763, 7
      %v3765 = vsub.s32 0, %v3764
      %v3766 = vrot.slane %v3727, %v3765
      %v3767 = vlaneseq
      %v3768 = vshrl.u32 %v3767, 7
      %v3769 = vsub.s32 1, %v3768
      %v3770 = vrot.slane %v3727, %v3769
      %v3773 = vadd.f32 %v3760, %v3766
      %v3774 = vadd.f32 %v3761, %v3770
      %v3775 = vmax.f32 %v3773, 0.0
      %v3776 = vmax.f32 %v3774, 0.0
      %s3777 = smul.u32 %s3478, 144
      %s3778 = scalar_lea.vmem %s13, %s3777
      %v3779 = vld [vmem:[%s3778] sm:$0xff]
      %v3780 = vld [vmem:[%s3778 + $0x8] sm:$0xff]
      %v3781 = vld [vmem:[%s3778 + $0x10] sm:$0xff]
      %v3782 = vld [vmem:[%s3778 + $0x18] sm:$0xff]
      %v3783 = vld [vmem:[%s3778 + $0x20] sm:$0xff]
      %v3784 = vld [vmem:[%s3778 + $0x28] sm:$0xff]
      %v3785 = vld [vmem:[%s3778 + $0x30] sm:$0xff]
      %v3786 = vld [vmem:[%s3778 + $0x38] sm:$0xff]
      %v3787 = vld [vmem:[%s3778 + $0x40] sm:$0xff]
      %v3788 = vld [vmem:[%s3778 + $0x48] sm:$0xff]
      %v3789 = vld [vmem:[%s3778 + $0x50] sm:$0xff]
      %v3790 = vld [vmem:[%s3778 + $0x58] sm:$0xff]
      %v3791 = vld [vmem:[%s3778 + $0x60] sm:$0xff]
      %v3792 = vld [vmem:[%s3778 + $0x68] sm:$0xff]
      %v3793 = vld [vmem:[%s3778 + $0x70] sm:$0xff]
      %v3794 = vld [vmem:[%s3778 + $0x78] sm:$0xff]
      %v3795 = vld [vmem:[%s3778 + $0x80] sm:$0xff]
      %v3796 = vld [vmem:[%s3778 + $0x88] sm:$0xff]
      %s3797 = scalar_lea.vmem %s14, %s3478
      %v3798 = vld [vmem:[%s3797] sm:$0x1]
      %v3800 = vlaneseq
      %v3801 = vshrl.u32 %v3800, 7
      %v3802 = vsub.s32 0, %v3801
      %v3803 = vrot.slane %v3798, %v3802
      %v3806 = vsel %vm1122, %v3776, 0
      %3808 = vmatprep.subr.mxu0 0.0
      %3809 = vmatpush1.msra.mxu0 %v3779
      %3810 = vmatprep.subr.mxu0 0.0
      %3811 = vmatpush1.msra.mxu0 %v3780
      %3812 = vmatprep.subr.mxu0 0.0
      %3813 = vmatpush1.msra.mxu0 %v3781
      %3814 = vmatprep.subr.mxu0 0.0
      %3815 = vmatpush1.msra.mxu0 %v3782
      %3816 = vmatprep.subr.mxu0 0.0
      %3817 = vmatpush1.msra.mxu0 %v3783
      %3818 = vmatprep.subr.mxu0 0.0
      %3819 = vmatpush1.msra.mxu0 %v3784
      %3820 = vmatprep.subr.mxu0 0.0
      %3821 = vmatpush1.msra.mxu0 %v3785
      %3822 = vmatprep.subr.mxu0 0.0
      %3823 = vmatpush1.msra.mxu0 %v3786
      %3824 = vmatprep.subr.mxu0 0.0
      %3825 = vmatpush1.msra.mxu0 %v3787
      %3826 = vmatprep.subr.mxu0 0.0
      %3827 = vmatpush1.msra.mxu0 %v3788
      %3828 = vmatprep.subr.mxu0 0.0
      %3829 = vmatpush1.msra.mxu0 %v3789
      %3830 = vmatprep.subr.mxu0 0.0
      %3831 = vmatpush1.msra.mxu0 %v3790
      %3832 = vmatprep.subr.mxu0 0.0
      %3833 = vmatpush1.msra.mxu0 %v3791
      %3834 = vmatprep.subr.mxu0 0.0
      %3835 = vmatpush1.msra.mxu0 %v3792
      %3836 = vmatprep.subr.mxu0 0.0
      %3837 = vmatpush1.msra.mxu0 %v3793
      %3838 = vmatprep.subr.mxu0 0.0
      %3839 = vmatpush1.msra.mxu0 %v3794
      %3840 = vmatprep.subr.mxu0 0.0
      %3841 = vmatpush1.msra.mxu0 %v3795
      %3842 = vmatprep.subr.mxu0 0.0
      %3843 = vmatpush1.msra.mxu0 %v3796
      %3844 = vmatprep.subr.mxu0 0.0
      %3845 = vmatpush1.msra.mxu0 0.0
      %3846 = vmatprep.subr.mxu0 0.0
      %3847 = vmatpush1.msra.mxu0 0.0
      %3848 = vmatprep.subr.mxu0 0.0
      %3849 = vmatpush1.msra.mxu0 0.0
      %3850 = vmatprep.subr.mxu0 0.0
      %3851 = vmatpush1.msra.mxu0 0.0
      %3852 = vmatprep.subr.mxu0 0.0
      %3853 = vmatpush1.msra.mxu0 0.0
      %3854 = vmatprep.subr.mxu0 0.0
      %3855 = vmatpush1.msra.mxu0 0.0
      %3856 = vmatprep.subr.mxu0 0.0
      %3857 = vmatpush1.msra.mxu0 0.0
      %3858 = vmatprep.subr.mxu0 0.0
      %3859 = vmatpush1.msra.mxu0 0.0
      %3860 = vmatprep.subr.mxu0 0.0
      %3861 = vmatpush1.msra.mxu0 0.0
      %3862 = vmatprep.subr.mxu0 0.0
      %3863 = vmatpush1.msra.mxu0 0.0
      %3864 = vmatprep.subr.mxu0 0.0
      %3865 = vmatpush1.msra.mxu0 0.0
      %3866 = vmatprep.subr.mxu0 0.0
      %3867 = vmatpush1.msra.mxu0 0.0
      %3868 = vmatprep.subr.mxu0 0.0
      %3869 = vmatpush1.msra.mxu0 0.0
      %3870 = vmatprep.subr.mxu0 0.0
      %3871 = vmatpush1.msra.mxu0 0.0
      %3872 = vmatprep.mubr.f32.mxu0 %v3806
      %3873 = vmatmul.mubr.f32.gmra.mrb[0].mxu0 %v3775
      %v3874 = vpop.f32.mrb[0].mxu0
      %v3875 = vadd.f32 %v3803, %v3874
      %v3876 = vpop.f32.mrb[0].mxu0
      %3877 = vdwg.mxu0
      %s3878 = scalar_lea.vmem %s15, %s3478
      %v3879 = vld [vmem:[%s3878] sm:$0x1]
      %s3880 = scalar_lea.vmem %s16, %s3478
      %v3881 = vld [vmem:[%s3880] sm:$0x1]
      %v3882 = vsel %vm840, %v3875, 0.0
      %3883 = vadd.xlane.f32.xlu0 %v3882
      %v3884 = vpop.xlane.xlu0 %3883
      %v3885 = vmul.f32 %v3884, 0.010416667
      %v3886 = vmul.f32 %v3875, %v3875
      %v3887 = vsel %vm840, %v3886, 0.0
      %3888 = vadd.xlane.f32.xlu0 %v3887
      %v3889 = vpop.xlane.xlu0 %3888
      %v3890 = vmul.f32 %v3889, 0.010416667
      %v3891 = vmul.f32 %v3885, %v3885
      %v3892 = vsub.f32 %v3890, %v3891
      %v3893 = vmax.f32 %v3892, 0.0
      %v3894 = vsub.f32 %v3875, %v3885
      %v3895 = vadd.f32 %v3893, 1e-05
      %v3896 = vrsqrt.pop %v3895
      %v3897 = vmul.f32 %v3894, %v3896
      %v3899 = vlaneseq
      %v3900 = vshrl.u32 %v3899, 7
      %v3901 = vsub.s32 0, %v3900
      %v3902 = vrot.slane %v3879, %v3901
      %v3904 = vmul.f32 %v3897, %v3902
      %v3906 = vlaneseq
      %v3907 = vshrl.u32 %v3906, 7
      %v3908 = vsub.s32 0, %v3907
      %v3909 = vrot.slane %v3881, %v3908
      %v3911 = vadd.f32 %v3904, %v3909
      %v3912 = vadd.f32 %v3477, %v3911
      %v3913 = vmax.f32 %v3912, 0.0
      %s3914 = sadd.s32 %s3042, 2
      %s3915 = smul.u32 %s3914, 96
      %s3916 = scalar_lea.vmem %s5, %s3915
      %v3917 = vld [vmem:[%s3916] sm:$0xff]
      %v3918 = vld [vmem:[%s3916 + $0x8] sm:$0xff]
      %v3919 = vld [vmem:[%s3916 + $0x10] sm:$0xff]
      %v3920 = vld [vmem:[%s3916 + $0x18] sm:$0xff]
      %v3921 = vld [vmem:[%s3916 + $0x20] sm:$0xff]
      %v3922 = vld [vmem:[%s3916 + $0x28] sm:$0xff]
      %v3923 = vld [vmem:[%s3916 + $0x30] sm:$0xff]
      %v3924 = vld [vmem:[%s3916 + $0x38] sm:$0xff]
      %v3925 = vld [vmem:[%s3916 + $0x40] sm:$0xff]
      %v3926 = vld [vmem:[%s3916 + $0x48] sm:$0xff]
      %v3927 = vld [vmem:[%s3916 + $0x50] sm:$0xff]
      %v3928 = vld [vmem:[%s3916 + $0x58] sm:$0xff]
      %s3929 = scalar_lea.vmem %s6, %s3914
      %v3930 = vld [vmem:[%s3929] sm:$0x1]
      %v3932 = vlaneseq
      %v3933 = vshrl.u32 %v3932, 7
      %v3934 = vsub.s32 0, %v3933
      %v3935 = vrot.slane %v3930, %v3934
      %v3938 = vsel %vm840, %v3913, 0
      %3940 = vmatprep.subr.mxu0 0.0
      %3941 = vmatpush1.msra.mxu0 %v3917
      %3942 = vmatprep.subr.mxu0 0.0
      %3943 = vmatpush1.msra.mxu0 %v3918
      %3944 = vmatprep.subr.mxu0 0.0
      %3945 = vmatpush1.msra.mxu0 %v3919
      %3946 = vmatprep.subr.mxu0 0.0
      %3947 = vmatpush1.msra.mxu0 %v3920
      %3948 = vmatprep.subr.mxu0 0.0
      %3949 = vmatpush1.msra.mxu0 %v3921
      %3950 = vmatprep.subr.mxu0 0.0
      %3951 = vmatpush1.msra.mxu0 %v3922
      %3952 = vmatprep.subr.mxu0 0.0
      %3953 = vmatpush1.msra.mxu0 %v3923
      %3954 = vmatprep.subr.mxu0 0.0
      %3955 = vmatpush1.msra.mxu0 %v3924
      %3956 = vmatprep.subr.mxu0 0.0
      %3957 = vmatpush1.msra.mxu0 %v3925
      %3958 = vmatprep.subr.mxu0 0.0
      %3959 = vmatpush1.msra.mxu0 %v3926
      %3960 = vmatprep.subr.mxu0 0.0
      %3961 = vmatpush1.msra.mxu0 %v3927
      %3962 = vmatprep.subr.mxu0 0.0
      %3963 = vmatpush1.msra.mxu0 %v3928
      %3964 = vmatprep.subr.mxu0 0.0
      %3965 = vmatpush1.msra.mxu0 0.0
      %3966 = vmatprep.subr.mxu0 0.0
      %3967 = vmatpush1.msra.mxu0 0.0
      %3968 = vmatprep.subr.mxu0 0.0
      %3969 = vmatpush1.msra.mxu0 0.0
      %3970 = vmatprep.subr.mxu0 0.0
      %3971 = vmatpush1.msra.mxu0 0.0
      %3972 = vmatprep.subr.mxu0 0.0
      %3973 = vmatpush1.msra.mxu0 0.0
      %3974 = vmatprep.subr.mxu0 0.0
      %3975 = vmatpush1.msra.mxu0 0.0
      %3976 = vmatprep.subr.mxu0 0.0
      %3977 = vmatpush1.msra.mxu0 0.0
      %3978 = vmatprep.subr.mxu0 0.0
      %3979 = vmatpush1.msra.mxu0 0.0
      %3980 = vmatprep.subr.mxu0 0.0
      %3981 = vmatpush1.msra.mxu0 0.0
      %3982 = vmatprep.subr.mxu0 0.0
      %3983 = vmatpush1.msra.mxu0 0.0
      %3984 = vmatprep.subr.mxu0 0.0
      %3985 = vmatpush1.msra.mxu0 0.0
      %3986 = vmatprep.subr.mxu0 0.0
      %3987 = vmatpush1.msra.mxu0 0.0
      %3988 = vmatprep.subr.mxu0 0.0
      %3989 = vmatpush1.msra.mxu0 0.0
      %3990 = vmatprep.subr.mxu0 0.0
      %3991 = vmatpush1.msra.mxu0 0.0
      %3992 = vmatprep.subr.mxu0 0.0
      %3993 = vmatpush1.msra.mxu0 0.0
      %3994 = vmatprep.subr.mxu0 0.0
      %3995 = vmatpush1.msra.mxu0 0.0
      %3996 = vmatprep.subr.mxu0 0.0
      %3997 = vmatpush1.msra.mxu0 0.0
      %3998 = vmatprep.subr.mxu0 0.0
      %3999 = vmatpush1.msra.mxu0 0.0
      %4000 = vmatprep.subr.mxu0 0.0
      %4001 = vmatpush1.msra.mxu0 0.0
      %4002 = vmatprep.subr.mxu0 0.0
      %4003 = vmatpush1.msra.mxu0 0.0
      %4004 = vmatprep.mubr.f32.mxu0 0.0
      %4005 = vmatmul.mubr.f32.gmra.mrb[0].mxu0 %v3938
      %v4006 = vpop.f32.mrb[0].mxu0
      %v4007 = vadd.f32 %v3935, %v4006
      %v4008 = vpop.f32.mrb[0].mxu0
      %4009 = vdwg.mxu0
      %s4010 = scalar_lea.vmem %s7, %s3914
      %v4011 = vld [vmem:[%s4010] sm:$0x1]
      %s4012 = scalar_lea.vmem %s8, %s3914
      %v4013 = vld [vmem:[%s4012] sm:$0x1]
      %v4014 = vsel %vm840, %v4007, 0.0
      %4015 = vadd.xlane.f32.xlu0 %v4014
      %v4016 = vpop.xlane.xlu0 %4015
      %v4017 = vmul.f32 %v4016, 0.010416667
      %v4018 = vmul.f32 %v4007, %v4007
      %v4019 = vsel %vm840, %v4018, 0.0
      %4020 = vadd.xlane.f32.xlu0 %v4019
      %v4021 = vpop.xlane.xlu0 %4020
      %v4022 = vmul.f32 %v4021, 0.010416667
      %v4023 = vmul.f32 %v4017, %v4017
      %v4024 = vsub.f32 %v4022, %v4023
      %v4025 = vmax.f32 %v4024, 0.0
      %v4026 = vsub.f32 %v4007, %v4017
      %v4027 = vadd.f32 %v4025, 1e-05
      %v4028 = vrsqrt.pop %v4027
      %v4029 = vmul.f32 %v4026, %v4028
      %v4031 = vlaneseq
      %v4032 = vshrl.u32 %v4031, 7
      %v4033 = vsub.s32 0, %v4032
      %v4034 = vrot.slane %v4011, %v4033
      %v4036 = vmul.f32 %v4029, %v4034
      %v4038 = vlaneseq
      %v4039 = vshrl.u32 %v4038, 7
      %v4040 = vsub.s32 0, %v4039
      %v4041 = vrot.slane %v4013, %v4040
      %v4043 = vadd.f32 %v4036, %v4041
      %v4044 = vmax.f32 %v4043, 0.0
      %s4045 = smul.u32 %s3914, 24
      %s4046 = smul.addr %s4045, 8
      %s4047 = scalar_lea.vmem %s9, %s4046
      %v4048 = vld [vmem:[%s4047] sm:$0xff]
      %v4049 = vld [vmem:[%s4047 + $0x8] sm:$0xff]
      %v4050 = vld [vmem:[%s4047 + $0x10] sm:$0xff]
      %v4051 = vld [vmem:[%s4047 + $0x18] sm:$0xff]
      %v4052 = vld [vmem:[%s4047 + $0x20] sm:$0xff]
      %v4053 = vld [vmem:[%s4047 + $0x28] sm:$0xff]
      %v4054 = vld [vmem:[%s4047 + $0x30] sm:$0xff]
      %v4055 = vld [vmem:[%s4047 + $0x38] sm:$0xff]
      %v4056 = vld [vmem:[%s4047 + $0x40] sm:$0xff]
      %v4057 = vld [vmem:[%s4047 + $0x48] sm:$0xff]
      %v4058 = vld [vmem:[%s4047 + $0x50] sm:$0xff]
      %v4059 = vld [vmem:[%s4047 + $0x58] sm:$0xff]
      %v4060 = vld [vmem:[%s4047 + $0x60] sm:$0xff]
      %v4061 = vld [vmem:[%s4047 + $0x68] sm:$0xff]
      %v4062 = vld [vmem:[%s4047 + $0x70] sm:$0xff]
      %v4063 = vld [vmem:[%s4047 + $0x78] sm:$0xff]
      %v4064 = vld [vmem:[%s4047 + $0x80] sm:$0xff]
      %v4065 = vld [vmem:[%s4047 + $0x88] sm:$0xff]
      %v4066 = vld [vmem:[%s4047 + $0x90] sm:$0xff]
      %v4067 = vld [vmem:[%s4047 + $0x98] sm:$0xff]
      %v4068 = vld [vmem:[%s4047 + $0xa0] sm:$0xff]
      %v4069 = vld [vmem:[%s4047 + $0xa8] sm:$0xff]
      %v4070 = vld [vmem:[%s4047 + $0xb0] sm:$0xff]
      %v4071 = vld [vmem:[%s4047 + $0xb8] sm:$0xff]
      %s4072 = smul.u32 %s3914, 2
      %s4073 = scalar_lea.vmem %s10, %s4072
      %v4074 = vld [vmem:[%s4073] sm:$0x3]
      %v4076 = vlaneseq
      %v4077 = vshrl.u32 %v4076, 7
      %v4078 = vsub.s32 0, %v4077
      %v4079 = vrot.slane %v4074, %v4078
      %v4080 = vlaneseq
      %v4081 = vshrl.u32 %v4080, 7
      %v4082 = vsub.s32 1, %v4081
      %v4083 = vrot.slane %v4074, %v4082
      %v4087 = vsel %vm840, %v4044, 0
      %4089 = vmatprep.subr.mxu0 %v4049
      %4090 = vmatpush1.msra.mxu0 %v4048
      %4091 = vmatprep.subr.mxu0 %v4051
      %4092 = vmatpush1.msra.mxu0 %v4050
      %4093 = vmatprep.subr.mxu0 %v4053
      %4094 = vmatpush1.msra.mxu0 %v4052
      %4095 = vmatprep.subr.mxu0 %v4055
      %4096 = vmatpush1.msra.mxu0 %v4054
      %4097 = vmatprep.subr.mxu0 %v4057
      %4098 = vmatpush1.msra.mxu0 %v4056
      %4099 = vmatprep.subr.mxu0 %v4059
      %4100 = vmatpush1.msra.mxu0 %v4058
      %4101 = vmatprep.subr.mxu0 %v4061
      %4102 = vmatpush1.msra.mxu0 %v4060
      %4103 = vmatprep.subr.mxu0 %v4063
      %4104 = vmatpush1.msra.mxu0 %v4062
      %4105 = vmatprep.subr.mxu0 %v4065
      %4106 = vmatpush1.msra.mxu0 %v4064
      %4107 = vmatprep.subr.mxu0 %v4067
      %4108 = vmatpush1.msra.mxu0 %v4066
      %4109 = vmatprep.subr.mxu0 %v4069
      %4110 = vmatpush1.msra.mxu0 %v4068
      %4111 = vmatprep.subr.mxu0 %v4071
      %4112 = vmatpush1.msra.mxu0 %v4070
      %4113 = vmatprep.subr.mxu0 0.0
      %4114 = vmatpush1.msra.mxu0 0.0
      %4115 = vmatprep.subr.mxu0 0.0
      %4116 = vmatpush1.msra.mxu0 0.0
      %4117 = vmatprep.subr.mxu0 0.0
      %4118 = vmatpush1.msra.mxu0 0.0
      %4119 = vmatprep.subr.mxu0 0.0
      %4120 = vmatpush1.msra.mxu0 0.0
      %4121 = vmatprep.subr.mxu0 0.0
      %4122 = vmatpush1.msra.mxu0 0.0
      %4123 = vmatprep.subr.mxu0 0.0
      %4124 = vmatpush1.msra.mxu0 0.0
      %4125 = vmatprep.subr.mxu0 0.0
      %4126 = vmatpush1.msra.mxu0 0.0
      %4127 = vmatprep.subr.mxu0 0.0
      %4128 = vmatpush1.msra.mxu0 0.0
      %4129 = vmatprep.subr.mxu0 0.0
      %4130 = vmatpush1.msra.mxu0 0.0
      %4131 = vmatprep.subr.mxu0 0.0
      %4132 = vmatpush1.msra.mxu0 0.0
      %4133 = vmatprep.subr.mxu0 0.0
      %4134 = vmatpush1.msra.mxu0 0.0
      %4135 = vmatprep.subr.mxu0 0.0
      %4136 = vmatpush1.msra.mxu0 0.0
      %4137 = vmatprep.subr.mxu0 0.0
      %4138 = vmatpush1.msra.mxu0 0.0
      %4139 = vmatprep.subr.mxu0 0.0
      %4140 = vmatpush1.msra.mxu0 0.0
      %4141 = vmatprep.subr.mxu0 0.0
      %4142 = vmatpush1.msra.mxu0 0.0
      %4143 = vmatprep.subr.mxu0 0.0
      %4144 = vmatpush1.msra.mxu0 0.0
      %4145 = vmatprep.subr.mxu0 0.0
      %4146 = vmatpush1.msra.mxu0 0.0
      %4147 = vmatprep.subr.mxu0 0.0
      %4148 = vmatpush1.msra.mxu0 0.0
      %4149 = vmatprep.subr.mxu0 0.0
      %4150 = vmatpush1.msra.mxu0 0.0
      %4151 = vmatprep.subr.mxu0 0.0
      %4152 = vmatpush1.msra.mxu0 0.0
      %4153 = vmatprep.mubr.f32.mxu0 0.0
      %4154 = vmatmul.mubr.f32.gmra.mrb[0].mxu0 %v4087
      %v4155 = vpop.f32.mrb[0].mxu0
      %v4156 = vadd.f32 %v4079, %v4155
      %v4157 = vpop.f32.mrb[0].mxu0
      %v4158 = vadd.f32 %v4083, %v4157
      %4159 = vdwg.mxu0
      %s4160 = scalar_lea.vmem %s11, %s4072
      %v4161 = vld [vmem:[%s4160] sm:$0x3]
      %s4162 = scalar_lea.vmem %s12, %s4072
      %v4163 = vld [vmem:[%s4162] sm:$0x3]
      %v4164 = vsel %vm1122, %v4158, 0.0
      %v4165 = vadd.f32 %v4156, %v4164
      %4166 = vadd.xlane.f32.xlu0 %v4165
      %v4167 = vpop.xlane.xlu0 %4166
      %v4168 = vmul.f32 %v4167, 0.0069444445
      %v4169 = vmul.f32 %v4156, %v4156
      %v4170 = vmul.f32 %v4158, %v4158
      %v4171 = vsel %vm1122, %v4170, 0.0
      %v4172 = vadd.f32 %v4169, %v4171
      %4173 = vadd.xlane.f32.xlu0 %v4172
      %v4174 = vpop.xlane.xlu0 %4173
      %v4175 = vmul.f32 %v4174, 0.0069444445
      %v4176 = vmul.f32 %v4168, %v4168
      %v4177 = vsub.f32 %v4175, %v4176
      %v4178 = vmax.f32 %v4177, 0.0
      %v4179 = vsub.f32 %v4156, %v4168
      %v4180 = vsub.f32 %v4158, %v4168
      %v4181 = vadd.f32 %v4178, 1e-05
      %v4182 = vrsqrt.pop %v4181
      %v4183 = vmul.f32 %v4179, %v4182
      %v4184 = vmul.f32 %v4180, %v4182
      %v4186 = vlaneseq
      %v4187 = vshrl.u32 %v4186, 7
      %v4188 = vsub.s32 0, %v4187
      %v4189 = vrot.slane %v4161, %v4188
      %v4190 = vlaneseq
      %v4191 = vshrl.u32 %v4190, 7
      %v4192 = vsub.s32 1, %v4191
      %v4193 = vrot.slane %v4161, %v4192
      %v4196 = vmul.f32 %v4183, %v4189
      %v4197 = vmul.f32 %v4184, %v4193
      %v4199 = vlaneseq
      %v4200 = vshrl.u32 %v4199, 7
      %v4201 = vsub.s32 0, %v4200
      %v4202 = vrot.slane %v4163, %v4201
      %v4203 = vlaneseq
      %v4204 = vshrl.u32 %v4203, 7
      %v4205 = vsub.s32 1, %v4204
      %v4206 = vrot.slane %v4163, %v4205
      %v4209 = vadd.f32 %v4196, %v4202
      %v4210 = vadd.f32 %v4197, %v4206
      %v4211 = vmax.f32 %v4209, 0.0
      %v4212 = vmax.f32 %v4210, 0.0
      %s4213 = smul.u32 %s3914, 144
      %s4214 = scalar_lea.vmem %s13, %s4213
      %v4215 = vld [vmem:[%s4214] sm:$0xff]
      %v4216 = vld [vmem:[%s4214 + $0x8] sm:$0xff]
      %v4217 = vld [vmem:[%s4214 + $0x10] sm:$0xff]
      %v4218 = vld [vmem:[%s4214 + $0x18] sm:$0xff]
      %v4219 = vld [vmem:[%s4214 + $0x20] sm:$0xff]
      %v4220 = vld [vmem:[%s4214 + $0x28] sm:$0xff]
      %v4221 = vld [vmem:[%s4214 + $0x30] sm:$0xff]
      %v4222 = vld [vmem:[%s4214 + $0x38] sm:$0xff]
      %v4223 = vld [vmem:[%s4214 + $0x40] sm:$0xff]
      %v4224 = vld [vmem:[%s4214 + $0x48] sm:$0xff]
      %v4225 = vld [vmem:[%s4214 + $0x50] sm:$0xff]
      %v4226 = vld [vmem:[%s4214 + $0x58] sm:$0xff]
      %v4227 = vld [vmem:[%s4214 + $0x60] sm:$0xff]
      %v4228 = vld [vmem:[%s4214 + $0x68] sm:$0xff]
      %v4229 = vld [vmem:[%s4214 + $0x70] sm:$0xff]
      %v4230 = vld [vmem:[%s4214 + $0x78] sm:$0xff]
      %v4231 = vld [vmem:[%s4214 + $0x80] sm:$0xff]
      %v4232 = vld [vmem:[%s4214 + $0x88] sm:$0xff]
      %s4233 = scalar_lea.vmem %s14, %s3914
      %v4234 = vld [vmem:[%s4233] sm:$0x1]
      %v4236 = vlaneseq
      %v4237 = vshrl.u32 %v4236, 7
      %v4238 = vsub.s32 0, %v4237
      %v4239 = vrot.slane %v4234, %v4238
      %v4242 = vsel %vm1122, %v4212, 0
      %4244 = vmatprep.subr.mxu0 0.0
      %4245 = vmatpush1.msra.mxu0 %v4215
      %4246 = vmatprep.subr.mxu0 0.0
      %4247 = vmatpush1.msra.mxu0 %v4216
      %4248 = vmatprep.subr.mxu0 0.0
      %4249 = vmatpush1.msra.mxu0 %v4217
      %4250 = vmatprep.subr.mxu0 0.0
      %4251 = vmatpush1.msra.mxu0 %v4218
      %4252 = vmatprep.subr.mxu0 0.0
      %4253 = vmatpush1.msra.mxu0 %v4219
      %4254 = vmatprep.subr.mxu0 0.0
      %4255 = vmatpush1.msra.mxu0 %v4220
      %4256 = vmatprep.subr.mxu0 0.0
      %4257 = vmatpush1.msra.mxu0 %v4221
      %4258 = vmatprep.subr.mxu0 0.0
      %4259 = vmatpush1.msra.mxu0 %v4222
      %4260 = vmatprep.subr.mxu0 0.0
      %4261 = vmatpush1.msra.mxu0 %v4223
      %4262 = vmatprep.subr.mxu0 0.0
      %4263 = vmatpush1.msra.mxu0 %v4224
      %4264 = vmatprep.subr.mxu0 0.0
      %4265 = vmatpush1.msra.mxu0 %v4225
      %4266 = vmatprep.subr.mxu0 0.0
      %4267 = vmatpush1.msra.mxu0 %v4226
      %4268 = vmatprep.subr.mxu0 0.0
      %4269 = vmatpush1.msra.mxu0 %v4227
      %4270 = vmatprep.subr.mxu0 0.0
      %4271 = vmatpush1.msra.mxu0 %v4228
      %4272 = vmatprep.subr.mxu0 0.0
      %4273 = vmatpush1.msra.mxu0 %v4229
      %4274 = vmatprep.subr.mxu0 0.0
      %4275 = vmatpush1.msra.mxu0 %v4230
      %4276 = vmatprep.subr.mxu0 0.0
      %4277 = vmatpush1.msra.mxu0 %v4231
      %4278 = vmatprep.subr.mxu0 0.0
      %4279 = vmatpush1.msra.mxu0 %v4232
      %4280 = vmatprep.subr.mxu0 0.0
      %4281 = vmatpush1.msra.mxu0 0.0
      %4282 = vmatprep.subr.mxu0 0.0
      %4283 = vmatpush1.msra.mxu0 0.0
      %4284 = vmatprep.subr.mxu0 0.0
      %4285 = vmatpush1.msra.mxu0 0.0
      %4286 = vmatprep.subr.mxu0 0.0
      %4287 = vmatpush1.msra.mxu0 0.0
      %4288 = vmatprep.subr.mxu0 0.0
      %4289 = vmatpush1.msra.mxu0 0.0
      %4290 = vmatprep.subr.mxu0 0.0
      %4291 = vmatpush1.msra.mxu0 0.0
      %4292 = vmatprep.subr.mxu0 0.0
      %4293 = vmatpush1.msra.mxu0 0.0
      %4294 = vmatprep.subr.mxu0 0.0
      %4295 = vmatpush1.msra.mxu0 0.0
      %4296 = vmatprep.subr.mxu0 0.0
      %4297 = vmatpush1.msra.mxu0 0.0
      %4298 = vmatprep.subr.mxu0 0.0
      %4299 = vmatpush1.msra.mxu0 0.0
      %4300 = vmatprep.subr.mxu0 0.0
      %4301 = vmatpush1.msra.mxu0 0.0
      %4302 = vmatprep.subr.mxu0 0.0
      %4303 = vmatpush1.msra.mxu0 0.0
      %4304 = vmatprep.subr.mxu0 0.0
      %4305 = vmatpush1.msra.mxu0 0.0
      %4306 = vmatprep.subr.mxu0 0.0
      %4307 = vmatpush1.msra.mxu0 0.0
      %4308 = vmatprep.mubr.f32.mxu0 %v4242
      %4309 = vmatmul.mubr.f32.gmra.mrb[0].mxu0 %v4211
      %v4310 = vpop.f32.mrb[0].mxu0
      %v4311 = vadd.f32 %v4239, %v4310
      %v4312 = vpop.f32.mrb[0].mxu0
      %4313 = vdwg.mxu0
      %s4314 = scalar_lea.vmem %s15, %s3914
      %v4315 = vld [vmem:[%s4314] sm:$0x1]
      %s4316 = scalar_lea.vmem %s16, %s3914
      %v4317 = vld [vmem:[%s4316] sm:$0x1]
      %v4318 = vsel %vm840, %v4311, 0.0
      %4319 = vadd.xlane.f32.xlu0 %v4318
      %v4320 = vpop.xlane.xlu0 %4319
      %v4321 = vmul.f32 %v4320, 0.010416667
      %v4322 = vmul.f32 %v4311, %v4311
      %v4323 = vsel %vm840, %v4322, 0.0
      %4324 = vadd.xlane.f32.xlu0 %v4323
      %v4325 = vpop.xlane.xlu0 %4324
      %v4326 = vmul.f32 %v4325, 0.010416667
      %v4327 = vmul.f32 %v4321, %v4321
      %v4328 = vsub.f32 %v4326, %v4327
      %v4329 = vmax.f32 %v4328, 0.0
      %v4330 = vsub.f32 %v4311, %v4321
      %v4331 = vadd.f32 %v4329, 1e-05
      %v4332 = vrsqrt.pop %v4331
      %v4333 = vmul.f32 %v4330, %v4332
      %v4335 = vlaneseq
      %v4336 = vshrl.u32 %v4335, 7
      %v4337 = vsub.s32 0, %v4336
      %v4338 = vrot.slane %v4315, %v4337
      %v4340 = vmul.f32 %v4333, %v4338
      %v4342 = vlaneseq
      %v4343 = vshrl.u32 %v4342, 7
      %v4344 = vsub.s32 0, %v4343
      %v4345 = vrot.slane %v4317, %v4344
      %v4347 = vadd.f32 %v4340, %v4345
      %v4348 = vadd.f32 %v3913, %v4347
      %v4349 = vmax.f32 %v4348, 0.0
      %s4350 = sadd.s32 %s3042, 3
      %s4351 = smul.u32 %s4350, 96
      %s4352 = scalar_lea.vmem %s5, %s4351
      %v4353 = vld [vmem:[%s4352] sm:$0xff]
      %v4354 = vld [vmem:[%s4352 + $0x8] sm:$0xff]
      %v4355 = vld [vmem:[%s4352 + $0x10] sm:$0xff]
      %v4356 = vld [vmem:[%s4352 + $0x18] sm:$0xff]
      %v4357 = vld [vmem:[%s4352 + $0x20] sm:$0xff]
      %v4358 = vld [vmem:[%s4352 + $0x28] sm:$0xff]
      %v4359 = vld [vmem:[%s4352 + $0x30] sm:$0xff]
      %v4360 = vld [vmem:[%s4352 + $0x38] sm:$0xff]
      %v4361 = vld [vmem:[%s4352 + $0x40] sm:$0xff]
      %v4362 = vld [vmem:[%s4352 + $0x48] sm:$0xff]
      %v4363 = vld [vmem:[%s4352 + $0x50] sm:$0xff]
      %v4364 = vld [vmem:[%s4352 + $0x58] sm:$0xff]
      %s4365 = scalar_lea.vmem %s6, %s4350
      %v4366 = vld [vmem:[%s4365] sm:$0x1]
      %v4368 = vlaneseq
      %v4369 = vshrl.u32 %v4368, 7
      %v4370 = vsub.s32 0, %v4369
      %v4371 = vrot.slane %v4366, %v4370
      %v4374 = vsel %vm840, %v4349, 0
      %4376 = vmatprep.subr.mxu0 0.0
      %4377 = vmatpush1.msra.mxu0 %v4353
      %4378 = vmatprep.subr.mxu0 0.0
      %4379 = vmatpush1.msra.mxu0 %v4354
      %4380 = vmatprep.subr.mxu0 0.0
      %4381 = vmatpush1.msra.mxu0 %v4355
      %4382 = vmatprep.subr.mxu0 0.0
      %4383 = vmatpush1.msra.mxu0 %v4356
      %4384 = vmatprep.subr.mxu0 0.0
      %4385 = vmatpush1.msra.mxu0 %v4357
      %4386 = vmatprep.subr.mxu0 0.0
      %4387 = vmatpush1.msra.mxu0 %v4358
      %4388 = vmatprep.subr.mxu0 0.0
      %4389 = vmatpush1.msra.mxu0 %v4359
      %4390 = vmatprep.subr.mxu0 0.0
      %4391 = vmatpush1.msra.mxu0 %v4360
      %4392 = vmatprep.subr.mxu0 0.0
      %4393 = vmatpush1.msra.mxu0 %v4361
      %4394 = vmatprep.subr.mxu0 0.0
      %4395 = vmatpush1.msra.mxu0 %v4362
      %4396 = vmatprep.subr.mxu0 0.0
      %4397 = vmatpush1.msra.mxu0 %v4363
      %4398 = vmatprep.subr.mxu0 0.0
      %4399 = vmatpush1.msra.mxu0 %v4364
      %4400 = vmatprep.subr.mxu0 0.0
      %4401 = vmatpush1.msra.mxu0 0.0
      %4402 = vmatprep.subr.mxu0 0.0
      %4403 = vmatpush1.msra.mxu0 0.0
      %4404 = vmatprep.subr.mxu0 0.0
      %4405 = vmatpush1.msra.mxu0 0.0
      %4406 = vmatprep.subr.mxu0 0.0
      %4407 = vmatpush1.msra.mxu0 0.0
      %4408 = vmatprep.subr.mxu0 0.0
      %4409 = vmatpush1.msra.mxu0 0.0
      %4410 = vmatprep.subr.mxu0 0.0
      %4411 = vmatpush1.msra.mxu0 0.0
      %4412 = vmatprep.subr.mxu0 0.0
      %4413 = vmatpush1.msra.mxu0 0.0
      %4414 = vmatprep.subr.mxu0 0.0
      %4415 = vmatpush1.msra.mxu0 0.0
      %4416 = vmatprep.subr.mxu0 0.0
      %4417 = vmatpush1.msra.mxu0 0.0
      %4418 = vmatprep.subr.mxu0 0.0
      %4419 = vmatpush1.msra.mxu0 0.0
      %4420 = vmatprep.subr.mxu0 0.0
      %4421 = vmatpush1.msra.mxu0 0.0
      %4422 = vmatprep.subr.mxu0 0.0
      %4423 = vmatpush1.msra.mxu0 0.0
      %4424 = vmatprep.subr.mxu0 0.0
      %4425 = vmatpush1.msra.mxu0 0.0
      %4426 = vmatprep.subr.mxu0 0.0
      %4427 = vmatpush1.msra.mxu0 0.0
      %4428 = vmatprep.subr.mxu0 0.0
      %4429 = vmatpush1.msra.mxu0 0.0
      %4430 = vmatprep.subr.mxu0 0.0
      %4431 = vmatpush1.msra.mxu0 0.0
      %4432 = vmatprep.subr.mxu0 0.0
      %4433 = vmatpush1.msra.mxu0 0.0
      %4434 = vmatprep.subr.mxu0 0.0
      %4435 = vmatpush1.msra.mxu0 0.0
      %4436 = vmatprep.subr.mxu0 0.0
      %4437 = vmatpush1.msra.mxu0 0.0
      %4438 = vmatprep.subr.mxu0 0.0
      %4439 = vmatpush1.msra.mxu0 0.0
      %4440 = vmatprep.mubr.f32.mxu0 0.0
      %4441 = vmatmul.mubr.f32.gmra.mrb[0].mxu0 %v4374
      %v4442 = vpop.f32.mrb[0].mxu0
      %v4443 = vadd.f32 %v4371, %v4442
      %v4444 = vpop.f32.mrb[0].mxu0
      %4445 = vdwg.mxu0
      %s4446 = scalar_lea.vmem %s7, %s4350
      %v4447 = vld [vmem:[%s4446] sm:$0x1]
      %s4448 = scalar_lea.vmem %s8, %s4350
      %v4449 = vld [vmem:[%s4448] sm:$0x1]
      %v4450 = vsel %vm840, %v4443, 0.0
      %4451 = vadd.xlane.f32.xlu0 %v4450
      %v4452 = vpop.xlane.xlu0 %4451
      %v4453 = vmul.f32 %v4452, 0.010416667
      %v4454 = vmul.f32 %v4443, %v4443
      %v4455 = vsel %vm840, %v4454, 0.0
      %4456 = vadd.xlane.f32.xlu0 %v4455
      %v4457 = vpop.xlane.xlu0 %4456
      %v4458 = vmul.f32 %v4457, 0.010416667
      %v4459 = vmul.f32 %v4453, %v4453
      %v4460 = vsub.f32 %v4458, %v4459
      %v4461 = vmax.f32 %v4460, 0.0
      %v4462 = vsub.f32 %v4443, %v4453
      %v4463 = vadd.f32 %v4461, 1e-05
      %v4464 = vrsqrt.pop %v4463
      %v4465 = vmul.f32 %v4462, %v4464
      %v4467 = vlaneseq
      %v4468 = vshrl.u32 %v4467, 7
      %v4469 = vsub.s32 0, %v4468
      %v4470 = vrot.slane %v4447, %v4469
      %v4472 = vmul.f32 %v4465, %v4470
      %v4474 = vlaneseq
      %v4475 = vshrl.u32 %v4474, 7
      %v4476 = vsub.s32 0, %v4475
      %v4477 = vrot.slane %v4449, %v4476
      %v4479 = vadd.f32 %v4472, %v4477
      %v4480 = vmax.f32 %v4479, 0.0
      %s4481 = smul.u32 %s4350, 24
      %s4482 = smul.addr %s4481, 8
      %s4483 = scalar_lea.vmem %s9, %s4482
      %v4484 = vld [vmem:[%s4483] sm:$0xff]
      %v4485 = vld [vmem:[%s4483 + $0x8] sm:$0xff]
      %v4486 = vld [vmem:[%s4483 + $0x10] sm:$0xff]
      %v4487 = vld [vmem:[%s4483 + $0x18] sm:$0xff]
      %v4488 = vld [vmem:[%s4483 + $0x20] sm:$0xff]
      %v4489 = vld [vmem:[%s4483 + $0x28] sm:$0xff]
      %v4490 = vld [vmem:[%s4483 + $0x30] sm:$0xff]
      %v4491 = vld [vmem:[%s4483 + $0x38] sm:$0xff]
      %v4492 = vld [vmem:[%s4483 + $0x40] sm:$0xff]
      %v4493 = vld [vmem:[%s4483 + $0x48] sm:$0xff]
      %v4494 = vld [vmem:[%s4483 + $0x50] sm:$0xff]
      %v4495 = vld [vmem:[%s4483 + $0x58] sm:$0xff]
      %v4496 = vld [vmem:[%s4483 + $0x60] sm:$0xff]
      %v4497 = vld [vmem:[%s4483 + $0x68] sm:$0xff]
      %v4498 = vld [vmem:[%s4483 + $0x70] sm:$0xff]
      %v4499 = vld [vmem:[%s4483 + $0x78] sm:$0xff]
      %v4500 = vld [vmem:[%s4483 + $0x80] sm:$0xff]
      %v4501 = vld [vmem:[%s4483 + $0x88] sm:$0xff]
      %v4502 = vld [vmem:[%s4483 + $0x90] sm:$0xff]
      %v4503 = vld [vmem:[%s4483 + $0x98] sm:$0xff]
      %v4504 = vld [vmem:[%s4483 + $0xa0] sm:$0xff]
      %v4505 = vld [vmem:[%s4483 + $0xa8] sm:$0xff]
      %v4506 = vld [vmem:[%s4483 + $0xb0] sm:$0xff]
      %v4507 = vld [vmem:[%s4483 + $0xb8] sm:$0xff]
      %s4508 = smul.u32 %s4350, 2
      %s4509 = scalar_lea.vmem %s10, %s4508
      %v4510 = vld [vmem:[%s4509] sm:$0x3]
      %v4512 = vlaneseq
      %v4513 = vshrl.u32 %v4512, 7
      %v4514 = vsub.s32 0, %v4513
      %v4515 = vrot.slane %v4510, %v4514
      %v4516 = vlaneseq
      %v4517 = vshrl.u32 %v4516, 7
      %v4518 = vsub.s32 1, %v4517
      %v4519 = vrot.slane %v4510, %v4518
      %v4523 = vsel %vm840, %v4480, 0
      %4525 = vmatprep.subr.mxu0 %v4485
      %4526 = vmatpush1.msra.mxu0 %v4484
      %4527 = vmatprep.subr.mxu0 %v4487
      %4528 = vmatpush1.msra.mxu0 %v4486
      %4529 = vmatprep.subr.mxu0 %v4489
      %4530 = vmatpush1.msra.mxu0 %v4488
      %4531 = vmatprep.subr.mxu0 %v4491
      %4532 = vmatpush1.msra.mxu0 %v4490
      %4533 = vmatprep.subr.mxu0 %v4493
      %4534 = vmatpush1.msra.mxu0 %v4492
      %4535 = vmatprep.subr.mxu0 %v4495
      %4536 = vmatpush1.msra.mxu0 %v4494
      %4537 = vmatprep.subr.mxu0 %v4497
      %4538 = vmatpush1.msra.mxu0 %v4496
      %4539 = vmatprep.subr.mxu0 %v4499
      %4540 = vmatpush1.msra.mxu0 %v4498
      %4541 = vmatprep.subr.mxu0 %v4501
      %4542 = vmatpush1.msra.mxu0 %v4500
      %4543 = vmatprep.subr.mxu0 %v4503
      %4544 = vmatpush1.msra.mxu0 %v4502
      %4545 = vmatprep.subr.mxu0 %v4505
      %4546 = vmatpush1.msra.mxu0 %v4504
      %4547 = vmatprep.subr.mxu0 %v4507
      %4548 = vmatpush1.msra.mxu0 %v4506
      %4549 = vmatprep.subr.mxu0 0.0
      %4550 = vmatpush1.msra.mxu0 0.0
      %4551 = vmatprep.subr.mxu0 0.0
      %4552 = vmatpush1.msra.mxu0 0.0
      %4553 = vmatprep.subr.mxu0 0.0
      %4554 = vmatpush1.msra.mxu0 0.0
      %4555 = vmatprep.subr.mxu0 0.0
      %4556 = vmatpush1.msra.mxu0 0.0
      %4557 = vmatprep.subr.mxu0 0.0
      %4558 = vmatpush1.msra.mxu0 0.0
      %4559 = vmatprep.subr.mxu0 0.0
      %4560 = vmatpush1.msra.mxu0 0.0
      %4561 = vmatprep.subr.mxu0 0.0
      %4562 = vmatpush1.msra.mxu0 0.0
      %4563 = vmatprep.subr.mxu0 0.0
      %4564 = vmatpush1.msra.mxu0 0.0
      %4565 = vmatprep.subr.mxu0 0.0
      %4566 = vmatpush1.msra.mxu0 0.0
      %4567 = vmatprep.subr.mxu0 0.0
      %4568 = vmatpush1.msra.mxu0 0.0
      %4569 = vmatprep.subr.mxu0 0.0
      %4570 = vmatpush1.msra.mxu0 0.0
      %4571 = vmatprep.subr.mxu0 0.0
      %4572 = vmatpush1.msra.mxu0 0.0
      %4573 = vmatprep.subr.mxu0 0.0
      %4574 = vmatpush1.msra.mxu0 0.0
      %4575 = vmatprep.subr.mxu0 0.0
      %4576 = vmatpush1.msra.mxu0 0.0
      %4577 = vmatprep.subr.mxu0 0.0
      %4578 = vmatpush1.msra.mxu0 0.0
      %4579 = vmatprep.subr.mxu0 0.0
      %4580 = vmatpush1.msra.mxu0 0.0
      %4581 = vmatprep.subr.mxu0 0.0
      %4582 = vmatpush1.msra.mxu0 0.0
      %4583 = vmatprep.subr.mxu0 0.0
      %4584 = vmatpush1.msra.mxu0 0.0
      %4585 = vmatprep.subr.mxu0 0.0
      %4586 = vmatpush1.msra.mxu0 0.0
      %4587 = vmatprep.subr.mxu0 0.0
      %4588 = vmatpush1.msra.mxu0 0.0
      %4589 = vmatprep.mubr.f32.mxu0 0.0
      %4590 = vmatmul.mubr.f32.gmra.mrb[0].mxu0 %v4523
      %v4591 = vpop.f32.mrb[0].mxu0
      %v4592 = vadd.f32 %v4515, %v4591
      %v4593 = vpop.f32.mrb[0].mxu0
      %v4594 = vadd.f32 %v4519, %v4593
      %4595 = vdwg.mxu0
      %s4596 = scalar_lea.vmem %s11, %s4508
      %v4597 = vld [vmem:[%s4596] sm:$0x3]
      %s4598 = scalar_lea.vmem %s12, %s4508
      %v4599 = vld [vmem:[%s4598] sm:$0x3]
      %v4600 = vsel %vm1122, %v4594, 0.0
      %v4601 = vadd.f32 %v4592, %v4600
      %4602 = vadd.xlane.f32.xlu0 %v4601
      %v4603 = vpop.xlane.xlu0 %4602
      %v4604 = vmul.f32 %v4603, 0.0069444445
      %v4605 = vmul.f32 %v4592, %v4592
      %v4606 = vmul.f32 %v4594, %v4594
      %v4607 = vsel %vm1122, %v4606, 0.0
      %v4608 = vadd.f32 %v4605, %v4607
      %4609 = vadd.xlane.f32.xlu0 %v4608
      %v4610 = vpop.xlane.xlu0 %4609
      %v4611 = vmul.f32 %v4610, 0.0069444445
      %v4612 = vmul.f32 %v4604, %v4604
      %v4613 = vsub.f32 %v4611, %v4612
      %v4614 = vmax.f32 %v4613, 0.0
      %v4615 = vsub.f32 %v4592, %v4604
      %v4616 = vsub.f32 %v4594, %v4604
      %v4617 = vadd.f32 %v4614, 1e-05
      %v4618 = vrsqrt.pop %v4617
      %v4619 = vmul.f32 %v4615, %v4618
      %v4620 = vmul.f32 %v4616, %v4618
      %v4622 = vlaneseq
      %v4623 = vshrl.u32 %v4622, 7
      %v4624 = vsub.s32 0, %v4623
      %v4625 = vrot.slane %v4597, %v4624
      %v4626 = vlaneseq
      %v4627 = vshrl.u32 %v4626, 7
      %v4628 = vsub.s32 1, %v4627
      %v4629 = vrot.slane %v4597, %v4628
      %v4632 = vmul.f32 %v4619, %v4625
      %v4633 = vmul.f32 %v4620, %v4629
      %v4635 = vlaneseq
      %v4636 = vshrl.u32 %v4635, 7
      %v4637 = vsub.s32 0, %v4636
      %v4638 = vrot.slane %v4599, %v4637
      %v4639 = vlaneseq
      %v4640 = vshrl.u32 %v4639, 7
      %v4641 = vsub.s32 1, %v4640
      %v4642 = vrot.slane %v4599, %v4641
      %v4645 = vadd.f32 %v4632, %v4638
      %v4646 = vadd.f32 %v4633, %v4642
      %v4647 = vmax.f32 %v4645, 0.0
      %v4648 = vmax.f32 %v4646, 0.0
      %s4649 = smul.u32 %s4350, 144
      %s4650 = scalar_lea.vmem %s13, %s4649
      %v4651 = vld [vmem:[%s4650] sm:$0xff]
      %v4652 = vld [vmem:[%s4650 + $0x8] sm:$0xff]
      %v4653 = vld [vmem:[%s4650 + $0x10] sm:$0xff]
      %v4654 = vld [vmem:[%s4650 + $0x18] sm:$0xff]
      %v4655 = vld [vmem:[%s4650 + $0x20] sm:$0xff]
      %v4656 = vld [vmem:[%s4650 + $0x28] sm:$0xff]
      %v4657 = vld [vmem:[%s4650 + $0x30] sm:$0xff]
      %v4658 = vld [vmem:[%s4650 + $0x38] sm:$0xff]
      %v4659 = vld [vmem:[%s4650 + $0x40] sm:$0xff]
      %v4660 = vld [vmem:[%s4650 + $0x48] sm:$0xff]
      %v4661 = vld [vmem:[%s4650 + $0x50] sm:$0xff]
      %v4662 = vld [vmem:[%s4650 + $0x58] sm:$0xff]
      %v4663 = vld [vmem:[%s4650 + $0x60] sm:$0xff]
      %v4664 = vld [vmem:[%s4650 + $0x68] sm:$0xff]
      %v4665 = vld [vmem:[%s4650 + $0x70] sm:$0xff]
      %v4666 = vld [vmem:[%s4650 + $0x78] sm:$0xff]
      %v4667 = vld [vmem:[%s4650 + $0x80] sm:$0xff]
      %v4668 = vld [vmem:[%s4650 + $0x88] sm:$0xff]
      %s4669 = scalar_lea.vmem %s14, %s4350
      %v4670 = vld [vmem:[%s4669] sm:$0x1]
      %v4672 = vlaneseq
      %v4673 = vshrl.u32 %v4672, 7
      %v4674 = vsub.s32 0, %v4673
      %v4675 = vrot.slane %v4670, %v4674
      %v4678 = vsel %vm1122, %v4648, 0
      %4680 = vmatprep.subr.mxu0 0.0
      %4681 = vmatpush1.msra.mxu0 %v4651
      %4682 = vmatprep.subr.mxu0 0.0
      %4683 = vmatpush1.msra.mxu0 %v4652
      %4684 = vmatprep.subr.mxu0 0.0
      %4685 = vmatpush1.msra.mxu0 %v4653
      %4686 = vmatprep.subr.mxu0 0.0
      %4687 = vmatpush1.msra.mxu0 %v4654
      %4688 = vmatprep.subr.mxu0 0.0
      %4689 = vmatpush1.msra.mxu0 %v4655
      %4690 = vmatprep.subr.mxu0 0.0
      %4691 = vmatpush1.msra.mxu0 %v4656
      %4692 = vmatprep.subr.mxu0 0.0
      %4693 = vmatpush1.msra.mxu0 %v4657
      %4694 = vmatprep.subr.mxu0 0.0
      %4695 = vmatpush1.msra.mxu0 %v4658
      %4696 = vmatprep.subr.mxu0 0.0
      %4697 = vmatpush1.msra.mxu0 %v4659
      %4698 = vmatprep.subr.mxu0 0.0
      %4699 = vmatpush1.msra.mxu0 %v4660
      %4700 = vmatprep.subr.mxu0 0.0
      %4701 = vmatpush1.msra.mxu0 %v4661
      %4702 = vmatprep.subr.mxu0 0.0
      %4703 = vmatpush1.msra.mxu0 %v4662
      %4704 = vmatprep.subr.mxu0 0.0
      %4705 = vmatpush1.msra.mxu0 %v4663
      %4706 = vmatprep.subr.mxu0 0.0
      %4707 = vmatpush1.msra.mxu0 %v4664
      %4708 = vmatprep.subr.mxu0 0.0
      %4709 = vmatpush1.msra.mxu0 %v4665
      %4710 = vmatprep.subr.mxu0 0.0
      %4711 = vmatpush1.msra.mxu0 %v4666
      %4712 = vmatprep.subr.mxu0 0.0
      %4713 = vmatpush1.msra.mxu0 %v4667
      %4714 = vmatprep.subr.mxu0 0.0
      %4715 = vmatpush1.msra.mxu0 %v4668
      %4716 = vmatprep.subr.mxu0 0.0
      %4717 = vmatpush1.msra.mxu0 0.0
      %4718 = vmatprep.subr.mxu0 0.0
      %4719 = vmatpush1.msra.mxu0 0.0
      %4720 = vmatprep.subr.mxu0 0.0
      %4721 = vmatpush1.msra.mxu0 0.0
      %4722 = vmatprep.subr.mxu0 0.0
      %4723 = vmatpush1.msra.mxu0 0.0
      %4724 = vmatprep.subr.mxu0 0.0
      %4725 = vmatpush1.msra.mxu0 0.0
      %4726 = vmatprep.subr.mxu0 0.0
      %4727 = vmatpush1.msra.mxu0 0.0
      %4728 = vmatprep.subr.mxu0 0.0
      %4729 = vmatpush1.msra.mxu0 0.0
      %4730 = vmatprep.subr.mxu0 0.0
      %4731 = vmatpush1.msra.mxu0 0.0
      %4732 = vmatprep.subr.mxu0 0.0
      %4733 = vmatpush1.msra.mxu0 0.0
      %4734 = vmatprep.subr.mxu0 0.0
      %4735 = vmatpush1.msra.mxu0 0.0
      %4736 = vmatprep.subr.mxu0 0.0
      %4737 = vmatpush1.msra.mxu0 0.0
      %4738 = vmatprep.subr.mxu0 0.0
      %4739 = vmatpush1.msra.mxu0 0.0
      %4740 = vmatprep.subr.mxu0 0.0
      %4741 = vmatpush1.msra.mxu0 0.0
      %4742 = vmatprep.subr.mxu0 0.0
      %4743 = vmatpush1.msra.mxu0 0.0
      %4744 = vmatprep.mubr.f32.mxu0 %v4678
      %4745 = vmatmul.mubr.f32.gmra.mrb[0].mxu0 %v4647
      %v4746 = vpop.f32.mrb[0].mxu0
      %v4747 = vadd.f32 %v4675, %v4746
      %v4748 = vpop.f32.mrb[0].mxu0
      %4749 = vdwg.mxu0
      %s4750 = scalar_lea.vmem %s15, %s4350
      %v4751 = vld [vmem:[%s4750] sm:$0x1]
      %s4752 = scalar_lea.vmem %s16, %s4350
      %v4753 = vld [vmem:[%s4752] sm:$0x1]
      %v4754 = vsel %vm840, %v4747, 0.0
      %4755 = vadd.xlane.f32.xlu0 %v4754
      %v4756 = vpop.xlane.xlu0 %4755
      %v4757 = vmul.f32 %v4756, 0.010416667
      %v4758 = vmul.f32 %v4747, %v4747
      %v4759 = vsel %vm840, %v4758, 0.0
      %4760 = vadd.xlane.f32.xlu0 %v4759
      %v4761 = vpop.xlane.xlu0 %4760
      %v4762 = vmul.f32 %v4761, 0.010416667
      %v4763 = vmul.f32 %v4757, %v4757
      %v4764 = vsub.f32 %v4762, %v4763
      %v4765 = vmax.f32 %v4764, 0.0
      %v4766 = vsub.f32 %v4747, %v4757
      %v4767 = vadd.f32 %v4765, 1e-05
      %v4768 = vrsqrt.pop %v4767
      %v4769 = vmul.f32 %v4766, %v4768
      %v4771 = vlaneseq
      %v4772 = vshrl.u32 %v4771, 7
      %v4773 = vsub.s32 0, %v4772
      %v4774 = vrot.slane %v4751, %v4773
      %v4776 = vmul.f32 %v4769, %v4774
      %v4778 = vlaneseq
      %v4779 = vshrl.u32 %v4778, 7
      %v4780 = vsub.s32 0, %v4779
      %v4781 = vrot.slane %v4753, %v4780
      %v4783 = vadd.f32 %v4776, %v4781
      %v4784 = vadd.f32 %v4349, %v4783
      %v4785 = vmax.f32 %v4784, 0.0
      %s4786 = smul.u32 %s2921, 96
      %s4787 = scalar_lea.vmem %s17, %s4786
      %v4788 = vld [vmem:[%s4787] sm:$0xff]
      %v4789 = vld [vmem:[%s4787 + $0x8] sm:$0xff]
      %v4790 = vld [vmem:[%s4787 + $0x10] sm:$0xff]
      %v4791 = vld [vmem:[%s4787 + $0x18] sm:$0xff]
      %v4792 = vld [vmem:[%s4787 + $0x20] sm:$0xff]
      %v4793 = vld [vmem:[%s4787 + $0x28] sm:$0xff]
      %v4794 = vld [vmem:[%s4787 + $0x30] sm:$0xff]
      %v4795 = vld [vmem:[%s4787 + $0x38] sm:$0xff]
      %v4796 = vld [vmem:[%s4787 + $0x40] sm:$0xff]
      %v4797 = vld [vmem:[%s4787 + $0x48] sm:$0xff]
      %v4798 = vld [vmem:[%s4787 + $0x50] sm:$0xff]
      %v4799 = vld [vmem:[%s4787 + $0x58] sm:$0xff]
      %s4800 = scalar_lea.vmem %s18, %s2921
      %v4801 = vld [vmem:[%s4800] sm:$0x1]
      %v4803 = vlaneseq
      %v4804 = vshrl.u32 %v4803, 7
      %v4805 = vsub.s32 0, %v4804
      %v4806 = vrot.slane %v4801, %v4805
      %v4809 = vsel %vm840, %v4785, 0
      %4811 = vmatprep.subr.mxu0 0.0
      %4812 = vmatpush1.msra.mxu0 %v4788
      %4813 = vmatprep.subr.mxu0 0.0
      %4814 = vmatpush1.msra.mxu0 %v4789
      %4815 = vmatprep.subr.mxu0 0.0
      %4816 = vmatpush1.msra.mxu0 %v4790
      %4817 = vmatprep.subr.mxu0 0.0
      %4818 = vmatpush1.msra.mxu0 %v4791
      %4819 = vmatprep.subr.mxu0 0.0
      %4820 = vmatpush1.msra.mxu0 %v4792
      %4821 = vmatprep.subr.mxu0 0.0
      %4822 = vmatpush1.msra.mxu0 %v4793
      %4823 = vmatprep.subr.mxu0 0.0
      %4824 = vmatpush1.msra.mxu0 %v4794
      %4825 = vmatprep.subr.mxu0 0.0
      %4826 = vmatpush1.msra.mxu0 %v4795
      %4827 = vmatprep.subr.mxu0 0.0
      %4828 = vmatpush1.msra.mxu0 %v4796
      %4829 = vmatprep.subr.mxu0 0.0
      %4830 = vmatpush1.msra.mxu0 %v4797
      %4831 = vmatprep.subr.mxu0 0.0
      %4832 = vmatpush1.msra.mxu0 %v4798
      %4833 = vmatprep.subr.mxu0 0.0
      %4834 = vmatpush1.msra.mxu0 %v4799
      %4835 = vmatprep.subr.mxu0 0.0
      %4836 = vmatpush1.msra.mxu0 0.0
      %4837 = vmatprep.subr.mxu0 0.0
      %4838 = vmatpush1.msra.mxu0 0.0
      %4839 = vmatprep.subr.mxu0 0.0
      %4840 = vmatpush1.msra.mxu0 0.0
      %4841 = vmatprep.subr.mxu0 0.0
      %4842 = vmatpush1.msra.mxu0 0.0
      %4843 = vmatprep.subr.mxu0 0.0
      %4844 = vmatpush1.msra.mxu0 0.0
      %4845 = vmatprep.subr.mxu0 0.0
      %4846 = vmatpush1.msra.mxu0 0.0
      %4847 = vmatprep.subr.mxu0 0.0
      %4848 = vmatpush1.msra.mxu0 0.0
      %4849 = vmatprep.subr.mxu0 0.0
      %4850 = vmatpush1.msra.mxu0 0.0
      %4851 = vmatprep.subr.mxu0 0.0
      %4852 = vmatpush1.msra.mxu0 0.0
      %4853 = vmatprep.subr.mxu0 0.0
      %4854 = vmatpush1.msra.mxu0 0.0
      %4855 = vmatprep.subr.mxu0 0.0
      %4856 = vmatpush1.msra.mxu0 0.0
      %4857 = vmatprep.subr.mxu0 0.0
      %4858 = vmatpush1.msra.mxu0 0.0
      %4859 = vmatprep.subr.mxu0 0.0
      %4860 = vmatpush1.msra.mxu0 0.0
      %4861 = vmatprep.subr.mxu0 0.0
      %4862 = vmatpush1.msra.mxu0 0.0
      %4863 = vmatprep.subr.mxu0 0.0
      %4864 = vmatpush1.msra.mxu0 0.0
      %4865 = vmatprep.subr.mxu0 0.0
      %4866 = vmatpush1.msra.mxu0 0.0
      %4867 = vmatprep.subr.mxu0 0.0
      %4868 = vmatpush1.msra.mxu0 0.0
      %4869 = vmatprep.subr.mxu0 0.0
      %4870 = vmatpush1.msra.mxu0 0.0
      %4871 = vmatprep.subr.mxu0 0.0
      %4872 = vmatpush1.msra.mxu0 0.0
      %4873 = vmatprep.subr.mxu0 0.0
      %4874 = vmatpush1.msra.mxu0 0.0
      %4875 = vmatprep.mubr.f32.mxu0 0.0
      %4876 = vmatmul.mubr.f32.gmra.mrb[0].mxu0 %v4809
      %v4877 = vpop.f32.mrb[0].mxu0
      %v4878 = vadd.f32 %v4806, %v4877
      %v4879 = vpop.f32.mrb[0].mxu0
      %4880 = vdwg.mxu0
      %v4881 = vmax.f32 %v4878, 0.0
      %s4882 = smul.u32 %s2921, 48
      %s4883 = scalar_lea.vmem %s19, %s4882
      %v4884 = vld [vmem:[%s4883] sm:$0xff]
      %v4885 = vld [vmem:[%s4883 + $0x8] sm:$0xff]
      %v4886 = vld [vmem:[%s4883 + $0x10] sm:$0xff]
      %v4887 = vld [vmem:[%s4883 + $0x18] sm:$0xff]
      %v4888 = vld [vmem:[%s4883 + $0x20] sm:$0xff]
      %v4889 = vld [vmem:[%s4883 + $0x28] sm:$0xff]
      %s4890 = scalar_lea.vmem %s20, %s2921
      %v4891 = vld [vmem:[%s4890] sm:$0x1]
      %v4893 = vlaneseq
      %v4894 = vshrl.u32 %v4893, 7
      %v4895 = vsub.s32 0, %v4894
      %v4896 = vrot.slane %v4891, %v4895
      %v4899 = vsel %vm2729, %v4881, 0
      %4901 = vmatprep.subr.mxu0 0.0
      %4902 = vmatpush1.msra.mxu0 %v4884
      %4903 = vmatprep.subr.mxu0 0.0
      %4904 = vmatpush1.msra.mxu0 %v4885
      %4905 = vmatprep.subr.mxu0 0.0
      %4906 = vmatpush1.msra.mxu0 %v4886
      %4907 = vmatprep.subr.mxu0 0.0
      %4908 = vmatpush1.msra.mxu0 %v4887
      %4909 = vmatprep.subr.mxu0 0.0
      %4910 = vmatpush1.msra.mxu0 %v4888
      %4911 = vmatprep.subr.mxu0 0.0
      %4912 = vmatpush1.msra.mxu0 %v4889
      %4913 = vmatprep.subr.mxu0 0.0
      %4914 = vmatpush1.msra.mxu0 0.0
      %4915 = vmatprep.subr.mxu0 0.0
      %4916 = vmatpush1.msra.mxu0 0.0
      %4917 = vmatprep.subr.mxu0 0.0
      %4918 = vmatpush1.msra.mxu0 0.0
      %4919 = vmatprep.subr.mxu0 0.0
      %4920 = vmatpush1.msra.mxu0 0.0
      %4921 = vmatprep.subr.mxu0 0.0
      %4922 = vmatpush1.msra.mxu0 0.0
      %4923 = vmatprep.subr.mxu0 0.0
      %4924 = vmatpush1.msra.mxu0 0.0
      %4925 = vmatprep.subr.mxu0 0.0
      %4926 = vmatpush1.msra.mxu0 0.0
      %4927 = vmatprep.subr.mxu0 0.0
      %4928 = vmatpush1.msra.mxu0 0.0
      %4929 = vmatprep.subr.mxu0 0.0
      %4930 = vmatpush1.msra.mxu0 0.0
      %4931 = vmatprep.subr.mxu0 0.0
      %4932 = vmatpush1.msra.mxu0 0.0
      %4933 = vmatprep.subr.mxu0 0.0
      %4934 = vmatpush1.msra.mxu0 0.0
      %4935 = vmatprep.subr.mxu0 0.0
      %4936 = vmatpush1.msra.mxu0 0.0
      %4937 = vmatprep.subr.mxu0 0.0
      %4938 = vmatpush1.msra.mxu0 0.0
      %4939 = vmatprep.subr.mxu0 0.0
      %4940 = vmatpush1.msra.mxu0 0.0
      %4941 = vmatprep.subr.mxu0 0.0
      %4942 = vmatpush1.msra.mxu0 0.0
      %4943 = vmatprep.subr.mxu0 0.0
      %4944 = vmatpush1.msra.mxu0 0.0
      %4945 = vmatprep.subr.mxu0 0.0
      %4946 = vmatpush1.msra.mxu0 0.0
      %4947 = vmatprep.subr.mxu0 0.0
      %4948 = vmatpush1.msra.mxu0 0.0
      %4949 = vmatprep.subr.mxu0 0.0
      %4950 = vmatpush1.msra.mxu0 0.0
      %4951 = vmatprep.subr.mxu0 0.0
      %4952 = vmatpush1.msra.mxu0 0.0
      %4953 = vmatprep.subr.mxu0 0.0
      %4954 = vmatpush1.msra.mxu0 0.0
      %4955 = vmatprep.subr.mxu0 0.0
      %4956 = vmatpush1.msra.mxu0 0.0
      %4957 = vmatprep.subr.mxu0 0.0
      %4958 = vmatpush1.msra.mxu0 0.0
      %4959 = vmatprep.subr.mxu0 0.0
      %4960 = vmatpush1.msra.mxu0 0.0
      %4961 = vmatprep.subr.mxu0 0.0
      %4962 = vmatpush1.msra.mxu0 0.0
      %4963 = vmatprep.subr.mxu0 0.0
      %4964 = vmatpush1.msra.mxu0 0.0
      %4965 = vmatprep.mubr.f32.mxu0 0.0
      %4966 = vmatmul.mubr.f32.gmra.mrb[0].mxu0 %v4899
      %v4967 = vpop.f32.mrb[0].mxu0
      %v4968 = vadd.f32 %v4896, %v4967
      %v4969 = vpop.f32.mrb[0].mxu0
      %4970 = vdwg.mxu0
      %v4971 = vadd.f32 %v4785, %v4968
      %v4972 = vmax.f32 %v4971, 0.0
      %s4973 = scalar_lea.vmem %s21, %s4786
      %v4974 = vld [vmem:[%s4973] sm:$0xff]
      %v4975 = vld [vmem:[%s4973 + $0x8] sm:$0xff]
      %v4976 = vld [vmem:[%s4973 + $0x10] sm:$0xff]
      %v4977 = vld [vmem:[%s4973 + $0x18] sm:$0xff]
      %v4978 = vld [vmem:[%s4973 + $0x20] sm:$0xff]
      %v4979 = vld [vmem:[%s4973 + $0x28] sm:$0xff]
      %v4980 = vld [vmem:[%s4973 + $0x30] sm:$0xff]
      %v4981 = vld [vmem:[%s4973 + $0x38] sm:$0xff]
      %v4982 = vld [vmem:[%s4973 + $0x40] sm:$0xff]
      %v4983 = vld [vmem:[%s4973 + $0x48] sm:$0xff]
      %v4984 = vld [vmem:[%s4973 + $0x50] sm:$0xff]
      %v4985 = vld [vmem:[%s4973 + $0x58] sm:$0xff]
      %s4986 = scalar_lea.vmem %s22, %s2921
      %v4987 = vld [vmem:[%s4986] sm:$0x1]
      %v4989 = vlaneseq
      %v4990 = vshrl.u32 %v4989, 7
      %v4991 = vsub.s32 0, %v4990
      %v4992 = vrot.slane %v4987, %v4991
      %v4995 = vsel %vm840, %v4972, 0
      %4997 = vmatprep.subr.mxu0 0.0
      %4998 = vmatpush1.msra.mxu0 %v4974
      %4999 = vmatprep.subr.mxu0 0.0
      %5000 = vmatpush1.msra.mxu0 %v4975
      %5001 = vmatprep.subr.mxu0 0.0
      %5002 = vmatpush1.msra.mxu0 %v4976
      %5003 = vmatprep.subr.mxu0 0.0
      %5004 = vmatpush1.msra.mxu0 %v4977
      %5005 = vmatprep.subr.mxu0 0.0
      %5006 = vmatpush1.msra.mxu0 %v4978
      %5007 = vmatprep.subr.mxu0 0.0
      %5008 = vmatpush1.msra.mxu0 %v4979
      %5009 = vmatprep.subr.mxu0 0.0
      %5010 = vmatpush1.msra.mxu0 %v4980
      %5011 = vmatprep.subr.mxu0 0.0
      %5012 = vmatpush1.msra.mxu0 %v4981
      %5013 = vmatprep.subr.mxu0 0.0
      %5014 = vmatpush1.msra.mxu0 %v4982
      %5015 = vmatprep.subr.mxu0 0.0
      %5016 = vmatpush1.msra.mxu0 %v4983
      %5017 = vmatprep.subr.mxu0 0.0
      %5018 = vmatpush1.msra.mxu0 %v4984
      %5019 = vmatprep.subr.mxu0 0.0
      %5020 = vmatpush1.msra.mxu0 %v4985
      %5021 = vmatprep.subr.mxu0 0.0
      %5022 = vmatpush1.msra.mxu0 0.0
      %5023 = vmatprep.subr.mxu0 0.0
      %5024 = vmatpush1.msra.mxu0 0.0
      %5025 = vmatprep.subr.mxu0 0.0
      %5026 = vmatpush1.msra.mxu0 0.0
      %5027 = vmatprep.subr.mxu0 0.0
      %5028 = vmatpush1.msra.mxu0 0.0
      %5029 = vmatprep.subr.mxu0 0.0
      %5030 = vmatpush1.msra.mxu0 0.0
      %5031 = vmatprep.subr.mxu0 0.0
      %5032 = vmatpush1.msra.mxu0 0.0
      %5033 = vmatprep.subr.mxu0 0.0
      %5034 = vmatpush1.msra.mxu0 0.0
      %5035 = vmatprep.subr.mxu0 0.0
      %5036 = vmatpush1.msra.mxu0 0.0
      %5037 = vmatprep.subr.mxu0 0.0
      %5038 = vmatpush1.msra.mxu0 0.0
      %5039 = vmatprep.subr.mxu0 0.0
      %5040 = vmatpush1.msra.mxu0 0.0
      %5041 = vmatprep.subr.mxu0 0.0
      %5042 = vmatpush1.msra.mxu0 0.0
      %5043 = vmatprep.subr.mxu0 0.0
      %5044 = vmatpush1.msra.mxu0 0.0
      %5045 = vmatprep.subr.mxu0 0.0
      %5046 = vmatpush1.msra.mxu0 0.0
      %5047 = vmatprep.subr.mxu0 0.0
      %5048 = vmatpush1.msra.mxu0 0.0
      %5049 = vmatprep.subr.mxu0 0.0
      %5050 = vmatpush1.msra.mxu0 0.0
      %5051 = vmatprep.subr.mxu0 0.0
      %5052 = vmatpush1.msra.mxu0 0.0
      %5053 = vmatprep.subr.mxu0 0.0
      %5054 = vmatpush1.msra.mxu0 0.0
      %5055 = vmatprep.subr.mxu0 0.0
      %5056 = vmatpush1.msra.mxu0 0.0
      %5057 = vmatprep.subr.mxu0 0.0
      %5058 = vmatpush1.msra.mxu0 0.0
      %5059 = vmatprep.subr.mxu0 0.0
      %5060 = vmatpush1.msra.mxu0 0.0
      %5061 = vmatprep.mubr.f32.mxu0 0.0
      %5062 = vmatmul.mubr.f32.gmra.mrb[0].mxu0 %v4995
      %v5063 = vpop.f32.mrb[0].mxu0
      %v5064 = vadd.f32 %v4992, %v5063
      %v5065 = vpop.f32.mrb[0].mxu0
      %5066 = vdwg.mxu0
      %v5067 = vmax.f32 %v5064, 0.0
      %s5068 = scalar_lea.vmem %s23, %s2921
      %v5069 = vld [vmem:[%s5068] sm:$0x1]
      %v5071 = vlaneseq
      %v5072 = vshrl.u32 %v5071, 7
      %v5073 = vsub.s32 0, %v5072
      %v5074 = vrot.slane %v5069, %v5073
      %v5076 = vmul.f32 %v5067, %v5074
      %v5077 = vsel %vm840, %v5076, 0.0
      %5078 = vadd.xlane.f32.xlu0 %v5077
      %v5079 = vpop.xlane.xlu0 %5078
      %s5080 = scalar_lea.vmem %s24, %s2921
      %v5081 = vld [vmem:[%s5080] sm:$0x1]
      %v5083 = vlaneseq
      %v5084 = vshrl.u32 %v5083, 7
      %v5085 = vsub.s32 0, %v5084
      %v5086 = vrot.slane %v5081, %v5085
      %v5088 = vadd.f32 %v5079, %v5086
      %v5089 = vadd.f32 %v2920, %v5088
      %v5090 = vmul.f32 %v5089, 0.5
      %v5091 = vlaneseq
      %v5092 = vand.u32 %v5091, 127
      %vm5093 = vcmp.eq.s32.totalorder %v5092, 0
      %5095 = vset.pattern.permute.xlu0 0
      %5096 = vperm.xlu0 %5095, %v5090
      %v5097 = vpop.permute.xlu0 %5096
      %v5099 = vsel %vm5093, %v5097, 0.0
      %5100 = vst [vmem:[%s742] sm:$0xff] %v5099
      %p5101 = scmp.lt.s32.totalorder %s36, 3
      %s5102 = scalar_select %p5101, %s36, 3
      %s5103 = smul.addr %s5102, 8
      %s5104 = scalar_lea.vmem %s25, %s5103
      // Predicated region
      $region121: #{doranet_forward.1} parent=119 // pred_check
        %p5105 = pneg %p579
      $region122: #{doranet_forward.1} parent=119 // pred_check_branch
        %5107 = sbr.rel (%p5105) target = $region124
      $region123: #{doranet_forward.1} parent=119 // pred_region
        _
      $region124: #{doranet_forward.1} parent=119 // pred_fallthru
        _
    $region120: #{doranet_forward.1} parent=5 // pred_fallthru
      _
    %p5108 = scmp.le.s32.totalorder 2, %s31
    // Predicated region
    $region125: #{doranet_forward.1} parent=5 // pred_check
      %p5109 = pneg %p5108
    $region126: #{doranet_forward.1} parent=5 // pred_check_branch
      %5111 = sbr.rel (%p5109) target = $region128
    $region127: #{doranet_forward.1} parent=5 // pred_region
      %s5112 = ssub.s32 %s31, 2
      // Predicated region
      $region129: #{doranet_forward.1} parent=127 // pred_check
        %p5113 = pneg %p585
      $region130: #{doranet_forward.1} parent=127 // pred_check_branch
        %5115 = sbr.rel (%p5113) target = $region132
      $region131: #{doranet_forward.1} parent=127 // pred_region
        %p5116 = scmp.lt.s32.totalorder %s37, 3
        %s5117 = scalar_select %p5116, %s37, 3
        %s5118 = smul.addr %s5117, 8
        %s5119 = scalar_lea.vmem %s25, %s5118
      $region132: #{doranet_forward.1} parent=127 // pred_fallthru
        _
    $region128: #{doranet_forward.1} parent=5 // pred_fallthru
      _
  $region6: #{doranet_forward.1} parent=0 // loop_footer
    %s35 = sadd.s32 1, %s31
  $region7: #{doranet_forward.1} parent=0 // loop_footer_branch
    %30 = sbr.rel target = $region3
  $region8: #{doranet_forward.1} parent=0 // loop_exit
    _

</llo_original>
